<compile_context>
chip_gen: v5e
topology: v5e:2x2
jax: 0.10.0
libtpu: 0.0.40
codegen_flags: <defaults>
</compile_context>

<pallas_src>
import math
from functools import partial

import jax
import jax.numpy as jnp
from jax import lax
from jax.experimental import pallas as pl
from jax.experimental.pallas import tpu as pltpu

_EPSILON = 1e-6


# ----------------------------- Pallas kernel ------------------------------
def _attention_kernel(xf_ref, xq_ref, wtT_ref, wxT_ref, bh_ref, wa_ref, ba_ref,
                      v_ref, a_ref, *, TQ, L, D, hi_diag, lo_diag):
    x_full = xf_ref[...].astype(jnp.float32)              # (C, L)   keys/values
    x_q = xq_ref[...].astype(jnp.float32)                 # (C, TQ)  query tile

    # q[i, d] = sum_c x[c, i] * Wt[c, d]  -> (TQ, D)
    q = jnp.dot(wtT_ref[...], x_q, preferred_element_type=jnp.float32).T
    q = q + bh_ref[...]                                    # + (1, D) bias
    # kT[d, j] = sum_c Wx[c, d] * x[c, j] -> (D, L)
    kT = jnp.dot(wxT_ref[...], x_full, preferred_element_type=jnp.float32)

    wa = wa_ref[...]                                       # (1, D)
    # Additive-attention logits accumulated one d-plane at a time: the largest
    # live tensor is a lane-dense (TQ, L) f32 plane, never (TQ, L, D).
    e = jnp.zeros((TQ, L), jnp.float32) + ba_ref[...]      # (1,1) broadcast
    for d in range(D):                                     # static unroll
        e = e + jnp.tanh(q[:, d:d + 1] + kT[d:d + 1, :]) * wa[:, d:d + 1]

    if hi_diag is not None:
        q0 = pl.program_id(1) * TQ
        rows = q0 + lax.broadcasted_iota(jnp.int32, (TQ, L), 0)
        cols = lax.broadcasted_iota(jnp.int32, (TQ, L), 1)
        delta = cols - rows
        mask = jnp.logical_and(delta <= hi_diag, delta >= lo_diag)
        # Mask logits BEFORE max/exp (robust softmax; review recommendation).
        e = jnp.where(mask, e, -1e30)

    p = jnp.exp(e - jnp.max(e, axis=-1, keepdims=True))
    if hi_diag is not None:
        p = jnp.where(mask, p, 0.0)        # exact zeros outside the band
    s = jnp.sum(p, axis=-1, keepdims=True)
    attn = p * (1.0 / (s + _EPSILON))      # tiny (TQ,1) divide, broadcast mult
    a_ref[...] = attn.astype(a_ref.dtype)

    # v[c, i] = sum_j x[c, j] * a[i, j]  -> written directly in NCL layout.
    v = jnp.dot(x_full, attn.T, preferred_element_type=jnp.float32)  # (C, TQ)
    v_ref[...] = v.astype(v_ref.dtype)


# ------------------------------- wrapper -----------------------------------
def attention_layer_pallas(x, Wt, Wx, bh, Wa, ba, attn_width=None):
    """x: (N, C, L); Wt, Wx: (C, D); bh: (D,); Wa: (D, 1); ba: (1,).
    Returns (v, a) with v: (N, C, L), a: (N, L, L)."""
    N, C, L = x.shape
    D = Wt.shape[1]

    # Query tile: 128 keeps (TQ, L) score planes (8,128)-aligned and adds a
    # second parallel grid axis; fall back to a single tile otherwise.
    TQ = 128 if (L % 128 == 0) else L
    n_q = L // TQ

    if attn_width is not None:
        hi_diag = attn_width // 2 - 1       # torch: .tril(attn_width // 2 - 1)
        lo_diag = (-attn_width) // 2        # torch: .triu(-attn_width // 2)
    else:
        hi_diag = lo_diag = None

    # Trace-time weight re-layout: lane-dense 2D tiles.
    wtT = jnp.transpose(Wt).astype(jnp.float32)            # (D, C)
    wxT = jnp.transpose(Wx).astype(jnp.float32)            # (D, C)
    bh_row = bh.reshape(1, D).astype(jnp.float32)           # (1, D)
    wa_row = Wa.reshape(1, D).astype(jnp.float32)           # (1, D)
    ba_2d = ba.reshape(1, 1).astype(jnp.float32)            # (1, 1)

    kernel = partial(_attention_kernel, TQ=TQ, L=L, D=D,
                     hi_diag=hi_diag, lo_diag=lo_diag)

    v, a = pl.pallas_call(
        kernel,
        out_shape=(jax.ShapeDtypeStruct((N, C, L), x.dtype),
                   jax.ShapeDtypeStruct((N, L, L), x.dtype)),
        grid=(N, n_q),
        in_specs=[
            pl.BlockSpec((None, C, L), lambda n, qi: (n, 0, 0)),    # x (keys/vals)
            pl.BlockSpec((None, C, TQ), lambda n, qi: (n, 0, qi)),  # x (query tile)
            pl.BlockSpec((D, C), lambda n, qi: (0, 0)),             # Wt^T
            pl.BlockSpec((D, C), lambda n, qi: (0, 0)),             # Wx^T
            pl.BlockSpec((1, D), lambda n, qi: (0, 0)),             # bh
            pl.BlockSpec((1, D), lambda n, qi: (0, 0)),             # Wa^T
            pl.BlockSpec((1, 1), lambda n, qi: (0, 0)),             # ba
        ],
        out_specs=(
            pl.BlockSpec((None, C, TQ), lambda n, qi: (n, 0, qi)),  # v (NCL)
            pl.BlockSpec((None, TQ, L), lambda n, qi: (n, qi, 0)),  # a
        ),
        compiler_params=pltpu.CompilerParams(
            dimension_semantics=("parallel", "parallel"),
        ),
    )(x, x, wtT, wxT, bh_row, wa_row, ba_2d)
    return v, a


# ----------------------- pure-JAX reference (PyTorch order) ----------------
def attention_layer_ref(x, Wt, Wx, bh, Wa, ba, attn_width=None):
    P = lax.Precision.HIGHEST
    xt = jnp.transpose(x, (0, 2, 1))                         # (N, L, C)
    q = jnp.einsum("nlc,cd->nld", xt, Wt, precision=P)
    k = jnp.einsum("nlc,cd->nld", xt, Wx, precision=P)
    h = jnp.tanh(q[:, :, None, :] + k[:, None, :, :] + bh)
    e = jnp.einsum("nijd,do->nijo", h, Wa, precision=P)[..., 0] + ba[0]
    e = jnp.exp(e - jnp.max(e, axis=-1, keepdims=True))
    if attn_width is not None:
        L = x.shape[-1]
        r = jnp.arange(L)[:, None]
        c = jnp.arange(L)[None, :]
        mask = (c - r <= attn_width // 2 - 1) & (c - r >= (-attn_width) // 2)
        e = jnp.where(mask, e, 0.0)
    s = jnp.sum(e, axis=-1, keepdims=True)
    a = e / (s + _EPSILON)
    v = jnp.einsum("nij,njc->nic", a, xt, precision=P)
    return jnp.transpose(v, (0, 2, 1)), a


# --------------------------------- main -------------------------------------
if __name__ == "__main__":
    N, C, L, D = 2, 16, 256, 32
    attn_width = 32

    key = jax.random.PRNGKey(0)
    kx, kwt, kwx, kwa, kbh, kba = jax.random.split(key, 6)

    def xavier(k, shape):
        bound = math.sqrt(6.0 / (shape[0] + shape[1]))
        return jax.random.uniform(k, shape, jnp.float32, -bound, bound)

    Wt = xavier(kwt, (C, D))
    Wx = xavier(kwx, (C, D))
    Wa = xavier(kwa, (D, 1))
    bh = 0.1 * jax.random.normal(kbh, (D,), jnp.float32)
    ba = 0.1 * jax.random.normal(kba, (1,), jnp.float32)
    x = jax.random.normal(kx, (N, C, L), jnp.float32)

    # windowed (banded) attention
    fwd = jax.jit(lambda xx: attention_layer_pallas(xx, Wt, Wx, bh, Wa, ba, attn_width))
    v, a = jax.block_until_ready(fwd(x))
    v_ref, a_ref = attention_layer_ref(x, Wt, Wx, bh, Wa, ba, attn_width)
    assert v.shape == (N, C, L) and a.shape == (N, L, L), (v.shape, a.shape)
    assert bool(jnp.all(jnp.isfinite(v))) and bool(jnp.all(jnp.isfinite(a)))
    err_v = float(jnp.max(jnp.abs(v - v_ref)))
    err_a = float(jnp.max(jnp.abs(a - a_ref)))
    assert err_v < 2e-3 and err_a < 2e-3, (err_v, err_a)

    # full (attn_width=None) attention path
    fwd_full = jax.jit(lambda xx: attention_layer_pallas(xx, Wt, Wx, bh, Wa, ba, None))
    v2, a2 = jax.block_until_ready(fwd_full(x))
    v2_ref, a2_ref = attention_layer_ref(x, Wt, Wx, bh, Wa, ba, None)
    assert float(jnp.max(jnp.abs(v2 - v2_ref))) < 2e-3
    assert float(jnp.max(jnp.abs(a2 - a2_ref))) < 2e-3

    print("KERNEL_OK")
</pallas_src>

<mosaic_0001>
module attributes {stable_mosaic.version = 11 : i64} {
  func.func @_attention_kernel(%arg0: i32, %arg1: i32, %arg2: memref<1x16x256xf32, #tpu.memory_space<vmem>>, %arg3: memref<1x16x128xf32, #tpu.memory_space<vmem>>, %arg4: memref<32x16xf32, #tpu.memory_space<vmem>>, %arg5: memref<32x16xf32, #tpu.memory_space<vmem>>, %arg6: memref<1x32xf32, #tpu.memory_space<vmem>>, %arg7: memref<1x32xf32, #tpu.memory_space<vmem>>, %arg8: memref<1x1xf32, #tpu.memory_space<vmem>>, %arg9: memref<1x16x128xf32, #tpu.memory_space<vmem>>, %arg10: memref<1x128x256xf32, #tpu.memory_space<vmem>>) attributes {dimension_semantics = [#tpu.dimension_semantics<parallel>, #tpu.dimension_semantics<parallel>], iteration_bounds = array<i64: 2, 2>, scalar_prefetch = 0 : i64, scratch_operands = 0 : i64, tpu.core_type = #tpu.core_type<tc>, window_params = [{transform_indices = @transform_0, window_bounds = array<i64: 1, 16, 256>}, {transform_indices = @transform_1, window_bounds = array<i64: 1, 16, 128>}, {pipeline_mode = #tpu.pipeline_mode<synchronous>, transform_indices = @transform_2, window_bounds = array<i64: 32, 16>}, {pipeline_mode = #tpu.pipeline_mode<synchronous>, transform_indices = @transform_3, window_bounds = array<i64: 32, 16>}, {pipeline_mode = #tpu.pipeline_mode<synchronous>, transform_indices = @transform_4, window_bounds = array<i64: 1, 32>}, {pipeline_mode = #tpu.pipeline_mode<synchronous>, transform_indices = @transform_5, window_bounds = array<i64: 1, 32>}, {pipeline_mode = #tpu.pipeline_mode<synchronous>, transform_indices = @transform_6, window_bounds = array<i64: 1, 1>}, {transform_indices = @transform_7, window_bounds = array<i64: 1, 16, 128>}, {transform_indices = @transform_8, window_bounds = array<i64: 1, 128, 256>}]} {
    %c0 = arith.constant 0 : index
    %c0_0 = arith.constant 0 : index
    %c0_1 = arith.constant 0 : index
    %0 = vector.load %arg2[%c0, %c0_0, %c0_1] : memref<1x16x256xf32, #tpu.memory_space<vmem>>, vector<1x16x256xf32>
    %1 = vector.shape_cast %0 : vector<1x16x256xf32> to vector<16x256xf32>
    %c0_2 = arith.constant 0 : index
    %c0_3 = arith.constant 0 : index
    %c0_4 = arith.constant 0 : index
    %2 = vector.load %arg3[%c0_2, %c0_3, %c0_4] : memref<1x16x128xf32, #tpu.memory_space<vmem>>, vector<1x16x128xf32>
    %3 = vector.shape_cast %2 : vector<1x16x128xf32> to vector<16x128xf32>
    %c0_5 = arith.constant 0 : index
    %c0_6 = arith.constant 0 : index
    %4 = vector.load %arg4[%c0_5, %c0_6] : memref<32x16xf32, #tpu.memory_space<vmem>>, vector<32x16xf32>
    %cst = arith.constant dense<0.000000e+00> : vector<32x128xf32>
    %5 = tpu.matmul %4, %3, %cst {dimension_numbers = #tpu.dot_dimension_numbers<[1], [0], [0], [1], [0, 0, 1, 1], [], []>} : vector<32x16xf32>, vector<16x128xf32>, vector<32x128xf32> -> vector<32x128xf32>
    %6 = tpu.transpose %5, [1, 0] : vector<32x128xf32> -> vector<128x32xf32>
    %c0_7 = arith.constant 0 : index
    %c0_8 = arith.constant 0 : index
    %7 = vector.load %arg6[%c0_7, %c0_8] : memref<1x32xf32, #tpu.memory_space<vmem>>, vector<1x32xf32>
    %8 = vector.broadcast %7 : vector<1x32xf32> to vector<128x32xf32>
    %9 = arith.addf %6, %8 : vector<128x32xf32>
    %c0_9 = arith.constant 0 : index
    %c0_10 = arith.constant 0 : index
    %10 = vector.load %arg5[%c0_9, %c0_10] : memref<32x16xf32, #tpu.memory_space<vmem>>, vector<32x16xf32>
    %cst_11 = arith.constant dense<0.000000e+00> : vector<32x256xf32>
    %11 = tpu.matmul %10, %1, %cst_11 {dimension_numbers = #tpu.dot_dimension_numbers<[1], [0], [0], [1], [0, 0, 1, 1], [], []>} : vector<32x16xf32>, vector<16x256xf32>, vector<32x256xf32> -> vector<32x256xf32>
    %c0_12 = arith.constant 0 : index
    %c0_13 = arith.constant 0 : index
    %12 = vector.load %arg7[%c0_12, %c0_13] : memref<1x32xf32, #tpu.memory_space<vmem>>, vector<1x32xf32>
    %cst_14 = arith.constant 0.000000e+00 : f32
    %13 = vector.broadcast %cst_14 : f32 to vector<128x256xf32>
    %c0_15 = arith.constant 0 : index
    %c0_16 = arith.constant 0 : index
    %14 = vector.load %arg8[%c0_15, %c0_16] : memref<1x1xf32, #tpu.memory_space<vmem>>, vector<1x1xf32>
    %15 = vector.broadcast %14 : vector<1x1xf32> to vector<128x256xf32>
    %16 = arith.addf %13, %15 : vector<128x256xf32>
    %17 = vector.extract_strided_slice %9 {offsets = [0, 0], sizes = [128, 1], strides = [1, 1]} : vector<128x32xf32> to vector<128x1xf32>
    %18 = vector.extract_strided_slice %11 {offsets = [0, 0], sizes = [1, 256], strides = [1, 1]} : vector<32x256xf32> to vector<1x256xf32>
    %19 = vector.broadcast %17 : vector<128x1xf32> to vector<128x256xf32>
    %20 = vector.broadcast %18 : vector<1x256xf32> to vector<128x256xf32>
    %21 = arith.addf %19, %20 : vector<128x256xf32>
    %22 = math.tanh %21 : vector<128x256xf32>
    %23 = vector.extract_strided_slice %12 {offsets = [0, 0], sizes = [1, 1], strides = [1, 1]} : vector<1x32xf32> to vector<1x1xf32>
    %24 = vector.broadcast %23 : vector<1x1xf32> to vector<128x256xf32>
    %25 = arith.mulf %22, %24 : vector<128x256xf32>
    %26 = arith.addf %16, %25 : vector<128x256xf32>
    %27 = vector.extract_strided_slice %9 {offsets = [0, 1], sizes = [128, 1], strides = [1, 1]} : vector<128x32xf32> to vector<128x1xf32>
    %28 = vector.extract_strided_slice %11 {offsets = [1, 0], sizes = [1, 256], strides = [1, 1]} : vector<32x256xf32> to vector<1x256xf32>
    %29 = vector.broadcast %27 : vector<128x1xf32> to vector<128x256xf32>
    %30 = vector.broadcast %28 : vector<1x256xf32> to vector<128x256xf32>
    %31 = arith.addf %29, %30 : vector<128x256xf32>
    %32 = math.tanh %31 : vector<128x256xf32>
    %33 = vector.extract_strided_slice %12 {offsets = [0, 1], sizes = [1, 1], strides = [1, 1]} : vector<1x32xf32> to vector<1x1xf32>
    %34 = vector.broadcast %33 : vector<1x1xf32> to vector<128x256xf32>
    %35 = arith.mulf %32, %34 : vector<128x256xf32>
    %36 = arith.addf %26, %35 : vector<128x256xf32>
    %37 = vector.extract_strided_slice %9 {offsets = [0, 2], sizes = [128, 1], strides = [1, 1]} : vector<128x32xf32> to vector<128x1xf32>
    %38 = vector.extract_strided_slice %11 {offsets = [2, 0], sizes = [1, 256], strides = [1, 1]} : vector<32x256xf32> to vector<1x256xf32>
    %39 = vector.broadcast %37 : vector<128x1xf32> to vector<128x256xf32>
    %40 = vector.broadcast %38 : vector<1x256xf32> to vector<128x256xf32>
    %41 = arith.addf %39, %40 : vector<128x256xf32>
    %42 = math.tanh %41 : vector<128x256xf32>
    %43 = vector.extract_strided_slice %12 {offsets = [0, 2], sizes = [1, 1], strides = [1, 1]} : vector<1x32xf32> to vector<1x1xf32>
    %44 = vector.broadcast %43 : vector<1x1xf32> to vector<128x256xf32>
    %45 = arith.mulf %42, %44 : vector<128x256xf32>
    %46 = arith.addf %36, %45 : vector<128x256xf32>
    %47 = vector.extract_strided_slice %9 {offsets = [0, 3], sizes = [128, 1], strides = [1, 1]} : vector<128x32xf32> to vector<128x1xf32>
    %48 = vector.extract_strided_slice %11 {offsets = [3, 0], sizes = [1, 256], strides = [1, 1]} : vector<32x256xf32> to vector<1x256xf32>
    %49 = vector.broadcast %47 : vector<128x1xf32> to vector<128x256xf32>
    %50 = vector.broadcast %48 : vector<1x256xf32> to vector<128x256xf32>
    %51 = arith.addf %49, %50 : vector<128x256xf32>
    %52 = math.tanh %51 : vector<128x256xf32>
    %53 = vector.extract_strided_slice %12 {offsets = [0, 3], sizes = [1, 1], strides = [1, 1]} : vector<1x32xf32> to vector<1x1xf32>
    %54 = vector.broadcast %53 : vector<1x1xf32> to vector<128x256xf32>
    %55 = arith.mulf %52, %54 : vector<128x256xf32>
    %56 = arith.addf %46, %55 : vector<128x256xf32>
    %57 = vector.extract_strided_slice %9 {offsets = [0, 4], sizes = [128, 1], strides = [1, 1]} : vector<128x32xf32> to vector<128x1xf32>
    %58 = vector.extract_strided_slice %11 {offsets = [4, 0], sizes = [1, 256], strides = [1, 1]} : vector<32x256xf32> to vector<1x256xf32>
    %59 = vector.broadcast %57 : vector<128x1xf32> to vector<128x256xf32>
    %60 = vector.broadcast %58 : vector<1x256xf32> to vector<128x256xf32>
    %61 = arith.addf %59, %60 : vector<128x256xf32>
    %62 = math.tanh %61 : vector<128x256xf32>
    %63 = vector.extract_strided_slice %12 {offsets = [0, 4], sizes = [1, 1], strides = [1, 1]} : vector<1x32xf32> to vector<1x1xf32>
    %64 = vector.broadcast %63 : vector<1x1xf32> to vector<128x256xf32>
    %65 = arith.mulf %62, %64 : vector<128x256xf32>
    %66 = arith.addf %56, %65 : vector<128x256xf32>
    %67 = vector.extract_strided_slice %9 {offsets = [0, 5], sizes = [128, 1], strides = [1, 1]} : vector<128x32xf32> to vector<128x1xf32>
    %68 = vector.extract_strided_slice %11 {offsets = [5, 0], sizes = [1, 256], strides = [1, 1]} : vector<32x256xf32> to vector<1x256xf32>
    %69 = vector.broadcast %67 : vector<128x1xf32> to vector<128x256xf32>
    %70 = vector.broadcast %68 : vector<1x256xf32> to vector<128x256xf32>
    %71 = arith.addf %69, %70 : vector<128x256xf32>
    %72 = math.tanh %71 : vector<128x256xf32>
    %73 = vector.extract_strided_slice %12 {offsets = [0, 5], sizes = [1, 1], strides = [1, 1]} : vector<1x32xf32> to vector<1x1xf32>
    %74 = vector.broadcast %73 : vector<1x1xf32> to vector<128x256xf32>
    %75 = arith.mulf %72, %74 : vector<128x256xf32>
    %76 = arith.addf %66, %75 : vector<128x256xf32>
    %77 = vector.extract_strided_slice %9 {offsets = [0, 6], sizes = [128, 1], strides = [1, 1]} : vector<128x32xf32> to vector<128x1xf32>
    %78 = vector.extract_strided_slice %11 {offsets = [6, 0], sizes = [1, 256], strides = [1, 1]} : vector<32x256xf32> to vector<1x256xf32>
    %79 = vector.broadcast %77 : vector<128x1xf32> to vector<128x256xf32>
    %80 = vector.broadcast %78 : vector<1x256xf32> to vector<128x256xf32>
    %81 = arith.addf %79, %80 : vector<128x256xf32>
    %82 = math.tanh %81 : vector<128x256xf32>
    %83 = vector.extract_strided_slice %12 {offsets = [0, 6], sizes = [1, 1], strides = [1, 1]} : vector<1x32xf32> to vector<1x1xf32>
    %84 = vector.broadcast %83 : vector<1x1xf32> to vector<128x256xf32>
    %85 = arith.mulf %82, %84 : vector<128x256xf32>
    %86 = arith.addf %76, %85 : vector<128x256xf32>
    %87 = vector.extract_strided_slice %9 {offsets = [0, 7], sizes = [128, 1], strides = [1, 1]} : vector<128x32xf32> to vector<128x1xf32>
    %88 = vector.extract_strided_slice %11 {offsets = [7, 0], sizes = [1, 256], strides = [1, 1]} : vector<32x256xf32> to vector<1x256xf32>
    %89 = vector.broadcast %87 : vector<128x1xf32> to vector<128x256xf32>
    %90 = vector.broadcast %88 : vector<1x256xf32> to vector<128x256xf32>
    %91 = arith.addf %89, %90 : vector<128x256xf32>
    %92 = math.tanh %91 : vector<128x256xf32>
    %93 = vector.extract_strided_slice %12 {offsets = [0, 7], sizes = [1, 1], strides = [1, 1]} : vector<1x32xf32> to vector<1x1xf32>
    %94 = vector.broadcast %93 : vector<1x1xf32> to vector<128x256xf32>
    %95 = arith.mulf %92, %94 : vector<128x256xf32>
    %96 = arith.addf %86, %95 : vector<128x256xf32>
    %97 = vector.extract_strided_slice %9 {offsets = [0, 8], sizes = [128, 1], strides = [1, 1]} : vector<128x32xf32> to vector<128x1xf32>
    %98 = vector.extract_strided_slice %11 {offsets = [8, 0], sizes = [1, 256], strides = [1, 1]} : vector<32x256xf32> to vector<1x256xf32>
    %99 = vector.broadcast %97 : vector<128x1xf32> to vector<128x256xf32>
    %100 = vector.broadcast %98 : vector<1x256xf32> to vector<128x256xf32>
    %101 = arith.addf %99, %100 : vector<128x256xf32>
    %102 = math.tanh %101 : vector<128x256xf32>
    %103 = vector.extract_strided_slice %12 {offsets = [0, 8], sizes = [1, 1], strides = [1, 1]} : vector<1x32xf32> to vector<1x1xf32>
    %104 = vector.broadcast %103 : vector<1x1xf32> to vector<128x256xf32>
    %105 = arith.mulf %102, %104 : vector<128x256xf32>
    %106 = arith.addf %96, %105 : vector<128x256xf32>
    %107 = vector.extract_strided_slice %9 {offsets = [0, 9], sizes = [128, 1], strides = [1, 1]} : vector<128x32xf32> to vector<128x1xf32>
    %108 = vector.extract_strided_slice %11 {offsets = [9, 0], sizes = [1, 256], strides = [1, 1]} : vector<32x256xf32> to vector<1x256xf32>
    %109 = vector.broadcast %107 : vector<128x1xf32> to vector<128x256xf32>
    %110 = vector.broadcast %108 : vector<1x256xf32> to vector<128x256xf32>
    %111 = arith.addf %109, %110 : vector<128x256xf32>
    %112 = math.tanh %111 : vector<128x256xf32>
    %113 = vector.extract_strided_slice %12 {offsets = [0, 9], sizes = [1, 1], strides = [1, 1]} : vector<1x32xf32> to vector<1x1xf32>
    %114 = vector.broadcast %113 : vector<1x1xf32> to vector<128x256xf32>
    %115 = arith.mulf %112, %114 : vector<128x256xf32>
    %116 = arith.addf %106, %115 : vector<128x256xf32>
    %117 = vector.extract_strided_slice %9 {offsets = [0, 10], sizes = [128, 1], strides = [1, 1]} : vector<128x32xf32> to vector<128x1xf32>
    %118 = vector.extract_strided_slice %11 {offsets = [10, 0], sizes = [1, 256], strides = [1, 1]} : vector<32x256xf32> to vector<1x256xf32>
    %119 = vector.broadcast %117 : vector<128x1xf32> to vector<128x256xf32>
    %120 = vector.broadcast %118 : vector<1x256xf32> to vector<128x256xf32>
    %121 = arith.addf %119, %120 : vector<128x256xf32>
    %122 = math.tanh %121 : vector<128x256xf32>
    %123 = vector.extract_strided_slice %12 {offsets = [0, 10], sizes = [1, 1], strides = [1, 1]} : vector<1x32xf32> to vector<1x1xf32>
    %124 = vector.broadcast %123 : vector<1x1xf32> to vector<128x256xf32>
    %125 = arith.mulf %122, %124 : vector<128x256xf32>
    %126 = arith.addf %116, %125 : vector<128x256xf32>
    %127 = vector.extract_strided_slice %9 {offsets = [0, 11], sizes = [128, 1], strides = [1, 1]} : vector<128x32xf32> to vector<128x1xf32>
    %128 = vector.extract_strided_slice %11 {offsets = [11, 0], sizes = [1, 256], strides = [1, 1]} : vector<32x256xf32> to vector<1x256xf32>
    %129 = vector.broadcast %127 : vector<128x1xf32> to vector<128x256xf32>
    %130 = vector.broadcast %128 : vector<1x256xf32> to vector<128x256xf32>
    %131 = arith.addf %129, %130 : vector<128x256xf32>
    %132 = math.tanh %131 : vector<128x256xf32>
    %133 = vector.extract_strided_slice %12 {offsets = [0, 11], sizes = [1, 1], strides = [1, 1]} : vector<1x32xf32> to vector<1x1xf32>
    %134 = vector.broadcast %133 : vector<1x1xf32> to vector<128x256xf32>
    %135 = arith.mulf %132, %134 : vector<128x256xf32>
    %136 = arith.addf %126, %135 : vector<128x256xf32>
    %137 = vector.extract_strided_slice %9 {offsets = [0, 12], sizes = [128, 1], strides = [1, 1]} : vector<128x32xf32> to vector<128x1xf32>
    %138 = vector.extract_strided_slice %11 {offsets = [12, 0], sizes = [1, 256], strides = [1, 1]} : vector<32x256xf32> to vector<1x256xf32>
    %139 = vector.broadcast %137 : vector<128x1xf32> to vector<128x256xf32>
    %140 = vector.broadcast %138 : vector<1x256xf32> to vector<128x256xf32>
    %141 = arith.addf %139, %140 : vector<128x256xf32>
    %142 = math.tanh %141 : vector<128x256xf32>
    %143 = vector.extract_strided_slice %12 {offsets = [0, 12], sizes = [1, 1], strides = [1, 1]} : vector<1x32xf32> to vector<1x1xf32>
    %144 = vector.broadcast %143 : vector<1x1xf32> to vector<128x256xf32>
    %145 = arith.mulf %142, %144 : vector<128x256xf32>
    %146 = arith.addf %136, %145 : vector<128x256xf32>
    %147 = vector.extract_strided_slice %9 {offsets = [0, 13], sizes = [128, 1], strides = [1, 1]} : vector<128x32xf32> to vector<128x1xf32>
    %148 = vector.extract_strided_slice %11 {offsets = [13, 0], sizes = [1, 256], strides = [1, 1]} : vector<32x256xf32> to vector<1x256xf32>
    %149 = vector.broadcast %147 : vector<128x1xf32> to vector<128x256xf32>
    %150 = vector.broadcast %148 : vector<1x256xf32> to vector<128x256xf32>
    %151 = arith.addf %149, %150 : vector<128x256xf32>
    %152 = math.tanh %151 : vector<128x256xf32>
    %153 = vector.extract_strided_slice %12 {offsets = [0, 13], sizes = [1, 1], strides = [1, 1]} : vector<1x32xf32> to vector<1x1xf32>
    %154 = vector.broadcast %153 : vector<1x1xf32> to vector<128x256xf32>
    %155 = arith.mulf %152, %154 : vector<128x256xf32>
    %156 = arith.addf %146, %155 : vector<128x256xf32>
    %157 = vector.extract_strided_slice %9 {offsets = [0, 14], sizes = [128, 1], strides = [1, 1]} : vector<128x32xf32> to vector<128x1xf32>
    %158 = vector.extract_strided_slice %11 {offsets = [14, 0], sizes = [1, 256], strides = [1, 1]} : vector<32x256xf32> to vector<1x256xf32>
    %159 = vector.broadcast %157 : vector<128x1xf32> to vector<128x256xf32>
    %160 = vector.broadcast %158 : vector<1x256xf32> to vector<128x256xf32>
    %161 = arith.addf %159, %160 : vector<128x256xf32>
    %162 = math.tanh %161 : vector<128x256xf32>
    %163 = vector.extract_strided_slice %12 {offsets = [0, 14], sizes = [1, 1], strides = [1, 1]} : vector<1x32xf32> to vector<1x1xf32>
    %164 = vector.broadcast %163 : vector<1x1xf32> to vector<128x256xf32>
    %165 = arith.mulf %162, %164 : vector<128x256xf32>
    %166 = arith.addf %156, %165 : vector<128x256xf32>
    %167 = vector.extract_strided_slice %9 {offsets = [0, 15], sizes = [128, 1], strides = [1, 1]} : vector<128x32xf32> to vector<128x1xf32>
    %168 = vector.extract_strided_slice %11 {offsets = [15, 0], sizes = [1, 256], strides = [1, 1]} : vector<32x256xf32> to vector<1x256xf32>
    %169 = vector.broadcast %167 : vector<128x1xf32> to vector<128x256xf32>
    %170 = vector.broadcast %168 : vector<1x256xf32> to vector<128x256xf32>
    %171 = arith.addf %169, %170 : vector<128x256xf32>
    %172 = math.tanh %171 : vector<128x256xf32>
    %173 = vector.extract_strided_slice %12 {offsets = [0, 15], sizes = [1, 1], strides = [1, 1]} : vector<1x32xf32> to vector<1x1xf32>
    %174 = vector.broadcast %173 : vector<1x1xf32> to vector<128x256xf32>
    %175 = arith.mulf %172, %174 : vector<128x256xf32>
    %176 = arith.addf %166, %175 : vector<128x256xf32>
    %177 = vector.extract_strided_slice %9 {offsets = [0, 16], sizes = [128, 1], strides = [1, 1]} : vector<128x32xf32> to vector<128x1xf32>
    %178 = vector.extract_strided_slice %11 {offsets = [16, 0], sizes = [1, 256], strides = [1, 1]} : vector<32x256xf32> to vector<1x256xf32>
    %179 = vector.broadcast %177 : vector<128x1xf32> to vector<128x256xf32>
    %180 = vector.broadcast %178 : vector<1x256xf32> to vector<128x256xf32>
    %181 = arith.addf %179, %180 : vector<128x256xf32>
    %182 = math.tanh %181 : vector<128x256xf32>
    %183 = vector.extract_strided_slice %12 {offsets = [0, 16], sizes = [1, 1], strides = [1, 1]} : vector<1x32xf32> to vector<1x1xf32>
    %184 = vector.broadcast %183 : vector<1x1xf32> to vector<128x256xf32>
    %185 = arith.mulf %182, %184 : vector<128x256xf32>
    %186 = arith.addf %176, %185 : vector<128x256xf32>
    %187 = vector.extract_strided_slice %9 {offsets = [0, 17], sizes = [128, 1], strides = [1, 1]} : vector<128x32xf32> to vector<128x1xf32>
    %188 = vector.extract_strided_slice %11 {offsets = [17, 0], sizes = [1, 256], strides = [1, 1]} : vector<32x256xf32> to vector<1x256xf32>
    %189 = vector.broadcast %187 : vector<128x1xf32> to vector<128x256xf32>
    %190 = vector.broadcast %188 : vector<1x256xf32> to vector<128x256xf32>
    %191 = arith.addf %189, %190 : vector<128x256xf32>
    %192 = math.tanh %191 : vector<128x256xf32>
    %193 = vector.extract_strided_slice %12 {offsets = [0, 17], sizes = [1, 1], strides = [1, 1]} : vector<1x32xf32> to vector<1x1xf32>
    %194 = vector.broadcast %193 : vector<1x1xf32> to vector<128x256xf32>
    %195 = arith.mulf %192, %194 : vector<128x256xf32>
    %196 = arith.addf %186, %195 : vector<128x256xf32>
    %197 = vector.extract_strided_slice %9 {offsets = [0, 18], sizes = [128, 1], strides = [1, 1]} : vector<128x32xf32> to vector<128x1xf32>
    %198 = vector.extract_strided_slice %11 {offsets = [18, 0], sizes = [1, 256], strides = [1, 1]} : vector<32x256xf32> to vector<1x256xf32>
    %199 = vector.broadcast %197 : vector<128x1xf32> to vector<128x256xf32>
    %200 = vector.broadcast %198 : vector<1x256xf32> to vector<128x256xf32>
    %201 = arith.addf %199, %200 : vector<128x256xf32>
    %202 = math.tanh %201 : vector<128x256xf32>
    %203 = vector.extract_strided_slice %12 {offsets = [0, 18], sizes = [1, 1], strides = [1, 1]} : vector<1x32xf32> to vector<1x1xf32>
    %204 = vector.broadcast %203 : vector<1x1xf32> to vector<128x256xf32>
    %205 = arith.mulf %202, %204 : vector<128x256xf32>
    %206 = arith.addf %196, %205 : vector<128x256xf32>
    %207 = vector.extract_strided_slice %9 {offsets = [0, 19], sizes = [128, 1], strides = [1, 1]} : vector<128x32xf32> to vector<128x1xf32>
    %208 = vector.extract_strided_slice %11 {offsets = [19, 0], sizes = [1, 256], strides = [1, 1]} : vector<32x256xf32> to vector<1x256xf32>
    %209 = vector.broadcast %207 : vector<128x1xf32> to vector<128x256xf32>
    %210 = vector.broadcast %208 : vector<1x256xf32> to vector<128x256xf32>
    %211 = arith.addf %209, %210 : vector<128x256xf32>
    %212 = math.tanh %211 : vector<128x256xf32>
    %213 = vector.extract_strided_slice %12 {offsets = [0, 19], sizes = [1, 1], strides = [1, 1]} : vector<1x32xf32> to vector<1x1xf32>
    %214 = vector.broadcast %213 : vector<1x1xf32> to vector<128x256xf32>
    %215 = arith.mulf %212, %214 : vector<128x256xf32>
    %216 = arith.addf %206, %215 : vector<128x256xf32>
    %217 = vector.extract_strided_slice %9 {offsets = [0, 20], sizes = [128, 1], strides = [1, 1]} : vector<128x32xf32> to vector<128x1xf32>
    %218 = vector.extract_strided_slice %11 {offsets = [20, 0], sizes = [1, 256], strides = [1, 1]} : vector<32x256xf32> to vector<1x256xf32>
    %219 = vector.broadcast %217 : vector<128x1xf32> to vector<128x256xf32>
    %220 = vector.broadcast %218 : vector<1x256xf32> to vector<128x256xf32>
    %221 = arith.addf %219, %220 : vector<128x256xf32>
    %222 = math.tanh %221 : vector<128x256xf32>
    %223 = vector.extract_strided_slice %12 {offsets = [0, 20], sizes = [1, 1], strides = [1, 1]} : vector<1x32xf32> to vector<1x1xf32>
    %224 = vector.broadcast %223 : vector<1x1xf32> to vector<128x256xf32>
    %225 = arith.mulf %222, %224 : vector<128x256xf32>
    %226 = arith.addf %216, %225 : vector<128x256xf32>
    %227 = vector.extract_strided_slice %9 {offsets = [0, 21], sizes = [128, 1], strides = [1, 1]} : vector<128x32xf32> to vector<128x1xf32>
    %228 = vector.extract_strided_slice %11 {offsets = [21, 0], sizes = [1, 256], strides = [1, 1]} : vector<32x256xf32> to vector<1x256xf32>
    %229 = vector.broadcast %227 : vector<128x1xf32> to vector<128x256xf32>
    %230 = vector.broadcast %228 : vector<1x256xf32> to vector<128x256xf32>
    %231 = arith.addf %229, %230 : vector<128x256xf32>
    %232 = math.tanh %231 : vector<128x256xf32>
    %233 = vector.extract_strided_slice %12 {offsets = [0, 21], sizes = [1, 1], strides = [1, 1]} : vector<1x32xf32> to vector<1x1xf32>
    %234 = vector.broadcast %233 : vector<1x1xf32> to vector<128x256xf32>
    %235 = arith.mulf %232, %234 : vector<128x256xf32>
    %236 = arith.addf %226, %235 : vector<128x256xf32>
    %237 = vector.extract_strided_slice %9 {offsets = [0, 22], sizes = [128, 1], strides = [1, 1]} : vector<128x32xf32> to vector<128x1xf32>
    %238 = vector.extract_strided_slice %11 {offsets = [22, 0], sizes = [1, 256], strides = [1, 1]} : vector<32x256xf32> to vector<1x256xf32>
    %239 = vector.broadcast %237 : vector<128x1xf32> to vector<128x256xf32>
    %240 = vector.broadcast %238 : vector<1x256xf32> to vector<128x256xf32>
    %241 = arith.addf %239, %240 : vector<128x256xf32>
    %242 = math.tanh %241 : vector<128x256xf32>
    %243 = vector.extract_strided_slice %12 {offsets = [0, 22], sizes = [1, 1], strides = [1, 1]} : vector<1x32xf32> to vector<1x1xf32>
    %244 = vector.broadcast %243 : vector<1x1xf32> to vector<128x256xf32>
    %245 = arith.mulf %242, %244 : vector<128x256xf32>
    %246 = arith.addf %236, %245 : vector<128x256xf32>
    %247 = vector.extract_strided_slice %9 {offsets = [0, 23], sizes = [128, 1], strides = [1, 1]} : vector<128x32xf32> to vector<128x1xf32>
    %248 = vector.extract_strided_slice %11 {offsets = [23, 0], sizes = [1, 256], strides = [1, 1]} : vector<32x256xf32> to vector<1x256xf32>
    %249 = vector.broadcast %247 : vector<128x1xf32> to vector<128x256xf32>
    %250 = vector.broadcast %248 : vector<1x256xf32> to vector<128x256xf32>
    %251 = arith.addf %249, %250 : vector<128x256xf32>
    %252 = math.tanh %251 : vector<128x256xf32>
    %253 = vector.extract_strided_slice %12 {offsets = [0, 23], sizes = [1, 1], strides = [1, 1]} : vector<1x32xf32> to vector<1x1xf32>
    %254 = vector.broadcast %253 : vector<1x1xf32> to vector<128x256xf32>
    %255 = arith.mulf %252, %254 : vector<128x256xf32>
    %256 = arith.addf %246, %255 : vector<128x256xf32>
    %257 = vector.extract_strided_slice %9 {offsets = [0, 24], sizes = [128, 1], strides = [1, 1]} : vector<128x32xf32> to vector<128x1xf32>
    %258 = vector.extract_strided_slice %11 {offsets = [24, 0], sizes = [1, 256], strides = [1, 1]} : vector<32x256xf32> to vector<1x256xf32>
    %259 = vector.broadcast %257 : vector<128x1xf32> to vector<128x256xf32>
    %260 = vector.broadcast %258 : vector<1x256xf32> to vector<128x256xf32>
    %261 = arith.addf %259, %260 : vector<128x256xf32>
    %262 = math.tanh %261 : vector<128x256xf32>
    %263 = vector.extract_strided_slice %12 {offsets = [0, 24], sizes = [1, 1], strides = [1, 1]} : vector<1x32xf32> to vector<1x1xf32>
    %264 = vector.broadcast %263 : vector<1x1xf32> to vector<128x256xf32>
    %265 = arith.mulf %262, %264 : vector<128x256xf32>
    %266 = arith.addf %256, %265 : vector<128x256xf32>
    %267 = vector.extract_strided_slice %9 {offsets = [0, 25], sizes = [128, 1], strides = [1, 1]} : vector<128x32xf32> to vector<128x1xf32>
    %268 = vector.extract_strided_slice %11 {offsets = [25, 0], sizes = [1, 256], strides = [1, 1]} : vector<32x256xf32> to vector<1x256xf32>
    %269 = vector.broadcast %267 : vector<128x1xf32> to vector<128x256xf32>
    %270 = vector.broadcast %268 : vector<1x256xf32> to vector<128x256xf32>
    %271 = arith.addf %269, %270 : vector<128x256xf32>
    %272 = math.tanh %271 : vector<128x256xf32>
    %273 = vector.extract_strided_slice %12 {offsets = [0, 25], sizes = [1, 1], strides = [1, 1]} : vector<1x32xf32> to vector<1x1xf32>
    %274 = vector.broadcast %273 : vector<1x1xf32> to vector<128x256xf32>
    %275 = arith.mulf %272, %274 : vector<128x256xf32>
    %276 = arith.addf %266, %275 : vector<128x256xf32>
    %277 = vector.extract_strided_slice %9 {offsets = [0, 26], sizes = [128, 1], strides = [1, 1]} : vector<128x32xf32> to vector<128x1xf32>
    %278 = vector.extract_strided_slice %11 {offsets = [26, 0], sizes = [1, 256], strides = [1, 1]} : vector<32x256xf32> to vector<1x256xf32>
    %279 = vector.broadcast %277 : vector<128x1xf32> to vector<128x256xf32>
    %280 = vector.broadcast %278 : vector<1x256xf32> to vector<128x256xf32>
    %281 = arith.addf %279, %280 : vector<128x256xf32>
    %282 = math.tanh %281 : vector<128x256xf32>
    %283 = vector.extract_strided_slice %12 {offsets = [0, 26], sizes = [1, 1], strides = [1, 1]} : vector<1x32xf32> to vector<1x1xf32>
    %284 = vector.broadcast %283 : vector<1x1xf32> to vector<128x256xf32>
    %285 = arith.mulf %282, %284 : vector<128x256xf32>
    %286 = arith.addf %276, %285 : vector<128x256xf32>
    %287 = vector.extract_strided_slice %9 {offsets = [0, 27], sizes = [128, 1], strides = [1, 1]} : vector<128x32xf32> to vector<128x1xf32>
    %288 = vector.extract_strided_slice %11 {offsets = [27, 0], sizes = [1, 256], strides = [1, 1]} : vector<32x256xf32> to vector<1x256xf32>
    %289 = vector.broadcast %287 : vector<128x1xf32> to vector<128x256xf32>
    %290 = vector.broadcast %288 : vector<1x256xf32> to vector<128x256xf32>
    %291 = arith.addf %289, %290 : vector<128x256xf32>
    %292 = math.tanh %291 : vector<128x256xf32>
    %293 = vector.extract_strided_slice %12 {offsets = [0, 27], sizes = [1, 1], strides = [1, 1]} : vector<1x32xf32> to vector<1x1xf32>
    %294 = vector.broadcast %293 : vector<1x1xf32> to vector<128x256xf32>
    %295 = arith.mulf %292, %294 : vector<128x256xf32>
    %296 = arith.addf %286, %295 : vector<128x256xf32>
    %297 = vector.extract_strided_slice %9 {offsets = [0, 28], sizes = [128, 1], strides = [1, 1]} : vector<128x32xf32> to vector<128x1xf32>
    %298 = vector.extract_strided_slice %11 {offsets = [28, 0], sizes = [1, 256], strides = [1, 1]} : vector<32x256xf32> to vector<1x256xf32>
    %299 = vector.broadcast %297 : vector<128x1xf32> to vector<128x256xf32>
    %300 = vector.broadcast %298 : vector<1x256xf32> to vector<128x256xf32>
    %301 = arith.addf %299, %300 : vector<128x256xf32>
    %302 = math.tanh %301 : vector<128x256xf32>
    %303 = vector.extract_strided_slice %12 {offsets = [0, 28], sizes = [1, 1], strides = [1, 1]} : vector<1x32xf32> to vector<1x1xf32>
    %304 = vector.broadcast %303 : vector<1x1xf32> to vector<128x256xf32>
    %305 = arith.mulf %302, %304 : vector<128x256xf32>
    %306 = arith.addf %296, %305 : vector<128x256xf32>
    %307 = vector.extract_strided_slice %9 {offsets = [0, 29], sizes = [128, 1], strides = [1, 1]} : vector<128x32xf32> to vector<128x1xf32>
    %308 = vector.extract_strided_slice %11 {offsets = [29, 0], sizes = [1, 256], strides = [1, 1]} : vector<32x256xf32> to vector<1x256xf32>
    %309 = vector.broadcast %307 : vector<128x1xf32> to vector<128x256xf32>
    %310 = vector.broadcast %308 : vector<1x256xf32> to vector<128x256xf32>
    %311 = arith.addf %309, %310 : vector<128x256xf32>
    %312 = math.tanh %311 : vector<128x256xf32>
    %313 = vector.extract_strided_slice %12 {offsets = [0, 29], sizes = [1, 1], strides = [1, 1]} : vector<1x32xf32> to vector<1x1xf32>
    %314 = vector.broadcast %313 : vector<1x1xf32> to vector<128x256xf32>
    %315 = arith.mulf %312, %314 : vector<128x256xf32>
    %316 = arith.addf %306, %315 : vector<128x256xf32>
    %317 = vector.extract_strided_slice %9 {offsets = [0, 30], sizes = [128, 1], strides = [1, 1]} : vector<128x32xf32> to vector<128x1xf32>
    %318 = vector.extract_strided_slice %11 {offsets = [30, 0], sizes = [1, 256], strides = [1, 1]} : vector<32x256xf32> to vector<1x256xf32>
    %319 = vector.broadcast %317 : vector<128x1xf32> to vector<128x256xf32>
    %320 = vector.broadcast %318 : vector<1x256xf32> to vector<128x256xf32>
    %321 = arith.addf %319, %320 : vector<128x256xf32>
    %322 = math.tanh %321 : vector<128x256xf32>
    %323 = vector.extract_strided_slice %12 {offsets = [0, 30], sizes = [1, 1], strides = [1, 1]} : vector<1x32xf32> to vector<1x1xf32>
    %324 = vector.broadcast %323 : vector<1x1xf32> to vector<128x256xf32>
    %325 = arith.mulf %322, %324 : vector<128x256xf32>
    %326 = arith.addf %316, %325 : vector<128x256xf32>
    %327 = vector.extract_strided_slice %9 {offsets = [0, 31], sizes = [128, 1], strides = [1, 1]} : vector<128x32xf32> to vector<128x1xf32>
    %328 = vector.extract_strided_slice %11 {offsets = [31, 0], sizes = [1, 256], strides = [1, 1]} : vector<32x256xf32> to vector<1x256xf32>
    %329 = vector.broadcast %327 : vector<128x1xf32> to vector<128x256xf32>
    %330 = vector.broadcast %328 : vector<1x256xf32> to vector<128x256xf32>
    %331 = arith.addf %329, %330 : vector<128x256xf32>
    %332 = math.tanh %331 : vector<128x256xf32>
    %333 = vector.extract_strided_slice %12 {offsets = [0, 31], sizes = [1, 1], strides = [1, 1]} : vector<1x32xf32> to vector<1x1xf32>
    %334 = vector.broadcast %333 : vector<1x1xf32> to vector<128x256xf32>
    %335 = arith.mulf %332, %334 : vector<128x256xf32>
    %336 = arith.addf %326, %335 : vector<128x256xf32>
    %c128_i32 = arith.constant 128 : i32
    %337 = arith.muli %arg1, %c128_i32 : i32
    %338 = tpu.iota {dimensions = array<i32: 0>} : vector<128x256xi32>
    %339 = vector.broadcast %337 : i32 to vector<128x256xi32>
    %340 = arith.addi %339, %338 : vector<128x256xi32>
    %341 = tpu.iota {dimensions = array<i32: 1>} : vector<128x256xi32>
    %342 = arith.subi %341, %340 : vector<128x256xi32>
    %c15_i32 = arith.constant 15 : i32
    %343 = vector.broadcast %c15_i32 : i32 to vector<128x256xi32>
    %344 = arith.cmpi sle, %342, %343 : vector<128x256xi32>
    %c-16_i32 = arith.constant -16 : i32
    %345 = vector.broadcast %c-16_i32 : i32 to vector<128x256xi32>
    %346 = arith.cmpi sge, %342, %345 : vector<128x256xi32>
    %347 = arith.andi %344, %346 : vector<128x256xi1>
    %cst_17 = arith.constant -1.000000e+30 : f32
    %348 = vector.broadcast %cst_17 : f32 to vector<128x256xf32>
    %349 = arith.select %347, %336, %348 : vector<128x256xi1>, vector<128x256xf32>
    %cst_18 = arith.constant dense<0xFF800000> : vector<128xf32>
    %350 = vector.multi_reduction <maximumf>, %349, %cst_18 [1] : vector<128x256xf32> to vector<128xf32>
    %351 = vector.shape_cast %350 : vector<128xf32> to vector<128x1xf32>
    %352 = vector.broadcast %351 : vector<128x1xf32> to vector<128x256xf32>
    %353 = arith.subf %349, %352 : vector<128x256xf32>
    %354 = math.exp %353 : vector<128x256xf32>
    %cst_19 = arith.constant 0.000000e+00 : f32
    %355 = vector.broadcast %cst_19 : f32 to vector<128x256xf32>
    %356 = arith.select %347, %354, %355 : vector<128x256xi1>, vector<128x256xf32>
    %cst_20 = arith.constant dense<0.000000e+00> : vector<128xf32>
    %357 = vector.multi_reduction <add>, %356, %cst_20 [1] : vector<128x256xf32> to vector<128xf32>
    %358 = vector.shape_cast %357 : vector<128xf32> to vector<128x1xf32>
    %cst_21 = arith.constant 9.99999997E-7 : f32
    %359 = vector.broadcast %cst_21 : f32 to vector<128x1xf32>
    %360 = arith.addf %358, %359 : vector<128x1xf32>
    %cst_22 = arith.constant 1.000000e+00 : f32
    %361 = vector.broadcast %cst_22 : f32 to vector<128x1xf32>
    %362 = arith.divf %361, %360 : vector<128x1xf32>
    %363 = vector.broadcast %362 : vector<128x1xf32> to vector<128x256xf32>
    %364 = arith.mulf %356, %363 : vector<128x256xf32>
    %c0_23 = arith.constant 0 : index
    %c0_24 = arith.constant 0 : index
    %c0_25 = arith.constant 0 : index
    %365 = vector.load %arg10[%c0_23, %c0_24, %c0_25] : memref<1x128x256xf32, #tpu.memory_space<vmem>>, vector<1x128x256xf32>
    %366 = vector.shape_cast %365 : vector<1x128x256xf32> to vector<128x256xf32>
    %367 = vector.shape_cast %364 : vector<128x256xf32> to vector<1x128x256xf32>
    tpu.vector_store %arg10[%c0_23, %c0_24, %c0_25], %367 {strides = array<i32>} : memref<1x128x256xf32, #tpu.memory_space<vmem>>, vector<1x128x256xf32>,
    %368 = tpu.transpose %364, [1, 0] : vector<128x256xf32> -> vector<256x128xf32>
    %cst_26 = arith.constant dense<0.000000e+00> : vector<16x128xf32>
    %369 = tpu.matmul %1, %368, %cst_26 {dimension_numbers = #tpu.dot_dimension_numbers<[1], [0], [0], [1], [0, 0, 1, 1], [], []>} : vector<16x256xf32>, vector<256x128xf32>, vector<16x128xf32> -> vector<16x128xf32>
    %c0_27 = arith.constant 0 : index
    %c0_28 = arith.constant 0 : index
    %c0_29 = arith.constant 0 : index
    %370 = vector.load %arg9[%c0_27, %c0_28, %c0_29] : memref<1x16x128xf32, #tpu.memory_space<vmem>>, vector<1x16x128xf32>
    %371 = vector.shape_cast %370 : vector<1x16x128xf32> to vector<16x128xf32>
    %372 = vector.shape_cast %369 : vector<16x128xf32> to vector<1x16x128xf32>
    tpu.vector_store %arg9[%c0_27, %c0_28, %c0_29], %372 {strides = array<i32>} : memref<1x16x128xf32, #tpu.memory_space<vmem>>, vector<1x16x128xf32>,
    return
  }
  func.func @transform_0(%arg0: i32, %arg1: i32) -> (i32, i32, i32) {
    %c0_i32 = arith.constant 0 : i32
    %c0_i32_0 = arith.constant 0 : i32
    %c0_i32_1 = arith.constant 0 : i32
    return %arg0, %c0_i32, %c0_i32_0 : i32, i32, i32
  }
  func.func @transform_1(%arg0: i32, %arg1: i32) -> (i32, i32, i32) {
    %c0_i32 = arith.constant 0 : i32
    %c0_i32_0 = arith.constant 0 : i32
    return %arg0, %c0_i32, %arg1 : i32, i32, i32
  }
  func.func @transform_2(%arg0: i32, %arg1: i32) -> (i32, i32) {
    %c0_i32 = arith.constant 0 : i32
    %c0_i32_0 = arith.constant 0 : i32
    %c0_i32_1 = arith.constant 0 : i32
    return %c0_i32, %c0_i32_0 : i32, i32
  }
  func.func @transform_3(%arg0: i32, %arg1: i32) -> (i32, i32) {
    %c0_i32 = arith.constant 0 : i32
    %c0_i32_0 = arith.constant 0 : i32
    %c0_i32_1 = arith.constant 0 : i32
    return %c0_i32, %c0_i32_0 : i32, i32
  }
  func.func @transform_4(%arg0: i32, %arg1: i32) -> (i32, i32) {
    %c0_i32 = arith.constant 0 : i32
    %c0_i32_0 = arith.constant 0 : i32
    %c0_i32_1 = arith.constant 0 : i32
    return %c0_i32, %c0_i32_0 : i32, i32
  }
  func.func @transform_5(%arg0: i32, %arg1: i32) -> (i32, i32) {
    %c0_i32 = arith.constant 0 : i32
    %c0_i32_0 = arith.constant 0 : i32
    %c0_i32_1 = arith.constant 0 : i32
    return %c0_i32, %c0_i32_0 : i32, i32
  }
  func.func @transform_6(%arg0: i32, %arg1: i32) -> (i32, i32) {
    %c0_i32 = arith.constant 0 : i32
    %c0_i32_0 = arith.constant 0 : i32
    %c0_i32_1 = arith.constant 0 : i32
    return %c0_i32, %c0_i32_0 : i32, i32
  }
  func.func @transform_7(%arg0: i32, %arg1: i32) -> (i32, i32, i32) {
    %c0_i32 = arith.constant 0 : i32
    %c0_i32_0 = arith.constant 0 : i32
    return %arg0, %c0_i32, %arg1 : i32, i32, i32
  }
  func.func @transform_8(%arg0: i32, %arg1: i32) -> (i32, i32, i32) {
    %c0_i32 = arith.constant 0 : i32
    %c0_i32_0 = arith.constant 0 : i32
    return %arg0, %arg1, %c0_i32 : i32, i32, i32
  }
}

</mosaic_0001>

<llo_original>
// kernel: _lambda_.1
$region0: #{_lambda_.1}
  #allocation0 [shape = 'u32[]', space=smem, size = 0x4, offset = 0x4, fixed_abs, tag = 'smem constant byte address 0x4 - core index']
  #allocation1 [shape = 'u32[72,128]{1,0:T(1,128)}', space=vmem, size = 0x9000, scoped, tag = 'internal scratch']
  #allocation2 [shape = 'f32[1,1]{1,0:T(1,128)S(1)}', space=vmem, size = 0x200, scoped, tag = 'scoped memory for _lambda_.1']
  %s0 = inlined_call_operand.hbm [shape: f32[2,16,256], index: 0, kind: input, shape index: {}, may-alias: {0,1}]
  %s1 = inlined_call_operand.hbm [shape: f32[2,16,256], index: 1, kind: input, shape index: {}, may-alias: {0,1}]
  %s2 = inlined_call_operand.hbm [shape: f32[32,16], index: 2, kind: input, shape index: {}]
  %s3 = inlined_call_operand.hbm [shape: f32[32,16], index: 3, kind: input, shape index: {}]
  %s4 = inlined_call_operand.vmem [shape: f32[1,32], index: 4, kind: input, shape index: {}]
  %s5 = inlined_call_operand.vmem [shape: f32[1,32], index: 5, kind: input, shape index: {}]
  %s6 = inlined_call_operand.<no memory space> [shape: f32[1,1], index: 6, kind: input, shape index: {}]
  %s7 = inlined_call_operand.hbm [shape: f32[2,16,256], index: 7, kind: output, shape index: {0}]
  %s8 = inlined_call_operand.hbm [shape: f32[2,256,256], index: 8, kind: output, shape index: {1}]
  %9 = xla_tuple %s7, %s8
  %s10 = sld [smem:[#allocation0]]
  $region85: #{_lambda_.1} parent=0
    _
  %s12 = ssub.s32 1, %s10
  %s13 = scalar_select 0, %s12, %s10
  %v14 = vstv %s6
  %15 = vst [vmem:[#allocation2] sm:$0x1] %v14
  $region1: #{_lambda_.1} parent=0
    #allocation3 [shape = 'u8[32768]{0}', space=vmem, size = 0x8000, scoped, tag = 'input window, operand 0']
    #allocation4 [shape = 's32[2]{0}', space=sflag, size = 0x8, scoped, tag = 'scoped memory for _lambda_.1']
    #allocation5 [shape = 's32[2]{0}', space=sflag, size = 0x8, scoped, tag = 'scoped memory for _lambda_.1']
    #allocation6 [shape = 'u8[16384]{0}', space=vmem, size = 0x4000, scoped, tag = 'input window, operand 1']
    #allocation7 [shape = 's32[2]{0}', space=sflag, size = 0x8, scoped, tag = 'scoped memory for _lambda_.1']
    #allocation8 [shape = 'u8[16384]{0}', space=vmem, size = 0x4000, scoped, tag = 'input window, operand 2, single buffered']
    #allocation9 [shape = 'u8[16384]{0}', space=vmem, size = 0x4000, scoped, tag = 'input window, operand 3, single buffered']
    #allocation10 [shape = 's32[1]{0}', space=sflag, size = 0x4, scoped, tag = 'scoped memory for _lambda_.1']
    #allocation11 [shape = 'u8[16384]{0}', space=vmem, size = 0x4000, scoped, tag = 'output window, operand 0']
    #allocation12 [shape = 'u8[262144]{0}', space=vmem, size = 0x40000, scoped, tag = 'output window, operand 1']
    #allocation13 [shape = 's32[2]{0}', space=sflag, size = 0x8, scoped, tag = 'scoped memory for _lambda_.1']
    %16 = vsyncpa [#allocation4], 0
    %s17 = scalar_lea.sflag [#allocation4], 1
    %18 = vsyncpa %s17, 0
    %19 = vsyncpa [#allocation7], 0
    %s20 = scalar_lea.sflag [#allocation7], 1
    %21 = vsyncpa %s20, 0
    %22 = vsyncpa [#allocation10], 0
    %23 = vsyncpa [#allocation5], 0
    %s24 = scalar_lea.sflag [#allocation5], 1
    %25 = vsyncpa %s24, 0
    %26 = vsyncpa [#allocation13], 0
    %s27 = scalar_lea.sflag [#allocation13], 1
    %28 = vsyncpa %s27, 0
    loop: start=0, step=1, limit=6
    $region2: #{_lambda_.1} parent=1 // loop_pre_header
      _
    $region3: #{_lambda_.1} parent=1 // loop_header
      %s30 = sphi 0, %s34
      %p31 = scmp.ge.s32.totalorder %s30, 6
      %s37 = sphi 0, %s49
      %s38 = sphi 0, %s45
      %s39 = sphi 0, %s37
      %s40 = sphi 0, %s38
      %s41 = sphi 0, %s39
      %s42 = sphi 0, %s40
      %s52 = sphi 0, %s54
      %s55 = sphi 0, %s52
      %s56 = sphi 0, %s55
      %s72 = sphi 0, %s56
      %s80 = sphi 0, %s82
      %s83 = sphi 0, %s80
      %s84 = sphi 0, %s83
      %s100 = sphi 0, %s84
      %s104 = sphi 0, %s104
      %s106 = sphi 0, %s104
      %s107 = sphi 0, %s106
      %s121 = sphi 0, %s107
      %s125 = sphi 0, %s125
      %s127 = sphi 0, %s125
      %s128 = sphi 0, %s127
      %s142 = sphi 0, %s128
      %s146 = sphi 0, %s146
      %s148 = sphi 0, %s146
      %s149 = sphi 0, %s148
      %s163 = sphi 0, %s149
      %s167 = sphi 0, %s167
      %s169 = sphi 0, %s167
      %s170 = sphi 0, %s169
      %s184 = sphi 0, %s170
      %s188 = sphi 0, %s188
      %s190 = sphi 0, %s188
      %s191 = sphi 0, %s190
      %s205 = sphi 0, %s191
      %s213 = sphi 0, %s215
      %s216 = sphi 0, %s213
      %s217 = sphi 0, %s216
      %s233 = sphi 0, %s217
      %s241 = sphi 0, %s243
      %s244 = sphi 0, %s241
      %s245 = sphi 0, %s244
      %s261 = sphi 0, %s245
    $region4: #{_lambda_.1} parent=1 // loop_header_branch
      %33 = sbr.rel (%p31) target = $region8
    $region5: #{_lambda_.1} parent=1 // loop_body
      %s35 = ssub.s32 %s30, 1
      %s36 = ssub.s32 %s30, 2
      %s43 = sadd.s32 1, %s38
      %p44 = scmp.ge.s32.totalorder %s43, 2
      %s45 = scalar_select %p44, 0, %s43
      %s46 = sadd.s32 1, %s37
      %s47 = scalar_select %p44, %s46, %s37
      %p48 = scmp.ge.s32.totalorder %s47, 2
      %s49 = scalar_select %p48, 0, %s47
      %s50 = ssub.s32 %s37, %s49
      %p51 = scmp.eq.s32.totalorder %s50, 0
      %s53 = sadd.s32 %s52, 1
      %s54 = scalar_select %p51, %s52, %s53
      %p57 = pneg %p51
      %p58 = scmp.eq.s32.totalorder %s30, 3
      %p59 = por %p57, %p58
      %p60 = scmp.ne.s32.totalorder %s52, %s55
      %p61 = scmp.eq.s32.totalorder %s30, 0
      %p62 = por %p60, %p61
      %p63 = scmp.ne.s32.totalorder %s52, %s55
      %p64 = scmp.eq.s32.totalorder %s35, 3
      %p65 = por %p63, %p64
      %p66 = scmp.ne.s32.totalorder %s55, %s56
      %p67 = scmp.eq.s32.totalorder %s35, 0
      %p68 = por %p66, %p67
      %p69 = scmp.ne.s32.totalorder %s55, %s56
      %p70 = scmp.eq.s32.totalorder %s36, 3
      %p71 = por %p69, %p70
      %p73 = scmp.ne.s32.totalorder %s56, %s72
      %p74 = scmp.eq.s32.totalorder %s36, 0
      %p75 = por %p73, %p74
      %s76 = ssub.s32 %s37, %s49
      %s77 = ssub.s32 %s38, %s45
      %s78 = sor.u32 %s76, %s77
      %p79 = scmp.eq.s32.totalorder %s78, 0
      %s81 = sadd.s32 %s80, 1
      %s82 = scalar_select %p79, %s80, %s81
      %p85 = pneg %p79
      %p86 = scmp.eq.s32.totalorder %s30, 3
      %p87 = por %p85, %p86
      %p88 = scmp.ne.s32.totalorder %s80, %s83
      %p89 = scmp.eq.s32.totalorder %s30, 0
      %p90 = por %p88, %p89
      %p91 = scmp.ne.s32.totalorder %s80, %s83
      %p92 = scmp.eq.s32.totalorder %s35, 3
      %p93 = por %p91, %p92
      %p94 = scmp.ne.s32.totalorder %s83, %s84
      %p95 = scmp.eq.s32.totalorder %s35, 0
      %p96 = por %p94, %p95
      %p97 = scmp.ne.s32.totalorder %s83, %s84
      %p98 = scmp.eq.s32.totalorder %s36, 3
      %p99 = por %p97, %p98
      %p101 = scmp.ne.s32.totalorder %s84, %s100
      %p102 = scmp.eq.s32.totalorder %s36, 0
      %p103 = por %p101, %p102
      %s105 = sadd.s32 %s104, 1
      %p108 = scmp.eq.s32.totalorder %s30, 3
      %p109 = scmp.ne.s32.totalorder %s104, %s106
      %p110 = scmp.eq.s32.totalorder %s30, 0
      %p111 = por %p109, %p110
      %p112 = scmp.ne.s32.totalorder %s104, %s106
      %p113 = scmp.eq.s32.totalorder %s35, 3
      %p114 = por %p112, %p113
      %p115 = scmp.ne.s32.totalorder %s106, %s107
      %p116 = scmp.eq.s32.totalorder %s35, 0
      %p117 = por %p115, %p116
      %p118 = scmp.ne.s32.totalorder %s106, %s107
      %p119 = scmp.eq.s32.totalorder %s36, 3
      %p120 = por %p118, %p119
      %p122 = scmp.ne.s32.totalorder %s107, %s121
      %p123 = scmp.eq.s32.totalorder %s36, 0
      %p124 = por %p122, %p123
      %s126 = sadd.s32 %s125, 1
      %p129 = scmp.eq.s32.totalorder %s30, 3
      %p130 = scmp.ne.s32.totalorder %s125, %s127
      %p131 = scmp.eq.s32.totalorder %s30, 0
      %p132 = por %p130, %p131
      %p133 = scmp.ne.s32.totalorder %s125, %s127
      %p134 = scmp.eq.s32.totalorder %s35, 3
      %p135 = por %p133, %p134
      %p136 = scmp.ne.s32.totalorder %s127, %s128
      %p137 = scmp.eq.s32.totalorder %s35, 0
      %p138 = por %p136, %p137
      %p139 = scmp.ne.s32.totalorder %s127, %s128
      %p140 = scmp.eq.s32.totalorder %s36, 3
      %p141 = por %p139, %p140
      %p143 = scmp.ne.s32.totalorder %s128, %s142
      %p144 = scmp.eq.s32.totalorder %s36, 0
      %p145 = por %p143, %p144
      %s147 = sadd.s32 %s146, 1
      %p150 = scmp.eq.s32.totalorder %s30, 3
      %p151 = scmp.ne.s32.totalorder %s146, %s148
      %p152 = scmp.eq.s32.totalorder %s30, 0
      %p153 = por %p151, %p152
      %p154 = scmp.ne.s32.totalorder %s146, %s148
      %p155 = scmp.eq.s32.totalorder %s35, 3
      %p156 = por %p154, %p155
      %p157 = scmp.ne.s32.totalorder %s148, %s149
      %p158 = scmp.eq.s32.totalorder %s35, 0
      %p159 = por %p157, %p158
      %p160 = scmp.ne.s32.totalorder %s148, %s149
      %p161 = scmp.eq.s32.totalorder %s36, 3
      %p162 = por %p160, %p161
      %p164 = scmp.ne.s32.totalorder %s149, %s163
      %p165 = scmp.eq.s32.totalorder %s36, 0
      %p166 = por %p164, %p165
      %s168 = sadd.s32 %s167, 1
      %p171 = scmp.eq.s32.totalorder %s30, 3
      %p172 = scmp.ne.s32.totalorder %s167, %s169
      %p173 = scmp.eq.s32.totalorder %s30, 0
      %p174 = por %p172, %p173
      %p175 = scmp.ne.s32.totalorder %s167, %s169
      %p176 = scmp.eq.s32.totalorder %s35, 3
      %p177 = por %p175, %p176
      %p178 = scmp.ne.s32.totalorder %s169, %s170
      %p179 = scmp.eq.s32.totalorder %s35, 0
      %p180 = por %p178, %p179
      %p181 = scmp.ne.s32.totalorder %s169, %s170
      %p182 = scmp.eq.s32.totalorder %s36, 3
      %p183 = por %p181, %p182
      %p185 = scmp.ne.s32.totalorder %s170, %s184
      %p186 = scmp.eq.s32.totalorder %s36, 0
      %p187 = por %p185, %p186
      %s189 = sadd.s32 %s188, 1
      %p192 = scmp.eq.s32.totalorder %s30, 3
      %p193 = scmp.ne.s32.totalorder %s188, %s190
      %p194 = scmp.eq.s32.totalorder %s30, 0
      %p195 = por %p193, %p194
      %p196 = scmp.ne.s32.totalorder %s188, %s190
      %p197 = scmp.eq.s32.totalorder %s35, 3
      %p198 = por %p196, %p197
      %p199 = scmp.ne.s32.totalorder %s190, %s191
      %p200 = scmp.eq.s32.totalorder %s35, 0
      %p201 = por %p199, %p200
      %p202 = scmp.ne.s32.totalorder %s190, %s191
      %p203 = scmp.eq.s32.totalorder %s36, 3
      %p204 = por %p202, %p203
      %p206 = scmp.ne.s32.totalorder %s191, %s205
      %p207 = scmp.eq.s32.totalorder %s36, 0
      %p208 = por %p206, %p207
      %s209 = ssub.s32 %s37, %s49
      %s210 = ssub.s32 %s38, %s45
      %s211 = sor.u32 %s209, %s210
      %p212 = scmp.eq.s32.totalorder %s211, 0
      %s214 = sadd.s32 %s213, 1
      %s215 = scalar_select %p212, %s213, %s214
      %p218 = pneg %p212
      %p219 = scmp.eq.s32.totalorder %s30, 3
      %p220 = por %p218, %p219
      %p221 = scmp.ne.s32.totalorder %s213, %s216
      %p222 = scmp.eq.s32.totalorder %s30, 0
      %p223 = por %p221, %p222
      %p224 = scmp.ne.s32.totalorder %s213, %s216
      %p225 = scmp.eq.s32.totalorder %s35, 3
      %p226 = por %p224, %p225
      %p227 = scmp.ne.s32.totalorder %s216, %s217
      %p228 = scmp.eq.s32.totalorder %s35, 0
      %p229 = por %p227, %p228
      %p230 = scmp.ne.s32.totalorder %s216, %s217
      %p231 = scmp.eq.s32.totalorder %s36, 3
      %p232 = por %p230, %p231
      %p234 = scmp.ne.s32.totalorder %s217, %s233
      %p235 = scmp.eq.s32.totalorder %s36, 0
      %p236 = por %p234, %p235
      %s237 = ssub.s32 %s37, %s49
      %s238 = ssub.s32 %s38, %s45
      %s239 = sor.u32 %s237, %s238
      %p240 = scmp.eq.s32.totalorder %s239, 0
      %s242 = sadd.s32 %s241, 1
      %s243 = scalar_select %p240, %s241, %s242
      %p246 = pneg %p240
      %p247 = scmp.eq.s32.totalorder %s30, 3
      %p248 = por %p246, %p247
      %p249 = scmp.ne.s32.totalorder %s241, %s244
      %p250 = scmp.eq.s32.totalorder %s30, 0
      %p251 = por %p249, %p250
      %p252 = scmp.ne.s32.totalorder %s241, %s244
      %p253 = scmp.eq.s32.totalorder %s35, 3
      %p254 = por %p252, %p253
      %p255 = scmp.ne.s32.totalorder %s244, %s245
      %p256 = scmp.eq.s32.totalorder %s35, 0
      %p257 = por %p255, %p256
      %p258 = scmp.ne.s32.totalorder %s244, %s245
      %p259 = scmp.eq.s32.totalorder %s36, 3
      %p260 = por %p258, %p259
      %p262 = scmp.ne.s32.totalorder %s245, %s261
      %p263 = scmp.eq.s32.totalorder %s36, 0
      %p264 = por %p262, %p263
      %p265 = scmp.le.s32.totalorder 1, %s30
      %p266 = scmp.lt.s32.totalorder %s30, 5
      %p267 = pnand %p265, %p266
      %p268 = pneg %p267
      // Predicated region
      $region9: #{_lambda_.1} parent=5 // pred_check
        _
      $region10: #{_lambda_.1} parent=5 // pred_check_branch
        %270 = sbr.rel (%p267) target = $region12
      $region11: #{_lambda_.1} parent=5 // pred_region
        %s271 = ssub.s32 %s30, 1
        // Predicated region
        $region13: #{_lambda_.1} parent=11 // pred_check
          %p272 = pneg %p117
        $region14: #{_lambda_.1} parent=11 // pred_check_branch
          %274 = sbr.rel (%p272) target = $region16
        $region15: #{_lambda_.1} parent=11 // pred_region
          %276 = vsyncadd [#allocation7], 0
          %s277 = sshll.u32 %s2, 4
          %s278 = int_to_ptr.hbm [resolvable:$true] %s277
          %s279 = sshll.u32 [#allocation8], 4
          %s280 = int_to_ptr.vmem [resolvable:$true] %s279
          %285 = dma.hbm_to_vmem [thread:$0]  %s278, 512, %s280, [#allocation7], 128, 128, 8
        $region16: #{_lambda_.1} parent=11 // pred_fallthru
          _
        // Predicated region
        $region17: #{_lambda_.1} parent=11 // pred_check
          %p286 = pneg %p138
        $region18: #{_lambda_.1} parent=11 // pred_check_branch
          %288 = sbr.rel (%p286) target = $region20
        $region19: #{_lambda_.1} parent=11 // pred_region
          %290 = vsyncadd [#allocation10], 0
          %s291 = sshll.u32 %s3, 4
          %s292 = int_to_ptr.hbm [resolvable:$true] %s291
          %s293 = sshll.u32 [#allocation9], 4
          %s294 = int_to_ptr.vmem [resolvable:$true] %s293
          %299 = dma.hbm_to_vmem [thread:$0]  %s292, 512, %s294, [#allocation10], 128, 128, 8
        $region20: #{_lambda_.1} parent=11 // pred_fallthru
          _
        // Predicated region
        $region21: #{_lambda_.1} parent=11 // pred_check
          %p300 = pneg %p159
        $region22: #{_lambda_.1} parent=11 // pred_check_branch
          %302 = sbr.rel (%p300) target = $region24
        $region23: #{_lambda_.1} parent=11 // pred_region
          _
        $region24: #{_lambda_.1} parent=11 // pred_fallthru
          _
        // Predicated region
        $region25: #{_lambda_.1} parent=11 // pred_check
          %p303 = pneg %p180
        $region26: #{_lambda_.1} parent=11 // pred_check_branch
          %305 = sbr.rel (%p303) target = $region28
        $region27: #{_lambda_.1} parent=11 // pred_region
          _
        $region28: #{_lambda_.1} parent=11 // pred_fallthru
          _
        // Predicated region
        $region29: #{_lambda_.1} parent=11 // pred_check
          %p306 = pneg %p201
        $region30: #{_lambda_.1} parent=11 // pred_check_branch
          %308 = sbr.rel (%p306) target = $region32
        $region31: #{_lambda_.1} parent=11 // pred_region
          _
        $region32: #{_lambda_.1} parent=11 // pred_fallthru
          _
      $region12: #{_lambda_.1} parent=5 // pred_fallthru
        _
      %p309 = scmp.lt.s32.totalorder %s30, 4
      // Predicated region
      $region33: #{_lambda_.1} parent=5 // pred_check
        %p310 = pneg %p309
      $region34: #{_lambda_.1} parent=5 // pred_check_branch
        %312 = sbr.rel (%p310) target = $region36
      $region35: #{_lambda_.1} parent=5 // pred_region
        // Predicated region
        $region37: #{_lambda_.1} parent=35 // pred_check
          %p313 = pneg %p62
        $region38: #{_lambda_.1} parent=35 // pred_check_branch
          %315 = sbr.rel (%p313) target = $region40
        $region39: #{_lambda_.1} parent=35 // pred_region
          %s316 = sand.u32 %s52, 1
          %s317 = scalar_lea.sflag [#allocation4], %s316
          %s318 = sand.u32 %s52, 1
          %s319 = smul.addr %s318, 32
          %s320 = scalar_lea.vmem [#allocation3], %s319
          %322 = vsyncadd %s317, 0
          %s323 = smul.addr %s37, 4
          %s324 = smul.addr %s323, 8
          %s325 = scalar_lea.hbm %s0, %s324
          %s326 = sshll.u32 %s325, 4
          %s327 = int_to_ptr.hbm [resolvable:$true] %s326
          %s328 = sshll.u32 %s320, 4
          %s329 = int_to_ptr.vmem [resolvable:$true] %s328
          %334 = dma.hbm_to_vmem [thread:$0]  %s327, 512, %s329, %s317, 256, 256, 16
        $region40: #{_lambda_.1} parent=35 // pred_fallthru
          _
        // Predicated region
        $region41: #{_lambda_.1} parent=35 // pred_check
          %p335 = pneg %p90
        $region42: #{_lambda_.1} parent=35 // pred_check_branch
          %337 = sbr.rel (%p335) target = $region44
        $region43: #{_lambda_.1} parent=35 // pred_region
          %s338 = sand.u32 %s30, 1
          %s339 = scalar_lea.sflag [#allocation7], %s338
          %s340 = sand.u32 %s80, 1
          %s341 = smul.addr %s340, 16
          %s342 = scalar_lea.vmem [#allocation6], %s341
          %344 = vsyncadd %s339, 0
          %s345 = smul.addr %s37, 4
          %s346 = sadd.s32 %s38, %s345
          %s347 = smul.addr %s346, 8
          %s348 = scalar_lea.hbm %s1, %s347
          %s349 = sshll.u32 %s348, 4
          %s350 = int_to_ptr.hbm [resolvable:$true] %s349
          %s351 = sshll.u32 %s342, 4
          %s352 = int_to_ptr.vmem [resolvable:$true] %s351
          %357 = dma.hbm_to_vmem [thread:$0]  %s350, 256, %s352, %s339, 256, 128, 8
        $region44: #{_lambda_.1} parent=35 // pred_fallthru
          _
      $region36: #{_lambda_.1} parent=5 // pred_fallthru
        _
      %p358 = scmp.le.s32.totalorder 1, %s30
      %p359 = scmp.lt.s32.totalorder %s30, 5
      %p360 = pnand %p358, %p359
      %p361 = pneg %p360
      // Predicated region
      $region45: #{_lambda_.1} parent=5 // pred_check
        _
      $region46: #{_lambda_.1} parent=5 // pred_check_branch
        %363 = sbr.rel (%p360) target = $region48
      $region47: #{_lambda_.1} parent=5 // pred_region
        %s364 = ssub.s32 %s30, 1
        %s365 = sand.u32 %s55, 1
        %s366 = scalar_lea.sflag [#allocation4], %s365
        %s367 = sand.u32 %s55, 1
        %s368 = smul.addr %s367, 32
        %s369 = scalar_lea.vmem [#allocation3], %s368
        // Predicated region
        $region49: #{_lambda_.1} parent=47 // pred_check
          %p370 = pneg %p68
        $region50: #{_lambda_.1} parent=47 // pred_check_branch
          %372 = sbr.rel (%p370) target = $region52
        $region51: #{_lambda_.1} parent=47 // pred_region
          %374 = dma.done %s366, 512
        $region52: #{_lambda_.1} parent=47 // pred_fallthru
          _
        %s375 = sand.u32 %s35, 1
        %s376 = scalar_lea.sflag [#allocation7], %s375
        %s377 = sand.u32 %s83, 1
        %s378 = smul.addr %s377, 16
        %s379 = scalar_lea.vmem [#allocation6], %s378
        // Predicated region
        $region53: #{_lambda_.1} parent=47 // pred_check
          %p380 = pneg %p96
        $region54: #{_lambda_.1} parent=47 // pred_check_branch
          %382 = sbr.rel (%p380) target = $region56
        $region55: #{_lambda_.1} parent=47 // pred_region
          %384 = dma.done %s376, 256
        $region56: #{_lambda_.1} parent=47 // pred_fallthru
          _
        // Predicated region
        $region57: #{_lambda_.1} parent=47 // pred_check
          %p385 = pneg %p117
        $region58: #{_lambda_.1} parent=47 // pred_check_branch
          %387 = sbr.rel (%p385) target = $region60
        $region59: #{_lambda_.1} parent=47 // pred_region
          %389 = dma.done [#allocation7], 512
        $region60: #{_lambda_.1} parent=47 // pred_fallthru
          _
        // Predicated region
        $region61: #{_lambda_.1} parent=47 // pred_check
          %p390 = pneg %p138
        $region62: #{_lambda_.1} parent=47 // pred_check_branch
          %392 = sbr.rel (%p390) target = $region64
        $region63: #{_lambda_.1} parent=47 // pred_region
          %394 = dma.done [#allocation10], 512
        $region64: #{_lambda_.1} parent=47 // pred_fallthru
          _
        %s395 = sand.u32 %s55, 1
        %s396 = scalar_lea.sflag [#allocation4], %s395
        %s397 = sand.u32 %s55, 1
        %s398 = smul.addr %s397, 32
        %s399 = scalar_lea.vmem [#allocation3], %s398
        %p400 = pneg %p68
        %p401 = pneg %p65
        %s402 = sand.u32 %s35, 1
        %s403 = scalar_lea.sflag [#allocation7], %s402
        %s404 = sand.u32 %s83, 1
        %s405 = smul.addr %s404, 16
        %s406 = scalar_lea.vmem [#allocation6], %s405
        %p407 = pneg %p96
        %p408 = pneg %p93
        %p409 = pneg %p117
        %p410 = pneg %p114
        %p411 = pneg %p138
        %p412 = pneg %p135
        %p413 = pneg %p159
        %p414 = pneg %p156
        %p415 = pneg %p180
        %p416 = pneg %p177
        %p417 = pneg %p201
        %p418 = pneg %p198
        %p419 = pneg %p229
        %p420 = pneg %p226
        %s421 = sand.u32 %s216, 1
        %s422 = scalar_lea.sflag [#allocation5], %s421
        %s423 = sand.u32 %s216, 1
        %s424 = smul.addr %s423, 16
        %s425 = scalar_lea.vmem [#allocation11], %s424
        %p426 = pneg %p257
        %p427 = pneg %p254
        %s428 = sand.u32 %s244, 1
        %s429 = scalar_lea.sflag [#allocation13], %s428
        %s430 = sand.u32 %s244, 1
        %s431 = smul.addr %s430, 256
        %s432 = scalar_lea.vmem [#allocation12], %s431
        %s433 = smul.u32 16, %s40
        %v434 = vld [vmem:[%s369] sm:$0xff]
        %v435 = vld [vmem:[%s369 + $0x8] sm:$0xff]
        %v436 = vld [vmem:[%s369 + $0x10] sm:$0xff]
        %v437 = vld [vmem:[%s369 + $0x18] sm:$0xff]
        %v438 = vld [vmem:[%s379] sm:$0xff]
        %v439 = vld [vmem:[%s379 + $0x8] sm:$0xff]
        %v440 = vld [vmem:[#allocation8] sm:$0xff]
        %v441 = vld [vmem:[#allocation8 + $0x8] sm:$0xff]
        %v442 = vld [vmem:[#allocation8 + $0x10] sm:$0xff]
        %v443 = vld [vmem:[#allocation8 + $0x18] sm:$0xff]
        %vm444 = vcmask 130048
        %v446 = vsel %vm444, %v440, 0
        %v449 = vsel %vm444, %v441, 0
        %v452 = vsel %vm444, %v442, 0
        %v455 = vsel %vm444, %v443, 0
        %457 = vmatpush.msra.mxu0 0.0
        %458 = vmatpush.msra.mxu0 0.0
        %459 = vmatpush.msra.mxu0 0.0
        %460 = vmatpush.msra.mxu0 0.0
        %461 = vmatpush.msra.mxu0 0.0
        %462 = vmatpush.msra.mxu0 0.0
        %463 = vmatpush.msra.mxu0 0.0
        %464 = vmatpush.msra.mxu0 0.0
        %465 = vmatpush.msra.mxu0 0.0
        %466 = vmatpush.msra.mxu0 0.0
        %467 = vmatpush.msra.mxu0 0.0
        %468 = vmatpush.msra.mxu0 0.0
        %469 = vmatpush.msra.mxu0 0.0
        %470 = vmatpush.msra.mxu0 0.0
        %471 = vmatpush.msra.mxu0 %v439
        %472 = vmatpush.msra.mxu0 %v438
        %473 = vmatmul.f32.gmra.mxu0 %v446
        %v474 = vpop.f32.mrf.mxu0
        %v475 = vadd.f32 0.0, %v474
        %476 = vmatmul.f32.gmra.mxu0 %v449
        %v477 = vpop.f32.mrf.mxu0
        %v478 = vadd.f32 0.0, %v477
        %479 = vmatmul.f32.gmra.mxu0 %v452
        %v480 = vpop.f32.mrf.mxu0
        %v481 = vadd.f32 0.0, %v480
        %482 = vmatmul.f32.gmra.mxu0 %v455
        %v483 = vpop.f32.mrf.mxu0
        %v484 = vadd.f32 0.0, %v483
        %485 = vdwg.mxu0
        %486 = vxpose.xlu0.b32.start [1/16] %v475, 128
        %487 = vxpose.xlu0.b32.cont [2/16] %v478, 128
        %488 = vxpose.xlu0.b32.cont [3/16] %v481, 128
        %489 = vxpose.xlu0.b32.cont [4/16] %v484, 128
        %490 = vxpose.xlu0.b32.cont [5/16] 0.0, 128
        %491 = vxpose.xlu0.b32.cont [6/16] 0.0, 128
        %492 = vxpose.xlu0.b32.cont [7/16] 0.0, 128
        %493 = vxpose.xlu0.b32.cont [8/16] 0.0, 128
        %494 = vxpose.xlu0.b32.cont [9/16] 0.0, 128
        %495 = vxpose.xlu0.b32.cont [10/16] 0.0, 128
        %496 = vxpose.xlu0.b32.cont [11/16] 0.0, 128
        %497 = vxpose.xlu0.b32.cont [12/16] 0.0, 128
        %498 = vxpose.xlu0.b32.cont [13/16] 0.0, 128
        %499 = vxpose.xlu0.b32.cont [14/16] 0.0, 128
        %500 = vxpose.xlu0.b32.cont [15/16] 0.0, 128
        %501 = vxpose.xlu0.b32.end [16/16] 0.0, 128
        %v502 = vpop.trf.xlu0
        %v503 = vpop.trf.xlu0
        %v504 = vpop.trf.xlu0
        %v505 = vpop.trf.xlu0
        %v506 = vpop.trf.xlu0
        %v507 = vpop.trf.xlu0
        %v508 = vpop.trf.xlu0
        %v509 = vpop.trf.xlu0
        %v510 = vpop.trf.xlu0
        %v511 = vpop.trf.xlu0
        %v512 = vpop.trf.xlu0
        %v513 = vpop.trf.xlu0
        %v514 = vpop.trf.xlu0
        %v515 = vpop.trf.xlu0
        %v516 = vpop.trf.xlu0
        %v517 = vpop.trf.xlu0
        %v518 = vld [vmem:[%s4] sm:$0x1]
        %v520 = vperm.slane %v518, 0
        %v522 = vadd.f32 %v502, %v520
        %v523 = vadd.f32 %v503, %v520
        %v524 = vadd.f32 %v504, %v520
        %v525 = vadd.f32 %v505, %v520
        %v526 = vadd.f32 %v506, %v520
        %v527 = vadd.f32 %v507, %v520
        %v528 = vadd.f32 %v508, %v520
        %v529 = vadd.f32 %v509, %v520
        %v530 = vadd.f32 %v510, %v520
        %v531 = vadd.f32 %v511, %v520
        %v532 = vadd.f32 %v512, %v520
        %v533 = vadd.f32 %v513, %v520
        %v534 = vadd.f32 %v514, %v520
        %v535 = vadd.f32 %v515, %v520
        %v536 = vadd.f32 %v516, %v520
        %v537 = vadd.f32 %v517, %v520
        %v538 = vld [vmem:[#allocation9] sm:$0xff]
        %v539 = vld [vmem:[#allocation9 + $0x8] sm:$0xff]
        %v540 = vld [vmem:[#allocation9 + $0x10] sm:$0xff]
        %v541 = vld [vmem:[#allocation9 + $0x18] sm:$0xff]
        %v543 = vsel %vm444, %v538, 0
        %v546 = vsel %vm444, %v539, 0
        %v549 = vsel %vm444, %v540, 0
        %v552 = vsel %vm444, %v541, 0
        %554 = vmatpush.msra.mxu0 0.0
        %555 = vmatpush.msra.mxu0 0.0
        %556 = vmatpush.msra.mxu0 0.0
        %557 = vmatpush.msra.mxu0 0.0
        %558 = vmatpush.msra.mxu0 0.0
        %559 = vmatpush.msra.mxu0 0.0
        %560 = vmatpush.msra.mxu0 0.0
        %561 = vmatpush.msra.mxu0 0.0
        %562 = vmatpush.msra.mxu0 0.0
        %563 = vmatpush.msra.mxu0 0.0
        %564 = vmatpush.msra.mxu0 0.0
        %565 = vmatpush.msra.mxu0 0.0
        %566 = vmatpush.msra.mxu0 0.0
        %567 = vmatpush.msra.mxu0 0.0
        %568 = vmatpush.msra.mxu0 %v436
        %569 = vmatpush.msra.mxu0 %v434
        %570 = vmatmul.f32.gmra.mxu0 %v543
        %v571 = vpop.f32.mrf.mxu0
        %v572 = vadd.f32 0.0, %v571
        %573 = vmatmul.f32.gmra.mxu0 %v546
        %v574 = vpop.f32.mrf.mxu0
        %v575 = vadd.f32 0.0, %v574
        %576 = vmatmul.f32.gmra.mxu0 %v549
        %v577 = vpop.f32.mrf.mxu0
        %v578 = vadd.f32 0.0, %v577
        %579 = vmatmul.f32.gmra.mxu0 %v552
        %v580 = vpop.f32.mrf.mxu0
        %v581 = vadd.f32 0.0, %v580
        %582 = vdwg.mxu0
        %583 = vmatpush.msra.mxu0 0.0
        %584 = vmatpush.msra.mxu0 0.0
        %585 = vmatpush.msra.mxu0 0.0
        %586 = vmatpush.msra.mxu0 0.0
        %587 = vmatpush.msra.mxu0 0.0
        %588 = vmatpush.msra.mxu0 0.0
        %589 = vmatpush.msra.mxu0 0.0
        %590 = vmatpush.msra.mxu0 0.0
        %591 = vmatpush.msra.mxu0 0.0
        %592 = vmatpush.msra.mxu0 0.0
        %593 = vmatpush.msra.mxu0 0.0
        %594 = vmatpush.msra.mxu0 0.0
        %595 = vmatpush.msra.mxu0 0.0
        %596 = vmatpush.msra.mxu0 0.0
        %597 = vmatpush.msra.mxu0 %v437
        %598 = vmatpush.msra.mxu0 %v435
        %599 = vmatmul.f32.gmra.mxu0 %v543
        %v600 = vpop.f32.mrf.mxu0
        %v601 = vadd.f32 0.0, %v600
        %602 = vmatmul.f32.gmra.mxu0 %v546
        %v603 = vpop.f32.mrf.mxu0
        %v604 = vadd.f32 0.0, %v603
        %605 = vmatmul.f32.gmra.mxu0 %v549
        %v606 = vpop.f32.mrf.mxu0
        %v607 = vadd.f32 0.0, %v606
        %608 = vmatmul.f32.gmra.mxu0 %v552
        %v609 = vpop.f32.mrf.mxu0
        %v610 = vadd.f32 0.0, %v609
        %611 = vdwg.mxu0
        %v612 = vld [vmem:[%s5] sm:$0x1]
        %v613 = vld [vmem:[#allocation2] sm:$0x1]
        %v615 = vperm.slane %v613, 0
        %616 = vset.pattern.permute.xlu0 0
        %617 = vperm.xlu0 %616, %v615
        %v618 = vpop.permute.xlu0 %617
        %v620 = vadd.f32 %v618, 0.0
        %622 = vset.pattern.permute.xlu0 0
        %623 = vperm.xlu0 %622, %v522
        %v624 = vpop.permute.xlu0 %623
        %627 = vset.pattern.permute.xlu0 0
        %628 = vperm.xlu0 %627, %v523
        %v629 = vpop.permute.xlu0 %628
        %632 = vset.pattern.permute.xlu0 0
        %633 = vperm.xlu0 %632, %v524
        %v634 = vpop.permute.xlu0 %633
        %637 = vset.pattern.permute.xlu0 0
        %638 = vperm.xlu0 %637, %v525
        %v639 = vpop.permute.xlu0 %638
        %642 = vset.pattern.permute.xlu0 0
        %643 = vperm.xlu0 %642, %v526
        %v644 = vpop.permute.xlu0 %643
        %647 = vset.pattern.permute.xlu0 0
        %648 = vperm.xlu0 %647, %v527
        %v649 = vpop.permute.xlu0 %648
        %652 = vset.pattern.permute.xlu0 0
        %653 = vperm.xlu0 %652, %v528
        %v654 = vpop.permute.xlu0 %653
        %657 = vset.pattern.permute.xlu0 0
        %658 = vperm.xlu0 %657, %v529
        %v659 = vpop.permute.xlu0 %658
        %662 = vset.pattern.permute.xlu0 0
        %663 = vperm.xlu0 %662, %v530
        %v664 = vpop.permute.xlu0 %663
        %667 = vset.pattern.permute.xlu0 0
        %668 = vperm.xlu0 %667, %v531
        %v669 = vpop.permute.xlu0 %668
        %672 = vset.pattern.permute.xlu0 0
        %673 = vperm.xlu0 %672, %v532
        %v674 = vpop.permute.xlu0 %673
        %677 = vset.pattern.permute.xlu0 0
        %678 = vperm.xlu0 %677, %v533
        %v679 = vpop.permute.xlu0 %678
        %682 = vset.pattern.permute.xlu0 0
        %683 = vperm.xlu0 %682, %v534
        %v684 = vpop.permute.xlu0 %683
        %687 = vset.pattern.permute.xlu0 0
        %688 = vperm.xlu0 %687, %v535
        %v689 = vpop.permute.xlu0 %688
        %692 = vset.pattern.permute.xlu0 0
        %693 = vperm.xlu0 %692, %v536
        %v694 = vpop.permute.xlu0 %693
        %697 = vset.pattern.permute.xlu0 0
        %698 = vperm.xlu0 %697, %v537
        %v699 = vpop.permute.xlu0 %698
        %v701 = vperm.slane %v572, 0
        %v702 = vperm.slane %v601, 0
        %v703 = vadd.f32 %v624, %v701
        %v704 = vadd.f32 %v624, %v702
        %v705 = vadd.f32 %v629, %v701
        %v706 = vadd.f32 %v629, %v702
        %v707 = vadd.f32 %v634, %v701
        %v708 = vadd.f32 %v634, %v702
        %v709 = vadd.f32 %v639, %v701
        %v710 = vadd.f32 %v639, %v702
        %v711 = vadd.f32 %v644, %v701
        %v712 = vadd.f32 %v644, %v702
        %v713 = vadd.f32 %v649, %v701
        %v714 = vadd.f32 %v649, %v702
        %v715 = vadd.f32 %v654, %v701
        %v716 = vadd.f32 %v654, %v702
        %v717 = vadd.f32 %v659, %v701
        %v718 = vadd.f32 %v659, %v702
        %v719 = vadd.f32 %v664, %v701
        %v720 = vadd.f32 %v664, %v702
        %v721 = vadd.f32 %v669, %v701
        %v722 = vadd.f32 %v669, %v702
        %v723 = vadd.f32 %v674, %v701
        %v724 = vadd.f32 %v674, %v702
        %v725 = vadd.f32 %v679, %v701
        %v726 = vadd.f32 %v679, %v702
        %v727 = vadd.f32 %v684, %v701
        %v728 = vadd.f32 %v684, %v702
        %v729 = vadd.f32 %v689, %v701
        %v730 = vadd.f32 %v689, %v702
        %v731 = vadd.f32 %v694, %v701
        %v732 = vadd.f32 %v694, %v702
        %v733 = vadd.f32 %v699, %v701
        %v734 = vadd.f32 %v699, %v702
        %v735 = vtanh.pop %v703
        %v736 = vtanh.pop %v704
        %v737 = vtanh.pop %v705
        %v738 = vtanh.pop %v706
        %v739 = vtanh.pop %v707
        %v740 = vtanh.pop %v708
        %v741 = vtanh.pop %v709
        %v742 = vtanh.pop %v710
        %v743 = vtanh.pop %v711
        %v744 = vtanh.pop %v712
        %v745 = vtanh.pop %v713
        %v746 = vtanh.pop %v714
        %v747 = vtanh.pop %v715
        %v748 = vtanh.pop %v716
        %v749 = vtanh.pop %v717
        %v750 = vtanh.pop %v718
        %v751 = vtanh.pop %v719
        %v752 = vtanh.pop %v720
        %v753 = vtanh.pop %v721
        %v754 = vtanh.pop %v722
        %v755 = vtanh.pop %v723
        %v756 = vtanh.pop %v724
        %v757 = vtanh.pop %v725
        %v758 = vtanh.pop %v726
        %v759 = vtanh.pop %v727
        %v760 = vtanh.pop %v728
        %v761 = vtanh.pop %v729
        %v762 = vtanh.pop %v730
        %v763 = vtanh.pop %v731
        %v764 = vtanh.pop %v732
        %v765 = vtanh.pop %v733
        %v766 = vtanh.pop %v734
        %v768 = vperm.slane %v612, 0
        %769 = vset.pattern.permute.xlu0 0
        %770 = vperm.xlu0 %769, %v768
        %v771 = vpop.permute.xlu0 %770
        %v773 = vmul.f32 %v735, %v771
        %v774 = vmul.f32 %v736, %v771
        %v775 = vmul.f32 %v737, %v771
        %v776 = vmul.f32 %v738, %v771
        %v777 = vmul.f32 %v739, %v771
        %v778 = vmul.f32 %v740, %v771
        %v779 = vmul.f32 %v741, %v771
        %v780 = vmul.f32 %v742, %v771
        %v781 = vmul.f32 %v743, %v771
        %v782 = vmul.f32 %v744, %v771
        %v783 = vmul.f32 %v745, %v771
        %v784 = vmul.f32 %v746, %v771
        %v785 = vmul.f32 %v747, %v771
        %v786 = vmul.f32 %v748, %v771
        %v787 = vmul.f32 %v749, %v771
        %v788 = vmul.f32 %v750, %v771
        %v789 = vmul.f32 %v751, %v771
        %v790 = vmul.f32 %v752, %v771
        %v791 = vmul.f32 %v753, %v771
        %v792 = vmul.f32 %v754, %v771
        %v793 = vmul.f32 %v755, %v771
        %v794 = vmul.f32 %v756, %v771
        %v795 = vmul.f32 %v757, %v771
        %v796 = vmul.f32 %v758, %v771
        %v797 = vmul.f32 %v759, %v771
        %v798 = vmul.f32 %v760, %v771
        %v799 = vmul.f32 %v761, %v771
        %v800 = vmul.f32 %v762, %v771
        %v801 = vmul.f32 %v763, %v771
        %v802 = vmul.f32 %v764, %v771
        %v803 = vmul.f32 %v765, %v771
        %v804 = vmul.f32 %v766, %v771
        %v805 = vadd.f32 %v620, %v773
        %v806 = vadd.f32 %v620, %v774
        %v807 = vadd.f32 %v620, %v775
        %v808 = vadd.f32 %v620, %v776
        %v809 = vadd.f32 %v620, %v777
        %v810 = vadd.f32 %v620, %v778
        %v811 = vadd.f32 %v620, %v779
        %v812 = vadd.f32 %v620, %v780
        %v813 = vadd.f32 %v620, %v781
        %v814 = vadd.f32 %v620, %v782
        %v815 = vadd.f32 %v620, %v783
        %v816 = vadd.f32 %v620, %v784
        %v817 = vadd.f32 %v620, %v785
        %v818 = vadd.f32 %v620, %v786
        %v819 = vadd.f32 %v620, %v787
        %v820 = vadd.f32 %v620, %v788
        %v821 = vadd.f32 %v620, %v789
        %v822 = vadd.f32 %v620, %v790
        %v823 = vadd.f32 %v620, %v791
        %v824 = vadd.f32 %v620, %v792
        %v825 = vadd.f32 %v620, %v793
        %v826 = vadd.f32 %v620, %v794
        %v827 = vadd.f32 %v620, %v795
        %v828 = vadd.f32 %v620, %v796
        %v829 = vadd.f32 %v620, %v797
        %v830 = vadd.f32 %v620, %v798
        %v831 = vadd.f32 %v620, %v799
        %v832 = vadd.f32 %v620, %v800
        %v833 = vadd.f32 %v620, %v801
        %v834 = vadd.f32 %v620, %v802
        %v835 = vadd.f32 %v620, %v803
        %v836 = vadd.f32 %v620, %v804
        %837 = vset.pattern.permute.xlu0 1
        %838 = vperm.xlu0 %837, %v522
        %v839 = vpop.permute.xlu0 %838
        %841 = vset.pattern.permute.xlu0 1
        %842 = vperm.xlu0 %841, %v523
        %v843 = vpop.permute.xlu0 %842
        %845 = vset.pattern.permute.xlu0 1
        %846 = vperm.xlu0 %845, %v524
        %v847 = vpop.permute.xlu0 %846
        %849 = vset.pattern.permute.xlu0 1
        %850 = vperm.xlu0 %849, %v525
        %v851 = vpop.permute.xlu0 %850
        %853 = vset.pattern.permute.xlu0 1
        %854 = vperm.xlu0 %853, %v526
        %v855 = vpop.permute.xlu0 %854
        %857 = vset.pattern.permute.xlu0 1
        %858 = vperm.xlu0 %857, %v527
        %v859 = vpop.permute.xlu0 %858
        %861 = vset.pattern.permute.xlu0 1
        %862 = vperm.xlu0 %861, %v528
        %v863 = vpop.permute.xlu0 %862
        %865 = vset.pattern.permute.xlu0 1
        %866 = vperm.xlu0 %865, %v529
        %v867 = vpop.permute.xlu0 %866
        %869 = vset.pattern.permute.xlu0 1
        %870 = vperm.xlu0 %869, %v530
        %v871 = vpop.permute.xlu0 %870
        %873 = vset.pattern.permute.xlu0 1
        %874 = vperm.xlu0 %873, %v531
        %v875 = vpop.permute.xlu0 %874
        %877 = vset.pattern.permute.xlu0 1
        %878 = vperm.xlu0 %877, %v532
        %v879 = vpop.permute.xlu0 %878
        %881 = vset.pattern.permute.xlu0 1
        %882 = vperm.xlu0 %881, %v533
        %v883 = vpop.permute.xlu0 %882
        %885 = vset.pattern.permute.xlu0 1
        %886 = vperm.xlu0 %885, %v534
        %v887 = vpop.permute.xlu0 %886
        %889 = vset.pattern.permute.xlu0 1
        %890 = vperm.xlu0 %889, %v535
        %v891 = vpop.permute.xlu0 %890
        %893 = vset.pattern.permute.xlu0 1
        %894 = vperm.xlu0 %893, %v536
        %v895 = vpop.permute.xlu0 %894
        %897 = vset.pattern.permute.xlu0 1
        %898 = vperm.xlu0 %897, %v537
        %v899 = vpop.permute.xlu0 %898
        %v901 = vperm.slane %v572, 1
        %v902 = vperm.slane %v601, 1
        %v903 = vadd.f32 %v839, %v901
        %v904 = vadd.f32 %v839, %v902
        %v905 = vadd.f32 %v843, %v901
        %v906 = vadd.f32 %v843, %v902
        %v907 = vadd.f32 %v847, %v901
        %v908 = vadd.f32 %v847, %v902
        %v909 = vadd.f32 %v851, %v901
        %v910 = vadd.f32 %v851, %v902
        %v911 = vadd.f32 %v855, %v901
        %v912 = vadd.f32 %v855, %v902
        %v913 = vadd.f32 %v859, %v901
        %v914 = vadd.f32 %v859, %v902
        %v915 = vadd.f32 %v863, %v901
        %v916 = vadd.f32 %v863, %v902
        %v917 = vadd.f32 %v867, %v901
        %v918 = vadd.f32 %v867, %v902
        %v919 = vadd.f32 %v871, %v901
        %v920 = vadd.f32 %v871, %v902
        %v921 = vadd.f32 %v875, %v901
        %v922 = vadd.f32 %v875, %v902
        %v923 = vadd.f32 %v879, %v901
        %v924 = vadd.f32 %v879, %v902
        %v925 = vadd.f32 %v883, %v901
        %v926 = vadd.f32 %v883, %v902
        %v927 = vadd.f32 %v887, %v901
        %v928 = vadd.f32 %v887, %v902
        %v929 = vadd.f32 %v891, %v901
        %v930 = vadd.f32 %v891, %v902
        %v931 = vadd.f32 %v895, %v901
        %v932 = vadd.f32 %v895, %v902
        %v933 = vadd.f32 %v899, %v901
        %v934 = vadd.f32 %v899, %v902
        %v935 = vtanh.pop %v903
        %v936 = vtanh.pop %v904
        %v937 = vtanh.pop %v905
        %v938 = vtanh.pop %v906
        %v939 = vtanh.pop %v907
        %v940 = vtanh.pop %v908
        %v941 = vtanh.pop %v909
        %v942 = vtanh.pop %v910
        %v943 = vtanh.pop %v911
        %v944 = vtanh.pop %v912
        %v945 = vtanh.pop %v913
        %v946 = vtanh.pop %v914
        %v947 = vtanh.pop %v915
        %v948 = vtanh.pop %v916
        %v949 = vtanh.pop %v917
        %v950 = vtanh.pop %v918
        %v951 = vtanh.pop %v919
        %v952 = vtanh.pop %v920
        %v953 = vtanh.pop %v921
        %v954 = vtanh.pop %v922
        %v955 = vtanh.pop %v923
        %v956 = vtanh.pop %v924
        %v957 = vtanh.pop %v925
        %v958 = vtanh.pop %v926
        %v959 = vtanh.pop %v927
        %v960 = vtanh.pop %v928
        %v961 = vtanh.pop %v929
        %v962 = vtanh.pop %v930
        %v963 = vtanh.pop %v931
        %v964 = vtanh.pop %v932
        %v965 = vtanh.pop %v933
        %v966 = vtanh.pop %v934
        %967 = vset.pattern.permute.xlu0 1
        %968 = vperm.xlu0 %967, %v768
        %v969 = vpop.permute.xlu0 %968
        %v971 = vmul.f32 %v935, %v969
        %v972 = vmul.f32 %v936, %v969
        %v973 = vmul.f32 %v937, %v969
        %v974 = vmul.f32 %v938, %v969
        %v975 = vmul.f32 %v939, %v969
        %v976 = vmul.f32 %v940, %v969
        %v977 = vmul.f32 %v941, %v969
        %v978 = vmul.f32 %v942, %v969
        %v979 = vmul.f32 %v943, %v969
        %v980 = vmul.f32 %v944, %v969
        %v981 = vmul.f32 %v945, %v969
        %v982 = vmul.f32 %v946, %v969
        %v983 = vmul.f32 %v947, %v969
        %v984 = vmul.f32 %v948, %v969
        %v985 = vmul.f32 %v949, %v969
        %v986 = vmul.f32 %v950, %v969
        %v987 = vmul.f32 %v951, %v969
        %v988 = vmul.f32 %v952, %v969
        %v989 = vmul.f32 %v953, %v969
        %v990 = vmul.f32 %v954, %v969
        %v991 = vmul.f32 %v955, %v969
        %v992 = vmul.f32 %v956, %v969
        %v993 = vmul.f32 %v957, %v969
        %v994 = vmul.f32 %v958, %v969
        %v995 = vmul.f32 %v959, %v969
        %v996 = vmul.f32 %v960, %v969
        %v997 = vmul.f32 %v961, %v969
        %v998 = vmul.f32 %v962, %v969
        %v999 = vmul.f32 %v963, %v969
        %v1000 = vmul.f32 %v964, %v969
        %v1001 = vmul.f32 %v965, %v969
        %v1002 = vmul.f32 %v966, %v969
        %v1003 = vadd.f32 %v805, %v971
        %v1004 = vadd.f32 %v806, %v972
        %v1005 = vadd.f32 %v807, %v973
        %v1006 = vadd.f32 %v808, %v974
        %v1007 = vadd.f32 %v809, %v975
        %v1008 = vadd.f32 %v810, %v976
        %v1009 = vadd.f32 %v811, %v977
        %v1010 = vadd.f32 %v812, %v978
        %v1011 = vadd.f32 %v813, %v979
        %v1012 = vadd.f32 %v814, %v980
        %v1013 = vadd.f32 %v815, %v981
        %v1014 = vadd.f32 %v816, %v982
        %v1015 = vadd.f32 %v817, %v983
        %v1016 = vadd.f32 %v818, %v984
        %v1017 = vadd.f32 %v819, %v985
        %v1018 = vadd.f32 %v820, %v986
        %v1019 = vadd.f32 %v821, %v987
        %v1020 = vadd.f32 %v822, %v988
        %v1021 = vadd.f32 %v823, %v989
        %v1022 = vadd.f32 %v824, %v990
        %v1023 = vadd.f32 %v825, %v991
        %v1024 = vadd.f32 %v826, %v992
        %v1025 = vadd.f32 %v827, %v993
        %v1026 = vadd.f32 %v828, %v994
        %v1027 = vadd.f32 %v829, %v995
        %v1028 = vadd.f32 %v830, %v996
        %v1029 = vadd.f32 %v831, %v997
        %v1030 = vadd.f32 %v832, %v998
        %v1031 = vadd.f32 %v833, %v999
        %v1032 = vadd.f32 %v834, %v1000
        %v1033 = vadd.f32 %v835, %v1001
        %v1034 = vadd.f32 %v836, %v1002
        %1035 = vset.pattern.permute.xlu0 2
        %1036 = vperm.xlu0 %1035, %v522
        %v1037 = vpop.permute.xlu0 %1036
        %1039 = vset.pattern.permute.xlu0 2
        %1040 = vperm.xlu0 %1039, %v523
        %v1041 = vpop.permute.xlu0 %1040
        %1043 = vset.pattern.permute.xlu0 2
        %1044 = vperm.xlu0 %1043, %v524
        %v1045 = vpop.permute.xlu0 %1044
        %1047 = vset.pattern.permute.xlu0 2
        %1048 = vperm.xlu0 %1047, %v525
        %v1049 = vpop.permute.xlu0 %1048
        %1051 = vset.pattern.permute.xlu0 2
        %1052 = vperm.xlu0 %1051, %v526
        %v1053 = vpop.permute.xlu0 %1052
        %1055 = vset.pattern.permute.xlu0 2
        %1056 = vperm.xlu0 %1055, %v527
        %v1057 = vpop.permute.xlu0 %1056
        %1059 = vset.pattern.permute.xlu0 2
        %1060 = vperm.xlu0 %1059, %v528
        %v1061 = vpop.permute.xlu0 %1060
        %1063 = vset.pattern.permute.xlu0 2
        %1064 = vperm.xlu0 %1063, %v529
        %v1065 = vpop.permute.xlu0 %1064
        %1067 = vset.pattern.permute.xlu0 2
        %1068 = vperm.xlu0 %1067, %v530
        %v1069 = vpop.permute.xlu0 %1068
        %1071 = vset.pattern.permute.xlu0 2
        %1072 = vperm.xlu0 %1071, %v531
        %v1073 = vpop.permute.xlu0 %1072
        %1075 = vset.pattern.permute.xlu0 2
        %1076 = vperm.xlu0 %1075, %v532
        %v1077 = vpop.permute.xlu0 %1076
        %1079 = vset.pattern.permute.xlu0 2
        %1080 = vperm.xlu0 %1079, %v533
        %v1081 = vpop.permute.xlu0 %1080
        %1083 = vset.pattern.permute.xlu0 2
        %1084 = vperm.xlu0 %1083, %v534
        %v1085 = vpop.permute.xlu0 %1084
        %1087 = vset.pattern.permute.xlu0 2
        %1088 = vperm.xlu0 %1087, %v535
        %v1089 = vpop.permute.xlu0 %1088
        %1091 = vset.pattern.permute.xlu0 2
        %1092 = vperm.xlu0 %1091, %v536
        %v1093 = vpop.permute.xlu0 %1092
        %1095 = vset.pattern.permute.xlu0 2
        %1096 = vperm.xlu0 %1095, %v537
        %v1097 = vpop.permute.xlu0 %1096
        %v1099 = vperm.slane %v572, 2
        %v1100 = vperm.slane %v601, 2
        %v1101 = vadd.f32 %v1037, %v1099
        %v1102 = vadd.f32 %v1037, %v1100
        %v1103 = vadd.f32 %v1041, %v1099
        %v1104 = vadd.f32 %v1041, %v1100
        %v1105 = vadd.f32 %v1045, %v1099
        %v1106 = vadd.f32 %v1045, %v1100
        %v1107 = vadd.f32 %v1049, %v1099
        %v1108 = vadd.f32 %v1049, %v1100
        %v1109 = vadd.f32 %v1053, %v1099
        %v1110 = vadd.f32 %v1053, %v1100
        %v1111 = vadd.f32 %v1057, %v1099
        %v1112 = vadd.f32 %v1057, %v1100
        %v1113 = vadd.f32 %v1061, %v1099
        %v1114 = vadd.f32 %v1061, %v1100
        %v1115 = vadd.f32 %v1065, %v1099
        %v1116 = vadd.f32 %v1065, %v1100
        %v1117 = vadd.f32 %v1069, %v1099
        %v1118 = vadd.f32 %v1069, %v1100
        %v1119 = vadd.f32 %v1073, %v1099
        %v1120 = vadd.f32 %v1073, %v1100
        %v1121 = vadd.f32 %v1077, %v1099
        %v1122 = vadd.f32 %v1077, %v1100
        %v1123 = vadd.f32 %v1081, %v1099
        %v1124 = vadd.f32 %v1081, %v1100
        %v1125 = vadd.f32 %v1085, %v1099
        %v1126 = vadd.f32 %v1085, %v1100
        %v1127 = vadd.f32 %v1089, %v1099
        %v1128 = vadd.f32 %v1089, %v1100
        %v1129 = vadd.f32 %v1093, %v1099
        %v1130 = vadd.f32 %v1093, %v1100
        %v1131 = vadd.f32 %v1097, %v1099
        %v1132 = vadd.f32 %v1097, %v1100
        %v1133 = vtanh.pop %v1101
        %v1134 = vtanh.pop %v1102
        %v1135 = vtanh.pop %v1103
        %v1136 = vtanh.pop %v1104
        %v1137 = vtanh.pop %v1105
        %v1138 = vtanh.pop %v1106
        %v1139 = vtanh.pop %v1107
        %v1140 = vtanh.pop %v1108
        %v1141 = vtanh.pop %v1109
        %v1142 = vtanh.pop %v1110
        %v1143 = vtanh.pop %v1111
        %v1144 = vtanh.pop %v1112
        %v1145 = vtanh.pop %v1113
        %v1146 = vtanh.pop %v1114
        %v1147 = vtanh.pop %v1115
        %v1148 = vtanh.pop %v1116
        %v1149 = vtanh.pop %v1117
        %v1150 = vtanh.pop %v1118
        %v1151 = vtanh.pop %v1119
        %v1152 = vtanh.pop %v1120
        %v1153 = vtanh.pop %v1121
        %v1154 = vtanh.pop %v1122
        %v1155 = vtanh.pop %v1123
        %v1156 = vtanh.pop %v1124
        %v1157 = vtanh.pop %v1125
        %v1158 = vtanh.pop %v1126
        %v1159 = vtanh.pop %v1127
        %v1160 = vtanh.pop %v1128
        %v1161 = vtanh.pop %v1129
        %v1162 = vtanh.pop %v1130
        %v1163 = vtanh.pop %v1131
        %v1164 = vtanh.pop %v1132
        %1165 = vset.pattern.permute.xlu0 2
        %1166 = vperm.xlu0 %1165, %v768
        %v1167 = vpop.permute.xlu0 %1166
        %v1169 = vmul.f32 %v1133, %v1167
        %v1170 = vmul.f32 %v1134, %v1167
        %v1171 = vmul.f32 %v1135, %v1167
        %v1172 = vmul.f32 %v1136, %v1167
        %v1173 = vmul.f32 %v1137, %v1167
        %v1174 = vmul.f32 %v1138, %v1167
        %v1175 = vmul.f32 %v1139, %v1167
        %v1176 = vmul.f32 %v1140, %v1167
        %v1177 = vmul.f32 %v1141, %v1167
        %v1178 = vmul.f32 %v1142, %v1167
        %v1179 = vmul.f32 %v1143, %v1167
        %v1180 = vmul.f32 %v1144, %v1167
        %v1181 = vmul.f32 %v1145, %v1167
        %v1182 = vmul.f32 %v1146, %v1167
        %v1183 = vmul.f32 %v1147, %v1167
        %v1184 = vmul.f32 %v1148, %v1167
        %v1185 = vmul.f32 %v1149, %v1167
        %v1186 = vmul.f32 %v1150, %v1167
        %v1187 = vmul.f32 %v1151, %v1167
        %v1188 = vmul.f32 %v1152, %v1167
        %v1189 = vmul.f32 %v1153, %v1167
        %v1190 = vmul.f32 %v1154, %v1167
        %v1191 = vmul.f32 %v1155, %v1167
        %v1192 = vmul.f32 %v1156, %v1167
        %v1193 = vmul.f32 %v1157, %v1167
        %v1194 = vmul.f32 %v1158, %v1167
        %v1195 = vmul.f32 %v1159, %v1167
        %v1196 = vmul.f32 %v1160, %v1167
        %v1197 = vmul.f32 %v1161, %v1167
        %v1198 = vmul.f32 %v1162, %v1167
        %v1199 = vmul.f32 %v1163, %v1167
        %v1200 = vmul.f32 %v1164, %v1167
        %v1201 = vadd.f32 %v1003, %v1169
        %v1202 = vadd.f32 %v1004, %v1170
        %v1203 = vadd.f32 %v1005, %v1171
        %v1204 = vadd.f32 %v1006, %v1172
        %v1205 = vadd.f32 %v1007, %v1173
        %v1206 = vadd.f32 %v1008, %v1174
        %v1207 = vadd.f32 %v1009, %v1175
        %v1208 = vadd.f32 %v1010, %v1176
        %v1209 = vadd.f32 %v1011, %v1177
        %v1210 = vadd.f32 %v1012, %v1178
        %v1211 = vadd.f32 %v1013, %v1179
        %v1212 = vadd.f32 %v1014, %v1180
        %v1213 = vadd.f32 %v1015, %v1181
        %v1214 = vadd.f32 %v1016, %v1182
        %v1215 = vadd.f32 %v1017, %v1183
        %v1216 = vadd.f32 %v1018, %v1184
        %v1217 = vadd.f32 %v1019, %v1185
        %v1218 = vadd.f32 %v1020, %v1186
        %v1219 = vadd.f32 %v1021, %v1187
        %v1220 = vadd.f32 %v1022, %v1188
        %v1221 = vadd.f32 %v1023, %v1189
        %v1222 = vadd.f32 %v1024, %v1190
        %v1223 = vadd.f32 %v1025, %v1191
        %v1224 = vadd.f32 %v1026, %v1192
        %v1225 = vadd.f32 %v1027, %v1193
        %v1226 = vadd.f32 %v1028, %v1194
        %v1227 = vadd.f32 %v1029, %v1195
        %v1228 = vadd.f32 %v1030, %v1196
        %v1229 = vadd.f32 %v1031, %v1197
        %v1230 = vadd.f32 %v1032, %v1198
        %v1231 = vadd.f32 %v1033, %v1199
        %v1232 = vadd.f32 %v1034, %v1200
        %1233 = vset.pattern.permute.xlu0 3
        %1234 = vperm.xlu0 %1233, %v522
        %v1235 = vpop.permute.xlu0 %1234
        %1237 = vset.pattern.permute.xlu0 3
        %1238 = vperm.xlu0 %1237, %v523
        %v1239 = vpop.permute.xlu0 %1238
        %1241 = vset.pattern.permute.xlu0 3
        %1242 = vperm.xlu0 %1241, %v524
        %v1243 = vpop.permute.xlu0 %1242
        %1245 = vset.pattern.permute.xlu0 3
        %1246 = vperm.xlu0 %1245, %v525
        %v1247 = vpop.permute.xlu0 %1246
        %1249 = vset.pattern.permute.xlu0 3
        %1250 = vperm.xlu0 %1249, %v526
        %v1251 = vpop.permute.xlu0 %1250
        %1253 = vset.pattern.permute.xlu0 3
        %1254 = vperm.xlu0 %1253, %v527
        %v1255 = vpop.permute.xlu0 %1254
        %1257 = vset.pattern.permute.xlu0 3
        %1258 = vperm.xlu0 %1257, %v528
        %v1259 = vpop.permute.xlu0 %1258
        %1261 = vset.pattern.permute.xlu0 3
        %1262 = vperm.xlu0 %1261, %v529
        %v1263 = vpop.permute.xlu0 %1262
        %1265 = vset.pattern.permute.xlu0 3
        %1266 = vperm.xlu0 %1265, %v530
        %v1267 = vpop.permute.xlu0 %1266
        %1269 = vset.pattern.permute.xlu0 3
        %1270 = vperm.xlu0 %1269, %v531
        %v1271 = vpop.permute.xlu0 %1270
        %1273 = vset.pattern.permute.xlu0 3
        %1274 = vperm.xlu0 %1273, %v532
        %v1275 = vpop.permute.xlu0 %1274
        %1277 = vset.pattern.permute.xlu0 3
        %1278 = vperm.xlu0 %1277, %v533
        %v1279 = vpop.permute.xlu0 %1278
        %1281 = vset.pattern.permute.xlu0 3
        %1282 = vperm.xlu0 %1281, %v534
        %v1283 = vpop.permute.xlu0 %1282
        %1285 = vset.pattern.permute.xlu0 3
        %1286 = vperm.xlu0 %1285, %v535
        %v1287 = vpop.permute.xlu0 %1286
        %1289 = vset.pattern.permute.xlu0 3
        %1290 = vperm.xlu0 %1289, %v536
        %v1291 = vpop.permute.xlu0 %1290
        %1293 = vset.pattern.permute.xlu0 3
        %1294 = vperm.xlu0 %1293, %v537
        %v1295 = vpop.permute.xlu0 %1294
        %v1297 = vperm.slane %v572, 3
        %v1298 = vperm.slane %v601, 3
        %v1299 = vadd.f32 %v1235, %v1297
        %v1300 = vadd.f32 %v1235, %v1298
        %v1301 = vadd.f32 %v1239, %v1297
        %v1302 = vadd.f32 %v1239, %v1298
        %v1303 = vadd.f32 %v1243, %v1297
        %v1304 = vadd.f32 %v1243, %v1298
        %v1305 = vadd.f32 %v1247, %v1297
        %v1306 = vadd.f32 %v1247, %v1298
        %v1307 = vadd.f32 %v1251, %v1297
        %v1308 = vadd.f32 %v1251, %v1298
        %v1309 = vadd.f32 %v1255, %v1297
        %v1310 = vadd.f32 %v1255, %v1298
        %v1311 = vadd.f32 %v1259, %v1297
        %v1312 = vadd.f32 %v1259, %v1298
        %v1313 = vadd.f32 %v1263, %v1297
        %v1314 = vadd.f32 %v1263, %v1298
        %v1315 = vadd.f32 %v1267, %v1297
        %v1316 = vadd.f32 %v1267, %v1298
        %v1317 = vadd.f32 %v1271, %v1297
        %v1318 = vadd.f32 %v1271, %v1298
        %v1319 = vadd.f32 %v1275, %v1297
        %v1320 = vadd.f32 %v1275, %v1298
        %v1321 = vadd.f32 %v1279, %v1297
        %v1322 = vadd.f32 %v1279, %v1298
        %v1323 = vadd.f32 %v1283, %v1297
        %v1324 = vadd.f32 %v1283, %v1298
        %v1325 = vadd.f32 %v1287, %v1297
        %v1326 = vadd.f32 %v1287, %v1298
        %v1327 = vadd.f32 %v1291, %v1297
        %v1328 = vadd.f32 %v1291, %v1298
        %v1329 = vadd.f32 %v1295, %v1297
        %v1330 = vadd.f32 %v1295, %v1298
        %v1331 = vtanh.pop %v1299
        %v1332 = vtanh.pop %v1300
        %v1333 = vtanh.pop %v1301
        %v1334 = vtanh.pop %v1302
        %v1335 = vtanh.pop %v1303
        %v1336 = vtanh.pop %v1304
        %v1337 = vtanh.pop %v1305
        %v1338 = vtanh.pop %v1306
        %v1339 = vtanh.pop %v1307
        %v1340 = vtanh.pop %v1308
        %v1341 = vtanh.pop %v1309
        %v1342 = vtanh.pop %v1310
        %v1343 = vtanh.pop %v1311
        %v1344 = vtanh.pop %v1312
        %v1345 = vtanh.pop %v1313
        %v1346 = vtanh.pop %v1314
        %v1347 = vtanh.pop %v1315
        %v1348 = vtanh.pop %v1316
        %v1349 = vtanh.pop %v1317
        %v1350 = vtanh.pop %v1318
        %v1351 = vtanh.pop %v1319
        %v1352 = vtanh.pop %v1320
        %v1353 = vtanh.pop %v1321
        %v1354 = vtanh.pop %v1322
        %v1355 = vtanh.pop %v1323
        %v1356 = vtanh.pop %v1324
        %v1357 = vtanh.pop %v1325
        %v1358 = vtanh.pop %v1326
        %v1359 = vtanh.pop %v1327
        %v1360 = vtanh.pop %v1328
        %v1361 = vtanh.pop %v1329
        %v1362 = vtanh.pop %v1330
        %1363 = vset.pattern.permute.xlu0 3
        %1364 = vperm.xlu0 %1363, %v768
        %v1365 = vpop.permute.xlu0 %1364
        %v1367 = vmul.f32 %v1331, %v1365
        %v1368 = vmul.f32 %v1332, %v1365
        %v1369 = vmul.f32 %v1333, %v1365
        %v1370 = vmul.f32 %v1334, %v1365
        %v1371 = vmul.f32 %v1335, %v1365
        %v1372 = vmul.f32 %v1336, %v1365
        %v1373 = vmul.f32 %v1337, %v1365
        %v1374 = vmul.f32 %v1338, %v1365
        %v1375 = vmul.f32 %v1339, %v1365
        %v1376 = vmul.f32 %v1340, %v1365
        %v1377 = vmul.f32 %v1341, %v1365
        %v1378 = vmul.f32 %v1342, %v1365
        %v1379 = vmul.f32 %v1343, %v1365
        %v1380 = vmul.f32 %v1344, %v1365
        %v1381 = vmul.f32 %v1345, %v1365
        %v1382 = vmul.f32 %v1346, %v1365
        %v1383 = vmul.f32 %v1347, %v1365
        %v1384 = vmul.f32 %v1348, %v1365
        %v1385 = vmul.f32 %v1349, %v1365
        %v1386 = vmul.f32 %v1350, %v1365
        %v1387 = vmul.f32 %v1351, %v1365
        %v1388 = vmul.f32 %v1352, %v1365
        %v1389 = vmul.f32 %v1353, %v1365
        %v1390 = vmul.f32 %v1354, %v1365
        %v1391 = vmul.f32 %v1355, %v1365
        %v1392 = vmul.f32 %v1356, %v1365
        %v1393 = vmul.f32 %v1357, %v1365
        %v1394 = vmul.f32 %v1358, %v1365
        %v1395 = vmul.f32 %v1359, %v1365
        %v1396 = vmul.f32 %v1360, %v1365
        %v1397 = vmul.f32 %v1361, %v1365
        %v1398 = vmul.f32 %v1362, %v1365
        %v1399 = vadd.f32 %v1201, %v1367
        %v1400 = vadd.f32 %v1202, %v1368
        %v1401 = vadd.f32 %v1203, %v1369
        %v1402 = vadd.f32 %v1204, %v1370
        %v1403 = vadd.f32 %v1205, %v1371
        %v1404 = vadd.f32 %v1206, %v1372
        %v1405 = vadd.f32 %v1207, %v1373
        %v1406 = vadd.f32 %v1208, %v1374
        %v1407 = vadd.f32 %v1209, %v1375
        %v1408 = vadd.f32 %v1210, %v1376
        %v1409 = vadd.f32 %v1211, %v1377
        %v1410 = vadd.f32 %v1212, %v1378
        %v1411 = vadd.f32 %v1213, %v1379
        %v1412 = vadd.f32 %v1214, %v1380
        %v1413 = vadd.f32 %v1215, %v1381
        %v1414 = vadd.f32 %v1216, %v1382
        %v1415 = vadd.f32 %v1217, %v1383
        %v1416 = vadd.f32 %v1218, %v1384
        %v1417 = vadd.f32 %v1219, %v1385
        %v1418 = vadd.f32 %v1220, %v1386
        %v1419 = vadd.f32 %v1221, %v1387
        %v1420 = vadd.f32 %v1222, %v1388
        %v1421 = vadd.f32 %v1223, %v1389
        %v1422 = vadd.f32 %v1224, %v1390
        %v1423 = vadd.f32 %v1225, %v1391
        %v1424 = vadd.f32 %v1226, %v1392
        %v1425 = vadd.f32 %v1227, %v1393
        %v1426 = vadd.f32 %v1228, %v1394
        %v1427 = vadd.f32 %v1229, %v1395
        %v1428 = vadd.f32 %v1230, %v1396
        %v1429 = vadd.f32 %v1231, %v1397
        %v1430 = vadd.f32 %v1232, %v1398
        %1431 = vset.pattern.permute.xlu0 4
        %1432 = vperm.xlu0 %1431, %v522
        %v1433 = vpop.permute.xlu0 %1432
        %1435 = vset.pattern.permute.xlu0 4
        %1436 = vperm.xlu0 %1435, %v523
        %v1437 = vpop.permute.xlu0 %1436
        %1439 = vset.pattern.permute.xlu0 4
        %1440 = vperm.xlu0 %1439, %v524
        %v1441 = vpop.permute.xlu0 %1440
        %1443 = vset.pattern.permute.xlu0 4
        %1444 = vperm.xlu0 %1443, %v525
        %v1445 = vpop.permute.xlu0 %1444
        %1447 = vset.pattern.permute.xlu0 4
        %1448 = vperm.xlu0 %1447, %v526
        %v1449 = vpop.permute.xlu0 %1448
        %1451 = vset.pattern.permute.xlu0 4
        %1452 = vperm.xlu0 %1451, %v527
        %v1453 = vpop.permute.xlu0 %1452
        %1455 = vset.pattern.permute.xlu0 4
        %1456 = vperm.xlu0 %1455, %v528
        %v1457 = vpop.permute.xlu0 %1456
        %1459 = vset.pattern.permute.xlu0 4
        %1460 = vperm.xlu0 %1459, %v529
        %v1461 = vpop.permute.xlu0 %1460
        %1463 = vset.pattern.permute.xlu0 4
        %1464 = vperm.xlu0 %1463, %v530
        %v1465 = vpop.permute.xlu0 %1464
        %1467 = vset.pattern.permute.xlu0 4
        %1468 = vperm.xlu0 %1467, %v531
        %v1469 = vpop.permute.xlu0 %1468
        %1471 = vset.pattern.permute.xlu0 4
        %1472 = vperm.xlu0 %1471, %v532
        %v1473 = vpop.permute.xlu0 %1472
        %1475 = vset.pattern.permute.xlu0 4
        %1476 = vperm.xlu0 %1475, %v533
        %v1477 = vpop.permute.xlu0 %1476
        %1479 = vset.pattern.permute.xlu0 4
        %1480 = vperm.xlu0 %1479, %v534
        %v1481 = vpop.permute.xlu0 %1480
        %1483 = vset.pattern.permute.xlu0 4
        %1484 = vperm.xlu0 %1483, %v535
        %v1485 = vpop.permute.xlu0 %1484
        %1487 = vset.pattern.permute.xlu0 4
        %1488 = vperm.xlu0 %1487, %v536
        %v1489 = vpop.permute.xlu0 %1488
        %1491 = vset.pattern.permute.xlu0 4
        %1492 = vperm.xlu0 %1491, %v537
        %v1493 = vpop.permute.xlu0 %1492
        %v1495 = vperm.slane %v572, 4
        %v1496 = vperm.slane %v601, 4
        %v1497 = vadd.f32 %v1433, %v1495
        %v1498 = vadd.f32 %v1433, %v1496
        %v1499 = vadd.f32 %v1437, %v1495
        %v1500 = vadd.f32 %v1437, %v1496
        %v1501 = vadd.f32 %v1441, %v1495
        %v1502 = vadd.f32 %v1441, %v1496
        %v1503 = vadd.f32 %v1445, %v1495
        %v1504 = vadd.f32 %v1445, %v1496
        %v1505 = vadd.f32 %v1449, %v1495
        %v1506 = vadd.f32 %v1449, %v1496
        %v1507 = vadd.f32 %v1453, %v1495
        %v1508 = vadd.f32 %v1453, %v1496
        %v1509 = vadd.f32 %v1457, %v1495
        %v1510 = vadd.f32 %v1457, %v1496
        %v1511 = vadd.f32 %v1461, %v1495
        %v1512 = vadd.f32 %v1461, %v1496
        %v1513 = vadd.f32 %v1465, %v1495
        %v1514 = vadd.f32 %v1465, %v1496
        %v1515 = vadd.f32 %v1469, %v1495
        %v1516 = vadd.f32 %v1469, %v1496
        %v1517 = vadd.f32 %v1473, %v1495
        %v1518 = vadd.f32 %v1473, %v1496
        %v1519 = vadd.f32 %v1477, %v1495
        %v1520 = vadd.f32 %v1477, %v1496
        %v1521 = vadd.f32 %v1481, %v1495
        %v1522 = vadd.f32 %v1481, %v1496
        %v1523 = vadd.f32 %v1485, %v1495
        %v1524 = vadd.f32 %v1485, %v1496
        %v1525 = vadd.f32 %v1489, %v1495
        %v1526 = vadd.f32 %v1489, %v1496
        %v1527 = vadd.f32 %v1493, %v1495
        %v1528 = vadd.f32 %v1493, %v1496
        %v1529 = vtanh.pop %v1497
        %v1530 = vtanh.pop %v1498
        %v1531 = vtanh.pop %v1499
        %v1532 = vtanh.pop %v1500
        %v1533 = vtanh.pop %v1501
        %v1534 = vtanh.pop %v1502
        %v1535 = vtanh.pop %v1503
        %v1536 = vtanh.pop %v1504
        %v1537 = vtanh.pop %v1505
        %v1538 = vtanh.pop %v1506
        %v1539 = vtanh.pop %v1507
        %v1540 = vtanh.pop %v1508
        %v1541 = vtanh.pop %v1509
        %v1542 = vtanh.pop %v1510
        %v1543 = vtanh.pop %v1511
        %v1544 = vtanh.pop %v1512
        %v1545 = vtanh.pop %v1513
        %v1546 = vtanh.pop %v1514
        %v1547 = vtanh.pop %v1515
        %v1548 = vtanh.pop %v1516
        %v1549 = vtanh.pop %v1517
        %v1550 = vtanh.pop %v1518
        %v1551 = vtanh.pop %v1519
        %v1552 = vtanh.pop %v1520
        %v1553 = vtanh.pop %v1521
        %v1554 = vtanh.pop %v1522
        %v1555 = vtanh.pop %v1523
        %v1556 = vtanh.pop %v1524
        %v1557 = vtanh.pop %v1525
        %v1558 = vtanh.pop %v1526
        %v1559 = vtanh.pop %v1527
        %v1560 = vtanh.pop %v1528
        %1561 = vset.pattern.permute.xlu0 4
        %1562 = vperm.xlu0 %1561, %v768
        %v1563 = vpop.permute.xlu0 %1562
        %v1565 = vmul.f32 %v1529, %v1563
        %v1566 = vmul.f32 %v1530, %v1563
        %v1567 = vmul.f32 %v1531, %v1563
        %v1568 = vmul.f32 %v1532, %v1563
        %v1569 = vmul.f32 %v1533, %v1563
        %v1570 = vmul.f32 %v1534, %v1563
        %v1571 = vmul.f32 %v1535, %v1563
        %v1572 = vmul.f32 %v1536, %v1563
        %v1573 = vmul.f32 %v1537, %v1563
        %v1574 = vmul.f32 %v1538, %v1563
        %v1575 = vmul.f32 %v1539, %v1563
        %v1576 = vmul.f32 %v1540, %v1563
        %v1577 = vmul.f32 %v1541, %v1563
        %v1578 = vmul.f32 %v1542, %v1563
        %v1579 = vmul.f32 %v1543, %v1563
        %v1580 = vmul.f32 %v1544, %v1563
        %v1581 = vmul.f32 %v1545, %v1563
        %v1582 = vmul.f32 %v1546, %v1563
        %v1583 = vmul.f32 %v1547, %v1563
        %v1584 = vmul.f32 %v1548, %v1563
        %v1585 = vmul.f32 %v1549, %v1563
        %v1586 = vmul.f32 %v1550, %v1563
        %v1587 = vmul.f32 %v1551, %v1563
        %v1588 = vmul.f32 %v1552, %v1563
        %v1589 = vmul.f32 %v1553, %v1563
        %v1590 = vmul.f32 %v1554, %v1563
        %v1591 = vmul.f32 %v1555, %v1563
        %v1592 = vmul.f32 %v1556, %v1563
        %v1593 = vmul.f32 %v1557, %v1563
        %v1594 = vmul.f32 %v1558, %v1563
        %v1595 = vmul.f32 %v1559, %v1563
        %v1596 = vmul.f32 %v1560, %v1563
        %v1597 = vadd.f32 %v1399, %v1565
        %v1598 = vadd.f32 %v1400, %v1566
        %v1599 = vadd.f32 %v1401, %v1567
        %v1600 = vadd.f32 %v1402, %v1568
        %v1601 = vadd.f32 %v1403, %v1569
        %v1602 = vadd.f32 %v1404, %v1570
        %v1603 = vadd.f32 %v1405, %v1571
        %v1604 = vadd.f32 %v1406, %v1572
        %v1605 = vadd.f32 %v1407, %v1573
        %v1606 = vadd.f32 %v1408, %v1574
        %v1607 = vadd.f32 %v1409, %v1575
        %v1608 = vadd.f32 %v1410, %v1576
        %v1609 = vadd.f32 %v1411, %v1577
        %v1610 = vadd.f32 %v1412, %v1578
        %v1611 = vadd.f32 %v1413, %v1579
        %v1612 = vadd.f32 %v1414, %v1580
        %v1613 = vadd.f32 %v1415, %v1581
        %v1614 = vadd.f32 %v1416, %v1582
        %v1615 = vadd.f32 %v1417, %v1583
        %v1616 = vadd.f32 %v1418, %v1584
        %v1617 = vadd.f32 %v1419, %v1585
        %v1618 = vadd.f32 %v1420, %v1586
        %v1619 = vadd.f32 %v1421, %v1587
        %v1620 = vadd.f32 %v1422, %v1588
        %v1621 = vadd.f32 %v1423, %v1589
        %v1622 = vadd.f32 %v1424, %v1590
        %v1623 = vadd.f32 %v1425, %v1591
        %v1624 = vadd.f32 %v1426, %v1592
        %v1625 = vadd.f32 %v1427, %v1593
        %v1626 = vadd.f32 %v1428, %v1594
        %v1627 = vadd.f32 %v1429, %v1595
        %v1628 = vadd.f32 %v1430, %v1596
        %1629 = vset.pattern.permute.xlu0 5
        %1630 = vperm.xlu0 %1629, %v522
        %v1631 = vpop.permute.xlu0 %1630
        %1633 = vset.pattern.permute.xlu0 5
        %1634 = vperm.xlu0 %1633, %v523
        %v1635 = vpop.permute.xlu0 %1634
        %1637 = vset.pattern.permute.xlu0 5
        %1638 = vperm.xlu0 %1637, %v524
        %v1639 = vpop.permute.xlu0 %1638
        %1641 = vset.pattern.permute.xlu0 5
        %1642 = vperm.xlu0 %1641, %v525
        %v1643 = vpop.permute.xlu0 %1642
        %1645 = vset.pattern.permute.xlu0 5
        %1646 = vperm.xlu0 %1645, %v526
        %v1647 = vpop.permute.xlu0 %1646
        %1649 = vset.pattern.permute.xlu0 5
        %1650 = vperm.xlu0 %1649, %v527
        %v1651 = vpop.permute.xlu0 %1650
        %1653 = vset.pattern.permute.xlu0 5
        %1654 = vperm.xlu0 %1653, %v528
        %v1655 = vpop.permute.xlu0 %1654
        %1657 = vset.pattern.permute.xlu0 5
        %1658 = vperm.xlu0 %1657, %v529
        %v1659 = vpop.permute.xlu0 %1658
        %1661 = vset.pattern.permute.xlu0 5
        %1662 = vperm.xlu0 %1661, %v530
        %v1663 = vpop.permute.xlu0 %1662
        %1665 = vset.pattern.permute.xlu0 5
        %1666 = vperm.xlu0 %1665, %v531
        %v1667 = vpop.permute.xlu0 %1666
        %1669 = vset.pattern.permute.xlu0 5
        %1670 = vperm.xlu0 %1669, %v532
        %v1671 = vpop.permute.xlu0 %1670
        %1673 = vset.pattern.permute.xlu0 5
        %1674 = vperm.xlu0 %1673, %v533
        %v1675 = vpop.permute.xlu0 %1674
        %1677 = vset.pattern.permute.xlu0 5
        %1678 = vperm.xlu0 %1677, %v534
        %v1679 = vpop.permute.xlu0 %1678
        %1681 = vset.pattern.permute.xlu0 5
        %1682 = vperm.xlu0 %1681, %v535
        %v1683 = vpop.permute.xlu0 %1682
        %1685 = vset.pattern.permute.xlu0 5
        %1686 = vperm.xlu0 %1685, %v536
        %v1687 = vpop.permute.xlu0 %1686
        %1689 = vset.pattern.permute.xlu0 5
        %1690 = vperm.xlu0 %1689, %v537
        %v1691 = vpop.permute.xlu0 %1690
        %v1693 = vperm.slane %v572, 5
        %v1694 = vperm.slane %v601, 5
        %v1695 = vadd.f32 %v1631, %v1693
        %v1696 = vadd.f32 %v1631, %v1694
        %v1697 = vadd.f32 %v1635, %v1693
        %v1698 = vadd.f32 %v1635, %v1694
        %v1699 = vadd.f32 %v1639, %v1693
        %v1700 = vadd.f32 %v1639, %v1694
        %v1701 = vadd.f32 %v1643, %v1693
        %v1702 = vadd.f32 %v1643, %v1694
        %v1703 = vadd.f32 %v1647, %v1693
        %v1704 = vadd.f32 %v1647, %v1694
        %v1705 = vadd.f32 %v1651, %v1693
        %v1706 = vadd.f32 %v1651, %v1694
        %v1707 = vadd.f32 %v1655, %v1693
        %v1708 = vadd.f32 %v1655, %v1694
        %v1709 = vadd.f32 %v1659, %v1693
        %v1710 = vadd.f32 %v1659, %v1694
        %v1711 = vadd.f32 %v1663, %v1693
        %v1712 = vadd.f32 %v1663, %v1694
        %v1713 = vadd.f32 %v1667, %v1693
        %v1714 = vadd.f32 %v1667, %v1694
        %v1715 = vadd.f32 %v1671, %v1693
        %v1716 = vadd.f32 %v1671, %v1694
        %v1717 = vadd.f32 %v1675, %v1693
        %v1718 = vadd.f32 %v1675, %v1694
        %v1719 = vadd.f32 %v1679, %v1693
        %v1720 = vadd.f32 %v1679, %v1694
        %v1721 = vadd.f32 %v1683, %v1693
        %v1722 = vadd.f32 %v1683, %v1694
        %v1723 = vadd.f32 %v1687, %v1693
        %v1724 = vadd.f32 %v1687, %v1694
        %v1725 = vadd.f32 %v1691, %v1693
        %v1726 = vadd.f32 %v1691, %v1694
        %v1727 = vtanh.pop %v1695
        %v1728 = vtanh.pop %v1696
        %v1729 = vtanh.pop %v1697
        %v1730 = vtanh.pop %v1698
        %v1731 = vtanh.pop %v1699
        %v1732 = vtanh.pop %v1700
        %v1733 = vtanh.pop %v1701
        %v1734 = vtanh.pop %v1702
        %v1735 = vtanh.pop %v1703
        %v1736 = vtanh.pop %v1704
        %v1737 = vtanh.pop %v1705
        %v1738 = vtanh.pop %v1706
        %v1739 = vtanh.pop %v1707
        %v1740 = vtanh.pop %v1708
        %v1741 = vtanh.pop %v1709
        %v1742 = vtanh.pop %v1710
        %v1743 = vtanh.pop %v1711
        %v1744 = vtanh.pop %v1712
        %v1745 = vtanh.pop %v1713
        %v1746 = vtanh.pop %v1714
        %v1747 = vtanh.pop %v1715
        %v1748 = vtanh.pop %v1716
        %v1749 = vtanh.pop %v1717
        %v1750 = vtanh.pop %v1718
        %v1751 = vtanh.pop %v1719
        %v1752 = vtanh.pop %v1720
        %v1753 = vtanh.pop %v1721
        %v1754 = vtanh.pop %v1722
        %v1755 = vtanh.pop %v1723
        %v1756 = vtanh.pop %v1724
        %v1757 = vtanh.pop %v1725
        %v1758 = vtanh.pop %v1726
        %1759 = vset.pattern.permute.xlu0 5
        %1760 = vperm.xlu0 %1759, %v768
        %v1761 = vpop.permute.xlu0 %1760
        %v1763 = vmul.f32 %v1727, %v1761
        %v1764 = vmul.f32 %v1728, %v1761
        %v1765 = vmul.f32 %v1729, %v1761
        %v1766 = vmul.f32 %v1730, %v1761
        %v1767 = vmul.f32 %v1731, %v1761
        %v1768 = vmul.f32 %v1732, %v1761
        %v1769 = vmul.f32 %v1733, %v1761
        %v1770 = vmul.f32 %v1734, %v1761
        %v1771 = vmul.f32 %v1735, %v1761
        %v1772 = vmul.f32 %v1736, %v1761
        %v1773 = vmul.f32 %v1737, %v1761
        %v1774 = vmul.f32 %v1738, %v1761
        %v1775 = vmul.f32 %v1739, %v1761
        %v1776 = vmul.f32 %v1740, %v1761
        %v1777 = vmul.f32 %v1741, %v1761
        %v1778 = vmul.f32 %v1742, %v1761
        %v1779 = vmul.f32 %v1743, %v1761
        %v1780 = vmul.f32 %v1744, %v1761
        %v1781 = vmul.f32 %v1745, %v1761
        %v1782 = vmul.f32 %v1746, %v1761
        %v1783 = vmul.f32 %v1747, %v1761
        %v1784 = vmul.f32 %v1748, %v1761
        %v1785 = vmul.f32 %v1749, %v1761
        %v1786 = vmul.f32 %v1750, %v1761
        %v1787 = vmul.f32 %v1751, %v1761
        %v1788 = vmul.f32 %v1752, %v1761
        %v1789 = vmul.f32 %v1753, %v1761
        %v1790 = vmul.f32 %v1754, %v1761
        %v1791 = vmul.f32 %v1755, %v1761
        %v1792 = vmul.f32 %v1756, %v1761
        %v1793 = vmul.f32 %v1757, %v1761
        %v1794 = vmul.f32 %v1758, %v1761
        %v1795 = vadd.f32 %v1597, %v1763
        %v1796 = vadd.f32 %v1598, %v1764
        %v1797 = vadd.f32 %v1599, %v1765
        %v1798 = vadd.f32 %v1600, %v1766
        %v1799 = vadd.f32 %v1601, %v1767
        %v1800 = vadd.f32 %v1602, %v1768
        %v1801 = vadd.f32 %v1603, %v1769
        %v1802 = vadd.f32 %v1604, %v1770
        %v1803 = vadd.f32 %v1605, %v1771
        %v1804 = vadd.f32 %v1606, %v1772
        %v1805 = vadd.f32 %v1607, %v1773
        %v1806 = vadd.f32 %v1608, %v1774
        %v1807 = vadd.f32 %v1609, %v1775
        %v1808 = vadd.f32 %v1610, %v1776
        %v1809 = vadd.f32 %v1611, %v1777
        %v1810 = vadd.f32 %v1612, %v1778
        %v1811 = vadd.f32 %v1613, %v1779
        %v1812 = vadd.f32 %v1614, %v1780
        %v1813 = vadd.f32 %v1615, %v1781
        %v1814 = vadd.f32 %v1616, %v1782
        %v1815 = vadd.f32 %v1617, %v1783
        %v1816 = vadd.f32 %v1618, %v1784
        %v1817 = vadd.f32 %v1619, %v1785
        %v1818 = vadd.f32 %v1620, %v1786
        %v1819 = vadd.f32 %v1621, %v1787
        %v1820 = vadd.f32 %v1622, %v1788
        %v1821 = vadd.f32 %v1623, %v1789
        %v1822 = vadd.f32 %v1624, %v1790
        %v1823 = vadd.f32 %v1625, %v1791
        %v1824 = vadd.f32 %v1626, %v1792
        %v1825 = vadd.f32 %v1627, %v1793
        %v1826 = vadd.f32 %v1628, %v1794
        %1827 = vset.pattern.permute.xlu0 6
        %1828 = vperm.xlu0 %1827, %v522
        %v1829 = vpop.permute.xlu0 %1828
        %1831 = vset.pattern.permute.xlu0 6
        %1832 = vperm.xlu0 %1831, %v523
        %v1833 = vpop.permute.xlu0 %1832
        %1835 = vset.pattern.permute.xlu0 6
        %1836 = vperm.xlu0 %1835, %v524
        %v1837 = vpop.permute.xlu0 %1836
        %1839 = vset.pattern.permute.xlu0 6
        %1840 = vperm.xlu0 %1839, %v525
        %v1841 = vpop.permute.xlu0 %1840
        %1843 = vset.pattern.permute.xlu0 6
        %1844 = vperm.xlu0 %1843, %v526
        %v1845 = vpop.permute.xlu0 %1844
        %1847 = vset.pattern.permute.xlu0 6
        %1848 = vperm.xlu0 %1847, %v527
        %v1849 = vpop.permute.xlu0 %1848
        %1851 = vset.pattern.permute.xlu0 6
        %1852 = vperm.xlu0 %1851, %v528
        %v1853 = vpop.permute.xlu0 %1852
        %1855 = vset.pattern.permute.xlu0 6
        %1856 = vperm.xlu0 %1855, %v529
        %v1857 = vpop.permute.xlu0 %1856
        %1859 = vset.pattern.permute.xlu0 6
        %1860 = vperm.xlu0 %1859, %v530
        %v1861 = vpop.permute.xlu0 %1860
        %1863 = vset.pattern.permute.xlu0 6
        %1864 = vperm.xlu0 %1863, %v531
        %v1865 = vpop.permute.xlu0 %1864
        %1867 = vset.pattern.permute.xlu0 6
        %1868 = vperm.xlu0 %1867, %v532
        %v1869 = vpop.permute.xlu0 %1868
        %1871 = vset.pattern.permute.xlu0 6
        %1872 = vperm.xlu0 %1871, %v533
        %v1873 = vpop.permute.xlu0 %1872
        %1875 = vset.pattern.permute.xlu0 6
        %1876 = vperm.xlu0 %1875, %v534
        %v1877 = vpop.permute.xlu0 %1876
        %1879 = vset.pattern.permute.xlu0 6
        %1880 = vperm.xlu0 %1879, %v535
        %v1881 = vpop.permute.xlu0 %1880
        %1883 = vset.pattern.permute.xlu0 6
        %1884 = vperm.xlu0 %1883, %v536
        %v1885 = vpop.permute.xlu0 %1884
        %1887 = vset.pattern.permute.xlu0 6
        %1888 = vperm.xlu0 %1887, %v537
        %v1889 = vpop.permute.xlu0 %1888
        %v1891 = vperm.slane %v572, 6
        %v1892 = vperm.slane %v601, 6
        %v1893 = vadd.f32 %v1829, %v1891
        %v1894 = vadd.f32 %v1829, %v1892
        %v1895 = vadd.f32 %v1833, %v1891
        %v1896 = vadd.f32 %v1833, %v1892
        %v1897 = vadd.f32 %v1837, %v1891
        %v1898 = vadd.f32 %v1837, %v1892
        %v1899 = vadd.f32 %v1841, %v1891
        %v1900 = vadd.f32 %v1841, %v1892
        %v1901 = vadd.f32 %v1845, %v1891
        %v1902 = vadd.f32 %v1845, %v1892
        %v1903 = vadd.f32 %v1849, %v1891
        %v1904 = vadd.f32 %v1849, %v1892
        %v1905 = vadd.f32 %v1853, %v1891
        %v1906 = vadd.f32 %v1853, %v1892
        %v1907 = vadd.f32 %v1857, %v1891
        %v1908 = vadd.f32 %v1857, %v1892
        %v1909 = vadd.f32 %v1861, %v1891
        %v1910 = vadd.f32 %v1861, %v1892
        %v1911 = vadd.f32 %v1865, %v1891
        %v1912 = vadd.f32 %v1865, %v1892
        %v1913 = vadd.f32 %v1869, %v1891
        %v1914 = vadd.f32 %v1869, %v1892
        %v1915 = vadd.f32 %v1873, %v1891
        %v1916 = vadd.f32 %v1873, %v1892
        %v1917 = vadd.f32 %v1877, %v1891
        %v1918 = vadd.f32 %v1877, %v1892
        %v1919 = vadd.f32 %v1881, %v1891
        %v1920 = vadd.f32 %v1881, %v1892
        %v1921 = vadd.f32 %v1885, %v1891
        %v1922 = vadd.f32 %v1885, %v1892
        %v1923 = vadd.f32 %v1889, %v1891
        %v1924 = vadd.f32 %v1889, %v1892
        %v1925 = vtanh.pop %v1893
        %v1926 = vtanh.pop %v1894
        %v1927 = vtanh.pop %v1895
        %v1928 = vtanh.pop %v1896
        %v1929 = vtanh.pop %v1897
        %v1930 = vtanh.pop %v1898
        %v1931 = vtanh.pop %v1899
        %v1932 = vtanh.pop %v1900
        %v1933 = vtanh.pop %v1901
        %v1934 = vtanh.pop %v1902
        %v1935 = vtanh.pop %v1903
        %v1936 = vtanh.pop %v1904
        %v1937 = vtanh.pop %v1905
        %v1938 = vtanh.pop %v1906
        %v1939 = vtanh.pop %v1907
        %v1940 = vtanh.pop %v1908
        %v1941 = vtanh.pop %v1909
        %v1942 = vtanh.pop %v1910
        %v1943 = vtanh.pop %v1911
        %v1944 = vtanh.pop %v1912
        %v1945 = vtanh.pop %v1913
        %v1946 = vtanh.pop %v1914
        %v1947 = vtanh.pop %v1915
        %v1948 = vtanh.pop %v1916
        %v1949 = vtanh.pop %v1917
        %v1950 = vtanh.pop %v1918
        %v1951 = vtanh.pop %v1919
        %v1952 = vtanh.pop %v1920
        %v1953 = vtanh.pop %v1921
        %v1954 = vtanh.pop %v1922
        %v1955 = vtanh.pop %v1923
        %v1956 = vtanh.pop %v1924
        %1957 = vset.pattern.permute.xlu0 6
        %1958 = vperm.xlu0 %1957, %v768
        %v1959 = vpop.permute.xlu0 %1958
        %v1961 = vmul.f32 %v1925, %v1959
        %v1962 = vmul.f32 %v1926, %v1959
        %v1963 = vmul.f32 %v1927, %v1959
        %v1964 = vmul.f32 %v1928, %v1959
        %v1965 = vmul.f32 %v1929, %v1959
        %v1966 = vmul.f32 %v1930, %v1959
        %v1967 = vmul.f32 %v1931, %v1959
        %v1968 = vmul.f32 %v1932, %v1959
        %v1969 = vmul.f32 %v1933, %v1959
        %v1970 = vmul.f32 %v1934, %v1959
        %v1971 = vmul.f32 %v1935, %v1959
        %v1972 = vmul.f32 %v1936, %v1959
        %v1973 = vmul.f32 %v1937, %v1959
        %v1974 = vmul.f32 %v1938, %v1959
        %v1975 = vmul.f32 %v1939, %v1959
        %v1976 = vmul.f32 %v1940, %v1959
        %v1977 = vmul.f32 %v1941, %v1959
        %v1978 = vmul.f32 %v1942, %v1959
        %v1979 = vmul.f32 %v1943, %v1959
        %v1980 = vmul.f32 %v1944, %v1959
        %v1981 = vmul.f32 %v1945, %v1959
        %v1982 = vmul.f32 %v1946, %v1959
        %v1983 = vmul.f32 %v1947, %v1959
        %v1984 = vmul.f32 %v1948, %v1959
        %v1985 = vmul.f32 %v1949, %v1959
        %v1986 = vmul.f32 %v1950, %v1959
        %v1987 = vmul.f32 %v1951, %v1959
        %v1988 = vmul.f32 %v1952, %v1959
        %v1989 = vmul.f32 %v1953, %v1959
        %v1990 = vmul.f32 %v1954, %v1959
        %v1991 = vmul.f32 %v1955, %v1959
        %v1992 = vmul.f32 %v1956, %v1959
        %v1993 = vadd.f32 %v1795, %v1961
        %v1994 = vadd.f32 %v1796, %v1962
        %v1995 = vadd.f32 %v1797, %v1963
        %v1996 = vadd.f32 %v1798, %v1964
        %v1997 = vadd.f32 %v1799, %v1965
        %v1998 = vadd.f32 %v1800, %v1966
        %v1999 = vadd.f32 %v1801, %v1967
        %v2000 = vadd.f32 %v1802, %v1968
        %v2001 = vadd.f32 %v1803, %v1969
        %v2002 = vadd.f32 %v1804, %v1970
        %v2003 = vadd.f32 %v1805, %v1971
        %v2004 = vadd.f32 %v1806, %v1972
        %v2005 = vadd.f32 %v1807, %v1973
        %v2006 = vadd.f32 %v1808, %v1974
        %v2007 = vadd.f32 %v1809, %v1975
        %v2008 = vadd.f32 %v1810, %v1976
        %v2009 = vadd.f32 %v1811, %v1977
        %v2010 = vadd.f32 %v1812, %v1978
        %v2011 = vadd.f32 %v1813, %v1979
        %v2012 = vadd.f32 %v1814, %v1980
        %v2013 = vadd.f32 %v1815, %v1981
        %v2014 = vadd.f32 %v1816, %v1982
        %v2015 = vadd.f32 %v1817, %v1983
        %v2016 = vadd.f32 %v1818, %v1984
        %v2017 = vadd.f32 %v1819, %v1985
        %v2018 = vadd.f32 %v1820, %v1986
        %v2019 = vadd.f32 %v1821, %v1987
        %v2020 = vadd.f32 %v1822, %v1988
        %v2021 = vadd.f32 %v1823, %v1989
        %v2022 = vadd.f32 %v1824, %v1990
        %v2023 = vadd.f32 %v1825, %v1991
        %v2024 = vadd.f32 %v1826, %v1992
        %2025 = vset.pattern.permute.xlu0 7
        %2026 = vperm.xlu0 %2025, %v522
        %v2027 = vpop.permute.xlu0 %2026
        %2029 = vset.pattern.permute.xlu0 7
        %2030 = vperm.xlu0 %2029, %v523
        %v2031 = vpop.permute.xlu0 %2030
        %2033 = vset.pattern.permute.xlu0 7
        %2034 = vperm.xlu0 %2033, %v524
        %v2035 = vpop.permute.xlu0 %2034
        %2037 = vset.pattern.permute.xlu0 7
        %2038 = vperm.xlu0 %2037, %v525
        %v2039 = vpop.permute.xlu0 %2038
        %2041 = vset.pattern.permute.xlu0 7
        %2042 = vperm.xlu0 %2041, %v526
        %v2043 = vpop.permute.xlu0 %2042
        %2045 = vset.pattern.permute.xlu0 7
        %2046 = vperm.xlu0 %2045, %v527
        %v2047 = vpop.permute.xlu0 %2046
        %2049 = vset.pattern.permute.xlu0 7
        %2050 = vperm.xlu0 %2049, %v528
        %v2051 = vpop.permute.xlu0 %2050
        %2053 = vset.pattern.permute.xlu0 7
        %2054 = vperm.xlu0 %2053, %v529
        %v2055 = vpop.permute.xlu0 %2054
        %2057 = vset.pattern.permute.xlu0 7
        %2058 = vperm.xlu0 %2057, %v530
        %v2059 = vpop.permute.xlu0 %2058
        %2061 = vset.pattern.permute.xlu0 7
        %2062 = vperm.xlu0 %2061, %v531
        %v2063 = vpop.permute.xlu0 %2062
        %2065 = vset.pattern.permute.xlu0 7
        %2066 = vperm.xlu0 %2065, %v532
        %v2067 = vpop.permute.xlu0 %2066
        %2069 = vset.pattern.permute.xlu0 7
        %2070 = vperm.xlu0 %2069, %v533
        %v2071 = vpop.permute.xlu0 %2070
        %2073 = vset.pattern.permute.xlu0 7
        %2074 = vperm.xlu0 %2073, %v534
        %v2075 = vpop.permute.xlu0 %2074
        %2077 = vset.pattern.permute.xlu0 7
        %2078 = vperm.xlu0 %2077, %v535
        %v2079 = vpop.permute.xlu0 %2078
        %2081 = vset.pattern.permute.xlu0 7
        %2082 = vperm.xlu0 %2081, %v536
        %v2083 = vpop.permute.xlu0 %2082
        %2085 = vset.pattern.permute.xlu0 7
        %2086 = vperm.xlu0 %2085, %v537
        %v2087 = vpop.permute.xlu0 %2086
        %v2089 = vperm.slane %v572, 7
        %v2090 = vperm.slane %v601, 7
        %v2091 = vadd.f32 %v2027, %v2089
        %v2092 = vadd.f32 %v2027, %v2090
        %v2093 = vadd.f32 %v2031, %v2089
        %v2094 = vadd.f32 %v2031, %v2090
        %v2095 = vadd.f32 %v2035, %v2089
        %v2096 = vadd.f32 %v2035, %v2090
        %v2097 = vadd.f32 %v2039, %v2089
        %v2098 = vadd.f32 %v2039, %v2090
        %v2099 = vadd.f32 %v2043, %v2089
        %v2100 = vadd.f32 %v2043, %v2090
        %v2101 = vadd.f32 %v2047, %v2089
        %v2102 = vadd.f32 %v2047, %v2090
        %v2103 = vadd.f32 %v2051, %v2089
        %v2104 = vadd.f32 %v2051, %v2090
        %v2105 = vadd.f32 %v2055, %v2089
        %v2106 = vadd.f32 %v2055, %v2090
        %v2107 = vadd.f32 %v2059, %v2089
        %v2108 = vadd.f32 %v2059, %v2090
        %v2109 = vadd.f32 %v2063, %v2089
        %v2110 = vadd.f32 %v2063, %v2090
        %v2111 = vadd.f32 %v2067, %v2089
        %v2112 = vadd.f32 %v2067, %v2090
        %v2113 = vadd.f32 %v2071, %v2089
        %v2114 = vadd.f32 %v2071, %v2090
        %v2115 = vadd.f32 %v2075, %v2089
        %v2116 = vadd.f32 %v2075, %v2090
        %v2117 = vadd.f32 %v2079, %v2089
        %v2118 = vadd.f32 %v2079, %v2090
        %v2119 = vadd.f32 %v2083, %v2089
        %v2120 = vadd.f32 %v2083, %v2090
        %v2121 = vadd.f32 %v2087, %v2089
        %v2122 = vadd.f32 %v2087, %v2090
        %v2123 = vtanh.pop %v2091
        %v2124 = vtanh.pop %v2092
        %v2125 = vtanh.pop %v2093
        %v2126 = vtanh.pop %v2094
        %v2127 = vtanh.pop %v2095
        %v2128 = vtanh.pop %v2096
        %v2129 = vtanh.pop %v2097
        %v2130 = vtanh.pop %v2098
        %v2131 = vtanh.pop %v2099
        %v2132 = vtanh.pop %v2100
        %v2133 = vtanh.pop %v2101
        %v2134 = vtanh.pop %v2102
        %v2135 = vtanh.pop %v2103
        %v2136 = vtanh.pop %v2104
        %v2137 = vtanh.pop %v2105
        %v2138 = vtanh.pop %v2106
        %v2139 = vtanh.pop %v2107
        %v2140 = vtanh.pop %v2108
        %v2141 = vtanh.pop %v2109
        %v2142 = vtanh.pop %v2110
        %v2143 = vtanh.pop %v2111
        %v2144 = vtanh.pop %v2112
        %v2145 = vtanh.pop %v2113
        %v2146 = vtanh.pop %v2114
        %v2147 = vtanh.pop %v2115
        %v2148 = vtanh.pop %v2116
        %v2149 = vtanh.pop %v2117
        %v2150 = vtanh.pop %v2118
        %v2151 = vtanh.pop %v2119
        %v2152 = vtanh.pop %v2120
        %v2153 = vtanh.pop %v2121
        %v2154 = vtanh.pop %v2122
        %2155 = vset.pattern.permute.xlu0 7
        %2156 = vperm.xlu0 %2155, %v768
        %v2157 = vpop.permute.xlu0 %2156
        %v2159 = vmul.f32 %v2123, %v2157
        %v2160 = vmul.f32 %v2124, %v2157
        %v2161 = vmul.f32 %v2125, %v2157
        %v2162 = vmul.f32 %v2126, %v2157
        %v2163 = vmul.f32 %v2127, %v2157
        %v2164 = vmul.f32 %v2128, %v2157
        %v2165 = vmul.f32 %v2129, %v2157
        %v2166 = vmul.f32 %v2130, %v2157
        %v2167 = vmul.f32 %v2131, %v2157
        %v2168 = vmul.f32 %v2132, %v2157
        %v2169 = vmul.f32 %v2133, %v2157
        %v2170 = vmul.f32 %v2134, %v2157
        %v2171 = vmul.f32 %v2135, %v2157
        %v2172 = vmul.f32 %v2136, %v2157
        %v2173 = vmul.f32 %v2137, %v2157
        %v2174 = vmul.f32 %v2138, %v2157
        %v2175 = vmul.f32 %v2139, %v2157
        %v2176 = vmul.f32 %v2140, %v2157
        %v2177 = vmul.f32 %v2141, %v2157
        %v2178 = vmul.f32 %v2142, %v2157
        %v2179 = vmul.f32 %v2143, %v2157
        %v2180 = vmul.f32 %v2144, %v2157
        %v2181 = vmul.f32 %v2145, %v2157
        %v2182 = vmul.f32 %v2146, %v2157
        %v2183 = vmul.f32 %v2147, %v2157
        %v2184 = vmul.f32 %v2148, %v2157
        %v2185 = vmul.f32 %v2149, %v2157
        %v2186 = vmul.f32 %v2150, %v2157
        %v2187 = vmul.f32 %v2151, %v2157
        %v2188 = vmul.f32 %v2152, %v2157
        %v2189 = vmul.f32 %v2153, %v2157
        %v2190 = vmul.f32 %v2154, %v2157
        %v2191 = vadd.f32 %v1993, %v2159
        %v2192 = vadd.f32 %v1994, %v2160
        %v2193 = vadd.f32 %v1995, %v2161
        %v2194 = vadd.f32 %v1996, %v2162
        %v2195 = vadd.f32 %v1997, %v2163
        %v2196 = vadd.f32 %v1998, %v2164
        %v2197 = vadd.f32 %v1999, %v2165
        %v2198 = vadd.f32 %v2000, %v2166
        %v2199 = vadd.f32 %v2001, %v2167
        %v2200 = vadd.f32 %v2002, %v2168
        %v2201 = vadd.f32 %v2003, %v2169
        %v2202 = vadd.f32 %v2004, %v2170
        %v2203 = vadd.f32 %v2005, %v2171
        %v2204 = vadd.f32 %v2006, %v2172
        %v2205 = vadd.f32 %v2007, %v2173
        %v2206 = vadd.f32 %v2008, %v2174
        %v2207 = vadd.f32 %v2009, %v2175
        %v2208 = vadd.f32 %v2010, %v2176
        %v2209 = vadd.f32 %v2011, %v2177
        %v2210 = vadd.f32 %v2012, %v2178
        %v2211 = vadd.f32 %v2013, %v2179
        %v2212 = vadd.f32 %v2014, %v2180
        %v2213 = vadd.f32 %v2015, %v2181
        %v2214 = vadd.f32 %v2016, %v2182
        %v2215 = vadd.f32 %v2017, %v2183
        %v2216 = vadd.f32 %v2018, %v2184
        %v2217 = vadd.f32 %v2019, %v2185
        %v2218 = vadd.f32 %v2020, %v2186
        %v2219 = vadd.f32 %v2021, %v2187
        %v2220 = vadd.f32 %v2022, %v2188
        %v2221 = vadd.f32 %v2023, %v2189
        %v2222 = vadd.f32 %v2024, %v2190
        %2223 = vset.pattern.permute.xlu0 8
        %2224 = vperm.xlu0 %2223, %v522
        %v2225 = vpop.permute.xlu0 %2224
        %2227 = vset.pattern.permute.xlu0 8
        %2228 = vperm.xlu0 %2227, %v523
        %v2229 = vpop.permute.xlu0 %2228
        %2231 = vset.pattern.permute.xlu0 8
        %2232 = vperm.xlu0 %2231, %v524
        %v2233 = vpop.permute.xlu0 %2232
        %2235 = vset.pattern.permute.xlu0 8
        %2236 = vperm.xlu0 %2235, %v525
        %v2237 = vpop.permute.xlu0 %2236
        %2239 = vset.pattern.permute.xlu0 8
        %2240 = vperm.xlu0 %2239, %v526
        %v2241 = vpop.permute.xlu0 %2240
        %2243 = vset.pattern.permute.xlu0 8
        %2244 = vperm.xlu0 %2243, %v527
        %v2245 = vpop.permute.xlu0 %2244
        %2247 = vset.pattern.permute.xlu0 8
        %2248 = vperm.xlu0 %2247, %v528
        %v2249 = vpop.permute.xlu0 %2248
        %2251 = vset.pattern.permute.xlu0 8
        %2252 = vperm.xlu0 %2251, %v529
        %v2253 = vpop.permute.xlu0 %2252
        %2255 = vset.pattern.permute.xlu0 8
        %2256 = vperm.xlu0 %2255, %v530
        %v2257 = vpop.permute.xlu0 %2256
        %2259 = vset.pattern.permute.xlu0 8
        %2260 = vperm.xlu0 %2259, %v531
        %v2261 = vpop.permute.xlu0 %2260
        %2263 = vset.pattern.permute.xlu0 8
        %2264 = vperm.xlu0 %2263, %v532
        %v2265 = vpop.permute.xlu0 %2264
        %2267 = vset.pattern.permute.xlu0 8
        %2268 = vperm.xlu0 %2267, %v533
        %v2269 = vpop.permute.xlu0 %2268
        %2271 = vset.pattern.permute.xlu0 8
        %2272 = vperm.xlu0 %2271, %v534
        %v2273 = vpop.permute.xlu0 %2272
        %2275 = vset.pattern.permute.xlu0 8
        %2276 = vperm.xlu0 %2275, %v535
        %v2277 = vpop.permute.xlu0 %2276
        %2279 = vset.pattern.permute.xlu0 8
        %2280 = vperm.xlu0 %2279, %v536
        %v2281 = vpop.permute.xlu0 %2280
        %2283 = vset.pattern.permute.xlu0 8
        %2284 = vperm.xlu0 %2283, %v537
        %v2285 = vpop.permute.xlu0 %2284
        %v2287 = vperm.slane %v575, 0
        %v2288 = vperm.slane %v604, 0
        %v2289 = vadd.f32 %v2225, %v2287
        %v2290 = vadd.f32 %v2225, %v2288
        %v2291 = vadd.f32 %v2229, %v2287
        %v2292 = vadd.f32 %v2229, %v2288
        %v2293 = vadd.f32 %v2233, %v2287
        %v2294 = vadd.f32 %v2233, %v2288
        %v2295 = vadd.f32 %v2237, %v2287
        %v2296 = vadd.f32 %v2237, %v2288
        %v2297 = vadd.f32 %v2241, %v2287
        %v2298 = vadd.f32 %v2241, %v2288
        %v2299 = vadd.f32 %v2245, %v2287
        %v2300 = vadd.f32 %v2245, %v2288
        %v2301 = vadd.f32 %v2249, %v2287
        %v2302 = vadd.f32 %v2249, %v2288
        %v2303 = vadd.f32 %v2253, %v2287
        %v2304 = vadd.f32 %v2253, %v2288
        %v2305 = vadd.f32 %v2257, %v2287
        %v2306 = vadd.f32 %v2257, %v2288
        %v2307 = vadd.f32 %v2261, %v2287
        %v2308 = vadd.f32 %v2261, %v2288
        %v2309 = vadd.f32 %v2265, %v2287
        %v2310 = vadd.f32 %v2265, %v2288
        %v2311 = vadd.f32 %v2269, %v2287
        %v2312 = vadd.f32 %v2269, %v2288
        %v2313 = vadd.f32 %v2273, %v2287
        %v2314 = vadd.f32 %v2273, %v2288
        %v2315 = vadd.f32 %v2277, %v2287
        %v2316 = vadd.f32 %v2277, %v2288
        %v2317 = vadd.f32 %v2281, %v2287
        %v2318 = vadd.f32 %v2281, %v2288
        %v2319 = vadd.f32 %v2285, %v2287
        %v2320 = vadd.f32 %v2285, %v2288
        %v2321 = vtanh.pop %v2289
        %v2322 = vtanh.pop %v2290
        %v2323 = vtanh.pop %v2291
        %v2324 = vtanh.pop %v2292
        %v2325 = vtanh.pop %v2293
        %v2326 = vtanh.pop %v2294
        %v2327 = vtanh.pop %v2295
        %v2328 = vtanh.pop %v2296
        %v2329 = vtanh.pop %v2297
        %v2330 = vtanh.pop %v2298
        %v2331 = vtanh.pop %v2299
        %v2332 = vtanh.pop %v2300
        %v2333 = vtanh.pop %v2301
        %v2334 = vtanh.pop %v2302
        %v2335 = vtanh.pop %v2303
        %v2336 = vtanh.pop %v2304
        %v2337 = vtanh.pop %v2305
        %v2338 = vtanh.pop %v2306
        %v2339 = vtanh.pop %v2307
        %v2340 = vtanh.pop %v2308
        %v2341 = vtanh.pop %v2309
        %v2342 = vtanh.pop %v2310
        %v2343 = vtanh.pop %v2311
        %v2344 = vtanh.pop %v2312
        %v2345 = vtanh.pop %v2313
        %v2346 = vtanh.pop %v2314
        %v2347 = vtanh.pop %v2315
        %v2348 = vtanh.pop %v2316
        %v2349 = vtanh.pop %v2317
        %v2350 = vtanh.pop %v2318
        %v2351 = vtanh.pop %v2319
        %v2352 = vtanh.pop %v2320
        %2353 = vset.pattern.permute.xlu0 8
        %2354 = vperm.xlu0 %2353, %v768
        %v2355 = vpop.permute.xlu0 %2354
        %v2357 = vmul.f32 %v2321, %v2355
        %v2358 = vmul.f32 %v2322, %v2355
        %v2359 = vmul.f32 %v2323, %v2355
        %v2360 = vmul.f32 %v2324, %v2355
        %v2361 = vmul.f32 %v2325, %v2355
        %v2362 = vmul.f32 %v2326, %v2355
        %v2363 = vmul.f32 %v2327, %v2355
        %v2364 = vmul.f32 %v2328, %v2355
        %v2365 = vmul.f32 %v2329, %v2355
        %v2366 = vmul.f32 %v2330, %v2355
        %v2367 = vmul.f32 %v2331, %v2355
        %v2368 = vmul.f32 %v2332, %v2355
        %v2369 = vmul.f32 %v2333, %v2355
        %v2370 = vmul.f32 %v2334, %v2355
        %v2371 = vmul.f32 %v2335, %v2355
        %v2372 = vmul.f32 %v2336, %v2355
        %v2373 = vmul.f32 %v2337, %v2355
        %v2374 = vmul.f32 %v2338, %v2355
        %v2375 = vmul.f32 %v2339, %v2355
        %v2376 = vmul.f32 %v2340, %v2355
        %v2377 = vmul.f32 %v2341, %v2355
        %v2378 = vmul.f32 %v2342, %v2355
        %v2379 = vmul.f32 %v2343, %v2355
        %v2380 = vmul.f32 %v2344, %v2355
        %v2381 = vmul.f32 %v2345, %v2355
        %v2382 = vmul.f32 %v2346, %v2355
        %v2383 = vmul.f32 %v2347, %v2355
        %v2384 = vmul.f32 %v2348, %v2355
        %v2385 = vmul.f32 %v2349, %v2355
        %v2386 = vmul.f32 %v2350, %v2355
        %v2387 = vmul.f32 %v2351, %v2355
        %v2388 = vmul.f32 %v2352, %v2355
        %v2389 = vadd.f32 %v2191, %v2357
        %v2390 = vadd.f32 %v2192, %v2358
        %v2391 = vadd.f32 %v2193, %v2359
        %v2392 = vadd.f32 %v2194, %v2360
        %v2393 = vadd.f32 %v2195, %v2361
        %v2394 = vadd.f32 %v2196, %v2362
        %v2395 = vadd.f32 %v2197, %v2363
        %v2396 = vadd.f32 %v2198, %v2364
        %v2397 = vadd.f32 %v2199, %v2365
        %v2398 = vadd.f32 %v2200, %v2366
        %v2399 = vadd.f32 %v2201, %v2367
        %v2400 = vadd.f32 %v2202, %v2368
        %v2401 = vadd.f32 %v2203, %v2369
        %v2402 = vadd.f32 %v2204, %v2370
        %v2403 = vadd.f32 %v2205, %v2371
        %v2404 = vadd.f32 %v2206, %v2372
        %v2405 = vadd.f32 %v2207, %v2373
        %v2406 = vadd.f32 %v2208, %v2374
        %v2407 = vadd.f32 %v2209, %v2375
        %v2408 = vadd.f32 %v2210, %v2376
        %v2409 = vadd.f32 %v2211, %v2377
        %v2410 = vadd.f32 %v2212, %v2378
        %v2411 = vadd.f32 %v2213, %v2379
        %v2412 = vadd.f32 %v2214, %v2380
        %v2413 = vadd.f32 %v2215, %v2381
        %v2414 = vadd.f32 %v2216, %v2382
        %v2415 = vadd.f32 %v2217, %v2383
        %v2416 = vadd.f32 %v2218, %v2384
        %v2417 = vadd.f32 %v2219, %v2385
        %v2418 = vadd.f32 %v2220, %v2386
        %v2419 = vadd.f32 %v2221, %v2387
        %v2420 = vadd.f32 %v2222, %v2388
        %2421 = vset.pattern.permute.xlu0 9
        %2422 = vperm.xlu0 %2421, %v522
        %v2423 = vpop.permute.xlu0 %2422
        %2425 = vset.pattern.permute.xlu0 9
        %2426 = vperm.xlu0 %2425, %v523
        %v2427 = vpop.permute.xlu0 %2426
        %2429 = vset.pattern.permute.xlu0 9
        %2430 = vperm.xlu0 %2429, %v524
        %v2431 = vpop.permute.xlu0 %2430
        %2433 = vset.pattern.permute.xlu0 9
        %2434 = vperm.xlu0 %2433, %v525
        %v2435 = vpop.permute.xlu0 %2434
        %2437 = vset.pattern.permute.xlu0 9
        %2438 = vperm.xlu0 %2437, %v526
        %v2439 = vpop.permute.xlu0 %2438
        %2441 = vset.pattern.permute.xlu0 9
        %2442 = vperm.xlu0 %2441, %v527
        %v2443 = vpop.permute.xlu0 %2442
        %2445 = vset.pattern.permute.xlu0 9
        %2446 = vperm.xlu0 %2445, %v528
        %v2447 = vpop.permute.xlu0 %2446
        %2449 = vset.pattern.permute.xlu0 9
        %2450 = vperm.xlu0 %2449, %v529
        %v2451 = vpop.permute.xlu0 %2450
        %2453 = vset.pattern.permute.xlu0 9
        %2454 = vperm.xlu0 %2453, %v530
        %v2455 = vpop.permute.xlu0 %2454
        %2457 = vset.pattern.permute.xlu0 9
        %2458 = vperm.xlu0 %2457, %v531
        %v2459 = vpop.permute.xlu0 %2458
        %2461 = vset.pattern.permute.xlu0 9
        %2462 = vperm.xlu0 %2461, %v532
        %v2463 = vpop.permute.xlu0 %2462
        %2465 = vset.pattern.permute.xlu0 9
        %2466 = vperm.xlu0 %2465, %v533
        %v2467 = vpop.permute.xlu0 %2466
        %2469 = vset.pattern.permute.xlu0 9
        %2470 = vperm.xlu0 %2469, %v534
        %v2471 = vpop.permute.xlu0 %2470
        %2473 = vset.pattern.permute.xlu0 9
        %2474 = vperm.xlu0 %2473, %v535
        %v2475 = vpop.permute.xlu0 %2474
        %2477 = vset.pattern.permute.xlu0 9
        %2478 = vperm.xlu0 %2477, %v536
        %v2479 = vpop.permute.xlu0 %2478
        %2481 = vset.pattern.permute.xlu0 9
        %2482 = vperm.xlu0 %2481, %v537
        %v2483 = vpop.permute.xlu0 %2482
        %v2485 = vperm.slane %v575, 1
        %v2486 = vperm.slane %v604, 1
        %v2487 = vadd.f32 %v2423, %v2485
        %v2488 = vadd.f32 %v2423, %v2486
        %v2489 = vadd.f32 %v2427, %v2485
        %v2490 = vadd.f32 %v2427, %v2486
        %v2491 = vadd.f32 %v2431, %v2485
        %v2492 = vadd.f32 %v2431, %v2486
        %v2493 = vadd.f32 %v2435, %v2485
        %v2494 = vadd.f32 %v2435, %v2486
        %v2495 = vadd.f32 %v2439, %v2485
        %v2496 = vadd.f32 %v2439, %v2486
        %v2497 = vadd.f32 %v2443, %v2485
        %v2498 = vadd.f32 %v2443, %v2486
        %v2499 = vadd.f32 %v2447, %v2485
        %v2500 = vadd.f32 %v2447, %v2486
        %v2501 = vadd.f32 %v2451, %v2485
        %v2502 = vadd.f32 %v2451, %v2486
        %v2503 = vadd.f32 %v2455, %v2485
        %v2504 = vadd.f32 %v2455, %v2486
        %v2505 = vadd.f32 %v2459, %v2485
        %v2506 = vadd.f32 %v2459, %v2486
        %v2507 = vadd.f32 %v2463, %v2485
        %v2508 = vadd.f32 %v2463, %v2486
        %v2509 = vadd.f32 %v2467, %v2485
        %v2510 = vadd.f32 %v2467, %v2486
        %v2511 = vadd.f32 %v2471, %v2485
        %v2512 = vadd.f32 %v2471, %v2486
        %v2513 = vadd.f32 %v2475, %v2485
        %v2514 = vadd.f32 %v2475, %v2486
        %v2515 = vadd.f32 %v2479, %v2485
        %v2516 = vadd.f32 %v2479, %v2486
        %v2517 = vadd.f32 %v2483, %v2485
        %v2518 = vadd.f32 %v2483, %v2486
        %v2519 = vtanh.pop %v2487
        %v2520 = vtanh.pop %v2488
        %v2521 = vtanh.pop %v2489
        %v2522 = vtanh.pop %v2490
        %v2523 = vtanh.pop %v2491
        %v2524 = vtanh.pop %v2492
        %v2525 = vtanh.pop %v2493
        %v2526 = vtanh.pop %v2494
        %v2527 = vtanh.pop %v2495
        %v2528 = vtanh.pop %v2496
        %v2529 = vtanh.pop %v2497
        %v2530 = vtanh.pop %v2498
        %v2531 = vtanh.pop %v2499
        %v2532 = vtanh.pop %v2500
        %v2533 = vtanh.pop %v2501
        %v2534 = vtanh.pop %v2502
        %v2535 = vtanh.pop %v2503
        %v2536 = vtanh.pop %v2504
        %v2537 = vtanh.pop %v2505
        %v2538 = vtanh.pop %v2506
        %v2539 = vtanh.pop %v2507
        %v2540 = vtanh.pop %v2508
        %v2541 = vtanh.pop %v2509
        %v2542 = vtanh.pop %v2510
        %v2543 = vtanh.pop %v2511
        %v2544 = vtanh.pop %v2512
        %v2545 = vtanh.pop %v2513
        %v2546 = vtanh.pop %v2514
        %v2547 = vtanh.pop %v2515
        %v2548 = vtanh.pop %v2516
        %v2549 = vtanh.pop %v2517
        %v2550 = vtanh.pop %v2518
        %2551 = vset.pattern.permute.xlu0 9
        %2552 = vperm.xlu0 %2551, %v768
        %v2553 = vpop.permute.xlu0 %2552
        %v2555 = vmul.f32 %v2519, %v2553
        %v2556 = vmul.f32 %v2520, %v2553
        %v2557 = vmul.f32 %v2521, %v2553
        %v2558 = vmul.f32 %v2522, %v2553
        %v2559 = vmul.f32 %v2523, %v2553
        %v2560 = vmul.f32 %v2524, %v2553
        %v2561 = vmul.f32 %v2525, %v2553
        %v2562 = vmul.f32 %v2526, %v2553
        %v2563 = vmul.f32 %v2527, %v2553
        %v2564 = vmul.f32 %v2528, %v2553
        %v2565 = vmul.f32 %v2529, %v2553
        %v2566 = vmul.f32 %v2530, %v2553
        %v2567 = vmul.f32 %v2531, %v2553
        %v2568 = vmul.f32 %v2532, %v2553
        %v2569 = vmul.f32 %v2533, %v2553
        %v2570 = vmul.f32 %v2534, %v2553
        %v2571 = vmul.f32 %v2535, %v2553
        %v2572 = vmul.f32 %v2536, %v2553
        %v2573 = vmul.f32 %v2537, %v2553
        %v2574 = vmul.f32 %v2538, %v2553
        %v2575 = vmul.f32 %v2539, %v2553
        %v2576 = vmul.f32 %v2540, %v2553
        %v2577 = vmul.f32 %v2541, %v2553
        %v2578 = vmul.f32 %v2542, %v2553
        %v2579 = vmul.f32 %v2543, %v2553
        %v2580 = vmul.f32 %v2544, %v2553
        %v2581 = vmul.f32 %v2545, %v2553
        %v2582 = vmul.f32 %v2546, %v2553
        %v2583 = vmul.f32 %v2547, %v2553
        %v2584 = vmul.f32 %v2548, %v2553
        %v2585 = vmul.f32 %v2549, %v2553
        %v2586 = vmul.f32 %v2550, %v2553
        %v2587 = vadd.f32 %v2389, %v2555
        %v2588 = vadd.f32 %v2390, %v2556
        %v2589 = vadd.f32 %v2391, %v2557
        %v2590 = vadd.f32 %v2392, %v2558
        %v2591 = vadd.f32 %v2393, %v2559
        %v2592 = vadd.f32 %v2394, %v2560
        %v2593 = vadd.f32 %v2395, %v2561
        %v2594 = vadd.f32 %v2396, %v2562
        %v2595 = vadd.f32 %v2397, %v2563
        %v2596 = vadd.f32 %v2398, %v2564
        %v2597 = vadd.f32 %v2399, %v2565
        %v2598 = vadd.f32 %v2400, %v2566
        %v2599 = vadd.f32 %v2401, %v2567
        %v2600 = vadd.f32 %v2402, %v2568
        %v2601 = vadd.f32 %v2403, %v2569
        %v2602 = vadd.f32 %v2404, %v2570
        %v2603 = vadd.f32 %v2405, %v2571
        %v2604 = vadd.f32 %v2406, %v2572
        %v2605 = vadd.f32 %v2407, %v2573
        %v2606 = vadd.f32 %v2408, %v2574
        %v2607 = vadd.f32 %v2409, %v2575
        %v2608 = vadd.f32 %v2410, %v2576
        %v2609 = vadd.f32 %v2411, %v2577
        %v2610 = vadd.f32 %v2412, %v2578
        %v2611 = vadd.f32 %v2413, %v2579
        %v2612 = vadd.f32 %v2414, %v2580
        %v2613 = vadd.f32 %v2415, %v2581
        %v2614 = vadd.f32 %v2416, %v2582
        %v2615 = vadd.f32 %v2417, %v2583
        %v2616 = vadd.f32 %v2418, %v2584
        %v2617 = vadd.f32 %v2419, %v2585
        %v2618 = vadd.f32 %v2420, %v2586
        %2619 = vset.pattern.permute.xlu0 10
        %2620 = vperm.xlu0 %2619, %v522
        %v2621 = vpop.permute.xlu0 %2620
        %2623 = vset.pattern.permute.xlu0 10
        %2624 = vperm.xlu0 %2623, %v523
        %v2625 = vpop.permute.xlu0 %2624
        %2627 = vset.pattern.permute.xlu0 10
        %2628 = vperm.xlu0 %2627, %v524
        %v2629 = vpop.permute.xlu0 %2628
        %2631 = vset.pattern.permute.xlu0 10
        %2632 = vperm.xlu0 %2631, %v525
        %v2633 = vpop.permute.xlu0 %2632
        %2635 = vset.pattern.permute.xlu0 10
        %2636 = vperm.xlu0 %2635, %v526
        %v2637 = vpop.permute.xlu0 %2636
        %2639 = vset.pattern.permute.xlu0 10
        %2640 = vperm.xlu0 %2639, %v527
        %v2641 = vpop.permute.xlu0 %2640
        %2643 = vset.pattern.permute.xlu0 10
        %2644 = vperm.xlu0 %2643, %v528
        %v2645 = vpop.permute.xlu0 %2644
        %2647 = vset.pattern.permute.xlu0 10
        %2648 = vperm.xlu0 %2647, %v529
        %v2649 = vpop.permute.xlu0 %2648
        %2651 = vset.pattern.permute.xlu0 10
        %2652 = vperm.xlu0 %2651, %v530
        %v2653 = vpop.permute.xlu0 %2652
        %2655 = vset.pattern.permute.xlu0 10
        %2656 = vperm.xlu0 %2655, %v531
        %v2657 = vpop.permute.xlu0 %2656
        %2659 = vset.pattern.permute.xlu0 10
        %2660 = vperm.xlu0 %2659, %v532
        %v2661 = vpop.permute.xlu0 %2660
        %2663 = vset.pattern.permute.xlu0 10
        %2664 = vperm.xlu0 %2663, %v533
        %v2665 = vpop.permute.xlu0 %2664
        %2667 = vset.pattern.permute.xlu0 10
        %2668 = vperm.xlu0 %2667, %v534
        %v2669 = vpop.permute.xlu0 %2668
        %2671 = vset.pattern.permute.xlu0 10
        %2672 = vperm.xlu0 %2671, %v535
        %v2673 = vpop.permute.xlu0 %2672
        %2675 = vset.pattern.permute.xlu0 10
        %2676 = vperm.xlu0 %2675, %v536
        %v2677 = vpop.permute.xlu0 %2676
        %2679 = vset.pattern.permute.xlu0 10
        %2680 = vperm.xlu0 %2679, %v537
        %v2681 = vpop.permute.xlu0 %2680
        %v2683 = vperm.slane %v575, 2
        %v2684 = vperm.slane %v604, 2
        %v2685 = vadd.f32 %v2621, %v2683
        %v2686 = vadd.f32 %v2621, %v2684
        %v2687 = vadd.f32 %v2625, %v2683
        %v2688 = vadd.f32 %v2625, %v2684
        %v2689 = vadd.f32 %v2629, %v2683
        %v2690 = vadd.f32 %v2629, %v2684
        %v2691 = vadd.f32 %v2633, %v2683
        %v2692 = vadd.f32 %v2633, %v2684
        %v2693 = vadd.f32 %v2637, %v2683
        %v2694 = vadd.f32 %v2637, %v2684
        %v2695 = vadd.f32 %v2641, %v2683
        %v2696 = vadd.f32 %v2641, %v2684
        %v2697 = vadd.f32 %v2645, %v2683
        %v2698 = vadd.f32 %v2645, %v2684
        %v2699 = vadd.f32 %v2649, %v2683
        %v2700 = vadd.f32 %v2649, %v2684
        %v2701 = vadd.f32 %v2653, %v2683
        %v2702 = vadd.f32 %v2653, %v2684
        %v2703 = vadd.f32 %v2657, %v2683
        %v2704 = vadd.f32 %v2657, %v2684
        %v2705 = vadd.f32 %v2661, %v2683
        %v2706 = vadd.f32 %v2661, %v2684
        %v2707 = vadd.f32 %v2665, %v2683
        %v2708 = vadd.f32 %v2665, %v2684
        %v2709 = vadd.f32 %v2669, %v2683
        %v2710 = vadd.f32 %v2669, %v2684
        %v2711 = vadd.f32 %v2673, %v2683
        %v2712 = vadd.f32 %v2673, %v2684
        %v2713 = vadd.f32 %v2677, %v2683
        %v2714 = vadd.f32 %v2677, %v2684
        %v2715 = vadd.f32 %v2681, %v2683
        %v2716 = vadd.f32 %v2681, %v2684
        %v2717 = vtanh.pop %v2685
        %v2718 = vtanh.pop %v2686
        %v2719 = vtanh.pop %v2687
        %v2720 = vtanh.pop %v2688
        %v2721 = vtanh.pop %v2689
        %v2722 = vtanh.pop %v2690
        %v2723 = vtanh.pop %v2691
        %v2724 = vtanh.pop %v2692
        %v2725 = vtanh.pop %v2693
        %v2726 = vtanh.pop %v2694
        %v2727 = vtanh.pop %v2695
        %v2728 = vtanh.pop %v2696
        %v2729 = vtanh.pop %v2697
        %v2730 = vtanh.pop %v2698
        %v2731 = vtanh.pop %v2699
        %v2732 = vtanh.pop %v2700
        %v2733 = vtanh.pop %v2701
        %v2734 = vtanh.pop %v2702
        %v2735 = vtanh.pop %v2703
        %v2736 = vtanh.pop %v2704
        %v2737 = vtanh.pop %v2705
        %v2738 = vtanh.pop %v2706
        %v2739 = vtanh.pop %v2707
        %v2740 = vtanh.pop %v2708
        %v2741 = vtanh.pop %v2709
        %v2742 = vtanh.pop %v2710
        %v2743 = vtanh.pop %v2711
        %v2744 = vtanh.pop %v2712
        %v2745 = vtanh.pop %v2713
        %v2746 = vtanh.pop %v2714
        %v2747 = vtanh.pop %v2715
        %v2748 = vtanh.pop %v2716
        %2749 = vset.pattern.permute.xlu0 10
        %2750 = vperm.xlu0 %2749, %v768
        %v2751 = vpop.permute.xlu0 %2750
        %v2753 = vmul.f32 %v2717, %v2751
        %v2754 = vmul.f32 %v2718, %v2751
        %v2755 = vmul.f32 %v2719, %v2751
        %v2756 = vmul.f32 %v2720, %v2751
        %v2757 = vmul.f32 %v2721, %v2751
        %v2758 = vmul.f32 %v2722, %v2751
        %v2759 = vmul.f32 %v2723, %v2751
        %v2760 = vmul.f32 %v2724, %v2751
        %v2761 = vmul.f32 %v2725, %v2751
        %v2762 = vmul.f32 %v2726, %v2751
        %v2763 = vmul.f32 %v2727, %v2751
        %v2764 = vmul.f32 %v2728, %v2751
        %v2765 = vmul.f32 %v2729, %v2751
        %v2766 = vmul.f32 %v2730, %v2751
        %v2767 = vmul.f32 %v2731, %v2751
        %v2768 = vmul.f32 %v2732, %v2751
        %v2769 = vmul.f32 %v2733, %v2751
        %v2770 = vmul.f32 %v2734, %v2751
        %v2771 = vmul.f32 %v2735, %v2751
        %v2772 = vmul.f32 %v2736, %v2751
        %v2773 = vmul.f32 %v2737, %v2751
        %v2774 = vmul.f32 %v2738, %v2751
        %v2775 = vmul.f32 %v2739, %v2751
        %v2776 = vmul.f32 %v2740, %v2751
        %v2777 = vmul.f32 %v2741, %v2751
        %v2778 = vmul.f32 %v2742, %v2751
        %v2779 = vmul.f32 %v2743, %v2751
        %v2780 = vmul.f32 %v2744, %v2751
        %v2781 = vmul.f32 %v2745, %v2751
        %v2782 = vmul.f32 %v2746, %v2751
        %v2783 = vmul.f32 %v2747, %v2751
        %v2784 = vmul.f32 %v2748, %v2751
        %v2785 = vadd.f32 %v2587, %v2753
        %v2786 = vadd.f32 %v2588, %v2754
        %v2787 = vadd.f32 %v2589, %v2755
        %v2788 = vadd.f32 %v2590, %v2756
        %v2789 = vadd.f32 %v2591, %v2757
        %v2790 = vadd.f32 %v2592, %v2758
        %v2791 = vadd.f32 %v2593, %v2759
        %v2792 = vadd.f32 %v2594, %v2760
        %v2793 = vadd.f32 %v2595, %v2761
        %v2794 = vadd.f32 %v2596, %v2762
        %v2795 = vadd.f32 %v2597, %v2763
        %v2796 = vadd.f32 %v2598, %v2764
        %v2797 = vadd.f32 %v2599, %v2765
        %v2798 = vadd.f32 %v2600, %v2766
        %v2799 = vadd.f32 %v2601, %v2767
        %v2800 = vadd.f32 %v2602, %v2768
        %v2801 = vadd.f32 %v2603, %v2769
        %v2802 = vadd.f32 %v2604, %v2770
        %v2803 = vadd.f32 %v2605, %v2771
        %v2804 = vadd.f32 %v2606, %v2772
        %v2805 = vadd.f32 %v2607, %v2773
        %v2806 = vadd.f32 %v2608, %v2774
        %v2807 = vadd.f32 %v2609, %v2775
        %v2808 = vadd.f32 %v2610, %v2776
        %v2809 = vadd.f32 %v2611, %v2777
        %v2810 = vadd.f32 %v2612, %v2778
        %v2811 = vadd.f32 %v2613, %v2779
        %v2812 = vadd.f32 %v2614, %v2780
        %v2813 = vadd.f32 %v2615, %v2781
        %v2814 = vadd.f32 %v2616, %v2782
        %v2815 = vadd.f32 %v2617, %v2783
        %v2816 = vadd.f32 %v2618, %v2784
        %2817 = vset.pattern.permute.xlu0 11
        %2818 = vperm.xlu0 %2817, %v522
        %v2819 = vpop.permute.xlu0 %2818
        %2821 = vset.pattern.permute.xlu0 11
        %2822 = vperm.xlu0 %2821, %v523
        %v2823 = vpop.permute.xlu0 %2822
        %2825 = vset.pattern.permute.xlu0 11
        %2826 = vperm.xlu0 %2825, %v524
        %v2827 = vpop.permute.xlu0 %2826
        %2829 = vset.pattern.permute.xlu0 11
        %2830 = vperm.xlu0 %2829, %v525
        %v2831 = vpop.permute.xlu0 %2830
        %2833 = vset.pattern.permute.xlu0 11
        %2834 = vperm.xlu0 %2833, %v526
        %v2835 = vpop.permute.xlu0 %2834
        %2837 = vset.pattern.permute.xlu0 11
        %2838 = vperm.xlu0 %2837, %v527
        %v2839 = vpop.permute.xlu0 %2838
        %2841 = vset.pattern.permute.xlu0 11
        %2842 = vperm.xlu0 %2841, %v528
        %v2843 = vpop.permute.xlu0 %2842
        %2845 = vset.pattern.permute.xlu0 11
        %2846 = vperm.xlu0 %2845, %v529
        %v2847 = vpop.permute.xlu0 %2846
        %2849 = vset.pattern.permute.xlu0 11
        %2850 = vperm.xlu0 %2849, %v530
        %v2851 = vpop.permute.xlu0 %2850
        %2853 = vset.pattern.permute.xlu0 11
        %2854 = vperm.xlu0 %2853, %v531
        %v2855 = vpop.permute.xlu0 %2854
        %2857 = vset.pattern.permute.xlu0 11
        %2858 = vperm.xlu0 %2857, %v532
        %v2859 = vpop.permute.xlu0 %2858
        %2861 = vset.pattern.permute.xlu0 11
        %2862 = vperm.xlu0 %2861, %v533
        %v2863 = vpop.permute.xlu0 %2862
        %2865 = vset.pattern.permute.xlu0 11
        %2866 = vperm.xlu0 %2865, %v534
        %v2867 = vpop.permute.xlu0 %2866
        %2869 = vset.pattern.permute.xlu0 11
        %2870 = vperm.xlu0 %2869, %v535
        %v2871 = vpop.permute.xlu0 %2870
        %2873 = vset.pattern.permute.xlu0 11
        %2874 = vperm.xlu0 %2873, %v536
        %v2875 = vpop.permute.xlu0 %2874
        %2877 = vset.pattern.permute.xlu0 11
        %2878 = vperm.xlu0 %2877, %v537
        %v2879 = vpop.permute.xlu0 %2878
        %v2881 = vperm.slane %v575, 3
        %v2882 = vperm.slane %v604, 3
        %v2883 = vadd.f32 %v2819, %v2881
        %v2884 = vadd.f32 %v2819, %v2882
        %v2885 = vadd.f32 %v2823, %v2881
        %v2886 = vadd.f32 %v2823, %v2882
        %v2887 = vadd.f32 %v2827, %v2881
        %v2888 = vadd.f32 %v2827, %v2882
        %v2889 = vadd.f32 %v2831, %v2881
        %v2890 = vadd.f32 %v2831, %v2882
        %v2891 = vadd.f32 %v2835, %v2881
        %v2892 = vadd.f32 %v2835, %v2882
        %v2893 = vadd.f32 %v2839, %v2881
        %v2894 = vadd.f32 %v2839, %v2882
        %v2895 = vadd.f32 %v2843, %v2881
        %v2896 = vadd.f32 %v2843, %v2882
        %v2897 = vadd.f32 %v2847, %v2881
        %v2898 = vadd.f32 %v2847, %v2882
        %v2899 = vadd.f32 %v2851, %v2881
        %v2900 = vadd.f32 %v2851, %v2882
        %v2901 = vadd.f32 %v2855, %v2881
        %v2902 = vadd.f32 %v2855, %v2882
        %v2903 = vadd.f32 %v2859, %v2881
        %v2904 = vadd.f32 %v2859, %v2882
        %v2905 = vadd.f32 %v2863, %v2881
        %v2906 = vadd.f32 %v2863, %v2882
        %v2907 = vadd.f32 %v2867, %v2881
        %v2908 = vadd.f32 %v2867, %v2882
        %v2909 = vadd.f32 %v2871, %v2881
        %v2910 = vadd.f32 %v2871, %v2882
        %v2911 = vadd.f32 %v2875, %v2881
        %v2912 = vadd.f32 %v2875, %v2882
        %v2913 = vadd.f32 %v2879, %v2881
        %v2914 = vadd.f32 %v2879, %v2882
        %v2915 = vtanh.pop %v2883
        %v2916 = vtanh.pop %v2884
        %v2917 = vtanh.pop %v2885
        %v2918 = vtanh.pop %v2886
        %v2919 = vtanh.pop %v2887
        %v2920 = vtanh.pop %v2888
        %v2921 = vtanh.pop %v2889
        %v2922 = vtanh.pop %v2890
        %v2923 = vtanh.pop %v2891
        %v2924 = vtanh.pop %v2892
        %v2925 = vtanh.pop %v2893
        %v2926 = vtanh.pop %v2894
        %v2927 = vtanh.pop %v2895
        %v2928 = vtanh.pop %v2896
        %v2929 = vtanh.pop %v2897
        %v2930 = vtanh.pop %v2898
        %v2931 = vtanh.pop %v2899
        %v2932 = vtanh.pop %v2900
        %v2933 = vtanh.pop %v2901
        %v2934 = vtanh.pop %v2902
        %v2935 = vtanh.pop %v2903
        %v2936 = vtanh.pop %v2904
        %v2937 = vtanh.pop %v2905
        %v2938 = vtanh.pop %v2906
        %v2939 = vtanh.pop %v2907
        %v2940 = vtanh.pop %v2908
        %v2941 = vtanh.pop %v2909
        %v2942 = vtanh.pop %v2910
        %v2943 = vtanh.pop %v2911
        %v2944 = vtanh.pop %v2912
        %v2945 = vtanh.pop %v2913
        %v2946 = vtanh.pop %v2914
        %2947 = vset.pattern.permute.xlu0 11
        %2948 = vperm.xlu0 %2947, %v768
        %v2949 = vpop.permute.xlu0 %2948
        %v2951 = vmul.f32 %v2915, %v2949
        %v2952 = vmul.f32 %v2916, %v2949
        %v2953 = vmul.f32 %v2917, %v2949
        %v2954 = vmul.f32 %v2918, %v2949
        %v2955 = vmul.f32 %v2919, %v2949
        %v2956 = vmul.f32 %v2920, %v2949
        %v2957 = vmul.f32 %v2921, %v2949
        %v2958 = vmul.f32 %v2922, %v2949
        %v2959 = vmul.f32 %v2923, %v2949
        %v2960 = vmul.f32 %v2924, %v2949
        %v2961 = vmul.f32 %v2925, %v2949
        %v2962 = vmul.f32 %v2926, %v2949
        %v2963 = vmul.f32 %v2927, %v2949
        %v2964 = vmul.f32 %v2928, %v2949
        %v2965 = vmul.f32 %v2929, %v2949
        %v2966 = vmul.f32 %v2930, %v2949
        %v2967 = vmul.f32 %v2931, %v2949
        %v2968 = vmul.f32 %v2932, %v2949
        %v2969 = vmul.f32 %v2933, %v2949
        %v2970 = vmul.f32 %v2934, %v2949
        %v2971 = vmul.f32 %v2935, %v2949
        %v2972 = vmul.f32 %v2936, %v2949
        %v2973 = vmul.f32 %v2937, %v2949
        %v2974 = vmul.f32 %v2938, %v2949
        %v2975 = vmul.f32 %v2939, %v2949
        %v2976 = vmul.f32 %v2940, %v2949
        %v2977 = vmul.f32 %v2941, %v2949
        %v2978 = vmul.f32 %v2942, %v2949
        %v2979 = vmul.f32 %v2943, %v2949
        %v2980 = vmul.f32 %v2944, %v2949
        %v2981 = vmul.f32 %v2945, %v2949
        %v2982 = vmul.f32 %v2946, %v2949
        %v2983 = vadd.f32 %v2785, %v2951
        %v2984 = vadd.f32 %v2786, %v2952
        %v2985 = vadd.f32 %v2787, %v2953
        %v2986 = vadd.f32 %v2788, %v2954
        %v2987 = vadd.f32 %v2789, %v2955
        %v2988 = vadd.f32 %v2790, %v2956
        %v2989 = vadd.f32 %v2791, %v2957
        %v2990 = vadd.f32 %v2792, %v2958
        %v2991 = vadd.f32 %v2793, %v2959
        %v2992 = vadd.f32 %v2794, %v2960
        %v2993 = vadd.f32 %v2795, %v2961
        %v2994 = vadd.f32 %v2796, %v2962
        %v2995 = vadd.f32 %v2797, %v2963
        %v2996 = vadd.f32 %v2798, %v2964
        %v2997 = vadd.f32 %v2799, %v2965
        %v2998 = vadd.f32 %v2800, %v2966
        %v2999 = vadd.f32 %v2801, %v2967
        %v3000 = vadd.f32 %v2802, %v2968
        %v3001 = vadd.f32 %v2803, %v2969
        %v3002 = vadd.f32 %v2804, %v2970
        %v3003 = vadd.f32 %v2805, %v2971
        %v3004 = vadd.f32 %v2806, %v2972
        %v3005 = vadd.f32 %v2807, %v2973
        %v3006 = vadd.f32 %v2808, %v2974
        %v3007 = vadd.f32 %v2809, %v2975
        %v3008 = vadd.f32 %v2810, %v2976
        %v3009 = vadd.f32 %v2811, %v2977
        %v3010 = vadd.f32 %v2812, %v2978
        %v3011 = vadd.f32 %v2813, %v2979
        %v3012 = vadd.f32 %v2814, %v2980
        %v3013 = vadd.f32 %v2815, %v2981
        %v3014 = vadd.f32 %v2816, %v2982
        %3015 = vset.pattern.permute.xlu0 12
        %3016 = vperm.xlu0 %3015, %v522
        %v3017 = vpop.permute.xlu0 %3016
        %3019 = vset.pattern.permute.xlu0 12
        %3020 = vperm.xlu0 %3019, %v523
        %v3021 = vpop.permute.xlu0 %3020
        %3023 = vset.pattern.permute.xlu0 12
        %3024 = vperm.xlu0 %3023, %v524
        %v3025 = vpop.permute.xlu0 %3024
        %3027 = vset.pattern.permute.xlu0 12
        %3028 = vperm.xlu0 %3027, %v525
        %v3029 = vpop.permute.xlu0 %3028
        %3031 = vset.pattern.permute.xlu0 12
        %3032 = vperm.xlu0 %3031, %v526
        %v3033 = vpop.permute.xlu0 %3032
        %3035 = vset.pattern.permute.xlu0 12
        %3036 = vperm.xlu0 %3035, %v527
        %v3037 = vpop.permute.xlu0 %3036
        %3039 = vset.pattern.permute.xlu0 12
        %3040 = vperm.xlu0 %3039, %v528
        %v3041 = vpop.permute.xlu0 %3040
        %3043 = vset.pattern.permute.xlu0 12
        %3044 = vperm.xlu0 %3043, %v529
        %v3045 = vpop.permute.xlu0 %3044
        %3047 = vset.pattern.permute.xlu0 12
        %3048 = vperm.xlu0 %3047, %v530
        %v3049 = vpop.permute.xlu0 %3048
        %3051 = vset.pattern.permute.xlu0 12
        %3052 = vperm.xlu0 %3051, %v531
        %v3053 = vpop.permute.xlu0 %3052
        %3055 = vset.pattern.permute.xlu0 12
        %3056 = vperm.xlu0 %3055, %v532
        %v3057 = vpop.permute.xlu0 %3056
        %3059 = vset.pattern.permute.xlu0 12
        %3060 = vperm.xlu0 %3059, %v533
        %v3061 = vpop.permute.xlu0 %3060
        %3063 = vset.pattern.permute.xlu0 12
        %3064 = vperm.xlu0 %3063, %v534
        %v3065 = vpop.permute.xlu0 %3064
        %3067 = vset.pattern.permute.xlu0 12
        %3068 = vperm.xlu0 %3067, %v535
        %v3069 = vpop.permute.xlu0 %3068
        %3071 = vset.pattern.permute.xlu0 12
        %3072 = vperm.xlu0 %3071, %v536
        %v3073 = vpop.permute.xlu0 %3072
        %3075 = vset.pattern.permute.xlu0 12
        %3076 = vperm.xlu0 %3075, %v537
        %v3077 = vpop.permute.xlu0 %3076
        %v3079 = vperm.slane %v575, 4
        %v3080 = vperm.slane %v604, 4
        %v3081 = vadd.f32 %v3017, %v3079
        %v3082 = vadd.f32 %v3017, %v3080
        %v3083 = vadd.f32 %v3021, %v3079
        %v3084 = vadd.f32 %v3021, %v3080
        %v3085 = vadd.f32 %v3025, %v3079
        %v3086 = vadd.f32 %v3025, %v3080
        %v3087 = vadd.f32 %v3029, %v3079
        %v3088 = vadd.f32 %v3029, %v3080
        %v3089 = vadd.f32 %v3033, %v3079
        %v3090 = vadd.f32 %v3033, %v3080
        %v3091 = vadd.f32 %v3037, %v3079
        %v3092 = vadd.f32 %v3037, %v3080
        %v3093 = vadd.f32 %v3041, %v3079
        %v3094 = vadd.f32 %v3041, %v3080
        %v3095 = vadd.f32 %v3045, %v3079
        %v3096 = vadd.f32 %v3045, %v3080
        %v3097 = vadd.f32 %v3049, %v3079
        %v3098 = vadd.f32 %v3049, %v3080
        %v3099 = vadd.f32 %v3053, %v3079
        %v3100 = vadd.f32 %v3053, %v3080
        %v3101 = vadd.f32 %v3057, %v3079
        %v3102 = vadd.f32 %v3057, %v3080
        %v3103 = vadd.f32 %v3061, %v3079
        %v3104 = vadd.f32 %v3061, %v3080
        %v3105 = vadd.f32 %v3065, %v3079
        %v3106 = vadd.f32 %v3065, %v3080
        %v3107 = vadd.f32 %v3069, %v3079
        %v3108 = vadd.f32 %v3069, %v3080
        %v3109 = vadd.f32 %v3073, %v3079
        %v3110 = vadd.f32 %v3073, %v3080
        %v3111 = vadd.f32 %v3077, %v3079
        %v3112 = vadd.f32 %v3077, %v3080
        %v3113 = vtanh.pop %v3081
        %v3114 = vtanh.pop %v3082
        %v3115 = vtanh.pop %v3083
        %v3116 = vtanh.pop %v3084
        %v3117 = vtanh.pop %v3085
        %v3118 = vtanh.pop %v3086
        %v3119 = vtanh.pop %v3087
        %v3120 = vtanh.pop %v3088
        %v3121 = vtanh.pop %v3089
        %v3122 = vtanh.pop %v3090
        %v3123 = vtanh.pop %v3091
        %v3124 = vtanh.pop %v3092
        %v3125 = vtanh.pop %v3093
        %v3126 = vtanh.pop %v3094
        %v3127 = vtanh.pop %v3095
        %v3128 = vtanh.pop %v3096
        %v3129 = vtanh.pop %v3097
        %v3130 = vtanh.pop %v3098
        %v3131 = vtanh.pop %v3099
        %v3132 = vtanh.pop %v3100
        %v3133 = vtanh.pop %v3101
        %v3134 = vtanh.pop %v3102
        %v3135 = vtanh.pop %v3103
        %v3136 = vtanh.pop %v3104
        %v3137 = vtanh.pop %v3105
        %v3138 = vtanh.pop %v3106
        %v3139 = vtanh.pop %v3107
        %v3140 = vtanh.pop %v3108
        %v3141 = vtanh.pop %v3109
        %v3142 = vtanh.pop %v3110
        %v3143 = vtanh.pop %v3111
        %v3144 = vtanh.pop %v3112
        %3145 = vset.pattern.permute.xlu0 12
        %3146 = vperm.xlu0 %3145, %v768
        %v3147 = vpop.permute.xlu0 %3146
        %v3149 = vmul.f32 %v3113, %v3147
        %v3150 = vmul.f32 %v3114, %v3147
        %v3151 = vmul.f32 %v3115, %v3147
        %v3152 = vmul.f32 %v3116, %v3147
        %v3153 = vmul.f32 %v3117, %v3147
        %v3154 = vmul.f32 %v3118, %v3147
        %v3155 = vmul.f32 %v3119, %v3147
        %v3156 = vmul.f32 %v3120, %v3147
        %v3157 = vmul.f32 %v3121, %v3147
        %v3158 = vmul.f32 %v3122, %v3147
        %v3159 = vmul.f32 %v3123, %v3147
        %v3160 = vmul.f32 %v3124, %v3147
        %v3161 = vmul.f32 %v3125, %v3147
        %v3162 = vmul.f32 %v3126, %v3147
        %v3163 = vmul.f32 %v3127, %v3147
        %v3164 = vmul.f32 %v3128, %v3147
        %v3165 = vmul.f32 %v3129, %v3147
        %v3166 = vmul.f32 %v3130, %v3147
        %v3167 = vmul.f32 %v3131, %v3147
        %v3168 = vmul.f32 %v3132, %v3147
        %v3169 = vmul.f32 %v3133, %v3147
        %v3170 = vmul.f32 %v3134, %v3147
        %v3171 = vmul.f32 %v3135, %v3147
        %v3172 = vmul.f32 %v3136, %v3147
        %v3173 = vmul.f32 %v3137, %v3147
        %v3174 = vmul.f32 %v3138, %v3147
        %v3175 = vmul.f32 %v3139, %v3147
        %v3176 = vmul.f32 %v3140, %v3147
        %v3177 = vmul.f32 %v3141, %v3147
        %v3178 = vmul.f32 %v3142, %v3147
        %v3179 = vmul.f32 %v3143, %v3147
        %v3180 = vmul.f32 %v3144, %v3147
        %v3181 = vadd.f32 %v2983, %v3149
        %v3182 = vadd.f32 %v2984, %v3150
        %v3183 = vadd.f32 %v2985, %v3151
        %v3184 = vadd.f32 %v2986, %v3152
        %v3185 = vadd.f32 %v2987, %v3153
        %v3186 = vadd.f32 %v2988, %v3154
        %v3187 = vadd.f32 %v2989, %v3155
        %v3188 = vadd.f32 %v2990, %v3156
        %v3189 = vadd.f32 %v2991, %v3157
        %v3190 = vadd.f32 %v2992, %v3158
        %v3191 = vadd.f32 %v2993, %v3159
        %v3192 = vadd.f32 %v2994, %v3160
        %v3193 = vadd.f32 %v2995, %v3161
        %v3194 = vadd.f32 %v2996, %v3162
        %v3195 = vadd.f32 %v2997, %v3163
        %v3196 = vadd.f32 %v2998, %v3164
        %v3197 = vadd.f32 %v2999, %v3165
        %v3198 = vadd.f32 %v3000, %v3166
        %v3199 = vadd.f32 %v3001, %v3167
        %v3200 = vadd.f32 %v3002, %v3168
        %v3201 = vadd.f32 %v3003, %v3169
        %v3202 = vadd.f32 %v3004, %v3170
        %v3203 = vadd.f32 %v3005, %v3171
        %v3204 = vadd.f32 %v3006, %v3172
        %v3205 = vadd.f32 %v3007, %v3173
        %v3206 = vadd.f32 %v3008, %v3174
        %v3207 = vadd.f32 %v3009, %v3175
        %v3208 = vadd.f32 %v3010, %v3176
        %v3209 = vadd.f32 %v3011, %v3177
        %v3210 = vadd.f32 %v3012, %v3178
        %v3211 = vadd.f32 %v3013, %v3179
        %v3212 = vadd.f32 %v3014, %v3180
        %3213 = vset.pattern.permute.xlu0 13
        %3214 = vperm.xlu0 %3213, %v522
        %v3215 = vpop.permute.xlu0 %3214
        %3217 = vset.pattern.permute.xlu0 13
        %3218 = vperm.xlu0 %3217, %v523
        %v3219 = vpop.permute.xlu0 %3218
        %3221 = vset.pattern.permute.xlu0 13
        %3222 = vperm.xlu0 %3221, %v524
        %v3223 = vpop.permute.xlu0 %3222
        %3225 = vset.pattern.permute.xlu0 13
        %3226 = vperm.xlu0 %3225, %v525
        %v3227 = vpop.permute.xlu0 %3226
        %3229 = vset.pattern.permute.xlu0 13
        %3230 = vperm.xlu0 %3229, %v526
        %v3231 = vpop.permute.xlu0 %3230
        %3233 = vset.pattern.permute.xlu0 13
        %3234 = vperm.xlu0 %3233, %v527
        %v3235 = vpop.permute.xlu0 %3234
        %3237 = vset.pattern.permute.xlu0 13
        %3238 = vperm.xlu0 %3237, %v528
        %v3239 = vpop.permute.xlu0 %3238
        %3241 = vset.pattern.permute.xlu0 13
        %3242 = vperm.xlu0 %3241, %v529
        %v3243 = vpop.permute.xlu0 %3242
        %3245 = vset.pattern.permute.xlu0 13
        %3246 = vperm.xlu0 %3245, %v530
        %v3247 = vpop.permute.xlu0 %3246
        %3249 = vset.pattern.permute.xlu0 13
        %3250 = vperm.xlu0 %3249, %v531
        %v3251 = vpop.permute.xlu0 %3250
        %3253 = vset.pattern.permute.xlu0 13
        %3254 = vperm.xlu0 %3253, %v532
        %v3255 = vpop.permute.xlu0 %3254
        %3257 = vset.pattern.permute.xlu0 13
        %3258 = vperm.xlu0 %3257, %v533
        %v3259 = vpop.permute.xlu0 %3258
        %3261 = vset.pattern.permute.xlu0 13
        %3262 = vperm.xlu0 %3261, %v534
        %v3263 = vpop.permute.xlu0 %3262
        %3265 = vset.pattern.permute.xlu0 13
        %3266 = vperm.xlu0 %3265, %v535
        %v3267 = vpop.permute.xlu0 %3266
        %3269 = vset.pattern.permute.xlu0 13
        %3270 = vperm.xlu0 %3269, %v536
        %v3271 = vpop.permute.xlu0 %3270
        %3273 = vset.pattern.permute.xlu0 13
        %3274 = vperm.xlu0 %3273, %v537
        %v3275 = vpop.permute.xlu0 %3274
        %v3277 = vperm.slane %v575, 5
        %v3278 = vperm.slane %v604, 5
        %v3279 = vadd.f32 %v3215, %v3277
        %v3280 = vadd.f32 %v3215, %v3278
        %v3281 = vadd.f32 %v3219, %v3277
        %v3282 = vadd.f32 %v3219, %v3278
        %v3283 = vadd.f32 %v3223, %v3277
        %v3284 = vadd.f32 %v3223, %v3278
        %v3285 = vadd.f32 %v3227, %v3277
        %v3286 = vadd.f32 %v3227, %v3278
        %v3287 = vadd.f32 %v3231, %v3277
        %v3288 = vadd.f32 %v3231, %v3278
        %v3289 = vadd.f32 %v3235, %v3277
        %v3290 = vadd.f32 %v3235, %v3278
        %v3291 = vadd.f32 %v3239, %v3277
        %v3292 = vadd.f32 %v3239, %v3278
        %v3293 = vadd.f32 %v3243, %v3277
        %v3294 = vadd.f32 %v3243, %v3278
        %v3295 = vadd.f32 %v3247, %v3277
        %v3296 = vadd.f32 %v3247, %v3278
        %v3297 = vadd.f32 %v3251, %v3277
        %v3298 = vadd.f32 %v3251, %v3278
        %v3299 = vadd.f32 %v3255, %v3277
        %v3300 = vadd.f32 %v3255, %v3278
        %v3301 = vadd.f32 %v3259, %v3277
        %v3302 = vadd.f32 %v3259, %v3278
        %v3303 = vadd.f32 %v3263, %v3277
        %v3304 = vadd.f32 %v3263, %v3278
        %v3305 = vadd.f32 %v3267, %v3277
        %v3306 = vadd.f32 %v3267, %v3278
        %v3307 = vadd.f32 %v3271, %v3277
        %v3308 = vadd.f32 %v3271, %v3278
        %v3309 = vadd.f32 %v3275, %v3277
        %v3310 = vadd.f32 %v3275, %v3278
        %v3311 = vtanh.pop %v3279
        %v3312 = vtanh.pop %v3280
        %v3313 = vtanh.pop %v3281
        %v3314 = vtanh.pop %v3282
        %v3315 = vtanh.pop %v3283
        %v3316 = vtanh.pop %v3284
        %v3317 = vtanh.pop %v3285
        %v3318 = vtanh.pop %v3286
        %v3319 = vtanh.pop %v3287
        %v3320 = vtanh.pop %v3288
        %v3321 = vtanh.pop %v3289
        %v3322 = vtanh.pop %v3290
        %v3323 = vtanh.pop %v3291
        %v3324 = vtanh.pop %v3292
        %v3325 = vtanh.pop %v3293
        %v3326 = vtanh.pop %v3294
        %v3327 = vtanh.pop %v3295
        %v3328 = vtanh.pop %v3296
        %v3329 = vtanh.pop %v3297
        %v3330 = vtanh.pop %v3298
        %v3331 = vtanh.pop %v3299
        %v3332 = vtanh.pop %v3300
        %v3333 = vtanh.pop %v3301
        %v3334 = vtanh.pop %v3302
        %v3335 = vtanh.pop %v3303
        %v3336 = vtanh.pop %v3304
        %v3337 = vtanh.pop %v3305
        %v3338 = vtanh.pop %v3306
        %v3339 = vtanh.pop %v3307
        %v3340 = vtanh.pop %v3308
        %v3341 = vtanh.pop %v3309
        %v3342 = vtanh.pop %v3310
        %3343 = vset.pattern.permute.xlu0 13
        %3344 = vperm.xlu0 %3343, %v768
        %v3345 = vpop.permute.xlu0 %3344
        %v3347 = vmul.f32 %v3311, %v3345
        %v3348 = vmul.f32 %v3312, %v3345
        %v3349 = vmul.f32 %v3313, %v3345
        %v3350 = vmul.f32 %v3314, %v3345
        %v3351 = vmul.f32 %v3315, %v3345
        %v3352 = vmul.f32 %v3316, %v3345
        %v3353 = vmul.f32 %v3317, %v3345
        %v3354 = vmul.f32 %v3318, %v3345
        %v3355 = vmul.f32 %v3319, %v3345
        %v3356 = vmul.f32 %v3320, %v3345
        %v3357 = vmul.f32 %v3321, %v3345
        %v3358 = vmul.f32 %v3322, %v3345
        %v3359 = vmul.f32 %v3323, %v3345
        %v3360 = vmul.f32 %v3324, %v3345
        %v3361 = vmul.f32 %v3325, %v3345
        %v3362 = vmul.f32 %v3326, %v3345
        %v3363 = vmul.f32 %v3327, %v3345
        %v3364 = vmul.f32 %v3328, %v3345
        %v3365 = vmul.f32 %v3329, %v3345
        %v3366 = vmul.f32 %v3330, %v3345
        %v3367 = vmul.f32 %v3331, %v3345
        %v3368 = vmul.f32 %v3332, %v3345
        %v3369 = vmul.f32 %v3333, %v3345
        %v3370 = vmul.f32 %v3334, %v3345
        %v3371 = vmul.f32 %v3335, %v3345
        %v3372 = vmul.f32 %v3336, %v3345
        %v3373 = vmul.f32 %v3337, %v3345
        %v3374 = vmul.f32 %v3338, %v3345
        %v3375 = vmul.f32 %v3339, %v3345
        %v3376 = vmul.f32 %v3340, %v3345
        %v3377 = vmul.f32 %v3341, %v3345
        %v3378 = vmul.f32 %v3342, %v3345
        %v3379 = vadd.f32 %v3181, %v3347
        %v3380 = vadd.f32 %v3182, %v3348
        %v3381 = vadd.f32 %v3183, %v3349
        %v3382 = vadd.f32 %v3184, %v3350
        %v3383 = vadd.f32 %v3185, %v3351
        %v3384 = vadd.f32 %v3186, %v3352
        %v3385 = vadd.f32 %v3187, %v3353
        %v3386 = vadd.f32 %v3188, %v3354
        %v3387 = vadd.f32 %v3189, %v3355
        %v3388 = vadd.f32 %v3190, %v3356
        %v3389 = vadd.f32 %v3191, %v3357
        %v3390 = vadd.f32 %v3192, %v3358
        %v3391 = vadd.f32 %v3193, %v3359
        %v3392 = vadd.f32 %v3194, %v3360
        %v3393 = vadd.f32 %v3195, %v3361
        %v3394 = vadd.f32 %v3196, %v3362
        %v3395 = vadd.f32 %v3197, %v3363
        %v3396 = vadd.f32 %v3198, %v3364
        %v3397 = vadd.f32 %v3199, %v3365
        %v3398 = vadd.f32 %v3200, %v3366
        %v3399 = vadd.f32 %v3201, %v3367
        %v3400 = vadd.f32 %v3202, %v3368
        %v3401 = vadd.f32 %v3203, %v3369
        %v3402 = vadd.f32 %v3204, %v3370
        %v3403 = vadd.f32 %v3205, %v3371
        %v3404 = vadd.f32 %v3206, %v3372
        %v3405 = vadd.f32 %v3207, %v3373
        %v3406 = vadd.f32 %v3208, %v3374
        %v3407 = vadd.f32 %v3209, %v3375
        %v3408 = vadd.f32 %v3210, %v3376
        %v3409 = vadd.f32 %v3211, %v3377
        %v3410 = vadd.f32 %v3212, %v3378
        %3411 = vset.pattern.permute.xlu0 14
        %3412 = vperm.xlu0 %3411, %v522
        %v3413 = vpop.permute.xlu0 %3412
        %3415 = vset.pattern.permute.xlu0 14
        %3416 = vperm.xlu0 %3415, %v523
        %v3417 = vpop.permute.xlu0 %3416
        %3419 = vset.pattern.permute.xlu0 14
        %3420 = vperm.xlu0 %3419, %v524
        %v3421 = vpop.permute.xlu0 %3420
        %3423 = vset.pattern.permute.xlu0 14
        %3424 = vperm.xlu0 %3423, %v525
        %v3425 = vpop.permute.xlu0 %3424
        %3427 = vset.pattern.permute.xlu0 14
        %3428 = vperm.xlu0 %3427, %v526
        %v3429 = vpop.permute.xlu0 %3428
        %3431 = vset.pattern.permute.xlu0 14
        %3432 = vperm.xlu0 %3431, %v527
        %v3433 = vpop.permute.xlu0 %3432
        %3435 = vset.pattern.permute.xlu0 14
        %3436 = vperm.xlu0 %3435, %v528
        %v3437 = vpop.permute.xlu0 %3436
        %3439 = vset.pattern.permute.xlu0 14
        %3440 = vperm.xlu0 %3439, %v529
        %v3441 = vpop.permute.xlu0 %3440
        %3443 = vset.pattern.permute.xlu0 14
        %3444 = vperm.xlu0 %3443, %v530
        %v3445 = vpop.permute.xlu0 %3444
        %3447 = vset.pattern.permute.xlu0 14
        %3448 = vperm.xlu0 %3447, %v531
        %v3449 = vpop.permute.xlu0 %3448
        %3451 = vset.pattern.permute.xlu0 14
        %3452 = vperm.xlu0 %3451, %v532
        %v3453 = vpop.permute.xlu0 %3452
        %3455 = vset.pattern.permute.xlu0 14
        %3456 = vperm.xlu0 %3455, %v533
        %v3457 = vpop.permute.xlu0 %3456
        %3459 = vset.pattern.permute.xlu0 14
        %3460 = vperm.xlu0 %3459, %v534
        %v3461 = vpop.permute.xlu0 %3460
        %3463 = vset.pattern.permute.xlu0 14
        %3464 = vperm.xlu0 %3463, %v535
        %v3465 = vpop.permute.xlu0 %3464
        %3467 = vset.pattern.permute.xlu0 14
        %3468 = vperm.xlu0 %3467, %v536
        %v3469 = vpop.permute.xlu0 %3468
        %3471 = vset.pattern.permute.xlu0 14
        %3472 = vperm.xlu0 %3471, %v537
        %v3473 = vpop.permute.xlu0 %3472
        %v3475 = vperm.slane %v575, 6
        %v3476 = vperm.slane %v604, 6
        %v3477 = vadd.f32 %v3413, %v3475
        %v3478 = vadd.f32 %v3413, %v3476
        %v3479 = vadd.f32 %v3417, %v3475
        %v3480 = vadd.f32 %v3417, %v3476
        %v3481 = vadd.f32 %v3421, %v3475
        %v3482 = vadd.f32 %v3421, %v3476
        %v3483 = vadd.f32 %v3425, %v3475
        %v3484 = vadd.f32 %v3425, %v3476
        %v3485 = vadd.f32 %v3429, %v3475
        %v3486 = vadd.f32 %v3429, %v3476
        %v3487 = vadd.f32 %v3433, %v3475
        %v3488 = vadd.f32 %v3433, %v3476
        %v3489 = vadd.f32 %v3437, %v3475
        %v3490 = vadd.f32 %v3437, %v3476
        %v3491 = vadd.f32 %v3441, %v3475
        %v3492 = vadd.f32 %v3441, %v3476
        %v3493 = vadd.f32 %v3445, %v3475
        %v3494 = vadd.f32 %v3445, %v3476
        %v3495 = vadd.f32 %v3449, %v3475
        %v3496 = vadd.f32 %v3449, %v3476
        %v3497 = vadd.f32 %v3453, %v3475
        %v3498 = vadd.f32 %v3453, %v3476
        %v3499 = vadd.f32 %v3457, %v3475
        %v3500 = vadd.f32 %v3457, %v3476
        %v3501 = vadd.f32 %v3461, %v3475
        %v3502 = vadd.f32 %v3461, %v3476
        %v3503 = vadd.f32 %v3465, %v3475
        %v3504 = vadd.f32 %v3465, %v3476
        %v3505 = vadd.f32 %v3469, %v3475
        %v3506 = vadd.f32 %v3469, %v3476
        %v3507 = vadd.f32 %v3473, %v3475
        %v3508 = vadd.f32 %v3473, %v3476
        %v3509 = vtanh.pop %v3477
        %v3510 = vtanh.pop %v3478
        %v3511 = vtanh.pop %v3479
        %v3512 = vtanh.pop %v3480
        %v3513 = vtanh.pop %v3481
        %v3514 = vtanh.pop %v3482
        %v3515 = vtanh.pop %v3483
        %v3516 = vtanh.pop %v3484
        %v3517 = vtanh.pop %v3485
        %v3518 = vtanh.pop %v3486
        %v3519 = vtanh.pop %v3487
        %v3520 = vtanh.pop %v3488
        %v3521 = vtanh.pop %v3489
        %v3522 = vtanh.pop %v3490
        %v3523 = vtanh.pop %v3491
        %v3524 = vtanh.pop %v3492
        %v3525 = vtanh.pop %v3493
        %v3526 = vtanh.pop %v3494
        %v3527 = vtanh.pop %v3495
        %v3528 = vtanh.pop %v3496
        %v3529 = vtanh.pop %v3497
        %v3530 = vtanh.pop %v3498
        %v3531 = vtanh.pop %v3499
        %v3532 = vtanh.pop %v3500
        %v3533 = vtanh.pop %v3501
        %v3534 = vtanh.pop %v3502
        %v3535 = vtanh.pop %v3503
        %v3536 = vtanh.pop %v3504
        %v3537 = vtanh.pop %v3505
        %v3538 = vtanh.pop %v3506
        %v3539 = vtanh.pop %v3507
        %v3540 = vtanh.pop %v3508
        %3541 = vset.pattern.permute.xlu0 14
        %3542 = vperm.xlu0 %3541, %v768
        %v3543 = vpop.permute.xlu0 %3542
        %v3545 = vmul.f32 %v3509, %v3543
        %v3546 = vmul.f32 %v3510, %v3543
        %v3547 = vmul.f32 %v3511, %v3543
        %v3548 = vmul.f32 %v3512, %v3543
        %v3549 = vmul.f32 %v3513, %v3543
        %v3550 = vmul.f32 %v3514, %v3543
        %v3551 = vmul.f32 %v3515, %v3543
        %v3552 = vmul.f32 %v3516, %v3543
        %v3553 = vmul.f32 %v3517, %v3543
        %v3554 = vmul.f32 %v3518, %v3543
        %v3555 = vmul.f32 %v3519, %v3543
        %v3556 = vmul.f32 %v3520, %v3543
        %v3557 = vmul.f32 %v3521, %v3543
        %v3558 = vmul.f32 %v3522, %v3543
        %v3559 = vmul.f32 %v3523, %v3543
        %v3560 = vmul.f32 %v3524, %v3543
        %v3561 = vmul.f32 %v3525, %v3543
        %v3562 = vmul.f32 %v3526, %v3543
        %v3563 = vmul.f32 %v3527, %v3543
        %v3564 = vmul.f32 %v3528, %v3543
        %v3565 = vmul.f32 %v3529, %v3543
        %v3566 = vmul.f32 %v3530, %v3543
        %v3567 = vmul.f32 %v3531, %v3543
        %v3568 = vmul.f32 %v3532, %v3543
        %v3569 = vmul.f32 %v3533, %v3543
        %v3570 = vmul.f32 %v3534, %v3543
        %v3571 = vmul.f32 %v3535, %v3543
        %v3572 = vmul.f32 %v3536, %v3543
        %v3573 = vmul.f32 %v3537, %v3543
        %v3574 = vmul.f32 %v3538, %v3543
        %v3575 = vmul.f32 %v3539, %v3543
        %v3576 = vmul.f32 %v3540, %v3543
        %v3577 = vadd.f32 %v3379, %v3545
        %v3578 = vadd.f32 %v3380, %v3546
        %v3579 = vadd.f32 %v3381, %v3547
        %v3580 = vadd.f32 %v3382, %v3548
        %v3581 = vadd.f32 %v3383, %v3549
        %v3582 = vadd.f32 %v3384, %v3550
        %v3583 = vadd.f32 %v3385, %v3551
        %v3584 = vadd.f32 %v3386, %v3552
        %v3585 = vadd.f32 %v3387, %v3553
        %v3586 = vadd.f32 %v3388, %v3554
        %v3587 = vadd.f32 %v3389, %v3555
        %v3588 = vadd.f32 %v3390, %v3556
        %v3589 = vadd.f32 %v3391, %v3557
        %v3590 = vadd.f32 %v3392, %v3558
        %v3591 = vadd.f32 %v3393, %v3559
        %v3592 = vadd.f32 %v3394, %v3560
        %v3593 = vadd.f32 %v3395, %v3561
        %v3594 = vadd.f32 %v3396, %v3562
        %v3595 = vadd.f32 %v3397, %v3563
        %v3596 = vadd.f32 %v3398, %v3564
        %v3597 = vadd.f32 %v3399, %v3565
        %v3598 = vadd.f32 %v3400, %v3566
        %v3599 = vadd.f32 %v3401, %v3567
        %v3600 = vadd.f32 %v3402, %v3568
        %v3601 = vadd.f32 %v3403, %v3569
        %v3602 = vadd.f32 %v3404, %v3570
        %v3603 = vadd.f32 %v3405, %v3571
        %v3604 = vadd.f32 %v3406, %v3572
        %v3605 = vadd.f32 %v3407, %v3573
        %v3606 = vadd.f32 %v3408, %v3574
        %v3607 = vadd.f32 %v3409, %v3575
        %v3608 = vadd.f32 %v3410, %v3576
        %3609 = vset.pattern.permute.xlu0 15
        %3610 = vperm.xlu0 %3609, %v522
        %v3611 = vpop.permute.xlu0 %3610
        %3613 = vset.pattern.permute.xlu0 15
        %3614 = vperm.xlu0 %3613, %v523
        %v3615 = vpop.permute.xlu0 %3614
        %3617 = vset.pattern.permute.xlu0 15
        %3618 = vperm.xlu0 %3617, %v524
        %v3619 = vpop.permute.xlu0 %3618
        %3621 = vset.pattern.permute.xlu0 15
        %3622 = vperm.xlu0 %3621, %v525
        %v3623 = vpop.permute.xlu0 %3622
        %3625 = vset.pattern.permute.xlu0 15
        %3626 = vperm.xlu0 %3625, %v526
        %v3627 = vpop.permute.xlu0 %3626
        %3629 = vset.pattern.permute.xlu0 15
        %3630 = vperm.xlu0 %3629, %v527
        %v3631 = vpop.permute.xlu0 %3630
        %3633 = vset.pattern.permute.xlu0 15
        %3634 = vperm.xlu0 %3633, %v528
        %v3635 = vpop.permute.xlu0 %3634
        %3637 = vset.pattern.permute.xlu0 15
        %3638 = vperm.xlu0 %3637, %v529
        %v3639 = vpop.permute.xlu0 %3638
        %3641 = vset.pattern.permute.xlu0 15
        %3642 = vperm.xlu0 %3641, %v530
        %v3643 = vpop.permute.xlu0 %3642
        %3645 = vset.pattern.permute.xlu0 15
        %3646 = vperm.xlu0 %3645, %v531
        %v3647 = vpop.permute.xlu0 %3646
        %3649 = vset.pattern.permute.xlu0 15
        %3650 = vperm.xlu0 %3649, %v532
        %v3651 = vpop.permute.xlu0 %3650
        %3653 = vset.pattern.permute.xlu0 15
        %3654 = vperm.xlu0 %3653, %v533
        %v3655 = vpop.permute.xlu0 %3654
        %3657 = vset.pattern.permute.xlu0 15
        %3658 = vperm.xlu0 %3657, %v534
        %v3659 = vpop.permute.xlu0 %3658
        %3661 = vset.pattern.permute.xlu0 15
        %3662 = vperm.xlu0 %3661, %v535
        %v3663 = vpop.permute.xlu0 %3662
        %3665 = vset.pattern.permute.xlu0 15
        %3666 = vperm.xlu0 %3665, %v536
        %v3667 = vpop.permute.xlu0 %3666
        %3669 = vset.pattern.permute.xlu0 15
        %3670 = vperm.xlu0 %3669, %v537
        %v3671 = vpop.permute.xlu0 %3670
        %v3673 = vperm.slane %v575, 7
        %v3674 = vperm.slane %v604, 7
        %v3675 = vadd.f32 %v3611, %v3673
        %v3676 = vadd.f32 %v3611, %v3674
        %v3677 = vadd.f32 %v3615, %v3673
        %v3678 = vadd.f32 %v3615, %v3674
        %v3679 = vadd.f32 %v3619, %v3673
        %v3680 = vadd.f32 %v3619, %v3674
        %v3681 = vadd.f32 %v3623, %v3673
        %v3682 = vadd.f32 %v3623, %v3674
        %v3683 = vadd.f32 %v3627, %v3673
        %v3684 = vadd.f32 %v3627, %v3674
        %v3685 = vadd.f32 %v3631, %v3673
        %v3686 = vadd.f32 %v3631, %v3674
        %v3687 = vadd.f32 %v3635, %v3673
        %v3688 = vadd.f32 %v3635, %v3674
        %v3689 = vadd.f32 %v3639, %v3673
        %v3690 = vadd.f32 %v3639, %v3674
        %v3691 = vadd.f32 %v3643, %v3673
        %v3692 = vadd.f32 %v3643, %v3674
        %v3693 = vadd.f32 %v3647, %v3673
        %v3694 = vadd.f32 %v3647, %v3674
        %v3695 = vadd.f32 %v3651, %v3673
        %v3696 = vadd.f32 %v3651, %v3674
        %v3697 = vadd.f32 %v3655, %v3673
        %v3698 = vadd.f32 %v3655, %v3674
        %v3699 = vadd.f32 %v3659, %v3673
        %v3700 = vadd.f32 %v3659, %v3674
        %v3701 = vadd.f32 %v3663, %v3673
        %v3702 = vadd.f32 %v3663, %v3674
        %v3703 = vadd.f32 %v3667, %v3673
        %v3704 = vadd.f32 %v3667, %v3674
        %v3705 = vadd.f32 %v3671, %v3673
        %v3706 = vadd.f32 %v3671, %v3674
        %v3707 = vtanh.pop %v3675
        %v3708 = vtanh.pop %v3676
        %v3709 = vtanh.pop %v3677
        %v3710 = vtanh.pop %v3678
        %v3711 = vtanh.pop %v3679
        %v3712 = vtanh.pop %v3680
        %v3713 = vtanh.pop %v3681
        %v3714 = vtanh.pop %v3682
        %v3715 = vtanh.pop %v3683
        %v3716 = vtanh.pop %v3684
        %v3717 = vtanh.pop %v3685
        %v3718 = vtanh.pop %v3686
        %v3719 = vtanh.pop %v3687
        %v3720 = vtanh.pop %v3688
        %v3721 = vtanh.pop %v3689
        %v3722 = vtanh.pop %v3690
        %v3723 = vtanh.pop %v3691
        %v3724 = vtanh.pop %v3692
        %v3725 = vtanh.pop %v3693
        %v3726 = vtanh.pop %v3694
        %v3727 = vtanh.pop %v3695
        %v3728 = vtanh.pop %v3696
        %v3729 = vtanh.pop %v3697
        %v3730 = vtanh.pop %v3698
        %v3731 = vtanh.pop %v3699
        %v3732 = vtanh.pop %v3700
        %v3733 = vtanh.pop %v3701
        %v3734 = vtanh.pop %v3702
        %v3735 = vtanh.pop %v3703
        %v3736 = vtanh.pop %v3704
        %v3737 = vtanh.pop %v3705
        %v3738 = vtanh.pop %v3706
        %3739 = vset.pattern.permute.xlu0 15
        %3740 = vperm.xlu0 %3739, %v768
        %v3741 = vpop.permute.xlu0 %3740
        %v3743 = vmul.f32 %v3707, %v3741
        %v3744 = vmul.f32 %v3708, %v3741
        %v3745 = vmul.f32 %v3709, %v3741
        %v3746 = vmul.f32 %v3710, %v3741
        %v3747 = vmul.f32 %v3711, %v3741
        %v3748 = vmul.f32 %v3712, %v3741
        %v3749 = vmul.f32 %v3713, %v3741
        %v3750 = vmul.f32 %v3714, %v3741
        %v3751 = vmul.f32 %v3715, %v3741
        %v3752 = vmul.f32 %v3716, %v3741
        %v3753 = vmul.f32 %v3717, %v3741
        %v3754 = vmul.f32 %v3718, %v3741
        %v3755 = vmul.f32 %v3719, %v3741
        %v3756 = vmul.f32 %v3720, %v3741
        %v3757 = vmul.f32 %v3721, %v3741
        %v3758 = vmul.f32 %v3722, %v3741
        %v3759 = vmul.f32 %v3723, %v3741
        %v3760 = vmul.f32 %v3724, %v3741
        %v3761 = vmul.f32 %v3725, %v3741
        %v3762 = vmul.f32 %v3726, %v3741
        %v3763 = vmul.f32 %v3727, %v3741
        %v3764 = vmul.f32 %v3728, %v3741
        %v3765 = vmul.f32 %v3729, %v3741
        %v3766 = vmul.f32 %v3730, %v3741
        %v3767 = vmul.f32 %v3731, %v3741
        %v3768 = vmul.f32 %v3732, %v3741
        %v3769 = vmul.f32 %v3733, %v3741
        %v3770 = vmul.f32 %v3734, %v3741
        %v3771 = vmul.f32 %v3735, %v3741
        %v3772 = vmul.f32 %v3736, %v3741
        %v3773 = vmul.f32 %v3737, %v3741
        %v3774 = vmul.f32 %v3738, %v3741
        %v3775 = vadd.f32 %v3577, %v3743
        %v3776 = vadd.f32 %v3578, %v3744
        %v3777 = vadd.f32 %v3579, %v3745
        %v3778 = vadd.f32 %v3580, %v3746
        %v3779 = vadd.f32 %v3581, %v3747
        %v3780 = vadd.f32 %v3582, %v3748
        %v3781 = vadd.f32 %v3583, %v3749
        %v3782 = vadd.f32 %v3584, %v3750
        %v3783 = vadd.f32 %v3585, %v3751
        %v3784 = vadd.f32 %v3586, %v3752
        %v3785 = vadd.f32 %v3587, %v3753
        %v3786 = vadd.f32 %v3588, %v3754
        %v3787 = vadd.f32 %v3589, %v3755
        %v3788 = vadd.f32 %v3590, %v3756
        %v3789 = vadd.f32 %v3591, %v3757
        %v3790 = vadd.f32 %v3592, %v3758
        %v3791 = vadd.f32 %v3593, %v3759
        %v3792 = vadd.f32 %v3594, %v3760
        %v3793 = vadd.f32 %v3595, %v3761
        %v3794 = vadd.f32 %v3596, %v3762
        %v3795 = vadd.f32 %v3597, %v3763
        %v3796 = vadd.f32 %v3598, %v3764
        %v3797 = vadd.f32 %v3599, %v3765
        %v3798 = vadd.f32 %v3600, %v3766
        %v3799 = vadd.f32 %v3601, %v3767
        %v3800 = vadd.f32 %v3602, %v3768
        %v3801 = vadd.f32 %v3603, %v3769
        %v3802 = vadd.f32 %v3604, %v3770
        %v3803 = vadd.f32 %v3605, %v3771
        %v3804 = vadd.f32 %v3606, %v3772
        %v3805 = vadd.f32 %v3607, %v3773
        %v3806 = vadd.f32 %v3608, %v3774
        %3807 = vset.pattern.permute.xlu0 16
        %3808 = vperm.xlu0 %3807, %v522
        %v3809 = vpop.permute.xlu0 %3808
        %3811 = vset.pattern.permute.xlu0 16
        %3812 = vperm.xlu0 %3811, %v523
        %v3813 = vpop.permute.xlu0 %3812
        %3815 = vset.pattern.permute.xlu0 16
        %3816 = vperm.xlu0 %3815, %v524
        %v3817 = vpop.permute.xlu0 %3816
        %3819 = vset.pattern.permute.xlu0 16
        %3820 = vperm.xlu0 %3819, %v525
        %v3821 = vpop.permute.xlu0 %3820
        %3823 = vset.pattern.permute.xlu0 16
        %3824 = vperm.xlu0 %3823, %v526
        %v3825 = vpop.permute.xlu0 %3824
        %3827 = vset.pattern.permute.xlu0 16
        %3828 = vperm.xlu0 %3827, %v527
        %v3829 = vpop.permute.xlu0 %3828
        %3831 = vset.pattern.permute.xlu0 16
        %3832 = vperm.xlu0 %3831, %v528
        %v3833 = vpop.permute.xlu0 %3832
        %3835 = vset.pattern.permute.xlu0 16
        %3836 = vperm.xlu0 %3835, %v529
        %v3837 = vpop.permute.xlu0 %3836
        %3839 = vset.pattern.permute.xlu0 16
        %3840 = vperm.xlu0 %3839, %v530
        %v3841 = vpop.permute.xlu0 %3840
        %3843 = vset.pattern.permute.xlu0 16
        %3844 = vperm.xlu0 %3843, %v531
        %v3845 = vpop.permute.xlu0 %3844
        %3847 = vset.pattern.permute.xlu0 16
        %3848 = vperm.xlu0 %3847, %v532
        %v3849 = vpop.permute.xlu0 %3848
        %3851 = vset.pattern.permute.xlu0 16
        %3852 = vperm.xlu0 %3851, %v533
        %v3853 = vpop.permute.xlu0 %3852
        %3855 = vset.pattern.permute.xlu0 16
        %3856 = vperm.xlu0 %3855, %v534
        %v3857 = vpop.permute.xlu0 %3856
        %3859 = vset.pattern.permute.xlu0 16
        %3860 = vperm.xlu0 %3859, %v535
        %v3861 = vpop.permute.xlu0 %3860
        %3863 = vset.pattern.permute.xlu0 16
        %3864 = vperm.xlu0 %3863, %v536
        %v3865 = vpop.permute.xlu0 %3864
        %3867 = vset.pattern.permute.xlu0 16
        %3868 = vperm.xlu0 %3867, %v537
        %v3869 = vpop.permute.xlu0 %3868
        %v3871 = vperm.slane %v578, 0
        %v3872 = vperm.slane %v607, 0
        %v3873 = vadd.f32 %v3809, %v3871
        %v3874 = vadd.f32 %v3809, %v3872
        %v3875 = vadd.f32 %v3813, %v3871
        %v3876 = vadd.f32 %v3813, %v3872
        %v3877 = vadd.f32 %v3817, %v3871
        %v3878 = vadd.f32 %v3817, %v3872
        %v3879 = vadd.f32 %v3821, %v3871
        %v3880 = vadd.f32 %v3821, %v3872
        %v3881 = vadd.f32 %v3825, %v3871
        %v3882 = vadd.f32 %v3825, %v3872
        %v3883 = vadd.f32 %v3829, %v3871
        %v3884 = vadd.f32 %v3829, %v3872
        %v3885 = vadd.f32 %v3833, %v3871
        %v3886 = vadd.f32 %v3833, %v3872
        %v3887 = vadd.f32 %v3837, %v3871
        %v3888 = vadd.f32 %v3837, %v3872
        %v3889 = vadd.f32 %v3841, %v3871
        %v3890 = vadd.f32 %v3841, %v3872
        %v3891 = vadd.f32 %v3845, %v3871
        %v3892 = vadd.f32 %v3845, %v3872
        %v3893 = vadd.f32 %v3849, %v3871
        %v3894 = vadd.f32 %v3849, %v3872
        %v3895 = vadd.f32 %v3853, %v3871
        %v3896 = vadd.f32 %v3853, %v3872
        %v3897 = vadd.f32 %v3857, %v3871
        %v3898 = vadd.f32 %v3857, %v3872
        %v3899 = vadd.f32 %v3861, %v3871
        %v3900 = vadd.f32 %v3861, %v3872
        %v3901 = vadd.f32 %v3865, %v3871
        %v3902 = vadd.f32 %v3865, %v3872
        %v3903 = vadd.f32 %v3869, %v3871
        %v3904 = vadd.f32 %v3869, %v3872
        %v3905 = vtanh.pop %v3873
        %v3906 = vtanh.pop %v3874
        %v3907 = vtanh.pop %v3875
        %v3908 = vtanh.pop %v3876
        %v3909 = vtanh.pop %v3877
        %v3910 = vtanh.pop %v3878
        %v3911 = vtanh.pop %v3879
        %v3912 = vtanh.pop %v3880
        %v3913 = vtanh.pop %v3881
        %v3914 = vtanh.pop %v3882
        %v3915 = vtanh.pop %v3883
        %v3916 = vtanh.pop %v3884
        %v3917 = vtanh.pop %v3885
        %v3918 = vtanh.pop %v3886
        %v3919 = vtanh.pop %v3887
        %v3920 = vtanh.pop %v3888
        %v3921 = vtanh.pop %v3889
        %v3922 = vtanh.pop %v3890
        %v3923 = vtanh.pop %v3891
        %v3924 = vtanh.pop %v3892
        %v3925 = vtanh.pop %v3893
        %v3926 = vtanh.pop %v3894
        %v3927 = vtanh.pop %v3895
        %v3928 = vtanh.pop %v3896
        %v3929 = vtanh.pop %v3897
        %v3930 = vtanh.pop %v3898
        %v3931 = vtanh.pop %v3899
        %v3932 = vtanh.pop %v3900
        %v3933 = vtanh.pop %v3901
        %v3934 = vtanh.pop %v3902
        %v3935 = vtanh.pop %v3903
        %v3936 = vtanh.pop %v3904
        %3937 = vset.pattern.permute.xlu0 16
        %3938 = vperm.xlu0 %3937, %v768
        %v3939 = vpop.permute.xlu0 %3938
        %v3941 = vmul.f32 %v3905, %v3939
        %v3942 = vmul.f32 %v3906, %v3939
        %v3943 = vmul.f32 %v3907, %v3939
        %v3944 = vmul.f32 %v3908, %v3939
        %v3945 = vmul.f32 %v3909, %v3939
        %v3946 = vmul.f32 %v3910, %v3939
        %v3947 = vmul.f32 %v3911, %v3939
        %v3948 = vmul.f32 %v3912, %v3939
        %v3949 = vmul.f32 %v3913, %v3939
        %v3950 = vmul.f32 %v3914, %v3939
        %v3951 = vmul.f32 %v3915, %v3939
        %v3952 = vmul.f32 %v3916, %v3939
        %v3953 = vmul.f32 %v3917, %v3939
        %v3954 = vmul.f32 %v3918, %v3939
        %v3955 = vmul.f32 %v3919, %v3939
        %v3956 = vmul.f32 %v3920, %v3939
        %v3957 = vmul.f32 %v3921, %v3939
        %v3958 = vmul.f32 %v3922, %v3939
        %v3959 = vmul.f32 %v3923, %v3939
        %v3960 = vmul.f32 %v3924, %v3939
        %v3961 = vmul.f32 %v3925, %v3939
        %v3962 = vmul.f32 %v3926, %v3939
        %v3963 = vmul.f32 %v3927, %v3939
        %v3964 = vmul.f32 %v3928, %v3939
        %v3965 = vmul.f32 %v3929, %v3939
        %v3966 = vmul.f32 %v3930, %v3939
        %v3967 = vmul.f32 %v3931, %v3939
        %v3968 = vmul.f32 %v3932, %v3939
        %v3969 = vmul.f32 %v3933, %v3939
        %v3970 = vmul.f32 %v3934, %v3939
        %v3971 = vmul.f32 %v3935, %v3939
        %v3972 = vmul.f32 %v3936, %v3939
        %v3973 = vadd.f32 %v3775, %v3941
        %v3974 = vadd.f32 %v3776, %v3942
        %v3975 = vadd.f32 %v3777, %v3943
        %v3976 = vadd.f32 %v3778, %v3944
        %v3977 = vadd.f32 %v3779, %v3945
        %v3978 = vadd.f32 %v3780, %v3946
        %v3979 = vadd.f32 %v3781, %v3947
        %v3980 = vadd.f32 %v3782, %v3948
        %v3981 = vadd.f32 %v3783, %v3949
        %v3982 = vadd.f32 %v3784, %v3950
        %v3983 = vadd.f32 %v3785, %v3951
        %v3984 = vadd.f32 %v3786, %v3952
        %v3985 = vadd.f32 %v3787, %v3953
        %v3986 = vadd.f32 %v3788, %v3954
        %v3987 = vadd.f32 %v3789, %v3955
        %v3988 = vadd.f32 %v3790, %v3956
        %v3989 = vadd.f32 %v3791, %v3957
        %v3990 = vadd.f32 %v3792, %v3958
        %v3991 = vadd.f32 %v3793, %v3959
        %v3992 = vadd.f32 %v3794, %v3960
        %v3993 = vadd.f32 %v3795, %v3961
        %v3994 = vadd.f32 %v3796, %v3962
        %v3995 = vadd.f32 %v3797, %v3963
        %v3996 = vadd.f32 %v3798, %v3964
        %v3997 = vadd.f32 %v3799, %v3965
        %v3998 = vadd.f32 %v3800, %v3966
        %v3999 = vadd.f32 %v3801, %v3967
        %v4000 = vadd.f32 %v3802, %v3968
        %v4001 = vadd.f32 %v3803, %v3969
        %v4002 = vadd.f32 %v3804, %v3970
        %v4003 = vadd.f32 %v3805, %v3971
        %v4004 = vadd.f32 %v3806, %v3972
        %4005 = vset.pattern.permute.xlu0 17
        %4006 = vperm.xlu0 %4005, %v522
        %v4007 = vpop.permute.xlu0 %4006
        %4009 = vset.pattern.permute.xlu0 17
        %4010 = vperm.xlu0 %4009, %v523
        %v4011 = vpop.permute.xlu0 %4010
        %4013 = vset.pattern.permute.xlu0 17
        %4014 = vperm.xlu0 %4013, %v524
        %v4015 = vpop.permute.xlu0 %4014
        %4017 = vset.pattern.permute.xlu0 17
        %4018 = vperm.xlu0 %4017, %v525
        %v4019 = vpop.permute.xlu0 %4018
        %4021 = vset.pattern.permute.xlu0 17
        %4022 = vperm.xlu0 %4021, %v526
        %v4023 = vpop.permute.xlu0 %4022
        %4025 = vset.pattern.permute.xlu0 17
        %4026 = vperm.xlu0 %4025, %v527
        %v4027 = vpop.permute.xlu0 %4026
        %4029 = vset.pattern.permute.xlu0 17
        %4030 = vperm.xlu0 %4029, %v528
        %v4031 = vpop.permute.xlu0 %4030
        %4033 = vset.pattern.permute.xlu0 17
        %4034 = vperm.xlu0 %4033, %v529
        %v4035 = vpop.permute.xlu0 %4034
        %4037 = vset.pattern.permute.xlu0 17
        %4038 = vperm.xlu0 %4037, %v530
        %v4039 = vpop.permute.xlu0 %4038
        %4041 = vset.pattern.permute.xlu0 17
        %4042 = vperm.xlu0 %4041, %v531
        %v4043 = vpop.permute.xlu0 %4042
        %4045 = vset.pattern.permute.xlu0 17
        %4046 = vperm.xlu0 %4045, %v532
        %v4047 = vpop.permute.xlu0 %4046
        %4049 = vset.pattern.permute.xlu0 17
        %4050 = vperm.xlu0 %4049, %v533
        %v4051 = vpop.permute.xlu0 %4050
        %4053 = vset.pattern.permute.xlu0 17
        %4054 = vperm.xlu0 %4053, %v534
        %v4055 = vpop.permute.xlu0 %4054
        %4057 = vset.pattern.permute.xlu0 17
        %4058 = vperm.xlu0 %4057, %v535
        %v4059 = vpop.permute.xlu0 %4058
        %4061 = vset.pattern.permute.xlu0 17
        %4062 = vperm.xlu0 %4061, %v536
        %v4063 = vpop.permute.xlu0 %4062
        %4065 = vset.pattern.permute.xlu0 17
        %4066 = vperm.xlu0 %4065, %v537
        %v4067 = vpop.permute.xlu0 %4066
        %v4069 = vperm.slane %v578, 1
        %v4070 = vperm.slane %v607, 1
        %v4071 = vadd.f32 %v4007, %v4069
        %v4072 = vadd.f32 %v4007, %v4070
        %v4073 = vadd.f32 %v4011, %v4069
        %v4074 = vadd.f32 %v4011, %v4070
        %v4075 = vadd.f32 %v4015, %v4069
        %v4076 = vadd.f32 %v4015, %v4070
        %v4077 = vadd.f32 %v4019, %v4069
        %v4078 = vadd.f32 %v4019, %v4070
        %v4079 = vadd.f32 %v4023, %v4069
        %v4080 = vadd.f32 %v4023, %v4070
        %v4081 = vadd.f32 %v4027, %v4069
        %v4082 = vadd.f32 %v4027, %v4070
        %v4083 = vadd.f32 %v4031, %v4069
        %v4084 = vadd.f32 %v4031, %v4070
        %v4085 = vadd.f32 %v4035, %v4069
        %v4086 = vadd.f32 %v4035, %v4070
        %v4087 = vadd.f32 %v4039, %v4069
        %v4088 = vadd.f32 %v4039, %v4070
        %v4089 = vadd.f32 %v4043, %v4069
        %v4090 = vadd.f32 %v4043, %v4070
        %v4091 = vadd.f32 %v4047, %v4069
        %v4092 = vadd.f32 %v4047, %v4070
        %v4093 = vadd.f32 %v4051, %v4069
        %v4094 = vadd.f32 %v4051, %v4070
        %v4095 = vadd.f32 %v4055, %v4069
        %v4096 = vadd.f32 %v4055, %v4070
        %v4097 = vadd.f32 %v4059, %v4069
        %v4098 = vadd.f32 %v4059, %v4070
        %v4099 = vadd.f32 %v4063, %v4069
        %v4100 = vadd.f32 %v4063, %v4070
        %v4101 = vadd.f32 %v4067, %v4069
        %v4102 = vadd.f32 %v4067, %v4070
        %v4103 = vtanh.pop %v4071
        %v4104 = vtanh.pop %v4072
        %v4105 = vtanh.pop %v4073
        %v4106 = vtanh.pop %v4074
        %v4107 = vtanh.pop %v4075
        %v4108 = vtanh.pop %v4076
        %v4109 = vtanh.pop %v4077
        %v4110 = vtanh.pop %v4078
        %v4111 = vtanh.pop %v4079
        %v4112 = vtanh.pop %v4080
        %v4113 = vtanh.pop %v4081
        %v4114 = vtanh.pop %v4082
        %v4115 = vtanh.pop %v4083
        %v4116 = vtanh.pop %v4084
        %v4117 = vtanh.pop %v4085
        %v4118 = vtanh.pop %v4086
        %v4119 = vtanh.pop %v4087
        %v4120 = vtanh.pop %v4088
        %v4121 = vtanh.pop %v4089
        %v4122 = vtanh.pop %v4090
        %v4123 = vtanh.pop %v4091
        %v4124 = vtanh.pop %v4092
        %v4125 = vtanh.pop %v4093
        %v4126 = vtanh.pop %v4094
        %v4127 = vtanh.pop %v4095
        %v4128 = vtanh.pop %v4096
        %v4129 = vtanh.pop %v4097
        %v4130 = vtanh.pop %v4098
        %v4131 = vtanh.pop %v4099
        %v4132 = vtanh.pop %v4100
        %v4133 = vtanh.pop %v4101
        %v4134 = vtanh.pop %v4102
        %4135 = vset.pattern.permute.xlu0 17
        %4136 = vperm.xlu0 %4135, %v768
        %v4137 = vpop.permute.xlu0 %4136
        %v4139 = vmul.f32 %v4103, %v4137
        %v4140 = vmul.f32 %v4104, %v4137
        %v4141 = vmul.f32 %v4105, %v4137
        %v4142 = vmul.f32 %v4106, %v4137
        %v4143 = vmul.f32 %v4107, %v4137
        %v4144 = vmul.f32 %v4108, %v4137
        %v4145 = vmul.f32 %v4109, %v4137
        %v4146 = vmul.f32 %v4110, %v4137
        %v4147 = vmul.f32 %v4111, %v4137
        %v4148 = vmul.f32 %v4112, %v4137
        %v4149 = vmul.f32 %v4113, %v4137
        %v4150 = vmul.f32 %v4114, %v4137
        %v4151 = vmul.f32 %v4115, %v4137
        %v4152 = vmul.f32 %v4116, %v4137
        %v4153 = vmul.f32 %v4117, %v4137
        %v4154 = vmul.f32 %v4118, %v4137
        %v4155 = vmul.f32 %v4119, %v4137
        %v4156 = vmul.f32 %v4120, %v4137
        %v4157 = vmul.f32 %v4121, %v4137
        %v4158 = vmul.f32 %v4122, %v4137
        %v4159 = vmul.f32 %v4123, %v4137
        %v4160 = vmul.f32 %v4124, %v4137
        %v4161 = vmul.f32 %v4125, %v4137
        %v4162 = vmul.f32 %v4126, %v4137
        %v4163 = vmul.f32 %v4127, %v4137
        %v4164 = vmul.f32 %v4128, %v4137
        %v4165 = vmul.f32 %v4129, %v4137
        %v4166 = vmul.f32 %v4130, %v4137
        %v4167 = vmul.f32 %v4131, %v4137
        %v4168 = vmul.f32 %v4132, %v4137
        %v4169 = vmul.f32 %v4133, %v4137
        %v4170 = vmul.f32 %v4134, %v4137
        %v4171 = vadd.f32 %v3973, %v4139
        %v4172 = vadd.f32 %v3974, %v4140
        %v4173 = vadd.f32 %v3975, %v4141
        %v4174 = vadd.f32 %v3976, %v4142
        %v4175 = vadd.f32 %v3977, %v4143
        %v4176 = vadd.f32 %v3978, %v4144
        %v4177 = vadd.f32 %v3979, %v4145
        %v4178 = vadd.f32 %v3980, %v4146
        %v4179 = vadd.f32 %v3981, %v4147
        %v4180 = vadd.f32 %v3982, %v4148
        %v4181 = vadd.f32 %v3983, %v4149
        %v4182 = vadd.f32 %v3984, %v4150
        %v4183 = vadd.f32 %v3985, %v4151
        %v4184 = vadd.f32 %v3986, %v4152
        %v4185 = vadd.f32 %v3987, %v4153
        %v4186 = vadd.f32 %v3988, %v4154
        %v4187 = vadd.f32 %v3989, %v4155
        %v4188 = vadd.f32 %v3990, %v4156
        %v4189 = vadd.f32 %v3991, %v4157
        %v4190 = vadd.f32 %v3992, %v4158
        %v4191 = vadd.f32 %v3993, %v4159
        %v4192 = vadd.f32 %v3994, %v4160
        %v4193 = vadd.f32 %v3995, %v4161
        %v4194 = vadd.f32 %v3996, %v4162
        %v4195 = vadd.f32 %v3997, %v4163
        %v4196 = vadd.f32 %v3998, %v4164
        %v4197 = vadd.f32 %v3999, %v4165
        %v4198 = vadd.f32 %v4000, %v4166
        %v4199 = vadd.f32 %v4001, %v4167
        %v4200 = vadd.f32 %v4002, %v4168
        %v4201 = vadd.f32 %v4003, %v4169
        %v4202 = vadd.f32 %v4004, %v4170
        %4203 = vset.pattern.permute.xlu0 18
        %4204 = vperm.xlu0 %4203, %v522
        %v4205 = vpop.permute.xlu0 %4204
        %4207 = vset.pattern.permute.xlu0 18
        %4208 = vperm.xlu0 %4207, %v523
        %v4209 = vpop.permute.xlu0 %4208
        %4211 = vset.pattern.permute.xlu0 18
        %4212 = vperm.xlu0 %4211, %v524
        %v4213 = vpop.permute.xlu0 %4212
        %4215 = vset.pattern.permute.xlu0 18
        %4216 = vperm.xlu0 %4215, %v525
        %v4217 = vpop.permute.xlu0 %4216
        %4219 = vset.pattern.permute.xlu0 18
        %4220 = vperm.xlu0 %4219, %v526
        %v4221 = vpop.permute.xlu0 %4220
        %4223 = vset.pattern.permute.xlu0 18
        %4224 = vperm.xlu0 %4223, %v527
        %v4225 = vpop.permute.xlu0 %4224
        %4227 = vset.pattern.permute.xlu0 18
        %4228 = vperm.xlu0 %4227, %v528
        %v4229 = vpop.permute.xlu0 %4228
        %4231 = vset.pattern.permute.xlu0 18
        %4232 = vperm.xlu0 %4231, %v529
        %v4233 = vpop.permute.xlu0 %4232
        %4235 = vset.pattern.permute.xlu0 18
        %4236 = vperm.xlu0 %4235, %v530
        %v4237 = vpop.permute.xlu0 %4236
        %4239 = vset.pattern.permute.xlu0 18
        %4240 = vperm.xlu0 %4239, %v531
        %v4241 = vpop.permute.xlu0 %4240
        %4243 = vset.pattern.permute.xlu0 18
        %4244 = vperm.xlu0 %4243, %v532
        %v4245 = vpop.permute.xlu0 %4244
        %4247 = vset.pattern.permute.xlu0 18
        %4248 = vperm.xlu0 %4247, %v533
        %v4249 = vpop.permute.xlu0 %4248
        %4251 = vset.pattern.permute.xlu0 18
        %4252 = vperm.xlu0 %4251, %v534
        %v4253 = vpop.permute.xlu0 %4252
        %4255 = vset.pattern.permute.xlu0 18
        %4256 = vperm.xlu0 %4255, %v535
        %v4257 = vpop.permute.xlu0 %4256
        %4259 = vset.pattern.permute.xlu0 18
        %4260 = vperm.xlu0 %4259, %v536
        %v4261 = vpop.permute.xlu0 %4260
        %4263 = vset.pattern.permute.xlu0 18
        %4264 = vperm.xlu0 %4263, %v537
        %v4265 = vpop.permute.xlu0 %4264
        %v4267 = vperm.slane %v578, 2
        %v4268 = vperm.slane %v607, 2
        %v4269 = vadd.f32 %v4205, %v4267
        %v4270 = vadd.f32 %v4205, %v4268
        %v4271 = vadd.f32 %v4209, %v4267
        %v4272 = vadd.f32 %v4209, %v4268
        %v4273 = vadd.f32 %v4213, %v4267
        %v4274 = vadd.f32 %v4213, %v4268
        %v4275 = vadd.f32 %v4217, %v4267
        %v4276 = vadd.f32 %v4217, %v4268
        %v4277 = vadd.f32 %v4221, %v4267
        %v4278 = vadd.f32 %v4221, %v4268
        %v4279 = vadd.f32 %v4225, %v4267
        %v4280 = vadd.f32 %v4225, %v4268
        %v4281 = vadd.f32 %v4229, %v4267
        %v4282 = vadd.f32 %v4229, %v4268
        %v4283 = vadd.f32 %v4233, %v4267
        %v4284 = vadd.f32 %v4233, %v4268
        %v4285 = vadd.f32 %v4237, %v4267
        %v4286 = vadd.f32 %v4237, %v4268
        %v4287 = vadd.f32 %v4241, %v4267
        %v4288 = vadd.f32 %v4241, %v4268
        %v4289 = vadd.f32 %v4245, %v4267
        %v4290 = vadd.f32 %v4245, %v4268
        %v4291 = vadd.f32 %v4249, %v4267
        %v4292 = vadd.f32 %v4249, %v4268
        %v4293 = vadd.f32 %v4253, %v4267
        %v4294 = vadd.f32 %v4253, %v4268
        %v4295 = vadd.f32 %v4257, %v4267
        %v4296 = vadd.f32 %v4257, %v4268
        %v4297 = vadd.f32 %v4261, %v4267
        %v4298 = vadd.f32 %v4261, %v4268
        %v4299 = vadd.f32 %v4265, %v4267
        %v4300 = vadd.f32 %v4265, %v4268
        %v4301 = vtanh.pop %v4269
        %v4302 = vtanh.pop %v4270
        %v4303 = vtanh.pop %v4271
        %v4304 = vtanh.pop %v4272
        %v4305 = vtanh.pop %v4273
        %v4306 = vtanh.pop %v4274
        %v4307 = vtanh.pop %v4275
        %v4308 = vtanh.pop %v4276
        %v4309 = vtanh.pop %v4277
        %v4310 = vtanh.pop %v4278
        %v4311 = vtanh.pop %v4279
        %v4312 = vtanh.pop %v4280
        %v4313 = vtanh.pop %v4281
        %v4314 = vtanh.pop %v4282
        %v4315 = vtanh.pop %v4283
        %v4316 = vtanh.pop %v4284
        %v4317 = vtanh.pop %v4285
        %v4318 = vtanh.pop %v4286
        %v4319 = vtanh.pop %v4287
        %v4320 = vtanh.pop %v4288
        %v4321 = vtanh.pop %v4289
        %v4322 = vtanh.pop %v4290
        %v4323 = vtanh.pop %v4291
        %v4324 = vtanh.pop %v4292
        %v4325 = vtanh.pop %v4293
        %v4326 = vtanh.pop %v4294
        %v4327 = vtanh.pop %v4295
        %v4328 = vtanh.pop %v4296
        %v4329 = vtanh.pop %v4297
        %v4330 = vtanh.pop %v4298
        %v4331 = vtanh.pop %v4299
        %v4332 = vtanh.pop %v4300
        %4333 = vset.pattern.permute.xlu0 18
        %4334 = vperm.xlu0 %4333, %v768
        %v4335 = vpop.permute.xlu0 %4334
        %v4337 = vmul.f32 %v4301, %v4335
        %v4338 = vmul.f32 %v4302, %v4335
        %v4339 = vmul.f32 %v4303, %v4335
        %v4340 = vmul.f32 %v4304, %v4335
        %v4341 = vmul.f32 %v4305, %v4335
        %v4342 = vmul.f32 %v4306, %v4335
        %v4343 = vmul.f32 %v4307, %v4335
        %v4344 = vmul.f32 %v4308, %v4335
        %v4345 = vmul.f32 %v4309, %v4335
        %v4346 = vmul.f32 %v4310, %v4335
        %v4347 = vmul.f32 %v4311, %v4335
        %v4348 = vmul.f32 %v4312, %v4335
        %v4349 = vmul.f32 %v4313, %v4335
        %v4350 = vmul.f32 %v4314, %v4335
        %v4351 = vmul.f32 %v4315, %v4335
        %v4352 = vmul.f32 %v4316, %v4335
        %v4353 = vmul.f32 %v4317, %v4335
        %v4354 = vmul.f32 %v4318, %v4335
        %v4355 = vmul.f32 %v4319, %v4335
        %v4356 = vmul.f32 %v4320, %v4335
        %v4357 = vmul.f32 %v4321, %v4335
        %v4358 = vmul.f32 %v4322, %v4335
        %v4359 = vmul.f32 %v4323, %v4335
        %v4360 = vmul.f32 %v4324, %v4335
        %v4361 = vmul.f32 %v4325, %v4335
        %v4362 = vmul.f32 %v4326, %v4335
        %v4363 = vmul.f32 %v4327, %v4335
        %v4364 = vmul.f32 %v4328, %v4335
        %v4365 = vmul.f32 %v4329, %v4335
        %v4366 = vmul.f32 %v4330, %v4335
        %v4367 = vmul.f32 %v4331, %v4335
        %v4368 = vmul.f32 %v4332, %v4335
        %v4369 = vadd.f32 %v4171, %v4337
        %v4370 = vadd.f32 %v4172, %v4338
        %v4371 = vadd.f32 %v4173, %v4339
        %v4372 = vadd.f32 %v4174, %v4340
        %v4373 = vadd.f32 %v4175, %v4341
        %v4374 = vadd.f32 %v4176, %v4342
        %v4375 = vadd.f32 %v4177, %v4343
        %v4376 = vadd.f32 %v4178, %v4344
        %v4377 = vadd.f32 %v4179, %v4345
        %v4378 = vadd.f32 %v4180, %v4346
        %v4379 = vadd.f32 %v4181, %v4347
        %v4380 = vadd.f32 %v4182, %v4348
        %v4381 = vadd.f32 %v4183, %v4349
        %v4382 = vadd.f32 %v4184, %v4350
        %v4383 = vadd.f32 %v4185, %v4351
        %v4384 = vadd.f32 %v4186, %v4352
        %v4385 = vadd.f32 %v4187, %v4353
        %v4386 = vadd.f32 %v4188, %v4354
        %v4387 = vadd.f32 %v4189, %v4355
        %v4388 = vadd.f32 %v4190, %v4356
        %v4389 = vadd.f32 %v4191, %v4357
        %v4390 = vadd.f32 %v4192, %v4358
        %v4391 = vadd.f32 %v4193, %v4359
        %v4392 = vadd.f32 %v4194, %v4360
        %v4393 = vadd.f32 %v4195, %v4361
        %v4394 = vadd.f32 %v4196, %v4362
        %v4395 = vadd.f32 %v4197, %v4363
        %v4396 = vadd.f32 %v4198, %v4364
        %v4397 = vadd.f32 %v4199, %v4365
        %v4398 = vadd.f32 %v4200, %v4366
        %v4399 = vadd.f32 %v4201, %v4367
        %v4400 = vadd.f32 %v4202, %v4368
        %4401 = vset.pattern.permute.xlu0 19
        %4402 = vperm.xlu0 %4401, %v522
        %v4403 = vpop.permute.xlu0 %4402
        %4405 = vset.pattern.permute.xlu0 19
        %4406 = vperm.xlu0 %4405, %v523
        %v4407 = vpop.permute.xlu0 %4406
        %4409 = vset.pattern.permute.xlu0 19
        %4410 = vperm.xlu0 %4409, %v524
        %v4411 = vpop.permute.xlu0 %4410
        %4413 = vset.pattern.permute.xlu0 19
        %4414 = vperm.xlu0 %4413, %v525
        %v4415 = vpop.permute.xlu0 %4414
        %4417 = vset.pattern.permute.xlu0 19
        %4418 = vperm.xlu0 %4417, %v526
        %v4419 = vpop.permute.xlu0 %4418
        %4421 = vset.pattern.permute.xlu0 19
        %4422 = vperm.xlu0 %4421, %v527
        %v4423 = vpop.permute.xlu0 %4422
        %4425 = vset.pattern.permute.xlu0 19
        %4426 = vperm.xlu0 %4425, %v528
        %v4427 = vpop.permute.xlu0 %4426
        %4429 = vset.pattern.permute.xlu0 19
        %4430 = vperm.xlu0 %4429, %v529
        %v4431 = vpop.permute.xlu0 %4430
        %4433 = vset.pattern.permute.xlu0 19
        %4434 = vperm.xlu0 %4433, %v530
        %v4435 = vpop.permute.xlu0 %4434
        %4437 = vset.pattern.permute.xlu0 19
        %4438 = vperm.xlu0 %4437, %v531
        %v4439 = vpop.permute.xlu0 %4438
        %4441 = vset.pattern.permute.xlu0 19
        %4442 = vperm.xlu0 %4441, %v532
        %v4443 = vpop.permute.xlu0 %4442
        %4445 = vset.pattern.permute.xlu0 19
        %4446 = vperm.xlu0 %4445, %v533
        %v4447 = vpop.permute.xlu0 %4446
        %4449 = vset.pattern.permute.xlu0 19
        %4450 = vperm.xlu0 %4449, %v534
        %v4451 = vpop.permute.xlu0 %4450
        %4453 = vset.pattern.permute.xlu0 19
        %4454 = vperm.xlu0 %4453, %v535
        %v4455 = vpop.permute.xlu0 %4454
        %4457 = vset.pattern.permute.xlu0 19
        %4458 = vperm.xlu0 %4457, %v536
        %v4459 = vpop.permute.xlu0 %4458
        %4461 = vset.pattern.permute.xlu0 19
        %4462 = vperm.xlu0 %4461, %v537
        %v4463 = vpop.permute.xlu0 %4462
        %v4465 = vperm.slane %v578, 3
        %v4466 = vperm.slane %v607, 3
        %v4467 = vadd.f32 %v4403, %v4465
        %v4468 = vadd.f32 %v4403, %v4466
        %v4469 = vadd.f32 %v4407, %v4465
        %v4470 = vadd.f32 %v4407, %v4466
        %v4471 = vadd.f32 %v4411, %v4465
        %v4472 = vadd.f32 %v4411, %v4466
        %v4473 = vadd.f32 %v4415, %v4465
        %v4474 = vadd.f32 %v4415, %v4466
        %v4475 = vadd.f32 %v4419, %v4465
        %v4476 = vadd.f32 %v4419, %v4466
        %v4477 = vadd.f32 %v4423, %v4465
        %v4478 = vadd.f32 %v4423, %v4466
        %v4479 = vadd.f32 %v4427, %v4465
        %v4480 = vadd.f32 %v4427, %v4466
        %v4481 = vadd.f32 %v4431, %v4465
        %v4482 = vadd.f32 %v4431, %v4466
        %v4483 = vadd.f32 %v4435, %v4465
        %v4484 = vadd.f32 %v4435, %v4466
        %v4485 = vadd.f32 %v4439, %v4465
        %v4486 = vadd.f32 %v4439, %v4466
        %v4487 = vadd.f32 %v4443, %v4465
        %v4488 = vadd.f32 %v4443, %v4466
        %v4489 = vadd.f32 %v4447, %v4465
        %v4490 = vadd.f32 %v4447, %v4466
        %v4491 = vadd.f32 %v4451, %v4465
        %v4492 = vadd.f32 %v4451, %v4466
        %v4493 = vadd.f32 %v4455, %v4465
        %v4494 = vadd.f32 %v4455, %v4466
        %v4495 = vadd.f32 %v4459, %v4465
        %v4496 = vadd.f32 %v4459, %v4466
        %v4497 = vadd.f32 %v4463, %v4465
        %v4498 = vadd.f32 %v4463, %v4466
        %v4499 = vtanh.pop %v4467
        %v4500 = vtanh.pop %v4468
        %v4501 = vtanh.pop %v4469
        %v4502 = vtanh.pop %v4470
        %v4503 = vtanh.pop %v4471
        %v4504 = vtanh.pop %v4472
        %v4505 = vtanh.pop %v4473
        %v4506 = vtanh.pop %v4474
        %v4507 = vtanh.pop %v4475
        %v4508 = vtanh.pop %v4476
        %v4509 = vtanh.pop %v4477
        %v4510 = vtanh.pop %v4478
        %v4511 = vtanh.pop %v4479
        %v4512 = vtanh.pop %v4480
        %v4513 = vtanh.pop %v4481
        %v4514 = vtanh.pop %v4482
        %v4515 = vtanh.pop %v4483
        %v4516 = vtanh.pop %v4484
        %v4517 = vtanh.pop %v4485
        %v4518 = vtanh.pop %v4486
        %v4519 = vtanh.pop %v4487
        %v4520 = vtanh.pop %v4488
        %v4521 = vtanh.pop %v4489
        %v4522 = vtanh.pop %v4490
        %v4523 = vtanh.pop %v4491
        %v4524 = vtanh.pop %v4492
        %v4525 = vtanh.pop %v4493
        %v4526 = vtanh.pop %v4494
        %v4527 = vtanh.pop %v4495
        %v4528 = vtanh.pop %v4496
        %v4529 = vtanh.pop %v4497
        %v4530 = vtanh.pop %v4498
        %4531 = vset.pattern.permute.xlu0 19
        %4532 = vperm.xlu0 %4531, %v768
        %v4533 = vpop.permute.xlu0 %4532
        %v4535 = vmul.f32 %v4499, %v4533
        %v4536 = vmul.f32 %v4500, %v4533
        %v4537 = vmul.f32 %v4501, %v4533
        %v4538 = vmul.f32 %v4502, %v4533
        %v4539 = vmul.f32 %v4503, %v4533
        %v4540 = vmul.f32 %v4504, %v4533
        %v4541 = vmul.f32 %v4505, %v4533
        %v4542 = vmul.f32 %v4506, %v4533
        %v4543 = vmul.f32 %v4507, %v4533
        %v4544 = vmul.f32 %v4508, %v4533
        %v4545 = vmul.f32 %v4509, %v4533
        %v4546 = vmul.f32 %v4510, %v4533
        %v4547 = vmul.f32 %v4511, %v4533
        %v4548 = vmul.f32 %v4512, %v4533
        %v4549 = vmul.f32 %v4513, %v4533
        %v4550 = vmul.f32 %v4514, %v4533
        %v4551 = vmul.f32 %v4515, %v4533
        %v4552 = vmul.f32 %v4516, %v4533
        %v4553 = vmul.f32 %v4517, %v4533
        %v4554 = vmul.f32 %v4518, %v4533
        %v4555 = vmul.f32 %v4519, %v4533
        %v4556 = vmul.f32 %v4520, %v4533
        %v4557 = vmul.f32 %v4521, %v4533
        %v4558 = vmul.f32 %v4522, %v4533
        %v4559 = vmul.f32 %v4523, %v4533
        %v4560 = vmul.f32 %v4524, %v4533
        %v4561 = vmul.f32 %v4525, %v4533
        %v4562 = vmul.f32 %v4526, %v4533
        %v4563 = vmul.f32 %v4527, %v4533
        %v4564 = vmul.f32 %v4528, %v4533
        %v4565 = vmul.f32 %v4529, %v4533
        %v4566 = vmul.f32 %v4530, %v4533
        %v4567 = vadd.f32 %v4369, %v4535
        %v4568 = vadd.f32 %v4370, %v4536
        %v4569 = vadd.f32 %v4371, %v4537
        %v4570 = vadd.f32 %v4372, %v4538
        %v4571 = vadd.f32 %v4373, %v4539
        %v4572 = vadd.f32 %v4374, %v4540
        %v4573 = vadd.f32 %v4375, %v4541
        %v4574 = vadd.f32 %v4376, %v4542
        %v4575 = vadd.f32 %v4377, %v4543
        %v4576 = vadd.f32 %v4378, %v4544
        %v4577 = vadd.f32 %v4379, %v4545
        %v4578 = vadd.f32 %v4380, %v4546
        %v4579 = vadd.f32 %v4381, %v4547
        %v4580 = vadd.f32 %v4382, %v4548
        %v4581 = vadd.f32 %v4383, %v4549
        %v4582 = vadd.f32 %v4384, %v4550
        %v4583 = vadd.f32 %v4385, %v4551
        %v4584 = vadd.f32 %v4386, %v4552
        %v4585 = vadd.f32 %v4387, %v4553
        %v4586 = vadd.f32 %v4388, %v4554
        %v4587 = vadd.f32 %v4389, %v4555
        %v4588 = vadd.f32 %v4390, %v4556
        %v4589 = vadd.f32 %v4391, %v4557
        %v4590 = vadd.f32 %v4392, %v4558
        %v4591 = vadd.f32 %v4393, %v4559
        %v4592 = vadd.f32 %v4394, %v4560
        %v4593 = vadd.f32 %v4395, %v4561
        %v4594 = vadd.f32 %v4396, %v4562
        %v4595 = vadd.f32 %v4397, %v4563
        %v4596 = vadd.f32 %v4398, %v4564
        %v4597 = vadd.f32 %v4399, %v4565
        %v4598 = vadd.f32 %v4400, %v4566
        %4599 = vset.pattern.permute.xlu0 20
        %4600 = vperm.xlu0 %4599, %v522
        %v4601 = vpop.permute.xlu0 %4600
        %4603 = vset.pattern.permute.xlu0 20
        %4604 = vperm.xlu0 %4603, %v523
        %v4605 = vpop.permute.xlu0 %4604
        %4607 = vset.pattern.permute.xlu0 20
        %4608 = vperm.xlu0 %4607, %v524
        %v4609 = vpop.permute.xlu0 %4608
        %4611 = vset.pattern.permute.xlu0 20
        %4612 = vperm.xlu0 %4611, %v525
        %v4613 = vpop.permute.xlu0 %4612
        %4615 = vset.pattern.permute.xlu0 20
        %4616 = vperm.xlu0 %4615, %v526
        %v4617 = vpop.permute.xlu0 %4616
        %4619 = vset.pattern.permute.xlu0 20
        %4620 = vperm.xlu0 %4619, %v527
        %v4621 = vpop.permute.xlu0 %4620
        %4623 = vset.pattern.permute.xlu0 20
        %4624 = vperm.xlu0 %4623, %v528
        %v4625 = vpop.permute.xlu0 %4624
        %4627 = vset.pattern.permute.xlu0 20
        %4628 = vperm.xlu0 %4627, %v529
        %v4629 = vpop.permute.xlu0 %4628
        %4631 = vset.pattern.permute.xlu0 20
        %4632 = vperm.xlu0 %4631, %v530
        %v4633 = vpop.permute.xlu0 %4632
        %4635 = vset.pattern.permute.xlu0 20
        %4636 = vperm.xlu0 %4635, %v531
        %v4637 = vpop.permute.xlu0 %4636
        %4639 = vset.pattern.permute.xlu0 20
        %4640 = vperm.xlu0 %4639, %v532
        %v4641 = vpop.permute.xlu0 %4640
        %4643 = vset.pattern.permute.xlu0 20
        %4644 = vperm.xlu0 %4643, %v533
        %v4645 = vpop.permute.xlu0 %4644
        %4647 = vset.pattern.permute.xlu0 20
        %4648 = vperm.xlu0 %4647, %v534
        %v4649 = vpop.permute.xlu0 %4648
        %4651 = vset.pattern.permute.xlu0 20
        %4652 = vperm.xlu0 %4651, %v535
        %v4653 = vpop.permute.xlu0 %4652
        %4655 = vset.pattern.permute.xlu0 20
        %4656 = vperm.xlu0 %4655, %v536
        %v4657 = vpop.permute.xlu0 %4656
        %4659 = vset.pattern.permute.xlu0 20
        %4660 = vperm.xlu0 %4659, %v537
        %v4661 = vpop.permute.xlu0 %4660
        %v4663 = vperm.slane %v578, 4
        %v4664 = vperm.slane %v607, 4
        %v4665 = vadd.f32 %v4601, %v4663
        %v4666 = vadd.f32 %v4601, %v4664
        %v4667 = vadd.f32 %v4605, %v4663
        %v4668 = vadd.f32 %v4605, %v4664
        %v4669 = vadd.f32 %v4609, %v4663
        %v4670 = vadd.f32 %v4609, %v4664
        %v4671 = vadd.f32 %v4613, %v4663
        %v4672 = vadd.f32 %v4613, %v4664
        %v4673 = vadd.f32 %v4617, %v4663
        %v4674 = vadd.f32 %v4617, %v4664
        %v4675 = vadd.f32 %v4621, %v4663
        %v4676 = vadd.f32 %v4621, %v4664
        %v4677 = vadd.f32 %v4625, %v4663
        %v4678 = vadd.f32 %v4625, %v4664
        %v4679 = vadd.f32 %v4629, %v4663
        %v4680 = vadd.f32 %v4629, %v4664
        %v4681 = vadd.f32 %v4633, %v4663
        %v4682 = vadd.f32 %v4633, %v4664
        %v4683 = vadd.f32 %v4637, %v4663
        %v4684 = vadd.f32 %v4637, %v4664
        %v4685 = vadd.f32 %v4641, %v4663
        %v4686 = vadd.f32 %v4641, %v4664
        %v4687 = vadd.f32 %v4645, %v4663
        %v4688 = vadd.f32 %v4645, %v4664
        %v4689 = vadd.f32 %v4649, %v4663
        %v4690 = vadd.f32 %v4649, %v4664
        %v4691 = vadd.f32 %v4653, %v4663
        %v4692 = vadd.f32 %v4653, %v4664
        %v4693 = vadd.f32 %v4657, %v4663
        %v4694 = vadd.f32 %v4657, %v4664
        %v4695 = vadd.f32 %v4661, %v4663
        %v4696 = vadd.f32 %v4661, %v4664
        %v4697 = vtanh.pop %v4665
        %v4698 = vtanh.pop %v4666
        %v4699 = vtanh.pop %v4667
        %v4700 = vtanh.pop %v4668
        %v4701 = vtanh.pop %v4669
        %v4702 = vtanh.pop %v4670
        %v4703 = vtanh.pop %v4671
        %v4704 = vtanh.pop %v4672
        %v4705 = vtanh.pop %v4673
        %v4706 = vtanh.pop %v4674
        %v4707 = vtanh.pop %v4675
        %v4708 = vtanh.pop %v4676
        %v4709 = vtanh.pop %v4677
        %v4710 = vtanh.pop %v4678
        %v4711 = vtanh.pop %v4679
        %v4712 = vtanh.pop %v4680
        %v4713 = vtanh.pop %v4681
        %v4714 = vtanh.pop %v4682
        %v4715 = vtanh.pop %v4683
        %v4716 = vtanh.pop %v4684
        %v4717 = vtanh.pop %v4685
        %v4718 = vtanh.pop %v4686
        %v4719 = vtanh.pop %v4687
        %v4720 = vtanh.pop %v4688
        %v4721 = vtanh.pop %v4689
        %v4722 = vtanh.pop %v4690
        %v4723 = vtanh.pop %v4691
        %v4724 = vtanh.pop %v4692
        %v4725 = vtanh.pop %v4693
        %v4726 = vtanh.pop %v4694
        %v4727 = vtanh.pop %v4695
        %v4728 = vtanh.pop %v4696
        %4729 = vset.pattern.permute.xlu0 20
        %4730 = vperm.xlu0 %4729, %v768
        %v4731 = vpop.permute.xlu0 %4730
        %v4733 = vmul.f32 %v4697, %v4731
        %v4734 = vmul.f32 %v4698, %v4731
        %v4735 = vmul.f32 %v4699, %v4731
        %v4736 = vmul.f32 %v4700, %v4731
        %v4737 = vmul.f32 %v4701, %v4731
        %v4738 = vmul.f32 %v4702, %v4731
        %v4739 = vmul.f32 %v4703, %v4731
        %v4740 = vmul.f32 %v4704, %v4731
        %v4741 = vmul.f32 %v4705, %v4731
        %v4742 = vmul.f32 %v4706, %v4731
        %v4743 = vmul.f32 %v4707, %v4731
        %v4744 = vmul.f32 %v4708, %v4731
        %v4745 = vmul.f32 %v4709, %v4731
        %v4746 = vmul.f32 %v4710, %v4731
        %v4747 = vmul.f32 %v4711, %v4731
        %v4748 = vmul.f32 %v4712, %v4731
        %v4749 = vmul.f32 %v4713, %v4731
        %v4750 = vmul.f32 %v4714, %v4731
        %v4751 = vmul.f32 %v4715, %v4731
        %v4752 = vmul.f32 %v4716, %v4731
        %v4753 = vmul.f32 %v4717, %v4731
        %v4754 = vmul.f32 %v4718, %v4731
        %v4755 = vmul.f32 %v4719, %v4731
        %v4756 = vmul.f32 %v4720, %v4731
        %v4757 = vmul.f32 %v4721, %v4731
        %v4758 = vmul.f32 %v4722, %v4731
        %v4759 = vmul.f32 %v4723, %v4731
        %v4760 = vmul.f32 %v4724, %v4731
        %v4761 = vmul.f32 %v4725, %v4731
        %v4762 = vmul.f32 %v4726, %v4731
        %v4763 = vmul.f32 %v4727, %v4731
        %v4764 = vmul.f32 %v4728, %v4731
        %v4765 = vadd.f32 %v4567, %v4733
        %v4766 = vadd.f32 %v4568, %v4734
        %v4767 = vadd.f32 %v4569, %v4735
        %v4768 = vadd.f32 %v4570, %v4736
        %v4769 = vadd.f32 %v4571, %v4737
        %v4770 = vadd.f32 %v4572, %v4738
        %v4771 = vadd.f32 %v4573, %v4739
        %v4772 = vadd.f32 %v4574, %v4740
        %v4773 = vadd.f32 %v4575, %v4741
        %v4774 = vadd.f32 %v4576, %v4742
        %v4775 = vadd.f32 %v4577, %v4743
        %v4776 = vadd.f32 %v4578, %v4744
        %v4777 = vadd.f32 %v4579, %v4745
        %v4778 = vadd.f32 %v4580, %v4746
        %v4779 = vadd.f32 %v4581, %v4747
        %v4780 = vadd.f32 %v4582, %v4748
        %v4781 = vadd.f32 %v4583, %v4749
        %v4782 = vadd.f32 %v4584, %v4750
        %v4783 = vadd.f32 %v4585, %v4751
        %v4784 = vadd.f32 %v4586, %v4752
        %v4785 = vadd.f32 %v4587, %v4753
        %v4786 = vadd.f32 %v4588, %v4754
        %v4787 = vadd.f32 %v4589, %v4755
        %v4788 = vadd.f32 %v4590, %v4756
        %v4789 = vadd.f32 %v4591, %v4757
        %v4790 = vadd.f32 %v4592, %v4758
        %v4791 = vadd.f32 %v4593, %v4759
        %v4792 = vadd.f32 %v4594, %v4760
        %v4793 = vadd.f32 %v4595, %v4761
        %v4794 = vadd.f32 %v4596, %v4762
        %v4795 = vadd.f32 %v4597, %v4763
        %v4796 = vadd.f32 %v4598, %v4764
        %4797 = vset.pattern.permute.xlu0 21
        %4798 = vperm.xlu0 %4797, %v522
        %v4799 = vpop.permute.xlu0 %4798
        %4801 = vset.pattern.permute.xlu0 21
        %4802 = vperm.xlu0 %4801, %v523
        %v4803 = vpop.permute.xlu0 %4802
        %4805 = vset.pattern.permute.xlu0 21
        %4806 = vperm.xlu0 %4805, %v524
        %v4807 = vpop.permute.xlu0 %4806
        %4809 = vset.pattern.permute.xlu0 21
        %4810 = vperm.xlu0 %4809, %v525
        %v4811 = vpop.permute.xlu0 %4810
        %4813 = vset.pattern.permute.xlu0 21
        %4814 = vperm.xlu0 %4813, %v526
        %v4815 = vpop.permute.xlu0 %4814
        %4817 = vset.pattern.permute.xlu0 21
        %4818 = vperm.xlu0 %4817, %v527
        %v4819 = vpop.permute.xlu0 %4818
        %4821 = vset.pattern.permute.xlu0 21
        %4822 = vperm.xlu0 %4821, %v528
        %v4823 = vpop.permute.xlu0 %4822
        %4825 = vset.pattern.permute.xlu0 21
        %4826 = vperm.xlu0 %4825, %v529
        %v4827 = vpop.permute.xlu0 %4826
        %4829 = vset.pattern.permute.xlu0 21
        %4830 = vperm.xlu0 %4829, %v530
        %v4831 = vpop.permute.xlu0 %4830
        %4833 = vset.pattern.permute.xlu0 21
        %4834 = vperm.xlu0 %4833, %v531
        %v4835 = vpop.permute.xlu0 %4834
        %4837 = vset.pattern.permute.xlu0 21
        %4838 = vperm.xlu0 %4837, %v532
        %v4839 = vpop.permute.xlu0 %4838
        %4841 = vset.pattern.permute.xlu0 21
        %4842 = vperm.xlu0 %4841, %v533
        %v4843 = vpop.permute.xlu0 %4842
        %4845 = vset.pattern.permute.xlu0 21
        %4846 = vperm.xlu0 %4845, %v534
        %v4847 = vpop.permute.xlu0 %4846
        %4849 = vset.pattern.permute.xlu0 21
        %4850 = vperm.xlu0 %4849, %v535
        %v4851 = vpop.permute.xlu0 %4850
        %4853 = vset.pattern.permute.xlu0 21
        %4854 = vperm.xlu0 %4853, %v536
        %v4855 = vpop.permute.xlu0 %4854
        %4857 = vset.pattern.permute.xlu0 21
        %4858 = vperm.xlu0 %4857, %v537
        %v4859 = vpop.permute.xlu0 %4858
        %v4861 = vperm.slane %v578, 5
        %v4862 = vperm.slane %v607, 5
        %v4863 = vadd.f32 %v4799, %v4861
        %v4864 = vadd.f32 %v4799, %v4862
        %v4865 = vadd.f32 %v4803, %v4861
        %v4866 = vadd.f32 %v4803, %v4862
        %v4867 = vadd.f32 %v4807, %v4861
        %v4868 = vadd.f32 %v4807, %v4862
        %v4869 = vadd.f32 %v4811, %v4861
        %v4870 = vadd.f32 %v4811, %v4862
        %v4871 = vadd.f32 %v4815, %v4861
        %v4872 = vadd.f32 %v4815, %v4862
        %v4873 = vadd.f32 %v4819, %v4861
        %v4874 = vadd.f32 %v4819, %v4862
        %v4875 = vadd.f32 %v4823, %v4861
        %v4876 = vadd.f32 %v4823, %v4862
        %v4877 = vadd.f32 %v4827, %v4861
        %v4878 = vadd.f32 %v4827, %v4862
        %v4879 = vadd.f32 %v4831, %v4861
        %v4880 = vadd.f32 %v4831, %v4862
        %v4881 = vadd.f32 %v4835, %v4861
        %v4882 = vadd.f32 %v4835, %v4862
        %v4883 = vadd.f32 %v4839, %v4861
        %v4884 = vadd.f32 %v4839, %v4862
        %v4885 = vadd.f32 %v4843, %v4861
        %v4886 = vadd.f32 %v4843, %v4862
        %v4887 = vadd.f32 %v4847, %v4861
        %v4888 = vadd.f32 %v4847, %v4862
        %v4889 = vadd.f32 %v4851, %v4861
        %v4890 = vadd.f32 %v4851, %v4862
        %v4891 = vadd.f32 %v4855, %v4861
        %v4892 = vadd.f32 %v4855, %v4862
        %v4893 = vadd.f32 %v4859, %v4861
        %v4894 = vadd.f32 %v4859, %v4862
        %v4895 = vtanh.pop %v4863
        %v4896 = vtanh.pop %v4864
        %v4897 = vtanh.pop %v4865
        %v4898 = vtanh.pop %v4866
        %v4899 = vtanh.pop %v4867
        %v4900 = vtanh.pop %v4868
        %v4901 = vtanh.pop %v4869
        %v4902 = vtanh.pop %v4870
        %v4903 = vtanh.pop %v4871
        %v4904 = vtanh.pop %v4872
        %v4905 = vtanh.pop %v4873
        %v4906 = vtanh.pop %v4874
        %v4907 = vtanh.pop %v4875
        %v4908 = vtanh.pop %v4876
        %v4909 = vtanh.pop %v4877
        %v4910 = vtanh.pop %v4878
        %v4911 = vtanh.pop %v4879
        %v4912 = vtanh.pop %v4880
        %v4913 = vtanh.pop %v4881
        %v4914 = vtanh.pop %v4882
        %v4915 = vtanh.pop %v4883
        %v4916 = vtanh.pop %v4884
        %v4917 = vtanh.pop %v4885
        %v4918 = vtanh.pop %v4886
        %v4919 = vtanh.pop %v4887
        %v4920 = vtanh.pop %v4888
        %v4921 = vtanh.pop %v4889
        %v4922 = vtanh.pop %v4890
        %v4923 = vtanh.pop %v4891
        %v4924 = vtanh.pop %v4892
        %v4925 = vtanh.pop %v4893
        %v4926 = vtanh.pop %v4894
        %4927 = vset.pattern.permute.xlu0 21
        %4928 = vperm.xlu0 %4927, %v768
        %v4929 = vpop.permute.xlu0 %4928
        %v4931 = vmul.f32 %v4895, %v4929
        %v4932 = vmul.f32 %v4896, %v4929
        %v4933 = vmul.f32 %v4897, %v4929
        %v4934 = vmul.f32 %v4898, %v4929
        %v4935 = vmul.f32 %v4899, %v4929
        %v4936 = vmul.f32 %v4900, %v4929
        %v4937 = vmul.f32 %v4901, %v4929
        %v4938 = vmul.f32 %v4902, %v4929
        %v4939 = vmul.f32 %v4903, %v4929
        %v4940 = vmul.f32 %v4904, %v4929
        %v4941 = vmul.f32 %v4905, %v4929
        %v4942 = vmul.f32 %v4906, %v4929
        %v4943 = vmul.f32 %v4907, %v4929
        %v4944 = vmul.f32 %v4908, %v4929
        %v4945 = vmul.f32 %v4909, %v4929
        %v4946 = vmul.f32 %v4910, %v4929
        %v4947 = vmul.f32 %v4911, %v4929
        %v4948 = vmul.f32 %v4912, %v4929
        %v4949 = vmul.f32 %v4913, %v4929
        %v4950 = vmul.f32 %v4914, %v4929
        %v4951 = vmul.f32 %v4915, %v4929
        %v4952 = vmul.f32 %v4916, %v4929
        %v4953 = vmul.f32 %v4917, %v4929
        %v4954 = vmul.f32 %v4918, %v4929
        %v4955 = vmul.f32 %v4919, %v4929
        %v4956 = vmul.f32 %v4920, %v4929
        %v4957 = vmul.f32 %v4921, %v4929
        %v4958 = vmul.f32 %v4922, %v4929
        %v4959 = vmul.f32 %v4923, %v4929
        %v4960 = vmul.f32 %v4924, %v4929
        %v4961 = vmul.f32 %v4925, %v4929
        %v4962 = vmul.f32 %v4926, %v4929
        %v4963 = vadd.f32 %v4765, %v4931
        %v4964 = vadd.f32 %v4766, %v4932
        %v4965 = vadd.f32 %v4767, %v4933
        %v4966 = vadd.f32 %v4768, %v4934
        %v4967 = vadd.f32 %v4769, %v4935
        %v4968 = vadd.f32 %v4770, %v4936
        %v4969 = vadd.f32 %v4771, %v4937
        %v4970 = vadd.f32 %v4772, %v4938
        %v4971 = vadd.f32 %v4773, %v4939
        %v4972 = vadd.f32 %v4774, %v4940
        %v4973 = vadd.f32 %v4775, %v4941
        %v4974 = vadd.f32 %v4776, %v4942
        %v4975 = vadd.f32 %v4777, %v4943
        %v4976 = vadd.f32 %v4778, %v4944
        %v4977 = vadd.f32 %v4779, %v4945
        %v4978 = vadd.f32 %v4780, %v4946
        %v4979 = vadd.f32 %v4781, %v4947
        %v4980 = vadd.f32 %v4782, %v4948
        %v4981 = vadd.f32 %v4783, %v4949
        %v4982 = vadd.f32 %v4784, %v4950
        %v4983 = vadd.f32 %v4785, %v4951
        %v4984 = vadd.f32 %v4786, %v4952
        %v4985 = vadd.f32 %v4787, %v4953
        %v4986 = vadd.f32 %v4788, %v4954
        %v4987 = vadd.f32 %v4789, %v4955
        %v4988 = vadd.f32 %v4790, %v4956
        %v4989 = vadd.f32 %v4791, %v4957
        %v4990 = vadd.f32 %v4792, %v4958
        %v4991 = vadd.f32 %v4793, %v4959
        %v4992 = vadd.f32 %v4794, %v4960
        %v4993 = vadd.f32 %v4795, %v4961
        %v4994 = vadd.f32 %v4796, %v4962
        %4995 = vset.pattern.permute.xlu0 22
        %4996 = vperm.xlu0 %4995, %v522
        %v4997 = vpop.permute.xlu0 %4996
        %4999 = vset.pattern.permute.xlu0 22
        %5000 = vperm.xlu0 %4999, %v523
        %v5001 = vpop.permute.xlu0 %5000
        %5003 = vset.pattern.permute.xlu0 22
        %5004 = vperm.xlu0 %5003, %v524
        %v5005 = vpop.permute.xlu0 %5004
        %5007 = vset.pattern.permute.xlu0 22
        %5008 = vperm.xlu0 %5007, %v525
        %v5009 = vpop.permute.xlu0 %5008
        %5011 = vset.pattern.permute.xlu0 22
        %5012 = vperm.xlu0 %5011, %v526
        %v5013 = vpop.permute.xlu0 %5012
        %5015 = vset.pattern.permute.xlu0 22
        %5016 = vperm.xlu0 %5015, %v527
        %v5017 = vpop.permute.xlu0 %5016
        %5019 = vset.pattern.permute.xlu0 22
        %5020 = vperm.xlu0 %5019, %v528
        %v5021 = vpop.permute.xlu0 %5020
        %5023 = vset.pattern.permute.xlu0 22
        %5024 = vperm.xlu0 %5023, %v529
        %v5025 = vpop.permute.xlu0 %5024
        %5027 = vset.pattern.permute.xlu0 22
        %5028 = vperm.xlu0 %5027, %v530
        %v5029 = vpop.permute.xlu0 %5028
        %5031 = vset.pattern.permute.xlu0 22
        %5032 = vperm.xlu0 %5031, %v531
        %v5033 = vpop.permute.xlu0 %5032
        %5035 = vset.pattern.permute.xlu0 22
        %5036 = vperm.xlu0 %5035, %v532
        %v5037 = vpop.permute.xlu0 %5036
        %5039 = vset.pattern.permute.xlu0 22
        %5040 = vperm.xlu0 %5039, %v533
        %v5041 = vpop.permute.xlu0 %5040
        %5043 = vset.pattern.permute.xlu0 22
        %5044 = vperm.xlu0 %5043, %v534
        %v5045 = vpop.permute.xlu0 %5044
        %5047 = vset.pattern.permute.xlu0 22
        %5048 = vperm.xlu0 %5047, %v535
        %v5049 = vpop.permute.xlu0 %5048
        %5051 = vset.pattern.permute.xlu0 22
        %5052 = vperm.xlu0 %5051, %v536
        %v5053 = vpop.permute.xlu0 %5052
        %5055 = vset.pattern.permute.xlu0 22
        %5056 = vperm.xlu0 %5055, %v537
        %v5057 = vpop.permute.xlu0 %5056
        %v5059 = vperm.slane %v578, 6
        %v5060 = vperm.slane %v607, 6
        %v5061 = vadd.f32 %v4997, %v5059
        %v5062 = vadd.f32 %v4997, %v5060
        %v5063 = vadd.f32 %v5001, %v5059
        %v5064 = vadd.f32 %v5001, %v5060
        %v5065 = vadd.f32 %v5005, %v5059
        %v5066 = vadd.f32 %v5005, %v5060
        %v5067 = vadd.f32 %v5009, %v5059
        %v5068 = vadd.f32 %v5009, %v5060
        %v5069 = vadd.f32 %v5013, %v5059
        %v5070 = vadd.f32 %v5013, %v5060
        %v5071 = vadd.f32 %v5017, %v5059
        %v5072 = vadd.f32 %v5017, %v5060
        %v5073 = vadd.f32 %v5021, %v5059
        %v5074 = vadd.f32 %v5021, %v5060
        %v5075 = vadd.f32 %v5025, %v5059
        %v5076 = vadd.f32 %v5025, %v5060
        %v5077 = vadd.f32 %v5029, %v5059
        %v5078 = vadd.f32 %v5029, %v5060
        %v5079 = vadd.f32 %v5033, %v5059
        %v5080 = vadd.f32 %v5033, %v5060
        %v5081 = vadd.f32 %v5037, %v5059
        %v5082 = vadd.f32 %v5037, %v5060
        %v5083 = vadd.f32 %v5041, %v5059
        %v5084 = vadd.f32 %v5041, %v5060
        %v5085 = vadd.f32 %v5045, %v5059
        %v5086 = vadd.f32 %v5045, %v5060
        %v5087 = vadd.f32 %v5049, %v5059
        %v5088 = vadd.f32 %v5049, %v5060
        %v5089 = vadd.f32 %v5053, %v5059
        %v5090 = vadd.f32 %v5053, %v5060
        %v5091 = vadd.f32 %v5057, %v5059
        %v5092 = vadd.f32 %v5057, %v5060
        %v5093 = vtanh.pop %v5061
        %v5094 = vtanh.pop %v5062
        %v5095 = vtanh.pop %v5063
        %v5096 = vtanh.pop %v5064
        %v5097 = vtanh.pop %v5065
        %v5098 = vtanh.pop %v5066
        %v5099 = vtanh.pop %v5067
        %v5100 = vtanh.pop %v5068
        %v5101 = vtanh.pop %v5069
        %v5102 = vtanh.pop %v5070
        %v5103 = vtanh.pop %v5071
        %v5104 = vtanh.pop %v5072
        %v5105 = vtanh.pop %v5073
        %v5106 = vtanh.pop %v5074
        %v5107 = vtanh.pop %v5075
        %v5108 = vtanh.pop %v5076
        %v5109 = vtanh.pop %v5077
        %v5110 = vtanh.pop %v5078
        %v5111 = vtanh.pop %v5079
        %v5112 = vtanh.pop %v5080
        %v5113 = vtanh.pop %v5081
        %v5114 = vtanh.pop %v5082
        %v5115 = vtanh.pop %v5083
        %v5116 = vtanh.pop %v5084
        %v5117 = vtanh.pop %v5085
        %v5118 = vtanh.pop %v5086
        %v5119 = vtanh.pop %v5087
        %v5120 = vtanh.pop %v5088
        %v5121 = vtanh.pop %v5089
        %v5122 = vtanh.pop %v5090
        %v5123 = vtanh.pop %v5091
        %v5124 = vtanh.pop %v5092
        %5125 = vset.pattern.permute.xlu0 22
        %5126 = vperm.xlu0 %5125, %v768
        %v5127 = vpop.permute.xlu0 %5126
        %v5129 = vmul.f32 %v5093, %v5127
        %v5130 = vmul.f32 %v5094, %v5127
        %v5131 = vmul.f32 %v5095, %v5127
        %v5132 = vmul.f32 %v5096, %v5127
        %v5133 = vmul.f32 %v5097, %v5127
        %v5134 = vmul.f32 %v5098, %v5127
        %v5135 = vmul.f32 %v5099, %v5127
        %v5136 = vmul.f32 %v5100, %v5127
        %v5137 = vmul.f32 %v5101, %v5127
        %v5138 = vmul.f32 %v5102, %v5127
        %v5139 = vmul.f32 %v5103, %v5127
        %v5140 = vmul.f32 %v5104, %v5127
        %v5141 = vmul.f32 %v5105, %v5127
        %v5142 = vmul.f32 %v5106, %v5127
        %v5143 = vmul.f32 %v5107, %v5127
        %v5144 = vmul.f32 %v5108, %v5127
        %v5145 = vmul.f32 %v5109, %v5127
        %v5146 = vmul.f32 %v5110, %v5127
        %v5147 = vmul.f32 %v5111, %v5127
        %v5148 = vmul.f32 %v5112, %v5127
        %v5149 = vmul.f32 %v5113, %v5127
        %v5150 = vmul.f32 %v5114, %v5127
        %v5151 = vmul.f32 %v5115, %v5127
        %v5152 = vmul.f32 %v5116, %v5127
        %v5153 = vmul.f32 %v5117, %v5127
        %v5154 = vmul.f32 %v5118, %v5127
        %v5155 = vmul.f32 %v5119, %v5127
        %v5156 = vmul.f32 %v5120, %v5127
        %v5157 = vmul.f32 %v5121, %v5127
        %v5158 = vmul.f32 %v5122, %v5127
        %v5159 = vmul.f32 %v5123, %v5127
        %v5160 = vmul.f32 %v5124, %v5127
        %v5161 = vadd.f32 %v4963, %v5129
        %v5162 = vadd.f32 %v4964, %v5130
        %v5163 = vadd.f32 %v4965, %v5131
        %v5164 = vadd.f32 %v4966, %v5132
        %v5165 = vadd.f32 %v4967, %v5133
        %v5166 = vadd.f32 %v4968, %v5134
        %v5167 = vadd.f32 %v4969, %v5135
        %v5168 = vadd.f32 %v4970, %v5136
        %v5169 = vadd.f32 %v4971, %v5137
        %v5170 = vadd.f32 %v4972, %v5138
        %v5171 = vadd.f32 %v4973, %v5139
        %v5172 = vadd.f32 %v4974, %v5140
        %v5173 = vadd.f32 %v4975, %v5141
        %v5174 = vadd.f32 %v4976, %v5142
        %v5175 = vadd.f32 %v4977, %v5143
        %v5176 = vadd.f32 %v4978, %v5144
        %v5177 = vadd.f32 %v4979, %v5145
        %v5178 = vadd.f32 %v4980, %v5146
        %v5179 = vadd.f32 %v4981, %v5147
        %v5180 = vadd.f32 %v4982, %v5148
        %v5181 = vadd.f32 %v4983, %v5149
        %v5182 = vadd.f32 %v4984, %v5150
        %v5183 = vadd.f32 %v4985, %v5151
        %v5184 = vadd.f32 %v4986, %v5152
        %v5185 = vadd.f32 %v4987, %v5153
        %v5186 = vadd.f32 %v4988, %v5154
        %v5187 = vadd.f32 %v4989, %v5155
        %v5188 = vadd.f32 %v4990, %v5156
        %v5189 = vadd.f32 %v4991, %v5157
        %v5190 = vadd.f32 %v4992, %v5158
        %v5191 = vadd.f32 %v4993, %v5159
        %v5192 = vadd.f32 %v4994, %v5160
        %5193 = vset.pattern.permute.xlu0 23
        %5194 = vperm.xlu0 %5193, %v522
        %v5195 = vpop.permute.xlu0 %5194
        %5197 = vset.pattern.permute.xlu0 23
        %5198 = vperm.xlu0 %5197, %v523
        %v5199 = vpop.permute.xlu0 %5198
        %5201 = vset.pattern.permute.xlu0 23
        %5202 = vperm.xlu0 %5201, %v524
        %v5203 = vpop.permute.xlu0 %5202
        %5205 = vset.pattern.permute.xlu0 23
        %5206 = vperm.xlu0 %5205, %v525
        %v5207 = vpop.permute.xlu0 %5206
        %5209 = vset.pattern.permute.xlu0 23
        %5210 = vperm.xlu0 %5209, %v526
        %v5211 = vpop.permute.xlu0 %5210
        %5213 = vset.pattern.permute.xlu0 23
        %5214 = vperm.xlu0 %5213, %v527
        %v5215 = vpop.permute.xlu0 %5214
        %5217 = vset.pattern.permute.xlu0 23
        %5218 = vperm.xlu0 %5217, %v528
        %v5219 = vpop.permute.xlu0 %5218
        %5221 = vset.pattern.permute.xlu0 23
        %5222 = vperm.xlu0 %5221, %v529
        %v5223 = vpop.permute.xlu0 %5222
        %5225 = vset.pattern.permute.xlu0 23
        %5226 = vperm.xlu0 %5225, %v530
        %v5227 = vpop.permute.xlu0 %5226
        %5229 = vset.pattern.permute.xlu0 23
        %5230 = vperm.xlu0 %5229, %v531
        %v5231 = vpop.permute.xlu0 %5230
        %5233 = vset.pattern.permute.xlu0 23
        %5234 = vperm.xlu0 %5233, %v532
        %v5235 = vpop.permute.xlu0 %5234
        %5237 = vset.pattern.permute.xlu0 23
        %5238 = vperm.xlu0 %5237, %v533
        %v5239 = vpop.permute.xlu0 %5238
        %5241 = vset.pattern.permute.xlu0 23
        %5242 = vperm.xlu0 %5241, %v534
        %v5243 = vpop.permute.xlu0 %5242
        %5245 = vset.pattern.permute.xlu0 23
        %5246 = vperm.xlu0 %5245, %v535
        %v5247 = vpop.permute.xlu0 %5246
        %5249 = vset.pattern.permute.xlu0 23
        %5250 = vperm.xlu0 %5249, %v536
        %v5251 = vpop.permute.xlu0 %5250
        %5253 = vset.pattern.permute.xlu0 23
        %5254 = vperm.xlu0 %5253, %v537
        %v5255 = vpop.permute.xlu0 %5254
        %v5257 = vperm.slane %v578, 7
        %v5258 = vperm.slane %v607, 7
        %v5259 = vadd.f32 %v5195, %v5257
        %v5260 = vadd.f32 %v5195, %v5258
        %v5261 = vadd.f32 %v5199, %v5257
        %v5262 = vadd.f32 %v5199, %v5258
        %v5263 = vadd.f32 %v5203, %v5257
        %v5264 = vadd.f32 %v5203, %v5258
        %v5265 = vadd.f32 %v5207, %v5257
        %v5266 = vadd.f32 %v5207, %v5258
        %v5267 = vadd.f32 %v5211, %v5257
        %v5268 = vadd.f32 %v5211, %v5258
        %v5269 = vadd.f32 %v5215, %v5257
        %v5270 = vadd.f32 %v5215, %v5258
        %v5271 = vadd.f32 %v5219, %v5257
        %v5272 = vadd.f32 %v5219, %v5258
        %v5273 = vadd.f32 %v5223, %v5257
        %v5274 = vadd.f32 %v5223, %v5258
        %v5275 = vadd.f32 %v5227, %v5257
        %v5276 = vadd.f32 %v5227, %v5258
        %v5277 = vadd.f32 %v5231, %v5257
        %v5278 = vadd.f32 %v5231, %v5258
        %v5279 = vadd.f32 %v5235, %v5257
        %v5280 = vadd.f32 %v5235, %v5258
        %v5281 = vadd.f32 %v5239, %v5257
        %v5282 = vadd.f32 %v5239, %v5258
        %v5283 = vadd.f32 %v5243, %v5257
        %v5284 = vadd.f32 %v5243, %v5258
        %v5285 = vadd.f32 %v5247, %v5257
        %v5286 = vadd.f32 %v5247, %v5258
        %v5287 = vadd.f32 %v5251, %v5257
        %v5288 = vadd.f32 %v5251, %v5258
        %v5289 = vadd.f32 %v5255, %v5257
        %v5290 = vadd.f32 %v5255, %v5258
        %v5291 = vtanh.pop %v5259
        %v5292 = vtanh.pop %v5260
        %v5293 = vtanh.pop %v5261
        %v5294 = vtanh.pop %v5262
        %v5295 = vtanh.pop %v5263
        %v5296 = vtanh.pop %v5264
        %v5297 = vtanh.pop %v5265
        %v5298 = vtanh.pop %v5266
        %v5299 = vtanh.pop %v5267
        %v5300 = vtanh.pop %v5268
        %v5301 = vtanh.pop %v5269
        %v5302 = vtanh.pop %v5270
        %v5303 = vtanh.pop %v5271
        %v5304 = vtanh.pop %v5272
        %v5305 = vtanh.pop %v5273
        %v5306 = vtanh.pop %v5274
        %v5307 = vtanh.pop %v5275
        %v5308 = vtanh.pop %v5276
        %v5309 = vtanh.pop %v5277
        %v5310 = vtanh.pop %v5278
        %v5311 = vtanh.pop %v5279
        %v5312 = vtanh.pop %v5280
        %v5313 = vtanh.pop %v5281
        %v5314 = vtanh.pop %v5282
        %v5315 = vtanh.pop %v5283
        %v5316 = vtanh.pop %v5284
        %v5317 = vtanh.pop %v5285
        %v5318 = vtanh.pop %v5286
        %v5319 = vtanh.pop %v5287
        %v5320 = vtanh.pop %v5288
        %v5321 = vtanh.pop %v5289
        %v5322 = vtanh.pop %v5290
        %5323 = vset.pattern.permute.xlu0 23
        %5324 = vperm.xlu0 %5323, %v768
        %v5325 = vpop.permute.xlu0 %5324
        %v5327 = vmul.f32 %v5291, %v5325
        %v5328 = vmul.f32 %v5292, %v5325
        %v5329 = vmul.f32 %v5293, %v5325
        %v5330 = vmul.f32 %v5294, %v5325
        %v5331 = vmul.f32 %v5295, %v5325
        %v5332 = vmul.f32 %v5296, %v5325
        %v5333 = vmul.f32 %v5297, %v5325
        %v5334 = vmul.f32 %v5298, %v5325
        %v5335 = vmul.f32 %v5299, %v5325
        %v5336 = vmul.f32 %v5300, %v5325
        %v5337 = vmul.f32 %v5301, %v5325
        %v5338 = vmul.f32 %v5302, %v5325
        %v5339 = vmul.f32 %v5303, %v5325
        %v5340 = vmul.f32 %v5304, %v5325
        %v5341 = vmul.f32 %v5305, %v5325
        %v5342 = vmul.f32 %v5306, %v5325
        %v5343 = vmul.f32 %v5307, %v5325
        %v5344 = vmul.f32 %v5308, %v5325
        %v5345 = vmul.f32 %v5309, %v5325
        %v5346 = vmul.f32 %v5310, %v5325
        %v5347 = vmul.f32 %v5311, %v5325
        %v5348 = vmul.f32 %v5312, %v5325
        %v5349 = vmul.f32 %v5313, %v5325
        %v5350 = vmul.f32 %v5314, %v5325
        %v5351 = vmul.f32 %v5315, %v5325
        %v5352 = vmul.f32 %v5316, %v5325
        %v5353 = vmul.f32 %v5317, %v5325
        %v5354 = vmul.f32 %v5318, %v5325
        %v5355 = vmul.f32 %v5319, %v5325
        %v5356 = vmul.f32 %v5320, %v5325
        %v5357 = vmul.f32 %v5321, %v5325
        %v5358 = vmul.f32 %v5322, %v5325
        %v5359 = vadd.f32 %v5161, %v5327
        %v5360 = vadd.f32 %v5162, %v5328
        %v5361 = vadd.f32 %v5163, %v5329
        %v5362 = vadd.f32 %v5164, %v5330
        %v5363 = vadd.f32 %v5165, %v5331
        %v5364 = vadd.f32 %v5166, %v5332
        %v5365 = vadd.f32 %v5167, %v5333
        %v5366 = vadd.f32 %v5168, %v5334
        %v5367 = vadd.f32 %v5169, %v5335
        %v5368 = vadd.f32 %v5170, %v5336
        %v5369 = vadd.f32 %v5171, %v5337
        %v5370 = vadd.f32 %v5172, %v5338
        %v5371 = vadd.f32 %v5173, %v5339
        %v5372 = vadd.f32 %v5174, %v5340
        %v5373 = vadd.f32 %v5175, %v5341
        %v5374 = vadd.f32 %v5176, %v5342
        %v5375 = vadd.f32 %v5177, %v5343
        %v5376 = vadd.f32 %v5178, %v5344
        %v5377 = vadd.f32 %v5179, %v5345
        %v5378 = vadd.f32 %v5180, %v5346
        %v5379 = vadd.f32 %v5181, %v5347
        %v5380 = vadd.f32 %v5182, %v5348
        %v5381 = vadd.f32 %v5183, %v5349
        %v5382 = vadd.f32 %v5184, %v5350
        %v5383 = vadd.f32 %v5185, %v5351
        %v5384 = vadd.f32 %v5186, %v5352
        %v5385 = vadd.f32 %v5187, %v5353
        %v5386 = vadd.f32 %v5188, %v5354
        %v5387 = vadd.f32 %v5189, %v5355
        %v5388 = vadd.f32 %v5190, %v5356
        %v5389 = vadd.f32 %v5191, %v5357
        %v5390 = vadd.f32 %v5192, %v5358
        %5391 = vset.pattern.permute.xlu0 24
        %5392 = vperm.xlu0 %5391, %v522
        %v5393 = vpop.permute.xlu0 %5392
        %5395 = vset.pattern.permute.xlu0 24
        %5396 = vperm.xlu0 %5395, %v523
        %v5397 = vpop.permute.xlu0 %5396
        %5399 = vset.pattern.permute.xlu0 24
        %5400 = vperm.xlu0 %5399, %v524
        %v5401 = vpop.permute.xlu0 %5400
        %5403 = vset.pattern.permute.xlu0 24
        %5404 = vperm.xlu0 %5403, %v525
        %v5405 = vpop.permute.xlu0 %5404
        %5407 = vset.pattern.permute.xlu0 24
        %5408 = vperm.xlu0 %5407, %v526
        %v5409 = vpop.permute.xlu0 %5408
        %5411 = vset.pattern.permute.xlu0 24
        %5412 = vperm.xlu0 %5411, %v527
        %v5413 = vpop.permute.xlu0 %5412
        %5415 = vset.pattern.permute.xlu0 24
        %5416 = vperm.xlu0 %5415, %v528
        %v5417 = vpop.permute.xlu0 %5416
        %5419 = vset.pattern.permute.xlu0 24
        %5420 = vperm.xlu0 %5419, %v529
        %v5421 = vpop.permute.xlu0 %5420
        %5423 = vset.pattern.permute.xlu0 24
        %5424 = vperm.xlu0 %5423, %v530
        %v5425 = vpop.permute.xlu0 %5424
        %5427 = vset.pattern.permute.xlu0 24
        %5428 = vperm.xlu0 %5427, %v531
        %v5429 = vpop.permute.xlu0 %5428
        %5431 = vset.pattern.permute.xlu0 24
        %5432 = vperm.xlu0 %5431, %v532
        %v5433 = vpop.permute.xlu0 %5432
        %5435 = vset.pattern.permute.xlu0 24
        %5436 = vperm.xlu0 %5435, %v533
        %v5437 = vpop.permute.xlu0 %5436
        %5439 = vset.pattern.permute.xlu0 24
        %5440 = vperm.xlu0 %5439, %v534
        %v5441 = vpop.permute.xlu0 %5440
        %5443 = vset.pattern.permute.xlu0 24
        %5444 = vperm.xlu0 %5443, %v535
        %v5445 = vpop.permute.xlu0 %5444
        %5447 = vset.pattern.permute.xlu0 24
        %5448 = vperm.xlu0 %5447, %v536
        %v5449 = vpop.permute.xlu0 %5448
        %5451 = vset.pattern.permute.xlu0 24
        %5452 = vperm.xlu0 %5451, %v537
        %v5453 = vpop.permute.xlu0 %5452
        %v5455 = vperm.slane %v581, 0
        %v5456 = vperm.slane %v610, 0
        %v5457 = vadd.f32 %v5393, %v5455
        %v5458 = vadd.f32 %v5393, %v5456
        %v5459 = vadd.f32 %v5397, %v5455
        %v5460 = vadd.f32 %v5397, %v5456
        %v5461 = vadd.f32 %v5401, %v5455
        %v5462 = vadd.f32 %v5401, %v5456
        %v5463 = vadd.f32 %v5405, %v5455
        %v5464 = vadd.f32 %v5405, %v5456
        %v5465 = vadd.f32 %v5409, %v5455
        %v5466 = vadd.f32 %v5409, %v5456
        %v5467 = vadd.f32 %v5413, %v5455
        %v5468 = vadd.f32 %v5413, %v5456
        %v5469 = vadd.f32 %v5417, %v5455
        %v5470 = vadd.f32 %v5417, %v5456
        %v5471 = vadd.f32 %v5421, %v5455
        %v5472 = vadd.f32 %v5421, %v5456
        %v5473 = vadd.f32 %v5425, %v5455
        %v5474 = vadd.f32 %v5425, %v5456
        %v5475 = vadd.f32 %v5429, %v5455
        %v5476 = vadd.f32 %v5429, %v5456
        %v5477 = vadd.f32 %v5433, %v5455
        %v5478 = vadd.f32 %v5433, %v5456
        %v5479 = vadd.f32 %v5437, %v5455
        %v5480 = vadd.f32 %v5437, %v5456
        %v5481 = vadd.f32 %v5441, %v5455
        %v5482 = vadd.f32 %v5441, %v5456
        %v5483 = vadd.f32 %v5445, %v5455
        %v5484 = vadd.f32 %v5445, %v5456
        %v5485 = vadd.f32 %v5449, %v5455
        %v5486 = vadd.f32 %v5449, %v5456
        %v5487 = vadd.f32 %v5453, %v5455
        %v5488 = vadd.f32 %v5453, %v5456
        %v5489 = vtanh.pop %v5457
        %v5490 = vtanh.pop %v5458
        %v5491 = vtanh.pop %v5459
        %v5492 = vtanh.pop %v5460
        %v5493 = vtanh.pop %v5461
        %v5494 = vtanh.pop %v5462
        %v5495 = vtanh.pop %v5463
        %v5496 = vtanh.pop %v5464
        %v5497 = vtanh.pop %v5465
        %v5498 = vtanh.pop %v5466
        %v5499 = vtanh.pop %v5467
        %v5500 = vtanh.pop %v5468
        %v5501 = vtanh.pop %v5469
        %v5502 = vtanh.pop %v5470
        %v5503 = vtanh.pop %v5471
        %v5504 = vtanh.pop %v5472
        %v5505 = vtanh.pop %v5473
        %v5506 = vtanh.pop %v5474
        %v5507 = vtanh.pop %v5475
        %v5508 = vtanh.pop %v5476
        %v5509 = vtanh.pop %v5477
        %v5510 = vtanh.pop %v5478
        %v5511 = vtanh.pop %v5479
        %v5512 = vtanh.pop %v5480
        %v5513 = vtanh.pop %v5481
        %v5514 = vtanh.pop %v5482
        %v5515 = vtanh.pop %v5483
        %v5516 = vtanh.pop %v5484
        %v5517 = vtanh.pop %v5485
        %v5518 = vtanh.pop %v5486
        %v5519 = vtanh.pop %v5487
        %v5520 = vtanh.pop %v5488
        %5521 = vset.pattern.permute.xlu0 24
        %5522 = vperm.xlu0 %5521, %v768
        %v5523 = vpop.permute.xlu0 %5522
        %v5525 = vmul.f32 %v5489, %v5523
        %v5526 = vmul.f32 %v5490, %v5523
        %v5527 = vmul.f32 %v5491, %v5523
        %v5528 = vmul.f32 %v5492, %v5523
        %v5529 = vmul.f32 %v5493, %v5523
        %v5530 = vmul.f32 %v5494, %v5523
        %v5531 = vmul.f32 %v5495, %v5523
        %v5532 = vmul.f32 %v5496, %v5523
        %v5533 = vmul.f32 %v5497, %v5523
        %v5534 = vmul.f32 %v5498, %v5523
        %v5535 = vmul.f32 %v5499, %v5523
        %v5536 = vmul.f32 %v5500, %v5523
        %v5537 = vmul.f32 %v5501, %v5523
        %v5538 = vmul.f32 %v5502, %v5523
        %v5539 = vmul.f32 %v5503, %v5523
        %v5540 = vmul.f32 %v5504, %v5523
        %v5541 = vmul.f32 %v5505, %v5523
        %v5542 = vmul.f32 %v5506, %v5523
        %v5543 = vmul.f32 %v5507, %v5523
        %v5544 = vmul.f32 %v5508, %v5523
        %v5545 = vmul.f32 %v5509, %v5523
        %v5546 = vmul.f32 %v5510, %v5523
        %v5547 = vmul.f32 %v5511, %v5523
        %v5548 = vmul.f32 %v5512, %v5523
        %v5549 = vmul.f32 %v5513, %v5523
        %v5550 = vmul.f32 %v5514, %v5523
        %v5551 = vmul.f32 %v5515, %v5523
        %v5552 = vmul.f32 %v5516, %v5523
        %v5553 = vmul.f32 %v5517, %v5523
        %v5554 = vmul.f32 %v5518, %v5523
        %v5555 = vmul.f32 %v5519, %v5523
        %v5556 = vmul.f32 %v5520, %v5523
        %v5557 = vadd.f32 %v5359, %v5525
        %v5558 = vadd.f32 %v5360, %v5526
        %v5559 = vadd.f32 %v5361, %v5527
        %v5560 = vadd.f32 %v5362, %v5528
        %v5561 = vadd.f32 %v5363, %v5529
        %v5562 = vadd.f32 %v5364, %v5530
        %v5563 = vadd.f32 %v5365, %v5531
        %v5564 = vadd.f32 %v5366, %v5532
        %v5565 = vadd.f32 %v5367, %v5533
        %v5566 = vadd.f32 %v5368, %v5534
        %v5567 = vadd.f32 %v5369, %v5535
        %v5568 = vadd.f32 %v5370, %v5536
        %v5569 = vadd.f32 %v5371, %v5537
        %v5570 = vadd.f32 %v5372, %v5538
        %v5571 = vadd.f32 %v5373, %v5539
        %v5572 = vadd.f32 %v5374, %v5540
        %v5573 = vadd.f32 %v5375, %v5541
        %v5574 = vadd.f32 %v5376, %v5542
        %v5575 = vadd.f32 %v5377, %v5543
        %v5576 = vadd.f32 %v5378, %v5544
        %v5577 = vadd.f32 %v5379, %v5545
        %v5578 = vadd.f32 %v5380, %v5546
        %v5579 = vadd.f32 %v5381, %v5547
        %v5580 = vadd.f32 %v5382, %v5548
        %v5581 = vadd.f32 %v5383, %v5549
        %v5582 = vadd.f32 %v5384, %v5550
        %v5583 = vadd.f32 %v5385, %v5551
        %v5584 = vadd.f32 %v5386, %v5552
        %v5585 = vadd.f32 %v5387, %v5553
        %v5586 = vadd.f32 %v5388, %v5554
        %v5587 = vadd.f32 %v5389, %v5555
        %v5588 = vadd.f32 %v5390, %v5556
        %5589 = vset.pattern.permute.xlu0 25
        %5590 = vperm.xlu0 %5589, %v522
        %v5591 = vpop.permute.xlu0 %5590
        %5593 = vset.pattern.permute.xlu0 25
        %5594 = vperm.xlu0 %5593, %v523
        %v5595 = vpop.permute.xlu0 %5594
        %5597 = vset.pattern.permute.xlu0 25
        %5598 = vperm.xlu0 %5597, %v524
        %v5599 = vpop.permute.xlu0 %5598
        %5601 = vset.pattern.permute.xlu0 25
        %5602 = vperm.xlu0 %5601, %v525
        %v5603 = vpop.permute.xlu0 %5602
        %5605 = vset.pattern.permute.xlu0 25
        %5606 = vperm.xlu0 %5605, %v526
        %v5607 = vpop.permute.xlu0 %5606
        %5609 = vset.pattern.permute.xlu0 25
        %5610 = vperm.xlu0 %5609, %v527
        %v5611 = vpop.permute.xlu0 %5610
        %5613 = vset.pattern.permute.xlu0 25
        %5614 = vperm.xlu0 %5613, %v528
        %v5615 = vpop.permute.xlu0 %5614
        %5617 = vset.pattern.permute.xlu0 25
        %5618 = vperm.xlu0 %5617, %v529
        %v5619 = vpop.permute.xlu0 %5618
        %5621 = vset.pattern.permute.xlu0 25
        %5622 = vperm.xlu0 %5621, %v530
        %v5623 = vpop.permute.xlu0 %5622
        %5625 = vset.pattern.permute.xlu0 25
        %5626 = vperm.xlu0 %5625, %v531
        %v5627 = vpop.permute.xlu0 %5626
        %5629 = vset.pattern.permute.xlu0 25
        %5630 = vperm.xlu0 %5629, %v532
        %v5631 = vpop.permute.xlu0 %5630
        %5633 = vset.pattern.permute.xlu0 25
        %5634 = vperm.xlu0 %5633, %v533
        %v5635 = vpop.permute.xlu0 %5634
        %5637 = vset.pattern.permute.xlu0 25
        %5638 = vperm.xlu0 %5637, %v534
        %v5639 = vpop.permute.xlu0 %5638
        %5641 = vset.pattern.permute.xlu0 25
        %5642 = vperm.xlu0 %5641, %v535
        %v5643 = vpop.permute.xlu0 %5642
        %5645 = vset.pattern.permute.xlu0 25
        %5646 = vperm.xlu0 %5645, %v536
        %v5647 = vpop.permute.xlu0 %5646
        %5649 = vset.pattern.permute.xlu0 25
        %5650 = vperm.xlu0 %5649, %v537
        %v5651 = vpop.permute.xlu0 %5650
        %v5653 = vperm.slane %v581, 1
        %v5654 = vperm.slane %v610, 1
        %v5655 = vadd.f32 %v5591, %v5653
        %v5656 = vadd.f32 %v5591, %v5654
        %v5657 = vadd.f32 %v5595, %v5653
        %v5658 = vadd.f32 %v5595, %v5654
        %v5659 = vadd.f32 %v5599, %v5653
        %v5660 = vadd.f32 %v5599, %v5654
        %v5661 = vadd.f32 %v5603, %v5653
        %v5662 = vadd.f32 %v5603, %v5654
        %v5663 = vadd.f32 %v5607, %v5653
        %v5664 = vadd.f32 %v5607, %v5654
        %v5665 = vadd.f32 %v5611, %v5653
        %v5666 = vadd.f32 %v5611, %v5654
        %v5667 = vadd.f32 %v5615, %v5653
        %v5668 = vadd.f32 %v5615, %v5654
        %v5669 = vadd.f32 %v5619, %v5653
        %v5670 = vadd.f32 %v5619, %v5654
        %v5671 = vadd.f32 %v5623, %v5653
        %v5672 = vadd.f32 %v5623, %v5654
        %v5673 = vadd.f32 %v5627, %v5653
        %v5674 = vadd.f32 %v5627, %v5654
        %v5675 = vadd.f32 %v5631, %v5653
        %v5676 = vadd.f32 %v5631, %v5654
        %v5677 = vadd.f32 %v5635, %v5653
        %v5678 = vadd.f32 %v5635, %v5654
        %v5679 = vadd.f32 %v5639, %v5653
        %v5680 = vadd.f32 %v5639, %v5654
        %v5681 = vadd.f32 %v5643, %v5653
        %v5682 = vadd.f32 %v5643, %v5654
        %v5683 = vadd.f32 %v5647, %v5653
        %v5684 = vadd.f32 %v5647, %v5654
        %v5685 = vadd.f32 %v5651, %v5653
        %v5686 = vadd.f32 %v5651, %v5654
        %v5687 = vtanh.pop %v5655
        %v5688 = vtanh.pop %v5656
        %v5689 = vtanh.pop %v5657
        %v5690 = vtanh.pop %v5658
        %v5691 = vtanh.pop %v5659
        %v5692 = vtanh.pop %v5660
        %v5693 = vtanh.pop %v5661
        %v5694 = vtanh.pop %v5662
        %v5695 = vtanh.pop %v5663
        %v5696 = vtanh.pop %v5664
        %v5697 = vtanh.pop %v5665
        %v5698 = vtanh.pop %v5666
        %v5699 = vtanh.pop %v5667
        %v5700 = vtanh.pop %v5668
        %v5701 = vtanh.pop %v5669
        %v5702 = vtanh.pop %v5670
        %v5703 = vtanh.pop %v5671
        %v5704 = vtanh.pop %v5672
        %v5705 = vtanh.pop %v5673
        %v5706 = vtanh.pop %v5674
        %v5707 = vtanh.pop %v5675
        %v5708 = vtanh.pop %v5676
        %v5709 = vtanh.pop %v5677
        %v5710 = vtanh.pop %v5678
        %v5711 = vtanh.pop %v5679
        %v5712 = vtanh.pop %v5680
        %v5713 = vtanh.pop %v5681
        %v5714 = vtanh.pop %v5682
        %v5715 = vtanh.pop %v5683
        %v5716 = vtanh.pop %v5684
        %v5717 = vtanh.pop %v5685
        %v5718 = vtanh.pop %v5686
        %5719 = vset.pattern.permute.xlu0 25
        %5720 = vperm.xlu0 %5719, %v768
        %v5721 = vpop.permute.xlu0 %5720
        %v5723 = vmul.f32 %v5687, %v5721
        %v5724 = vmul.f32 %v5688, %v5721
        %v5725 = vmul.f32 %v5689, %v5721
        %v5726 = vmul.f32 %v5690, %v5721
        %v5727 = vmul.f32 %v5691, %v5721
        %v5728 = vmul.f32 %v5692, %v5721
        %v5729 = vmul.f32 %v5693, %v5721
        %v5730 = vmul.f32 %v5694, %v5721
        %v5731 = vmul.f32 %v5695, %v5721
        %v5732 = vmul.f32 %v5696, %v5721
        %v5733 = vmul.f32 %v5697, %v5721
        %v5734 = vmul.f32 %v5698, %v5721
        %v5735 = vmul.f32 %v5699, %v5721
        %v5736 = vmul.f32 %v5700, %v5721
        %v5737 = vmul.f32 %v5701, %v5721
        %v5738 = vmul.f32 %v5702, %v5721
        %v5739 = vmul.f32 %v5703, %v5721
        %v5740 = vmul.f32 %v5704, %v5721
        %v5741 = vmul.f32 %v5705, %v5721
        %v5742 = vmul.f32 %v5706, %v5721
        %v5743 = vmul.f32 %v5707, %v5721
        %v5744 = vmul.f32 %v5708, %v5721
        %v5745 = vmul.f32 %v5709, %v5721
        %v5746 = vmul.f32 %v5710, %v5721
        %v5747 = vmul.f32 %v5711, %v5721
        %v5748 = vmul.f32 %v5712, %v5721
        %v5749 = vmul.f32 %v5713, %v5721
        %v5750 = vmul.f32 %v5714, %v5721
        %v5751 = vmul.f32 %v5715, %v5721
        %v5752 = vmul.f32 %v5716, %v5721
        %v5753 = vmul.f32 %v5717, %v5721
        %v5754 = vmul.f32 %v5718, %v5721
        %v5755 = vadd.f32 %v5557, %v5723
        %v5756 = vadd.f32 %v5558, %v5724
        %v5757 = vadd.f32 %v5559, %v5725
        %v5758 = vadd.f32 %v5560, %v5726
        %v5759 = vadd.f32 %v5561, %v5727
        %v5760 = vadd.f32 %v5562, %v5728
        %v5761 = vadd.f32 %v5563, %v5729
        %v5762 = vadd.f32 %v5564, %v5730
        %v5763 = vadd.f32 %v5565, %v5731
        %v5764 = vadd.f32 %v5566, %v5732
        %v5765 = vadd.f32 %v5567, %v5733
        %v5766 = vadd.f32 %v5568, %v5734
        %v5767 = vadd.f32 %v5569, %v5735
        %v5768 = vadd.f32 %v5570, %v5736
        %v5769 = vadd.f32 %v5571, %v5737
        %v5770 = vadd.f32 %v5572, %v5738
        %v5771 = vadd.f32 %v5573, %v5739
        %v5772 = vadd.f32 %v5574, %v5740
        %v5773 = vadd.f32 %v5575, %v5741
        %v5774 = vadd.f32 %v5576, %v5742
        %v5775 = vadd.f32 %v5577, %v5743
        %v5776 = vadd.f32 %v5578, %v5744
        %v5777 = vadd.f32 %v5579, %v5745
        %v5778 = vadd.f32 %v5580, %v5746
        %v5779 = vadd.f32 %v5581, %v5747
        %v5780 = vadd.f32 %v5582, %v5748
        %v5781 = vadd.f32 %v5583, %v5749
        %v5782 = vadd.f32 %v5584, %v5750
        %v5783 = vadd.f32 %v5585, %v5751
        %v5784 = vadd.f32 %v5586, %v5752
        %v5785 = vadd.f32 %v5587, %v5753
        %v5786 = vadd.f32 %v5588, %v5754
        %5787 = vset.pattern.permute.xlu0 26
        %5788 = vperm.xlu0 %5787, %v522
        %v5789 = vpop.permute.xlu0 %5788
        %5791 = vset.pattern.permute.xlu0 26
        %5792 = vperm.xlu0 %5791, %v523
        %v5793 = vpop.permute.xlu0 %5792
        %5795 = vset.pattern.permute.xlu0 26
        %5796 = vperm.xlu0 %5795, %v524
        %v5797 = vpop.permute.xlu0 %5796
        %5799 = vset.pattern.permute.xlu0 26
        %5800 = vperm.xlu0 %5799, %v525
        %v5801 = vpop.permute.xlu0 %5800
        %5803 = vset.pattern.permute.xlu0 26
        %5804 = vperm.xlu0 %5803, %v526
        %v5805 = vpop.permute.xlu0 %5804
        %5807 = vset.pattern.permute.xlu0 26
        %5808 = vperm.xlu0 %5807, %v527
        %v5809 = vpop.permute.xlu0 %5808
        %5811 = vset.pattern.permute.xlu0 26
        %5812 = vperm.xlu0 %5811, %v528
        %v5813 = vpop.permute.xlu0 %5812
        %5815 = vset.pattern.permute.xlu0 26
        %5816 = vperm.xlu0 %5815, %v529
        %v5817 = vpop.permute.xlu0 %5816
        %5819 = vset.pattern.permute.xlu0 26
        %5820 = vperm.xlu0 %5819, %v530
        %v5821 = vpop.permute.xlu0 %5820
        %5823 = vset.pattern.permute.xlu0 26
        %5824 = vperm.xlu0 %5823, %v531
        %v5825 = vpop.permute.xlu0 %5824
        %5827 = vset.pattern.permute.xlu0 26
        %5828 = vperm.xlu0 %5827, %v532
        %v5829 = vpop.permute.xlu0 %5828
        %5831 = vset.pattern.permute.xlu0 26
        %5832 = vperm.xlu0 %5831, %v533
        %v5833 = vpop.permute.xlu0 %5832
        %5835 = vset.pattern.permute.xlu0 26
        %5836 = vperm.xlu0 %5835, %v534
        %v5837 = vpop.permute.xlu0 %5836
        %5839 = vset.pattern.permute.xlu0 26
        %5840 = vperm.xlu0 %5839, %v535
        %v5841 = vpop.permute.xlu0 %5840
        %5843 = vset.pattern.permute.xlu0 26
        %5844 = vperm.xlu0 %5843, %v536
        %v5845 = vpop.permute.xlu0 %5844
        %5847 = vset.pattern.permute.xlu0 26
        %5848 = vperm.xlu0 %5847, %v537
        %v5849 = vpop.permute.xlu0 %5848
        %v5851 = vperm.slane %v581, 2
        %v5852 = vperm.slane %v610, 2
        %v5853 = vadd.f32 %v5789, %v5851
        %v5854 = vadd.f32 %v5789, %v5852
        %v5855 = vadd.f32 %v5793, %v5851
        %v5856 = vadd.f32 %v5793, %v5852
        %v5857 = vadd.f32 %v5797, %v5851
        %v5858 = vadd.f32 %v5797, %v5852
        %v5859 = vadd.f32 %v5801, %v5851
        %v5860 = vadd.f32 %v5801, %v5852
        %v5861 = vadd.f32 %v5805, %v5851
        %v5862 = vadd.f32 %v5805, %v5852
        %v5863 = vadd.f32 %v5809, %v5851
        %v5864 = vadd.f32 %v5809, %v5852
        %v5865 = vadd.f32 %v5813, %v5851
        %v5866 = vadd.f32 %v5813, %v5852
        %v5867 = vadd.f32 %v5817, %v5851
        %v5868 = vadd.f32 %v5817, %v5852
        %v5869 = vadd.f32 %v5821, %v5851
        %v5870 = vadd.f32 %v5821, %v5852
        %v5871 = vadd.f32 %v5825, %v5851
        %v5872 = vadd.f32 %v5825, %v5852
        %v5873 = vadd.f32 %v5829, %v5851
        %v5874 = vadd.f32 %v5829, %v5852
        %v5875 = vadd.f32 %v5833, %v5851
        %v5876 = vadd.f32 %v5833, %v5852
        %v5877 = vadd.f32 %v5837, %v5851
        %v5878 = vadd.f32 %v5837, %v5852
        %v5879 = vadd.f32 %v5841, %v5851
        %v5880 = vadd.f32 %v5841, %v5852
        %v5881 = vadd.f32 %v5845, %v5851
        %v5882 = vadd.f32 %v5845, %v5852
        %v5883 = vadd.f32 %v5849, %v5851
        %v5884 = vadd.f32 %v5849, %v5852
        %v5885 = vtanh.pop %v5853
        %v5886 = vtanh.pop %v5854
        %v5887 = vtanh.pop %v5855
        %v5888 = vtanh.pop %v5856
        %v5889 = vtanh.pop %v5857
        %v5890 = vtanh.pop %v5858
        %v5891 = vtanh.pop %v5859
        %v5892 = vtanh.pop %v5860
        %v5893 = vtanh.pop %v5861
        %v5894 = vtanh.pop %v5862
        %v5895 = vtanh.pop %v5863
        %v5896 = vtanh.pop %v5864
        %v5897 = vtanh.pop %v5865
        %v5898 = vtanh.pop %v5866
        %v5899 = vtanh.pop %v5867
        %v5900 = vtanh.pop %v5868
        %v5901 = vtanh.pop %v5869
        %v5902 = vtanh.pop %v5870
        %v5903 = vtanh.pop %v5871
        %v5904 = vtanh.pop %v5872
        %v5905 = vtanh.pop %v5873
        %v5906 = vtanh.pop %v5874
        %v5907 = vtanh.pop %v5875
        %v5908 = vtanh.pop %v5876
        %v5909 = vtanh.pop %v5877
        %v5910 = vtanh.pop %v5878
        %v5911 = vtanh.pop %v5879
        %v5912 = vtanh.pop %v5880
        %v5913 = vtanh.pop %v5881
        %v5914 = vtanh.pop %v5882
        %v5915 = vtanh.pop %v5883
        %v5916 = vtanh.pop %v5884
        %5917 = vset.pattern.permute.xlu0 26
        %5918 = vperm.xlu0 %5917, %v768
        %v5919 = vpop.permute.xlu0 %5918
        %v5921 = vmul.f32 %v5885, %v5919
        %v5922 = vmul.f32 %v5886, %v5919
        %v5923 = vmul.f32 %v5887, %v5919
        %v5924 = vmul.f32 %v5888, %v5919
        %v5925 = vmul.f32 %v5889, %v5919
        %v5926 = vmul.f32 %v5890, %v5919
        %v5927 = vmul.f32 %v5891, %v5919
        %v5928 = vmul.f32 %v5892, %v5919
        %v5929 = vmul.f32 %v5893, %v5919
        %v5930 = vmul.f32 %v5894, %v5919
        %v5931 = vmul.f32 %v5895, %v5919
        %v5932 = vmul.f32 %v5896, %v5919
        %v5933 = vmul.f32 %v5897, %v5919
        %v5934 = vmul.f32 %v5898, %v5919
        %v5935 = vmul.f32 %v5899, %v5919
        %v5936 = vmul.f32 %v5900, %v5919
        %v5937 = vmul.f32 %v5901, %v5919
        %v5938 = vmul.f32 %v5902, %v5919
        %v5939 = vmul.f32 %v5903, %v5919
        %v5940 = vmul.f32 %v5904, %v5919
        %v5941 = vmul.f32 %v5905, %v5919
        %v5942 = vmul.f32 %v5906, %v5919
        %v5943 = vmul.f32 %v5907, %v5919
        %v5944 = vmul.f32 %v5908, %v5919
        %v5945 = vmul.f32 %v5909, %v5919
        %v5946 = vmul.f32 %v5910, %v5919
        %v5947 = vmul.f32 %v5911, %v5919
        %v5948 = vmul.f32 %v5912, %v5919
        %v5949 = vmul.f32 %v5913, %v5919
        %v5950 = vmul.f32 %v5914, %v5919
        %v5951 = vmul.f32 %v5915, %v5919
        %v5952 = vmul.f32 %v5916, %v5919
        %v5953 = vadd.f32 %v5755, %v5921
        %v5954 = vadd.f32 %v5756, %v5922
        %v5955 = vadd.f32 %v5757, %v5923
        %v5956 = vadd.f32 %v5758, %v5924
        %v5957 = vadd.f32 %v5759, %v5925
        %v5958 = vadd.f32 %v5760, %v5926
        %v5959 = vadd.f32 %v5761, %v5927
        %v5960 = vadd.f32 %v5762, %v5928
        %v5961 = vadd.f32 %v5763, %v5929
        %v5962 = vadd.f32 %v5764, %v5930
        %v5963 = vadd.f32 %v5765, %v5931
        %v5964 = vadd.f32 %v5766, %v5932
        %v5965 = vadd.f32 %v5767, %v5933
        %v5966 = vadd.f32 %v5768, %v5934
        %v5967 = vadd.f32 %v5769, %v5935
        %v5968 = vadd.f32 %v5770, %v5936
        %v5969 = vadd.f32 %v5771, %v5937
        %v5970 = vadd.f32 %v5772, %v5938
        %v5971 = vadd.f32 %v5773, %v5939
        %v5972 = vadd.f32 %v5774, %v5940
        %v5973 = vadd.f32 %v5775, %v5941
        %v5974 = vadd.f32 %v5776, %v5942
        %v5975 = vadd.f32 %v5777, %v5943
        %v5976 = vadd.f32 %v5778, %v5944
        %v5977 = vadd.f32 %v5779, %v5945
        %v5978 = vadd.f32 %v5780, %v5946
        %v5979 = vadd.f32 %v5781, %v5947
        %v5980 = vadd.f32 %v5782, %v5948
        %v5981 = vadd.f32 %v5783, %v5949
        %v5982 = vadd.f32 %v5784, %v5950
        %v5983 = vadd.f32 %v5785, %v5951
        %v5984 = vadd.f32 %v5786, %v5952
        %5985 = vset.pattern.permute.xlu0 27
        %5986 = vperm.xlu0 %5985, %v522
        %v5987 = vpop.permute.xlu0 %5986
        %5989 = vset.pattern.permute.xlu0 27
        %5990 = vperm.xlu0 %5989, %v523
        %v5991 = vpop.permute.xlu0 %5990
        %5993 = vset.pattern.permute.xlu0 27
        %5994 = vperm.xlu0 %5993, %v524
        %v5995 = vpop.permute.xlu0 %5994
        %5997 = vset.pattern.permute.xlu0 27
        %5998 = vperm.xlu0 %5997, %v525
        %v5999 = vpop.permute.xlu0 %5998
        %6001 = vset.pattern.permute.xlu0 27
        %6002 = vperm.xlu0 %6001, %v526
        %v6003 = vpop.permute.xlu0 %6002
        %6005 = vset.pattern.permute.xlu0 27
        %6006 = vperm.xlu0 %6005, %v527
        %v6007 = vpop.permute.xlu0 %6006
        %6009 = vset.pattern.permute.xlu0 27
        %6010 = vperm.xlu0 %6009, %v528
        %v6011 = vpop.permute.xlu0 %6010
        %6013 = vset.pattern.permute.xlu0 27
        %6014 = vperm.xlu0 %6013, %v529
        %v6015 = vpop.permute.xlu0 %6014
        %6017 = vset.pattern.permute.xlu0 27
        %6018 = vperm.xlu0 %6017, %v530
        %v6019 = vpop.permute.xlu0 %6018
        %6021 = vset.pattern.permute.xlu0 27
        %6022 = vperm.xlu0 %6021, %v531
        %v6023 = vpop.permute.xlu0 %6022
        %6025 = vset.pattern.permute.xlu0 27
        %6026 = vperm.xlu0 %6025, %v532
        %v6027 = vpop.permute.xlu0 %6026
        %6029 = vset.pattern.permute.xlu0 27
        %6030 = vperm.xlu0 %6029, %v533
        %v6031 = vpop.permute.xlu0 %6030
        %6033 = vset.pattern.permute.xlu0 27
        %6034 = vperm.xlu0 %6033, %v534
        %v6035 = vpop.permute.xlu0 %6034
        %6037 = vset.pattern.permute.xlu0 27
        %6038 = vperm.xlu0 %6037, %v535
        %v6039 = vpop.permute.xlu0 %6038
        %6041 = vset.pattern.permute.xlu0 27
        %6042 = vperm.xlu0 %6041, %v536
        %v6043 = vpop.permute.xlu0 %6042
        %6045 = vset.pattern.permute.xlu0 27
        %6046 = vperm.xlu0 %6045, %v537
        %v6047 = vpop.permute.xlu0 %6046
        %v6049 = vperm.slane %v581, 3
        %v6050 = vperm.slane %v610, 3
        %v6051 = vadd.f32 %v5987, %v6049
        %v6052 = vadd.f32 %v5987, %v6050
        %v6053 = vadd.f32 %v5991, %v6049
        %v6054 = vadd.f32 %v5991, %v6050
        %v6055 = vadd.f32 %v5995, %v6049
        %v6056 = vadd.f32 %v5995, %v6050
        %v6057 = vadd.f32 %v5999, %v6049
        %v6058 = vadd.f32 %v5999, %v6050
        %v6059 = vadd.f32 %v6003, %v6049
        %v6060 = vadd.f32 %v6003, %v6050
        %v6061 = vadd.f32 %v6007, %v6049
        %v6062 = vadd.f32 %v6007, %v6050
        %v6063 = vadd.f32 %v6011, %v6049
        %v6064 = vadd.f32 %v6011, %v6050
        %v6065 = vadd.f32 %v6015, %v6049
        %v6066 = vadd.f32 %v6015, %v6050
        %v6067 = vadd.f32 %v6019, %v6049
        %v6068 = vadd.f32 %v6019, %v6050
        %v6069 = vadd.f32 %v6023, %v6049
        %v6070 = vadd.f32 %v6023, %v6050
        %v6071 = vadd.f32 %v6027, %v6049
        %v6072 = vadd.f32 %v6027, %v6050
        %v6073 = vadd.f32 %v6031, %v6049
        %v6074 = vadd.f32 %v6031, %v6050
        %v6075 = vadd.f32 %v6035, %v6049
        %v6076 = vadd.f32 %v6035, %v6050
        %v6077 = vadd.f32 %v6039, %v6049
        %v6078 = vadd.f32 %v6039, %v6050
        %v6079 = vadd.f32 %v6043, %v6049
        %v6080 = vadd.f32 %v6043, %v6050
        %v6081 = vadd.f32 %v6047, %v6049
        %v6082 = vadd.f32 %v6047, %v6050
        %v6083 = vtanh.pop %v6051
        %v6084 = vtanh.pop %v6052
        %v6085 = vtanh.pop %v6053
        %v6086 = vtanh.pop %v6054
        %v6087 = vtanh.pop %v6055
        %v6088 = vtanh.pop %v6056
        %v6089 = vtanh.pop %v6057
        %v6090 = vtanh.pop %v6058
        %v6091 = vtanh.pop %v6059
        %v6092 = vtanh.pop %v6060
        %v6093 = vtanh.pop %v6061
        %v6094 = vtanh.pop %v6062
        %v6095 = vtanh.pop %v6063
        %v6096 = vtanh.pop %v6064
        %v6097 = vtanh.pop %v6065
        %v6098 = vtanh.pop %v6066
        %v6099 = vtanh.pop %v6067
        %v6100 = vtanh.pop %v6068
        %v6101 = vtanh.pop %v6069
        %v6102 = vtanh.pop %v6070
        %v6103 = vtanh.pop %v6071
        %v6104 = vtanh.pop %v6072
        %v6105 = vtanh.pop %v6073
        %v6106 = vtanh.pop %v6074
        %v6107 = vtanh.pop %v6075
        %v6108 = vtanh.pop %v6076
        %v6109 = vtanh.pop %v6077
        %v6110 = vtanh.pop %v6078
        %v6111 = vtanh.pop %v6079
        %v6112 = vtanh.pop %v6080
        %v6113 = vtanh.pop %v6081
        %v6114 = vtanh.pop %v6082
        %6115 = vset.pattern.permute.xlu0 27
        %6116 = vperm.xlu0 %6115, %v768
        %v6117 = vpop.permute.xlu0 %6116
        %v6119 = vmul.f32 %v6083, %v6117
        %v6120 = vmul.f32 %v6084, %v6117
        %v6121 = vmul.f32 %v6085, %v6117
        %v6122 = vmul.f32 %v6086, %v6117
        %v6123 = vmul.f32 %v6087, %v6117
        %v6124 = vmul.f32 %v6088, %v6117
        %v6125 = vmul.f32 %v6089, %v6117
        %v6126 = vmul.f32 %v6090, %v6117
        %v6127 = vmul.f32 %v6091, %v6117
        %v6128 = vmul.f32 %v6092, %v6117
        %v6129 = vmul.f32 %v6093, %v6117
        %v6130 = vmul.f32 %v6094, %v6117
        %v6131 = vmul.f32 %v6095, %v6117
        %v6132 = vmul.f32 %v6096, %v6117
        %v6133 = vmul.f32 %v6097, %v6117
        %v6134 = vmul.f32 %v6098, %v6117
        %v6135 = vmul.f32 %v6099, %v6117
        %v6136 = vmul.f32 %v6100, %v6117
        %v6137 = vmul.f32 %v6101, %v6117
        %v6138 = vmul.f32 %v6102, %v6117
        %v6139 = vmul.f32 %v6103, %v6117
        %v6140 = vmul.f32 %v6104, %v6117
        %v6141 = vmul.f32 %v6105, %v6117
        %v6142 = vmul.f32 %v6106, %v6117
        %v6143 = vmul.f32 %v6107, %v6117
        %v6144 = vmul.f32 %v6108, %v6117
        %v6145 = vmul.f32 %v6109, %v6117
        %v6146 = vmul.f32 %v6110, %v6117
        %v6147 = vmul.f32 %v6111, %v6117
        %v6148 = vmul.f32 %v6112, %v6117
        %v6149 = vmul.f32 %v6113, %v6117
        %v6150 = vmul.f32 %v6114, %v6117
        %v6151 = vadd.f32 %v5953, %v6119
        %v6152 = vadd.f32 %v5954, %v6120
        %v6153 = vadd.f32 %v5955, %v6121
        %v6154 = vadd.f32 %v5956, %v6122
        %v6155 = vadd.f32 %v5957, %v6123
        %v6156 = vadd.f32 %v5958, %v6124
        %v6157 = vadd.f32 %v5959, %v6125
        %v6158 = vadd.f32 %v5960, %v6126
        %v6159 = vadd.f32 %v5961, %v6127
        %v6160 = vadd.f32 %v5962, %v6128
        %v6161 = vadd.f32 %v5963, %v6129
        %v6162 = vadd.f32 %v5964, %v6130
        %v6163 = vadd.f32 %v5965, %v6131
        %v6164 = vadd.f32 %v5966, %v6132
        %v6165 = vadd.f32 %v5967, %v6133
        %v6166 = vadd.f32 %v5968, %v6134
        %v6167 = vadd.f32 %v5969, %v6135
        %v6168 = vadd.f32 %v5970, %v6136
        %v6169 = vadd.f32 %v5971, %v6137
        %v6170 = vadd.f32 %v5972, %v6138
        %v6171 = vadd.f32 %v5973, %v6139
        %v6172 = vadd.f32 %v5974, %v6140
        %v6173 = vadd.f32 %v5975, %v6141
        %v6174 = vadd.f32 %v5976, %v6142
        %v6175 = vadd.f32 %v5977, %v6143
        %v6176 = vadd.f32 %v5978, %v6144
        %v6177 = vadd.f32 %v5979, %v6145
        %v6178 = vadd.f32 %v5980, %v6146
        %v6179 = vadd.f32 %v5981, %v6147
        %v6180 = vadd.f32 %v5982, %v6148
        %v6181 = vadd.f32 %v5983, %v6149
        %v6182 = vadd.f32 %v5984, %v6150
        %6183 = vset.pattern.permute.xlu0 28
        %6184 = vperm.xlu0 %6183, %v522
        %v6185 = vpop.permute.xlu0 %6184
        %6187 = vset.pattern.permute.xlu0 28
        %6188 = vperm.xlu0 %6187, %v523
        %v6189 = vpop.permute.xlu0 %6188
        %6191 = vset.pattern.permute.xlu0 28
        %6192 = vperm.xlu0 %6191, %v524
        %v6193 = vpop.permute.xlu0 %6192
        %6195 = vset.pattern.permute.xlu0 28
        %6196 = vperm.xlu0 %6195, %v525
        %v6197 = vpop.permute.xlu0 %6196
        %6199 = vset.pattern.permute.xlu0 28
        %6200 = vperm.xlu0 %6199, %v526
        %v6201 = vpop.permute.xlu0 %6200
        %6203 = vset.pattern.permute.xlu0 28
        %6204 = vperm.xlu0 %6203, %v527
        %v6205 = vpop.permute.xlu0 %6204
        %6207 = vset.pattern.permute.xlu0 28
        %6208 = vperm.xlu0 %6207, %v528
        %v6209 = vpop.permute.xlu0 %6208
        %6211 = vset.pattern.permute.xlu0 28
        %6212 = vperm.xlu0 %6211, %v529
        %v6213 = vpop.permute.xlu0 %6212
        %6215 = vset.pattern.permute.xlu0 28
        %6216 = vperm.xlu0 %6215, %v530
        %v6217 = vpop.permute.xlu0 %6216
        %6219 = vset.pattern.permute.xlu0 28
        %6220 = vperm.xlu0 %6219, %v531
        %v6221 = vpop.permute.xlu0 %6220
        %6223 = vset.pattern.permute.xlu0 28
        %6224 = vperm.xlu0 %6223, %v532
        %v6225 = vpop.permute.xlu0 %6224
        %6227 = vset.pattern.permute.xlu0 28
        %6228 = vperm.xlu0 %6227, %v533
        %v6229 = vpop.permute.xlu0 %6228
        %6231 = vset.pattern.permute.xlu0 28
        %6232 = vperm.xlu0 %6231, %v534
        %v6233 = vpop.permute.xlu0 %6232
        %6235 = vset.pattern.permute.xlu0 28
        %6236 = vperm.xlu0 %6235, %v535
        %v6237 = vpop.permute.xlu0 %6236
        %6239 = vset.pattern.permute.xlu0 28
        %6240 = vperm.xlu0 %6239, %v536
        %v6241 = vpop.permute.xlu0 %6240
        %6243 = vset.pattern.permute.xlu0 28
        %6244 = vperm.xlu0 %6243, %v537
        %v6245 = vpop.permute.xlu0 %6244
        %v6247 = vperm.slane %v581, 4
        %v6248 = vperm.slane %v610, 4
        %v6249 = vadd.f32 %v6185, %v6247
        %v6250 = vadd.f32 %v6185, %v6248
        %v6251 = vadd.f32 %v6189, %v6247
        %v6252 = vadd.f32 %v6189, %v6248
        %v6253 = vadd.f32 %v6193, %v6247
        %v6254 = vadd.f32 %v6193, %v6248
        %v6255 = vadd.f32 %v6197, %v6247
        %v6256 = vadd.f32 %v6197, %v6248
        %v6257 = vadd.f32 %v6201, %v6247
        %v6258 = vadd.f32 %v6201, %v6248
        %v6259 = vadd.f32 %v6205, %v6247
        %v6260 = vadd.f32 %v6205, %v6248
        %v6261 = vadd.f32 %v6209, %v6247
        %v6262 = vadd.f32 %v6209, %v6248
        %v6263 = vadd.f32 %v6213, %v6247
        %v6264 = vadd.f32 %v6213, %v6248
        %v6265 = vadd.f32 %v6217, %v6247
        %v6266 = vadd.f32 %v6217, %v6248
        %v6267 = vadd.f32 %v6221, %v6247
        %v6268 = vadd.f32 %v6221, %v6248
        %v6269 = vadd.f32 %v6225, %v6247
        %v6270 = vadd.f32 %v6225, %v6248
        %v6271 = vadd.f32 %v6229, %v6247
        %v6272 = vadd.f32 %v6229, %v6248
        %v6273 = vadd.f32 %v6233, %v6247
        %v6274 = vadd.f32 %v6233, %v6248
        %v6275 = vadd.f32 %v6237, %v6247
        %v6276 = vadd.f32 %v6237, %v6248
        %v6277 = vadd.f32 %v6241, %v6247
        %v6278 = vadd.f32 %v6241, %v6248
        %v6279 = vadd.f32 %v6245, %v6247
        %v6280 = vadd.f32 %v6245, %v6248
        %v6281 = vtanh.pop %v6249
        %v6282 = vtanh.pop %v6250
        %v6283 = vtanh.pop %v6251
        %v6284 = vtanh.pop %v6252
        %v6285 = vtanh.pop %v6253
        %v6286 = vtanh.pop %v6254
        %v6287 = vtanh.pop %v6255
        %v6288 = vtanh.pop %v6256
        %v6289 = vtanh.pop %v6257
        %v6290 = vtanh.pop %v6258
        %v6291 = vtanh.pop %v6259
        %v6292 = vtanh.pop %v6260
        %v6293 = vtanh.pop %v6261
        %v6294 = vtanh.pop %v6262
        %v6295 = vtanh.pop %v6263
        %v6296 = vtanh.pop %v6264
        %v6297 = vtanh.pop %v6265
        %v6298 = vtanh.pop %v6266
        %v6299 = vtanh.pop %v6267
        %v6300 = vtanh.pop %v6268
        %v6301 = vtanh.pop %v6269
        %v6302 = vtanh.pop %v6270
        %v6303 = vtanh.pop %v6271
        %v6304 = vtanh.pop %v6272
        %v6305 = vtanh.pop %v6273
        %v6306 = vtanh.pop %v6274
        %v6307 = vtanh.pop %v6275
        %v6308 = vtanh.pop %v6276
        %v6309 = vtanh.pop %v6277
        %v6310 = vtanh.pop %v6278
        %v6311 = vtanh.pop %v6279
        %v6312 = vtanh.pop %v6280
        %6313 = vset.pattern.permute.xlu0 28
        %6314 = vperm.xlu0 %6313, %v768
        %v6315 = vpop.permute.xlu0 %6314
        %v6317 = vmul.f32 %v6281, %v6315
        %v6318 = vmul.f32 %v6282, %v6315
        %v6319 = vmul.f32 %v6283, %v6315
        %v6320 = vmul.f32 %v6284, %v6315
        %v6321 = vmul.f32 %v6285, %v6315
        %v6322 = vmul.f32 %v6286, %v6315
        %v6323 = vmul.f32 %v6287, %v6315
        %v6324 = vmul.f32 %v6288, %v6315
        %v6325 = vmul.f32 %v6289, %v6315
        %v6326 = vmul.f32 %v6290, %v6315
        %v6327 = vmul.f32 %v6291, %v6315
        %v6328 = vmul.f32 %v6292, %v6315
        %v6329 = vmul.f32 %v6293, %v6315
        %v6330 = vmul.f32 %v6294, %v6315
        %v6331 = vmul.f32 %v6295, %v6315
        %v6332 = vmul.f32 %v6296, %v6315
        %v6333 = vmul.f32 %v6297, %v6315
        %v6334 = vmul.f32 %v6298, %v6315
        %v6335 = vmul.f32 %v6299, %v6315
        %v6336 = vmul.f32 %v6300, %v6315
        %v6337 = vmul.f32 %v6301, %v6315
        %v6338 = vmul.f32 %v6302, %v6315
        %v6339 = vmul.f32 %v6303, %v6315
        %v6340 = vmul.f32 %v6304, %v6315
        %v6341 = vmul.f32 %v6305, %v6315
        %v6342 = vmul.f32 %v6306, %v6315
        %v6343 = vmul.f32 %v6307, %v6315
        %v6344 = vmul.f32 %v6308, %v6315
        %v6345 = vmul.f32 %v6309, %v6315
        %v6346 = vmul.f32 %v6310, %v6315
        %v6347 = vmul.f32 %v6311, %v6315
        %v6348 = vmul.f32 %v6312, %v6315
        %v6349 = vadd.f32 %v6151, %v6317
        %v6350 = vadd.f32 %v6152, %v6318
        %v6351 = vadd.f32 %v6153, %v6319
        %v6352 = vadd.f32 %v6154, %v6320
        %v6353 = vadd.f32 %v6155, %v6321
        %v6354 = vadd.f32 %v6156, %v6322
        %v6355 = vadd.f32 %v6157, %v6323
        %v6356 = vadd.f32 %v6158, %v6324
        %v6357 = vadd.f32 %v6159, %v6325
        %v6358 = vadd.f32 %v6160, %v6326
        %v6359 = vadd.f32 %v6161, %v6327
        %v6360 = vadd.f32 %v6162, %v6328
        %v6361 = vadd.f32 %v6163, %v6329
        %v6362 = vadd.f32 %v6164, %v6330
        %v6363 = vadd.f32 %v6165, %v6331
        %v6364 = vadd.f32 %v6166, %v6332
        %v6365 = vadd.f32 %v6167, %v6333
        %v6366 = vadd.f32 %v6168, %v6334
        %v6367 = vadd.f32 %v6169, %v6335
        %v6368 = vadd.f32 %v6170, %v6336
        %v6369 = vadd.f32 %v6171, %v6337
        %v6370 = vadd.f32 %v6172, %v6338
        %v6371 = vadd.f32 %v6173, %v6339
        %v6372 = vadd.f32 %v6174, %v6340
        %v6373 = vadd.f32 %v6175, %v6341
        %v6374 = vadd.f32 %v6176, %v6342
        %v6375 = vadd.f32 %v6177, %v6343
        %v6376 = vadd.f32 %v6178, %v6344
        %v6377 = vadd.f32 %v6179, %v6345
        %v6378 = vadd.f32 %v6180, %v6346
        %v6379 = vadd.f32 %v6181, %v6347
        %v6380 = vadd.f32 %v6182, %v6348
        %6381 = vset.pattern.permute.xlu0 29
        %6382 = vperm.xlu0 %6381, %v522
        %v6383 = vpop.permute.xlu0 %6382
        %6385 = vset.pattern.permute.xlu0 29
        %6386 = vperm.xlu0 %6385, %v523
        %v6387 = vpop.permute.xlu0 %6386
        %6389 = vset.pattern.permute.xlu0 29
        %6390 = vperm.xlu0 %6389, %v524
        %v6391 = vpop.permute.xlu0 %6390
        %6393 = vset.pattern.permute.xlu0 29
        %6394 = vperm.xlu0 %6393, %v525
        %v6395 = vpop.permute.xlu0 %6394
        %6397 = vset.pattern.permute.xlu0 29
        %6398 = vperm.xlu0 %6397, %v526
        %v6399 = vpop.permute.xlu0 %6398
        %6401 = vset.pattern.permute.xlu0 29
        %6402 = vperm.xlu0 %6401, %v527
        %v6403 = vpop.permute.xlu0 %6402
        %6405 = vset.pattern.permute.xlu0 29
        %6406 = vperm.xlu0 %6405, %v528
        %v6407 = vpop.permute.xlu0 %6406
        %6409 = vset.pattern.permute.xlu0 29
        %6410 = vperm.xlu0 %6409, %v529
        %v6411 = vpop.permute.xlu0 %6410
        %6413 = vset.pattern.permute.xlu0 29
        %6414 = vperm.xlu0 %6413, %v530
        %v6415 = vpop.permute.xlu0 %6414
        %6417 = vset.pattern.permute.xlu0 29
        %6418 = vperm.xlu0 %6417, %v531
        %v6419 = vpop.permute.xlu0 %6418
        %6421 = vset.pattern.permute.xlu0 29
        %6422 = vperm.xlu0 %6421, %v532
        %v6423 = vpop.permute.xlu0 %6422
        %6425 = vset.pattern.permute.xlu0 29
        %6426 = vperm.xlu0 %6425, %v533
        %v6427 = vpop.permute.xlu0 %6426
        %6429 = vset.pattern.permute.xlu0 29
        %6430 = vperm.xlu0 %6429, %v534
        %v6431 = vpop.permute.xlu0 %6430
        %6433 = vset.pattern.permute.xlu0 29
        %6434 = vperm.xlu0 %6433, %v535
        %v6435 = vpop.permute.xlu0 %6434
        %6437 = vset.pattern.permute.xlu0 29
        %6438 = vperm.xlu0 %6437, %v536
        %v6439 = vpop.permute.xlu0 %6438
        %6441 = vset.pattern.permute.xlu0 29
        %6442 = vperm.xlu0 %6441, %v537
        %v6443 = vpop.permute.xlu0 %6442
        %v6445 = vperm.slane %v581, 5
        %v6446 = vperm.slane %v610, 5
        %v6447 = vadd.f32 %v6383, %v6445
        %v6448 = vadd.f32 %v6383, %v6446
        %v6449 = vadd.f32 %v6387, %v6445
        %v6450 = vadd.f32 %v6387, %v6446
        %v6451 = vadd.f32 %v6391, %v6445
        %v6452 = vadd.f32 %v6391, %v6446
        %v6453 = vadd.f32 %v6395, %v6445
        %v6454 = vadd.f32 %v6395, %v6446
        %v6455 = vadd.f32 %v6399, %v6445
        %v6456 = vadd.f32 %v6399, %v6446
        %v6457 = vadd.f32 %v6403, %v6445
        %v6458 = vadd.f32 %v6403, %v6446
        %v6459 = vadd.f32 %v6407, %v6445
        %v6460 = vadd.f32 %v6407, %v6446
        %v6461 = vadd.f32 %v6411, %v6445
        %v6462 = vadd.f32 %v6411, %v6446
        %v6463 = vadd.f32 %v6415, %v6445
        %v6464 = vadd.f32 %v6415, %v6446
        %v6465 = vadd.f32 %v6419, %v6445
        %v6466 = vadd.f32 %v6419, %v6446
        %v6467 = vadd.f32 %v6423, %v6445
        %v6468 = vadd.f32 %v6423, %v6446
        %v6469 = vadd.f32 %v6427, %v6445
        %v6470 = vadd.f32 %v6427, %v6446
        %v6471 = vadd.f32 %v6431, %v6445
        %v6472 = vadd.f32 %v6431, %v6446
        %v6473 = vadd.f32 %v6435, %v6445
        %v6474 = vadd.f32 %v6435, %v6446
        %v6475 = vadd.f32 %v6439, %v6445
        %v6476 = vadd.f32 %v6439, %v6446
        %v6477 = vadd.f32 %v6443, %v6445
        %v6478 = vadd.f32 %v6443, %v6446
        %v6479 = vtanh.pop %v6447
        %v6480 = vtanh.pop %v6448
        %v6481 = vtanh.pop %v6449
        %v6482 = vtanh.pop %v6450
        %v6483 = vtanh.pop %v6451
        %v6484 = vtanh.pop %v6452
        %v6485 = vtanh.pop %v6453
        %v6486 = vtanh.pop %v6454
        %v6487 = vtanh.pop %v6455
        %v6488 = vtanh.pop %v6456
        %v6489 = vtanh.pop %v6457
        %v6490 = vtanh.pop %v6458
        %v6491 = vtanh.pop %v6459
        %v6492 = vtanh.pop %v6460
        %v6493 = vtanh.pop %v6461
        %v6494 = vtanh.pop %v6462
        %v6495 = vtanh.pop %v6463
        %v6496 = vtanh.pop %v6464
        %v6497 = vtanh.pop %v6465
        %v6498 = vtanh.pop %v6466
        %v6499 = vtanh.pop %v6467
        %v6500 = vtanh.pop %v6468
        %v6501 = vtanh.pop %v6469
        %v6502 = vtanh.pop %v6470
        %v6503 = vtanh.pop %v6471
        %v6504 = vtanh.pop %v6472
        %v6505 = vtanh.pop %v6473
        %v6506 = vtanh.pop %v6474
        %v6507 = vtanh.pop %v6475
        %v6508 = vtanh.pop %v6476
        %v6509 = vtanh.pop %v6477
        %v6510 = vtanh.pop %v6478
        %6511 = vset.pattern.permute.xlu0 29
        %6512 = vperm.xlu0 %6511, %v768
        %v6513 = vpop.permute.xlu0 %6512
        %v6515 = vmul.f32 %v6479, %v6513
        %v6516 = vmul.f32 %v6480, %v6513
        %v6517 = vmul.f32 %v6481, %v6513
        %v6518 = vmul.f32 %v6482, %v6513
        %v6519 = vmul.f32 %v6483, %v6513
        %v6520 = vmul.f32 %v6484, %v6513
        %v6521 = vmul.f32 %v6485, %v6513
        %v6522 = vmul.f32 %v6486, %v6513
        %v6523 = vmul.f32 %v6487, %v6513
        %v6524 = vmul.f32 %v6488, %v6513
        %v6525 = vmul.f32 %v6489, %v6513
        %v6526 = vmul.f32 %v6490, %v6513
        %v6527 = vmul.f32 %v6491, %v6513
        %v6528 = vmul.f32 %v6492, %v6513
        %v6529 = vmul.f32 %v6493, %v6513
        %v6530 = vmul.f32 %v6494, %v6513
        %v6531 = vmul.f32 %v6495, %v6513
        %v6532 = vmul.f32 %v6496, %v6513
        %v6533 = vmul.f32 %v6497, %v6513
        %v6534 = vmul.f32 %v6498, %v6513
        %v6535 = vmul.f32 %v6499, %v6513
        %v6536 = vmul.f32 %v6500, %v6513
        %v6537 = vmul.f32 %v6501, %v6513
        %v6538 = vmul.f32 %v6502, %v6513
        %v6539 = vmul.f32 %v6503, %v6513
        %v6540 = vmul.f32 %v6504, %v6513
        %v6541 = vmul.f32 %v6505, %v6513
        %v6542 = vmul.f32 %v6506, %v6513
        %v6543 = vmul.f32 %v6507, %v6513
        %v6544 = vmul.f32 %v6508, %v6513
        %v6545 = vmul.f32 %v6509, %v6513
        %v6546 = vmul.f32 %v6510, %v6513
        %v6547 = vadd.f32 %v6349, %v6515
        %v6548 = vadd.f32 %v6350, %v6516
        %v6549 = vadd.f32 %v6351, %v6517
        %v6550 = vadd.f32 %v6352, %v6518
        %v6551 = vadd.f32 %v6353, %v6519
        %v6552 = vadd.f32 %v6354, %v6520
        %v6553 = vadd.f32 %v6355, %v6521
        %v6554 = vadd.f32 %v6356, %v6522
        %v6555 = vadd.f32 %v6357, %v6523
        %v6556 = vadd.f32 %v6358, %v6524
        %v6557 = vadd.f32 %v6359, %v6525
        %v6558 = vadd.f32 %v6360, %v6526
        %v6559 = vadd.f32 %v6361, %v6527
        %v6560 = vadd.f32 %v6362, %v6528
        %v6561 = vadd.f32 %v6363, %v6529
        %v6562 = vadd.f32 %v6364, %v6530
        %v6563 = vadd.f32 %v6365, %v6531
        %v6564 = vadd.f32 %v6366, %v6532
        %v6565 = vadd.f32 %v6367, %v6533
        %v6566 = vadd.f32 %v6368, %v6534
        %v6567 = vadd.f32 %v6369, %v6535
        %v6568 = vadd.f32 %v6370, %v6536
        %v6569 = vadd.f32 %v6371, %v6537
        %v6570 = vadd.f32 %v6372, %v6538
        %v6571 = vadd.f32 %v6373, %v6539
        %v6572 = vadd.f32 %v6374, %v6540
        %v6573 = vadd.f32 %v6375, %v6541
        %v6574 = vadd.f32 %v6376, %v6542
        %v6575 = vadd.f32 %v6377, %v6543
        %v6576 = vadd.f32 %v6378, %v6544
        %v6577 = vadd.f32 %v6379, %v6545
        %v6578 = vadd.f32 %v6380, %v6546
        %6579 = vset.pattern.permute.xlu0 30
        %6580 = vperm.xlu0 %6579, %v522
        %v6581 = vpop.permute.xlu0 %6580
        %6583 = vset.pattern.permute.xlu0 30
        %6584 = vperm.xlu0 %6583, %v523
        %v6585 = vpop.permute.xlu0 %6584
        %6587 = vset.pattern.permute.xlu0 30
        %6588 = vperm.xlu0 %6587, %v524
        %v6589 = vpop.permute.xlu0 %6588
        %6591 = vset.pattern.permute.xlu0 30
        %6592 = vperm.xlu0 %6591, %v525
        %v6593 = vpop.permute.xlu0 %6592
        %6595 = vset.pattern.permute.xlu0 30
        %6596 = vperm.xlu0 %6595, %v526
        %v6597 = vpop.permute.xlu0 %6596
        %6599 = vset.pattern.permute.xlu0 30
        %6600 = vperm.xlu0 %6599, %v527
        %v6601 = vpop.permute.xlu0 %6600
        %6603 = vset.pattern.permute.xlu0 30
        %6604 = vperm.xlu0 %6603, %v528
        %v6605 = vpop.permute.xlu0 %6604
        %6607 = vset.pattern.permute.xlu0 30
        %6608 = vperm.xlu0 %6607, %v529
        %v6609 = vpop.permute.xlu0 %6608
        %6611 = vset.pattern.permute.xlu0 30
        %6612 = vperm.xlu0 %6611, %v530
        %v6613 = vpop.permute.xlu0 %6612
        %6615 = vset.pattern.permute.xlu0 30
        %6616 = vperm.xlu0 %6615, %v531
        %v6617 = vpop.permute.xlu0 %6616
        %6619 = vset.pattern.permute.xlu0 30
        %6620 = vperm.xlu0 %6619, %v532
        %v6621 = vpop.permute.xlu0 %6620
        %6623 = vset.pattern.permute.xlu0 30
        %6624 = vperm.xlu0 %6623, %v533
        %v6625 = vpop.permute.xlu0 %6624
        %6627 = vset.pattern.permute.xlu0 30
        %6628 = vperm.xlu0 %6627, %v534
        %v6629 = vpop.permute.xlu0 %6628
        %6631 = vset.pattern.permute.xlu0 30
        %6632 = vperm.xlu0 %6631, %v535
        %v6633 = vpop.permute.xlu0 %6632
        %6635 = vset.pattern.permute.xlu0 30
        %6636 = vperm.xlu0 %6635, %v536
        %v6637 = vpop.permute.xlu0 %6636
        %6639 = vset.pattern.permute.xlu0 30
        %6640 = vperm.xlu0 %6639, %v537
        %v6641 = vpop.permute.xlu0 %6640
        %v6643 = vperm.slane %v581, 6
        %v6644 = vperm.slane %v610, 6
        %v6645 = vadd.f32 %v6581, %v6643
        %v6646 = vadd.f32 %v6581, %v6644
        %v6647 = vadd.f32 %v6585, %v6643
        %v6648 = vadd.f32 %v6585, %v6644
        %v6649 = vadd.f32 %v6589, %v6643
        %v6650 = vadd.f32 %v6589, %v6644
        %v6651 = vadd.f32 %v6593, %v6643
        %v6652 = vadd.f32 %v6593, %v6644
        %v6653 = vadd.f32 %v6597, %v6643
        %v6654 = vadd.f32 %v6597, %v6644
        %v6655 = vadd.f32 %v6601, %v6643
        %v6656 = vadd.f32 %v6601, %v6644
        %v6657 = vadd.f32 %v6605, %v6643
        %v6658 = vadd.f32 %v6605, %v6644
        %v6659 = vadd.f32 %v6609, %v6643
        %v6660 = vadd.f32 %v6609, %v6644
        %v6661 = vadd.f32 %v6613, %v6643
        %v6662 = vadd.f32 %v6613, %v6644
        %v6663 = vadd.f32 %v6617, %v6643
        %v6664 = vadd.f32 %v6617, %v6644
        %v6665 = vadd.f32 %v6621, %v6643
        %v6666 = vadd.f32 %v6621, %v6644
        %v6667 = vadd.f32 %v6625, %v6643
        %v6668 = vadd.f32 %v6625, %v6644
        %v6669 = vadd.f32 %v6629, %v6643
        %v6670 = vadd.f32 %v6629, %v6644
        %v6671 = vadd.f32 %v6633, %v6643
        %v6672 = vadd.f32 %v6633, %v6644
        %v6673 = vadd.f32 %v6637, %v6643
        %v6674 = vadd.f32 %v6637, %v6644
        %v6675 = vadd.f32 %v6641, %v6643
        %v6676 = vadd.f32 %v6641, %v6644
        %v6677 = vtanh.pop %v6645
        %v6678 = vtanh.pop %v6646
        %v6679 = vtanh.pop %v6647
        %v6680 = vtanh.pop %v6648
        %v6681 = vtanh.pop %v6649
        %v6682 = vtanh.pop %v6650
        %v6683 = vtanh.pop %v6651
        %v6684 = vtanh.pop %v6652
        %v6685 = vtanh.pop %v6653
        %v6686 = vtanh.pop %v6654
        %v6687 = vtanh.pop %v6655
        %v6688 = vtanh.pop %v6656
        %v6689 = vtanh.pop %v6657
        %v6690 = vtanh.pop %v6658
        %v6691 = vtanh.pop %v6659
        %v6692 = vtanh.pop %v6660
        %v6693 = vtanh.pop %v6661
        %v6694 = vtanh.pop %v6662
        %v6695 = vtanh.pop %v6663
        %v6696 = vtanh.pop %v6664
        %v6697 = vtanh.pop %v6665
        %v6698 = vtanh.pop %v6666
        %v6699 = vtanh.pop %v6667
        %v6700 = vtanh.pop %v6668
        %v6701 = vtanh.pop %v6669
        %v6702 = vtanh.pop %v6670
        %v6703 = vtanh.pop %v6671
        %v6704 = vtanh.pop %v6672
        %v6705 = vtanh.pop %v6673
        %v6706 = vtanh.pop %v6674
        %v6707 = vtanh.pop %v6675
        %v6708 = vtanh.pop %v6676
        %6709 = vset.pattern.permute.xlu0 30
        %6710 = vperm.xlu0 %6709, %v768
        %v6711 = vpop.permute.xlu0 %6710
        %v6713 = vmul.f32 %v6677, %v6711
        %v6714 = vmul.f32 %v6678, %v6711
        %v6715 = vmul.f32 %v6679, %v6711
        %v6716 = vmul.f32 %v6680, %v6711
        %v6717 = vmul.f32 %v6681, %v6711
        %v6718 = vmul.f32 %v6682, %v6711
        %v6719 = vmul.f32 %v6683, %v6711
        %v6720 = vmul.f32 %v6684, %v6711
        %v6721 = vmul.f32 %v6685, %v6711
        %v6722 = vmul.f32 %v6686, %v6711
        %v6723 = vmul.f32 %v6687, %v6711
        %v6724 = vmul.f32 %v6688, %v6711
        %v6725 = vmul.f32 %v6689, %v6711
        %v6726 = vmul.f32 %v6690, %v6711
        %v6727 = vmul.f32 %v6691, %v6711
        %v6728 = vmul.f32 %v6692, %v6711
        %v6729 = vmul.f32 %v6693, %v6711
        %v6730 = vmul.f32 %v6694, %v6711
        %v6731 = vmul.f32 %v6695, %v6711
        %v6732 = vmul.f32 %v6696, %v6711
        %v6733 = vmul.f32 %v6697, %v6711
        %v6734 = vmul.f32 %v6698, %v6711
        %v6735 = vmul.f32 %v6699, %v6711
        %v6736 = vmul.f32 %v6700, %v6711
        %v6737 = vmul.f32 %v6701, %v6711
        %v6738 = vmul.f32 %v6702, %v6711
        %v6739 = vmul.f32 %v6703, %v6711
        %v6740 = vmul.f32 %v6704, %v6711
        %v6741 = vmul.f32 %v6705, %v6711
        %v6742 = vmul.f32 %v6706, %v6711
        %v6743 = vmul.f32 %v6707, %v6711
        %v6744 = vmul.f32 %v6708, %v6711
        %v6745 = vadd.f32 %v6547, %v6713
        %v6746 = vadd.f32 %v6548, %v6714
        %v6747 = vadd.f32 %v6549, %v6715
        %v6748 = vadd.f32 %v6550, %v6716
        %v6749 = vadd.f32 %v6551, %v6717
        %v6750 = vadd.f32 %v6552, %v6718
        %v6751 = vadd.f32 %v6553, %v6719
        %v6752 = vadd.f32 %v6554, %v6720
        %v6753 = vadd.f32 %v6555, %v6721
        %v6754 = vadd.f32 %v6556, %v6722
        %v6755 = vadd.f32 %v6557, %v6723
        %v6756 = vadd.f32 %v6558, %v6724
        %v6757 = vadd.f32 %v6559, %v6725
        %v6758 = vadd.f32 %v6560, %v6726
        %v6759 = vadd.f32 %v6561, %v6727
        %v6760 = vadd.f32 %v6562, %v6728
        %v6761 = vadd.f32 %v6563, %v6729
        %v6762 = vadd.f32 %v6564, %v6730
        %v6763 = vadd.f32 %v6565, %v6731
        %v6764 = vadd.f32 %v6566, %v6732
        %v6765 = vadd.f32 %v6567, %v6733
        %v6766 = vadd.f32 %v6568, %v6734
        %v6767 = vadd.f32 %v6569, %v6735
        %v6768 = vadd.f32 %v6570, %v6736
        %v6769 = vadd.f32 %v6571, %v6737
        %v6770 = vadd.f32 %v6572, %v6738
        %v6771 = vadd.f32 %v6573, %v6739
        %v6772 = vadd.f32 %v6574, %v6740
        %v6773 = vadd.f32 %v6575, %v6741
        %v6774 = vadd.f32 %v6576, %v6742
        %v6775 = vadd.f32 %v6577, %v6743
        %v6776 = vadd.f32 %v6578, %v6744
        %6777 = vset.pattern.permute.xlu0 31
        %6778 = vperm.xlu0 %6777, %v522
        %v6779 = vpop.permute.xlu0 %6778
        %6781 = vset.pattern.permute.xlu0 31
        %6782 = vperm.xlu0 %6781, %v523
        %v6783 = vpop.permute.xlu0 %6782
        %6785 = vset.pattern.permute.xlu0 31
        %6786 = vperm.xlu0 %6785, %v524
        %v6787 = vpop.permute.xlu0 %6786
        %6789 = vset.pattern.permute.xlu0 31
        %6790 = vperm.xlu0 %6789, %v525
        %v6791 = vpop.permute.xlu0 %6790
        %6793 = vset.pattern.permute.xlu0 31
        %6794 = vperm.xlu0 %6793, %v526
        %v6795 = vpop.permute.xlu0 %6794
        %6797 = vset.pattern.permute.xlu0 31
        %6798 = vperm.xlu0 %6797, %v527
        %v6799 = vpop.permute.xlu0 %6798
        %6801 = vset.pattern.permute.xlu0 31
        %6802 = vperm.xlu0 %6801, %v528
        %v6803 = vpop.permute.xlu0 %6802
        %6805 = vset.pattern.permute.xlu0 31
        %6806 = vperm.xlu0 %6805, %v529
        %v6807 = vpop.permute.xlu0 %6806
        %6809 = vset.pattern.permute.xlu0 31
        %6810 = vperm.xlu0 %6809, %v530
        %v6811 = vpop.permute.xlu0 %6810
        %6813 = vset.pattern.permute.xlu0 31
        %6814 = vperm.xlu0 %6813, %v531
        %v6815 = vpop.permute.xlu0 %6814
        %6817 = vset.pattern.permute.xlu0 31
        %6818 = vperm.xlu0 %6817, %v532
        %v6819 = vpop.permute.xlu0 %6818
        %6821 = vset.pattern.permute.xlu0 31
        %6822 = vperm.xlu0 %6821, %v533
        %v6823 = vpop.permute.xlu0 %6822
        %6825 = vset.pattern.permute.xlu0 31
        %6826 = vperm.xlu0 %6825, %v534
        %v6827 = vpop.permute.xlu0 %6826
        %6829 = vset.pattern.permute.xlu0 31
        %6830 = vperm.xlu0 %6829, %v535
        %v6831 = vpop.permute.xlu0 %6830
        %6833 = vset.pattern.permute.xlu0 31
        %6834 = vperm.xlu0 %6833, %v536
        %v6835 = vpop.permute.xlu0 %6834
        %6837 = vset.pattern.permute.xlu0 31
        %6838 = vperm.xlu0 %6837, %v537
        %v6839 = vpop.permute.xlu0 %6838
        %v6841 = vperm.slane %v581, 7
        %v6842 = vperm.slane %v610, 7
        %v6843 = vadd.f32 %v6779, %v6841
        %v6844 = vadd.f32 %v6779, %v6842
        %v6845 = vadd.f32 %v6783, %v6841
        %v6846 = vadd.f32 %v6783, %v6842
        %v6847 = vadd.f32 %v6787, %v6841
        %v6848 = vadd.f32 %v6787, %v6842
        %v6849 = vadd.f32 %v6791, %v6841
        %v6850 = vadd.f32 %v6791, %v6842
        %v6851 = vadd.f32 %v6795, %v6841
        %v6852 = vadd.f32 %v6795, %v6842
        %v6853 = vadd.f32 %v6799, %v6841
        %v6854 = vadd.f32 %v6799, %v6842
        %v6855 = vadd.f32 %v6803, %v6841
        %v6856 = vadd.f32 %v6803, %v6842
        %v6857 = vadd.f32 %v6807, %v6841
        %v6858 = vadd.f32 %v6807, %v6842
        %v6859 = vadd.f32 %v6811, %v6841
        %v6860 = vadd.f32 %v6811, %v6842
        %v6861 = vadd.f32 %v6815, %v6841
        %v6862 = vadd.f32 %v6815, %v6842
        %v6863 = vadd.f32 %v6819, %v6841
        %v6864 = vadd.f32 %v6819, %v6842
        %v6865 = vadd.f32 %v6823, %v6841
        %v6866 = vadd.f32 %v6823, %v6842
        %v6867 = vadd.f32 %v6827, %v6841
        %v6868 = vadd.f32 %v6827, %v6842
        %v6869 = vadd.f32 %v6831, %v6841
        %v6870 = vadd.f32 %v6831, %v6842
        %v6871 = vadd.f32 %v6835, %v6841
        %v6872 = vadd.f32 %v6835, %v6842
        %v6873 = vadd.f32 %v6839, %v6841
        %v6874 = vadd.f32 %v6839, %v6842
        %v6875 = vtanh.pop %v6843
        %v6876 = vtanh.pop %v6844
        %v6877 = vtanh.pop %v6845
        %v6878 = vtanh.pop %v6846
        %v6879 = vtanh.pop %v6847
        %v6880 = vtanh.pop %v6848
        %v6881 = vtanh.pop %v6849
        %v6882 = vtanh.pop %v6850
        %v6883 = vtanh.pop %v6851
        %v6884 = vtanh.pop %v6852
        %v6885 = vtanh.pop %v6853
        %v6886 = vtanh.pop %v6854
        %v6887 = vtanh.pop %v6855
        %v6888 = vtanh.pop %v6856
        %v6889 = vtanh.pop %v6857
        %v6890 = vtanh.pop %v6858
        %v6891 = vtanh.pop %v6859
        %v6892 = vtanh.pop %v6860
        %v6893 = vtanh.pop %v6861
        %v6894 = vtanh.pop %v6862
        %v6895 = vtanh.pop %v6863
        %v6896 = vtanh.pop %v6864
        %v6897 = vtanh.pop %v6865
        %v6898 = vtanh.pop %v6866
        %v6899 = vtanh.pop %v6867
        %v6900 = vtanh.pop %v6868
        %v6901 = vtanh.pop %v6869
        %v6902 = vtanh.pop %v6870
        %v6903 = vtanh.pop %v6871
        %v6904 = vtanh.pop %v6872
        %v6905 = vtanh.pop %v6873
        %v6906 = vtanh.pop %v6874
        %6907 = vset.pattern.permute.xlu0 31
        %6908 = vperm.xlu0 %6907, %v768
        %v6909 = vpop.permute.xlu0 %6908
        %v6911 = vmul.f32 %v6875, %v6909
        %v6912 = vmul.f32 %v6876, %v6909
        %v6913 = vmul.f32 %v6877, %v6909
        %v6914 = vmul.f32 %v6878, %v6909
        %v6915 = vmul.f32 %v6879, %v6909
        %v6916 = vmul.f32 %v6880, %v6909
        %v6917 = vmul.f32 %v6881, %v6909
        %v6918 = vmul.f32 %v6882, %v6909
        %v6919 = vmul.f32 %v6883, %v6909
        %v6920 = vmul.f32 %v6884, %v6909
        %v6921 = vmul.f32 %v6885, %v6909
        %v6922 = vmul.f32 %v6886, %v6909
        %v6923 = vmul.f32 %v6887, %v6909
        %v6924 = vmul.f32 %v6888, %v6909
        %v6925 = vmul.f32 %v6889, %v6909
        %v6926 = vmul.f32 %v6890, %v6909
        %v6927 = vmul.f32 %v6891, %v6909
        %v6928 = vmul.f32 %v6892, %v6909
        %v6929 = vmul.f32 %v6893, %v6909
        %v6930 = vmul.f32 %v6894, %v6909
        %v6931 = vmul.f32 %v6895, %v6909
        %v6932 = vmul.f32 %v6896, %v6909
        %v6933 = vmul.f32 %v6897, %v6909
        %v6934 = vmul.f32 %v6898, %v6909
        %v6935 = vmul.f32 %v6899, %v6909
        %v6936 = vmul.f32 %v6900, %v6909
        %v6937 = vmul.f32 %v6901, %v6909
        %v6938 = vmul.f32 %v6902, %v6909
        %v6939 = vmul.f32 %v6903, %v6909
        %v6940 = vmul.f32 %v6904, %v6909
        %v6941 = vmul.f32 %v6905, %v6909
        %v6942 = vmul.f32 %v6906, %v6909
        %v6943 = vadd.f32 %v6745, %v6911
        %v6944 = vadd.f32 %v6746, %v6912
        %v6945 = vadd.f32 %v6747, %v6913
        %v6946 = vadd.f32 %v6748, %v6914
        %v6947 = vadd.f32 %v6749, %v6915
        %v6948 = vadd.f32 %v6750, %v6916
        %v6949 = vadd.f32 %v6751, %v6917
        %v6950 = vadd.f32 %v6752, %v6918
        %v6951 = vadd.f32 %v6753, %v6919
        %v6952 = vadd.f32 %v6754, %v6920
        %v6953 = vadd.f32 %v6755, %v6921
        %v6954 = vadd.f32 %v6756, %v6922
        %v6955 = vadd.f32 %v6757, %v6923
        %v6956 = vadd.f32 %v6758, %v6924
        %v6957 = vadd.f32 %v6759, %v6925
        %v6958 = vadd.f32 %v6760, %v6926
        %v6959 = vadd.f32 %v6761, %v6927
        %v6960 = vadd.f32 %v6762, %v6928
        %v6961 = vadd.f32 %v6763, %v6929
        %v6962 = vadd.f32 %v6764, %v6930
        %v6963 = vadd.f32 %v6765, %v6931
        %v6964 = vadd.f32 %v6766, %v6932
        %v6965 = vadd.f32 %v6767, %v6933
        %v6966 = vadd.f32 %v6768, %v6934
        %v6967 = vadd.f32 %v6769, %v6935
        %v6968 = vadd.f32 %v6770, %v6936
        %v6969 = vadd.f32 %v6771, %v6937
        %v6970 = vadd.f32 %v6772, %v6938
        %v6971 = vadd.f32 %v6773, %v6939
        %v6972 = vadd.f32 %v6774, %v6940
        %v6973 = vadd.f32 %v6775, %v6941
        %v6974 = vadd.f32 %v6776, %v6942
        %s6975 = smul.u32 %s40, 128
        %v6976 = vlaneseq
        %v6977 = vshrl.u32 %v6976, 7
        %v6978 = vadd.s32 %v6977, 8
        %v6979 = vadd.s32 %v6977, 16
        %v6980 = vadd.s32 %v6977, 24
        %v6981 = vadd.s32 %v6977, 32
        %v6982 = vadd.s32 %v6977, 40
        %v6983 = vadd.s32 %v6977, 48
        %v6984 = vadd.s32 %v6977, 56
        %v6985 = vadd.s32 %v6977, 64
        %v6986 = vadd.s32 %v6977, 72
        %v6987 = vadd.s32 %v6977, 80
        %v6988 = vadd.s32 %v6977, 88
        %v6989 = vadd.s32 %v6977, 96
        %v6990 = vadd.s32 %v6977, 104
        %v6991 = vadd.s32 %v6977, 112
        %v6992 = vadd.s32 %v6977, 120
        %v6993 = vstv %s6975
        %v6994 = vadd.s32 %v6993, %v6977
        %v6995 = vadd.s32 %v6993, %v6978
        %v6996 = vadd.s32 %v6993, %v6979
        %v6997 = vadd.s32 %v6993, %v6980
        %v6998 = vadd.s32 %v6993, %v6981
        %v6999 = vadd.s32 %v6993, %v6982
        %v7000 = vadd.s32 %v6993, %v6983
        %v7001 = vadd.s32 %v6993, %v6984
        %v7002 = vadd.s32 %v6993, %v6985
        %v7003 = vadd.s32 %v6993, %v6986
        %v7004 = vadd.s32 %v6993, %v6987
        %v7005 = vadd.s32 %v6993, %v6988
        %v7006 = vadd.s32 %v6993, %v6989
        %v7007 = vadd.s32 %v6993, %v6990
        %v7008 = vadd.s32 %v6993, %v6991
        %v7009 = vadd.s32 %v6993, %v6992
        %v7010 = vlaneseq
        %v7011 = vand.u32 %v7010, 127
        %v7012 = vadd.s32 %v7011, 128
        %v7013 = vsub.s32 %v7011, %v6994
        %v7014 = vsub.s32 %v7012, %v6994
        %v7015 = vsub.s32 %v7011, %v6995
        %v7016 = vsub.s32 %v7012, %v6995
        %v7017 = vsub.s32 %v7011, %v6996
        %v7018 = vsub.s32 %v7012, %v6996
        %v7019 = vsub.s32 %v7011, %v6997
        %v7020 = vsub.s32 %v7012, %v6997
        %v7021 = vsub.s32 %v7011, %v6998
        %v7022 = vsub.s32 %v7012, %v6998
        %v7023 = vsub.s32 %v7011, %v6999
        %v7024 = vsub.s32 %v7012, %v6999
        %v7025 = vsub.s32 %v7011, %v7000
        %v7026 = vsub.s32 %v7012, %v7000
        %v7027 = vsub.s32 %v7011, %v7001
        %v7028 = vsub.s32 %v7012, %v7001
        %v7029 = vsub.s32 %v7011, %v7002
        %v7030 = vsub.s32 %v7012, %v7002
        %v7031 = vsub.s32 %v7011, %v7003
        %v7032 = vsub.s32 %v7012, %v7003
        %v7033 = vsub.s32 %v7011, %v7004
        %v7034 = vsub.s32 %v7012, %v7004
        %v7035 = vsub.s32 %v7011, %v7005
        %v7036 = vsub.s32 %v7012, %v7005
        %v7037 = vsub.s32 %v7011, %v7006
        %v7038 = vsub.s32 %v7012, %v7006
        %v7039 = vsub.s32 %v7011, %v7007
        %v7040 = vsub.s32 %v7012, %v7007
        %v7041 = vsub.s32 %v7011, %v7008
        %v7042 = vsub.s32 %v7012, %v7008
        %v7043 = vsub.s32 %v7011, %v7009
        %v7044 = vsub.s32 %v7012, %v7009
        %vm7045 = vcmp.le.s32.totalorder %v7013, 15
        %vm7046 = vcmp.le.s32.totalorder %v7014, 15
        %vm7047 = vcmp.le.s32.totalorder %v7015, 15
        %vm7048 = vcmp.le.s32.totalorder %v7016, 15
        %vm7049 = vcmp.le.s32.totalorder %v7017, 15
        %vm7050 = vcmp.le.s32.totalorder %v7018, 15
        %vm7051 = vcmp.le.s32.totalorder %v7019, 15
        %vm7052 = vcmp.le.s32.totalorder %v7020, 15
        %vm7053 = vcmp.le.s32.totalorder %v7021, 15
        %vm7054 = vcmp.le.s32.totalorder %v7022, 15
        %vm7055 = vcmp.le.s32.totalorder %v7023, 15
        %vm7056 = vcmp.le.s32.totalorder %v7024, 15
        %vm7057 = vcmp.le.s32.totalorder %v7025, 15
        %vm7058 = vcmp.le.s32.totalorder %v7026, 15
        %vm7059 = vcmp.le.s32.totalorder %v7027, 15
        %vm7060 = vcmp.le.s32.totalorder %v7028, 15
        %vm7061 = vcmp.le.s32.totalorder %v7029, 15
        %vm7062 = vcmp.le.s32.totalorder %v7030, 15
        %vm7063 = vcmp.le.s32.totalorder %v7031, 15
        %vm7064 = vcmp.le.s32.totalorder %v7032, 15
        %vm7065 = vcmp.le.s32.totalorder %v7033, 15
        %vm7066 = vcmp.le.s32.totalorder %v7034, 15
        %vm7067 = vcmp.le.s32.totalorder %v7035, 15
        %vm7068 = vcmp.le.s32.totalorder %v7036, 15
        %vm7069 = vcmp.le.s32.totalorder %v7037, 15
        %vm7070 = vcmp.le.s32.totalorder %v7038, 15
        %vm7071 = vcmp.le.s32.totalorder %v7039, 15
        %vm7072 = vcmp.le.s32.totalorder %v7040, 15
        %vm7073 = vcmp.le.s32.totalorder %v7041, 15
        %vm7074 = vcmp.le.s32.totalorder %v7042, 15
        %vm7075 = vcmp.le.s32.totalorder %v7043, 15
        %vm7076 = vcmp.le.s32.totalorder %v7044, 15
        %vm7077 = vcmp.ge.s32.totalorder %v7013, 4294967280
        %vm7078 = vcmp.ge.s32.totalorder %v7014, 4294967280
        %vm7079 = vcmp.ge.s32.totalorder %v7015, 4294967280
        %vm7080 = vcmp.ge.s32.totalorder %v7016, 4294967280
        %vm7081 = vcmp.ge.s32.totalorder %v7017, 4294967280
        %vm7082 = vcmp.ge.s32.totalorder %v7018, 4294967280
        %vm7083 = vcmp.ge.s32.totalorder %v7019, 4294967280
        %vm7084 = vcmp.ge.s32.totalorder %v7020, 4294967280
        %vm7085 = vcmp.ge.s32.totalorder %v7021, 4294967280
        %vm7086 = vcmp.ge.s32.totalorder %v7022, 4294967280
        %vm7087 = vcmp.ge.s32.totalorder %v7023, 4294967280
        %vm7088 = vcmp.ge.s32.totalorder %v7024, 4294967280
        %vm7089 = vcmp.ge.s32.totalorder %v7025, 4294967280
        %vm7090 = vcmp.ge.s32.totalorder %v7026, 4294967280
        %vm7091 = vcmp.ge.s32.totalorder %v7027, 4294967280
        %vm7092 = vcmp.ge.s32.totalorder %v7028, 4294967280
        %vm7093 = vcmp.ge.s32.totalorder %v7029, 4294967280
        %vm7094 = vcmp.ge.s32.totalorder %v7030, 4294967280
        %vm7095 = vcmp.ge.s32.totalorder %v7031, 4294967280
        %vm7096 = vcmp.ge.s32.totalorder %v7032, 4294967280
        %vm7097 = vcmp.ge.s32.totalorder %v7033, 4294967280
        %vm7098 = vcmp.ge.s32.totalorder %v7034, 4294967280
        %vm7099 = vcmp.ge.s32.totalorder %v7035, 4294967280
        %vm7100 = vcmp.ge.s32.totalorder %v7036, 4294967280
        %vm7101 = vcmp.ge.s32.totalorder %v7037, 4294967280
        %vm7102 = vcmp.ge.s32.totalorder %v7038, 4294967280
        %vm7103 = vcmp.ge.s32.totalorder %v7039, 4294967280
        %vm7104 = vcmp.ge.s32.totalorder %v7040, 4294967280
        %vm7105 = vcmp.ge.s32.totalorder %v7041, 4294967280
        %vm7106 = vcmp.ge.s32.totalorder %v7042, 4294967280
        %vm7107 = vcmp.ge.s32.totalorder %v7043, 4294967280
        %vm7108 = vcmp.ge.s32.totalorder %v7044, 4294967280
        %vm7109 = vmand %vm7045, %vm7077
        %vm7110 = vmand %vm7046, %vm7078
        %vm7111 = vmand %vm7047, %vm7079
        %vm7112 = vmand %vm7048, %vm7080
        %vm7113 = vmand %vm7049, %vm7081
        %vm7114 = vmand %vm7050, %vm7082
        %vm7115 = vmand %vm7051, %vm7083
        %vm7116 = vmand %vm7052, %vm7084
        %vm7117 = vmand %vm7053, %vm7085
        %vm7118 = vmand %vm7054, %vm7086
        %vm7119 = vmand %vm7055, %vm7087
        %vm7120 = vmand %vm7056, %vm7088
        %vm7121 = vmand %vm7057, %vm7089
        %vm7122 = vmand %vm7058, %vm7090
        %vm7123 = vmand %vm7059, %vm7091
        %vm7124 = vmand %vm7060, %vm7092
        %vm7125 = vmand %vm7061, %vm7093
        %vm7126 = vmand %vm7062, %vm7094
        %vm7127 = vmand %vm7063, %vm7095
        %vm7128 = vmand %vm7064, %vm7096
        %vm7129 = vmand %vm7065, %vm7097
        %vm7130 = vmand %vm7066, %vm7098
        %vm7131 = vmand %vm7067, %vm7099
        %vm7132 = vmand %vm7068, %vm7100
        %vm7133 = vmand %vm7069, %vm7101
        %vm7134 = vmand %vm7070, %vm7102
        %vm7135 = vmand %vm7071, %vm7103
        %vm7136 = vmand %vm7072, %vm7104
        %vm7137 = vmand %vm7073, %vm7105
        %vm7138 = vmand %vm7074, %vm7106
        %vm7139 = vmand %vm7075, %vm7107
        %vm7140 = vmand %vm7076, %vm7108
        %v7141 = vsel %vm7109, %v6943, -1e+30
        %v7142 = vsel %vm7110, %v6944, -1e+30
        %v7143 = vsel %vm7111, %v6945, -1e+30
        %v7144 = vsel %vm7112, %v6946, -1e+30
        %v7145 = vsel %vm7113, %v6947, -1e+30
        %v7146 = vsel %vm7114, %v6948, -1e+30
        %v7147 = vsel %vm7115, %v6949, -1e+30
        %v7148 = vsel %vm7116, %v6950, -1e+30
        %v7149 = vsel %vm7117, %v6951, -1e+30
        %v7150 = vsel %vm7118, %v6952, -1e+30
        %v7151 = vsel %vm7119, %v6953, -1e+30
        %v7152 = vsel %vm7120, %v6954, -1e+30
        %v7153 = vsel %vm7121, %v6955, -1e+30
        %v7154 = vsel %vm7122, %v6956, -1e+30
        %v7155 = vsel %vm7123, %v6957, -1e+30
        %v7156 = vsel %vm7124, %v6958, -1e+30
        %v7157 = vsel %vm7125, %v6959, -1e+30
        %v7158 = vsel %vm7126, %v6960, -1e+30
        %v7159 = vsel %vm7127, %v6961, -1e+30
        %v7160 = vsel %vm7128, %v6962, -1e+30
        %v7161 = vsel %vm7129, %v6963, -1e+30
        %v7162 = vsel %vm7130, %v6964, -1e+30
        %v7163 = vsel %vm7131, %v6965, -1e+30
        %v7164 = vsel %vm7132, %v6966, -1e+30
        %v7165 = vsel %vm7133, %v6967, -1e+30
        %v7166 = vsel %vm7134, %v6968, -1e+30
        %v7167 = vsel %vm7135, %v6969, -1e+30
        %v7168 = vsel %vm7136, %v6970, -1e+30
        %v7169 = vsel %vm7137, %v6971, -1e+30
        %v7170 = vsel %vm7138, %v6972, -1e+30
        %v7171 = vsel %vm7139, %v6973, -1e+30
        %v7172 = vsel %vm7140, %v6974, -1e+30
        %v7173 = vmax.f32 %v7141, %v7142
        %7174 = vmax.xlane.f32.xlu0 %v7173
        %v7175 = vpop.xlane.xlu0 %7174
        %v7176 = vmax.f32 %v7143, %v7144
        %7177 = vmax.xlane.f32.xlu0 %v7176
        %v7178 = vpop.xlane.xlu0 %7177
        %v7179 = vmax.f32 %v7145, %v7146
        %7180 = vmax.xlane.f32.xlu0 %v7179
        %v7181 = vpop.xlane.xlu0 %7180
        %v7182 = vmax.f32 %v7147, %v7148
        %7183 = vmax.xlane.f32.xlu0 %v7182
        %v7184 = vpop.xlane.xlu0 %7183
        %v7185 = vmax.f32 %v7149, %v7150
        %7186 = vmax.xlane.f32.xlu0 %v7185
        %v7187 = vpop.xlane.xlu0 %7186
        %v7188 = vmax.f32 %v7151, %v7152
        %7189 = vmax.xlane.f32.xlu0 %v7188
        %v7190 = vpop.xlane.xlu0 %7189
        %v7191 = vmax.f32 %v7153, %v7154
        %7192 = vmax.xlane.f32.xlu0 %v7191
        %v7193 = vpop.xlane.xlu0 %7192
        %v7194 = vmax.f32 %v7155, %v7156
        %7195 = vmax.xlane.f32.xlu0 %v7194
        %v7196 = vpop.xlane.xlu0 %7195
        %v7197 = vmax.f32 %v7157, %v7158
        %7198 = vmax.xlane.f32.xlu0 %v7197
        %v7199 = vpop.xlane.xlu0 %7198
        %v7200 = vmax.f32 %v7159, %v7160
        %7201 = vmax.xlane.f32.xlu0 %v7200
        %v7202 = vpop.xlane.xlu0 %7201
        %v7203 = vmax.f32 %v7161, %v7162
        %7204 = vmax.xlane.f32.xlu0 %v7203
        %v7205 = vpop.xlane.xlu0 %7204
        %v7206 = vmax.f32 %v7163, %v7164
        %7207 = vmax.xlane.f32.xlu0 %v7206
        %v7208 = vpop.xlane.xlu0 %7207
        %v7209 = vmax.f32 %v7165, %v7166
        %7210 = vmax.xlane.f32.xlu0 %v7209
        %v7211 = vpop.xlane.xlu0 %7210
        %v7212 = vmax.f32 %v7167, %v7168
        %7213 = vmax.xlane.f32.xlu0 %v7212
        %v7214 = vpop.xlane.xlu0 %7213
        %v7215 = vmax.f32 %v7169, %v7170
        %7216 = vmax.xlane.f32.xlu0 %v7215
        %v7217 = vpop.xlane.xlu0 %7216
        %v7218 = vmax.f32 %v7171, %v7172
        %7219 = vmax.xlane.f32.xlu0 %v7218
        %v7220 = vpop.xlane.xlu0 %7219
        %v7221 = vsub.f32 %v7141, %v7175
        %v7222 = vsub.f32 %v7142, %v7175
        %v7223 = vsub.f32 %v7143, %v7178
        %v7224 = vsub.f32 %v7144, %v7178
        %v7225 = vsub.f32 %v7145, %v7181
        %v7226 = vsub.f32 %v7146, %v7181
        %v7227 = vsub.f32 %v7147, %v7184
        %v7228 = vsub.f32 %v7148, %v7184
        %v7229 = vsub.f32 %v7149, %v7187
        %v7230 = vsub.f32 %v7150, %v7187
        %v7231 = vsub.f32 %v7151, %v7190
        %v7232 = vsub.f32 %v7152, %v7190
        %v7233 = vsub.f32 %v7153, %v7193
        %v7234 = vsub.f32 %v7154, %v7193
        %v7235 = vsub.f32 %v7155, %v7196
        %v7236 = vsub.f32 %v7156, %v7196
        %v7237 = vsub.f32 %v7157, %v7199
        %v7238 = vsub.f32 %v7158, %v7199
        %v7239 = vsub.f32 %v7159, %v7202
        %v7240 = vsub.f32 %v7160, %v7202
        %v7241 = vsub.f32 %v7161, %v7205
        %v7242 = vsub.f32 %v7162, %v7205
        %v7243 = vsub.f32 %v7163, %v7208
        %v7244 = vsub.f32 %v7164, %v7208
        %v7245 = vsub.f32 %v7165, %v7211
        %v7246 = vsub.f32 %v7166, %v7211
        %v7247 = vsub.f32 %v7167, %v7214
        %v7248 = vsub.f32 %v7168, %v7214
        %v7249 = vsub.f32 %v7169, %v7217
        %v7250 = vsub.f32 %v7170, %v7217
        %v7251 = vsub.f32 %v7171, %v7220
        %v7252 = vsub.f32 %v7172, %v7220
        %v7253 = vmul.f32 %v7221, 1.442695
        %v7254 = vpow.pop %v7253
        %v7255 = vmul.f32 %v7222, 1.442695
        %v7256 = vpow.pop %v7255
        %v7257 = vmul.f32 %v7223, 1.442695
        %v7258 = vpow.pop %v7257
        %v7259 = vmul.f32 %v7224, 1.442695
        %v7260 = vpow.pop %v7259
        %v7261 = vmul.f32 %v7225, 1.442695
        %v7262 = vpow.pop %v7261
        %v7263 = vmul.f32 %v7226, 1.442695
        %v7264 = vpow.pop %v7263
        %v7265 = vmul.f32 %v7227, 1.442695
        %v7266 = vpow.pop %v7265
        %v7267 = vmul.f32 %v7228, 1.442695
        %v7268 = vpow.pop %v7267
        %v7269 = vmul.f32 %v7229, 1.442695
        %v7270 = vpow.pop %v7269
        %v7271 = vmul.f32 %v7230, 1.442695
        %v7272 = vpow.pop %v7271
        %v7273 = vmul.f32 %v7231, 1.442695
        %v7274 = vpow.pop %v7273
        %v7275 = vmul.f32 %v7232, 1.442695
        %v7276 = vpow.pop %v7275
        %v7277 = vmul.f32 %v7233, 1.442695
        %v7278 = vpow.pop %v7277
        %v7279 = vmul.f32 %v7234, 1.442695
        %v7280 = vpow.pop %v7279
        %v7281 = vmul.f32 %v7235, 1.442695
        %v7282 = vpow.pop %v7281
        %v7283 = vmul.f32 %v7236, 1.442695
        %v7284 = vpow.pop %v7283
        %v7285 = vmul.f32 %v7237, 1.442695
        %v7286 = vpow.pop %v7285
        %v7287 = vmul.f32 %v7238, 1.442695
        %v7288 = vpow.pop %v7287
        %v7289 = vmul.f32 %v7239, 1.442695
        %v7290 = vpow.pop %v7289
        %v7291 = vmul.f32 %v7240, 1.442695
        %v7292 = vpow.pop %v7291
        %v7293 = vmul.f32 %v7241, 1.442695
        %v7294 = vpow.pop %v7293
        %v7295 = vmul.f32 %v7242, 1.442695
        %v7296 = vpow.pop %v7295
        %v7297 = vmul.f32 %v7243, 1.442695
        %v7298 = vpow.pop %v7297
        %v7299 = vmul.f32 %v7244, 1.442695
        %v7300 = vpow.pop %v7299
        %v7301 = vmul.f32 %v7245, 1.442695
        %v7302 = vpow.pop %v7301
        %v7303 = vmul.f32 %v7246, 1.442695
        %v7304 = vpow.pop %v7303
        %v7305 = vmul.f32 %v7247, 1.442695
        %v7306 = vpow.pop %v7305
        %v7307 = vmul.f32 %v7248, 1.442695
        %v7308 = vpow.pop %v7307
        %v7309 = vmul.f32 %v7249, 1.442695
        %v7310 = vpow.pop %v7309
        %v7311 = vmul.f32 %v7250, 1.442695
        %v7312 = vpow.pop %v7311
        %v7313 = vmul.f32 %v7251, 1.442695
        %v7314 = vpow.pop %v7313
        %v7315 = vmul.f32 %v7252, 1.442695
        %v7316 = vpow.pop %v7315
        %v7317 = vsel %vm7109, %v7254, 0.0
        %v7318 = vsel %vm7110, %v7256, 0.0
        %v7319 = vsel %vm7111, %v7258, 0.0
        %v7320 = vsel %vm7112, %v7260, 0.0
        %v7321 = vsel %vm7113, %v7262, 0.0
        %v7322 = vsel %vm7114, %v7264, 0.0
        %v7323 = vsel %vm7115, %v7266, 0.0
        %v7324 = vsel %vm7116, %v7268, 0.0
        %v7325 = vsel %vm7117, %v7270, 0.0
        %v7326 = vsel %vm7118, %v7272, 0.0
        %v7327 = vsel %vm7119, %v7274, 0.0
        %v7328 = vsel %vm7120, %v7276, 0.0
        %v7329 = vsel %vm7121, %v7278, 0.0
        %v7330 = vsel %vm7122, %v7280, 0.0
        %v7331 = vsel %vm7123, %v7282, 0.0
        %v7332 = vsel %vm7124, %v7284, 0.0
        %v7333 = vsel %vm7125, %v7286, 0.0
        %v7334 = vsel %vm7126, %v7288, 0.0
        %v7335 = vsel %vm7127, %v7290, 0.0
        %v7336 = vsel %vm7128, %v7292, 0.0
        %v7337 = vsel %vm7129, %v7294, 0.0
        %v7338 = vsel %vm7130, %v7296, 0.0
        %v7339 = vsel %vm7131, %v7298, 0.0
        %v7340 = vsel %vm7132, %v7300, 0.0
        %v7341 = vsel %vm7133, %v7302, 0.0
        %v7342 = vsel %vm7134, %v7304, 0.0
        %v7343 = vsel %vm7135, %v7306, 0.0
        %v7344 = vsel %vm7136, %v7308, 0.0
        %v7345 = vsel %vm7137, %v7310, 0.0
        %v7346 = vsel %vm7138, %v7312, 0.0
        %v7347 = vsel %vm7139, %v7314, 0.0
        %v7348 = vsel %vm7140, %v7316, 0.0
        %v7349 = vadd.f32 %v7317, %v7318
        %7350 = vadd.xlane.f32.xlu0 %v7349
        %v7351 = vpop.xlane.xlu0 %7350
        %v7352 = vadd.f32 %v7319, %v7320
        %7353 = vadd.xlane.f32.xlu0 %v7352
        %v7354 = vpop.xlane.xlu0 %7353
        %v7355 = vadd.f32 %v7321, %v7322
        %7356 = vadd.xlane.f32.xlu0 %v7355
        %v7357 = vpop.xlane.xlu0 %7356
        %v7358 = vadd.f32 %v7323, %v7324
        %7359 = vadd.xlane.f32.xlu0 %v7358
        %v7360 = vpop.xlane.xlu0 %7359
        %v7361 = vadd.f32 %v7325, %v7326
        %7362 = vadd.xlane.f32.xlu0 %v7361
        %v7363 = vpop.xlane.xlu0 %7362
        %v7364 = vadd.f32 %v7327, %v7328
        %7365 = vadd.xlane.f32.xlu0 %v7364
        %v7366 = vpop.xlane.xlu0 %7365
        %v7367 = vadd.f32 %v7329, %v7330
        %7368 = vadd.xlane.f32.xlu0 %v7367
        %v7369 = vpop.xlane.xlu0 %7368
        %v7370 = vadd.f32 %v7331, %v7332
        %7371 = vadd.xlane.f32.xlu0 %v7370
        %v7372 = vpop.xlane.xlu0 %7371
        %v7373 = vadd.f32 %v7333, %v7334
        %7374 = vadd.xlane.f32.xlu0 %v7373
        %v7375 = vpop.xlane.xlu0 %7374
        %v7376 = vadd.f32 %v7335, %v7336
        %7377 = vadd.xlane.f32.xlu0 %v7376
        %v7378 = vpop.xlane.xlu0 %7377
        %v7379 = vadd.f32 %v7337, %v7338
        %7380 = vadd.xlane.f32.xlu0 %v7379
        %v7381 = vpop.xlane.xlu0 %7380
        %v7382 = vadd.f32 %v7339, %v7340
        %7383 = vadd.xlane.f32.xlu0 %v7382
        %v7384 = vpop.xlane.xlu0 %7383
        %v7385 = vadd.f32 %v7341, %v7342
        %7386 = vadd.xlane.f32.xlu0 %v7385
        %v7387 = vpop.xlane.xlu0 %7386
        %v7388 = vadd.f32 %v7343, %v7344
        %7389 = vadd.xlane.f32.xlu0 %v7388
        %v7390 = vpop.xlane.xlu0 %7389
        %v7391 = vadd.f32 %v7345, %v7346
        %7392 = vadd.xlane.f32.xlu0 %v7391
        %v7393 = vpop.xlane.xlu0 %7392
        %v7394 = vadd.f32 %v7347, %v7348
        %7395 = vadd.xlane.f32.xlu0 %v7394
        %v7396 = vpop.xlane.xlu0 %7395
        %v7397 = vadd.f32 %v7351, 1e-06
        %v7398 = vadd.f32 %v7354, 1e-06
        %v7399 = vadd.f32 %v7357, 1e-06
        %v7400 = vadd.f32 %v7360, 1e-06
        %v7401 = vadd.f32 %v7363, 1e-06
        %v7402 = vadd.f32 %v7366, 1e-06
        %v7403 = vadd.f32 %v7369, 1e-06
        %v7404 = vadd.f32 %v7372, 1e-06
        %v7405 = vadd.f32 %v7375, 1e-06
        %v7406 = vadd.f32 %v7378, 1e-06
        %v7407 = vadd.f32 %v7381, 1e-06
        %v7408 = vadd.f32 %v7384, 1e-06
        %v7409 = vadd.f32 %v7387, 1e-06
        %v7410 = vadd.f32 %v7390, 1e-06
        %v7411 = vadd.f32 %v7393, 1e-06
        %v7412 = vadd.f32 %v7396, 1e-06
        %v7413 = vrcp.pop %v7397
        %v7414 = vmul.f32 %v7397, %v7413
        %v7415 = vsub.f32 1.0, %v7414
        %v7416 = vmul.f32 %v7413, %v7415
        %v7417 = vadd.f32 %v7413, %v7416
        %vm7418 = vweird.f32 %v7397
        %vm7419 = vweird.f32 %v7413
        %vm7420 = vmor %vm7418, %vm7419
        %v7421 = vsel %vm7420, %v7413, %v7417
        %v7422 = vand.u32 2147483647, %v7397
        %vm7423 = vcmp.eq.f32.partialorder %v7422, 8.507059e+37
        %v7424 = vand.u32 %v7397, 2147483648
        %v7425 = vor.u32 1.1754944e-38, %v7424
        %v7426 = vsel %vm7423, %v7425, %v7421
        %v7427 = vmul.f32 1.0, %v7426
        %v7428 = vrcp.pop %v7398
        %v7429 = vmul.f32 %v7398, %v7428
        %v7430 = vsub.f32 1.0, %v7429
        %v7431 = vmul.f32 %v7428, %v7430
        %v7432 = vadd.f32 %v7428, %v7431
        %vm7433 = vweird.f32 %v7398
        %vm7434 = vweird.f32 %v7428
        %vm7435 = vmor %vm7433, %vm7434
        %v7436 = vsel %vm7435, %v7428, %v7432
        %v7437 = vand.u32 2147483647, %v7398
        %vm7438 = vcmp.eq.f32.partialorder %v7437, 8.507059e+37
        %v7439 = vand.u32 %v7398, 2147483648
        %v7440 = vor.u32 1.1754944e-38, %v7439
        %v7441 = vsel %vm7438, %v7440, %v7436
        %v7442 = vmul.f32 1.0, %v7441
        %v7443 = vrcp.pop %v7399
        %v7444 = vmul.f32 %v7399, %v7443
        %v7445 = vsub.f32 1.0, %v7444
        %v7446 = vmul.f32 %v7443, %v7445
        %v7447 = vadd.f32 %v7443, %v7446
        %vm7448 = vweird.f32 %v7399
        %vm7449 = vweird.f32 %v7443
        %vm7450 = vmor %vm7448, %vm7449
        %v7451 = vsel %vm7450, %v7443, %v7447
        %v7452 = vand.u32 2147483647, %v7399
        %vm7453 = vcmp.eq.f32.partialorder %v7452, 8.507059e+37
        %v7454 = vand.u32 %v7399, 2147483648
        %v7455 = vor.u32 1.1754944e-38, %v7454
        %v7456 = vsel %vm7453, %v7455, %v7451
        %v7457 = vmul.f32 1.0, %v7456
        %v7458 = vrcp.pop %v7400
        %v7459 = vmul.f32 %v7400, %v7458
        %v7460 = vsub.f32 1.0, %v7459
        %v7461 = vmul.f32 %v7458, %v7460
        %v7462 = vadd.f32 %v7458, %v7461
        %vm7463 = vweird.f32 %v7400
        %vm7464 = vweird.f32 %v7458
        %vm7465 = vmor %vm7463, %vm7464
        %v7466 = vsel %vm7465, %v7458, %v7462
        %v7467 = vand.u32 2147483647, %v7400
        %vm7468 = vcmp.eq.f32.partialorder %v7467, 8.507059e+37
        %v7469 = vand.u32 %v7400, 2147483648
        %v7470 = vor.u32 1.1754944e-38, %v7469
        %v7471 = vsel %vm7468, %v7470, %v7466
        %v7472 = vmul.f32 1.0, %v7471
        %v7473 = vrcp.pop %v7401
        %v7474 = vmul.f32 %v7401, %v7473
        %v7475 = vsub.f32 1.0, %v7474
        %v7476 = vmul.f32 %v7473, %v7475
        %v7477 = vadd.f32 %v7473, %v7476
        %vm7478 = vweird.f32 %v7401
        %vm7479 = vweird.f32 %v7473
        %vm7480 = vmor %vm7478, %vm7479
        %v7481 = vsel %vm7480, %v7473, %v7477
        %v7482 = vand.u32 2147483647, %v7401
        %vm7483 = vcmp.eq.f32.partialorder %v7482, 8.507059e+37
        %v7484 = vand.u32 %v7401, 2147483648
        %v7485 = vor.u32 1.1754944e-38, %v7484
        %v7486 = vsel %vm7483, %v7485, %v7481
        %v7487 = vmul.f32 1.0, %v7486
        %v7488 = vrcp.pop %v7402
        %v7489 = vmul.f32 %v7402, %v7488
        %v7490 = vsub.f32 1.0, %v7489
        %v7491 = vmul.f32 %v7488, %v7490
        %v7492 = vadd.f32 %v7488, %v7491
        %vm7493 = vweird.f32 %v7402
        %vm7494 = vweird.f32 %v7488
        %vm7495 = vmor %vm7493, %vm7494
        %v7496 = vsel %vm7495, %v7488, %v7492
        %v7497 = vand.u32 2147483647, %v7402
        %vm7498 = vcmp.eq.f32.partialorder %v7497, 8.507059e+37
        %v7499 = vand.u32 %v7402, 2147483648
        %v7500 = vor.u32 1.1754944e-38, %v7499
        %v7501 = vsel %vm7498, %v7500, %v7496
        %v7502 = vmul.f32 1.0, %v7501
        %v7503 = vrcp.pop %v7403
        %v7504 = vmul.f32 %v7403, %v7503
        %v7505 = vsub.f32 1.0, %v7504
        %v7506 = vmul.f32 %v7503, %v7505
        %v7507 = vadd.f32 %v7503, %v7506
        %vm7508 = vweird.f32 %v7403
        %vm7509 = vweird.f32 %v7503
        %vm7510 = vmor %vm7508, %vm7509
        %v7511 = vsel %vm7510, %v7503, %v7507
        %v7512 = vand.u32 2147483647, %v7403
        %vm7513 = vcmp.eq.f32.partialorder %v7512, 8.507059e+37
        %v7514 = vand.u32 %v7403, 2147483648
        %v7515 = vor.u32 1.1754944e-38, %v7514
        %v7516 = vsel %vm7513, %v7515, %v7511
        %v7517 = vmul.f32 1.0, %v7516
        %v7518 = vrcp.pop %v7404
        %v7519 = vmul.f32 %v7404, %v7518
        %v7520 = vsub.f32 1.0, %v7519
        %v7521 = vmul.f32 %v7518, %v7520
        %v7522 = vadd.f32 %v7518, %v7521
        %vm7523 = vweird.f32 %v7404
        %vm7524 = vweird.f32 %v7518
        %vm7525 = vmor %vm7523, %vm7524
        %v7526 = vsel %vm7525, %v7518, %v7522
        %v7527 = vand.u32 2147483647, %v7404
        %vm7528 = vcmp.eq.f32.partialorder %v7527, 8.507059e+37
        %v7529 = vand.u32 %v7404, 2147483648
        %v7530 = vor.u32 1.1754944e-38, %v7529
        %v7531 = vsel %vm7528, %v7530, %v7526
        %v7532 = vmul.f32 1.0, %v7531
        %v7533 = vrcp.pop %v7405
        %v7534 = vmul.f32 %v7405, %v7533
        %v7535 = vsub.f32 1.0, %v7534
        %v7536 = vmul.f32 %v7533, %v7535
        %v7537 = vadd.f32 %v7533, %v7536
        %vm7538 = vweird.f32 %v7405
        %vm7539 = vweird.f32 %v7533
        %vm7540 = vmor %vm7538, %vm7539
        %v7541 = vsel %vm7540, %v7533, %v7537
        %v7542 = vand.u32 2147483647, %v7405
        %vm7543 = vcmp.eq.f32.partialorder %v7542, 8.507059e+37
        %v7544 = vand.u32 %v7405, 2147483648
        %v7545 = vor.u32 1.1754944e-38, %v7544
        %v7546 = vsel %vm7543, %v7545, %v7541
        %v7547 = vmul.f32 1.0, %v7546
        %v7548 = vrcp.pop %v7406
        %v7549 = vmul.f32 %v7406, %v7548
        %v7550 = vsub.f32 1.0, %v7549
        %v7551 = vmul.f32 %v7548, %v7550
        %v7552 = vadd.f32 %v7548, %v7551
        %vm7553 = vweird.f32 %v7406
        %vm7554 = vweird.f32 %v7548
        %vm7555 = vmor %vm7553, %vm7554
        %v7556 = vsel %vm7555, %v7548, %v7552
        %v7557 = vand.u32 2147483647, %v7406
        %vm7558 = vcmp.eq.f32.partialorder %v7557, 8.507059e+37
        %v7559 = vand.u32 %v7406, 2147483648
        %v7560 = vor.u32 1.1754944e-38, %v7559
        %v7561 = vsel %vm7558, %v7560, %v7556
        %v7562 = vmul.f32 1.0, %v7561
        %v7563 = vrcp.pop %v7407
        %v7564 = vmul.f32 %v7407, %v7563
        %v7565 = vsub.f32 1.0, %v7564
        %v7566 = vmul.f32 %v7563, %v7565
        %v7567 = vadd.f32 %v7563, %v7566
        %vm7568 = vweird.f32 %v7407
        %vm7569 = vweird.f32 %v7563
        %vm7570 = vmor %vm7568, %vm7569
        %v7571 = vsel %vm7570, %v7563, %v7567
        %v7572 = vand.u32 2147483647, %v7407
        %vm7573 = vcmp.eq.f32.partialorder %v7572, 8.507059e+37
        %v7574 = vand.u32 %v7407, 2147483648
        %v7575 = vor.u32 1.1754944e-38, %v7574
        %v7576 = vsel %vm7573, %v7575, %v7571
        %v7577 = vmul.f32 1.0, %v7576
        %v7578 = vrcp.pop %v7408
        %v7579 = vmul.f32 %v7408, %v7578
        %v7580 = vsub.f32 1.0, %v7579
        %v7581 = vmul.f32 %v7578, %v7580
        %v7582 = vadd.f32 %v7578, %v7581
        %vm7583 = vweird.f32 %v7408
        %vm7584 = vweird.f32 %v7578
        %vm7585 = vmor %vm7583, %vm7584
        %v7586 = vsel %vm7585, %v7578, %v7582
        %v7587 = vand.u32 2147483647, %v7408
        %vm7588 = vcmp.eq.f32.partialorder %v7587, 8.507059e+37
        %v7589 = vand.u32 %v7408, 2147483648
        %v7590 = vor.u32 1.1754944e-38, %v7589
        %v7591 = vsel %vm7588, %v7590, %v7586
        %v7592 = vmul.f32 1.0, %v7591
        %v7593 = vrcp.pop %v7409
        %v7594 = vmul.f32 %v7409, %v7593
        %v7595 = vsub.f32 1.0, %v7594
        %v7596 = vmul.f32 %v7593, %v7595
        %v7597 = vadd.f32 %v7593, %v7596
        %vm7598 = vweird.f32 %v7409
        %vm7599 = vweird.f32 %v7593
        %vm7600 = vmor %vm7598, %vm7599
        %v7601 = vsel %vm7600, %v7593, %v7597
        %v7602 = vand.u32 2147483647, %v7409
        %vm7603 = vcmp.eq.f32.partialorder %v7602, 8.507059e+37
        %v7604 = vand.u32 %v7409, 2147483648
        %v7605 = vor.u32 1.1754944e-38, %v7604
        %v7606 = vsel %vm7603, %v7605, %v7601
        %v7607 = vmul.f32 1.0, %v7606
        %v7608 = vrcp.pop %v7410
        %v7609 = vmul.f32 %v7410, %v7608
        %v7610 = vsub.f32 1.0, %v7609
        %v7611 = vmul.f32 %v7608, %v7610
        %v7612 = vadd.f32 %v7608, %v7611
        %vm7613 = vweird.f32 %v7410
        %vm7614 = vweird.f32 %v7608
        %vm7615 = vmor %vm7613, %vm7614
        %v7616 = vsel %vm7615, %v7608, %v7612
        %v7617 = vand.u32 2147483647, %v7410
        %vm7618 = vcmp.eq.f32.partialorder %v7617, 8.507059e+37
        %v7619 = vand.u32 %v7410, 2147483648
        %v7620 = vor.u32 1.1754944e-38, %v7619
        %v7621 = vsel %vm7618, %v7620, %v7616
        %v7622 = vmul.f32 1.0, %v7621
        %v7623 = vrcp.pop %v7411
        %v7624 = vmul.f32 %v7411, %v7623
        %v7625 = vsub.f32 1.0, %v7624
        %v7626 = vmul.f32 %v7623, %v7625
        %v7627 = vadd.f32 %v7623, %v7626
        %vm7628 = vweird.f32 %v7411
        %vm7629 = vweird.f32 %v7623
        %vm7630 = vmor %vm7628, %vm7629
        %v7631 = vsel %vm7630, %v7623, %v7627
        %v7632 = vand.u32 2147483647, %v7411
        %vm7633 = vcmp.eq.f32.partialorder %v7632, 8.507059e+37
        %v7634 = vand.u32 %v7411, 2147483648
        %v7635 = vor.u32 1.1754944e-38, %v7634
        %v7636 = vsel %vm7633, %v7635, %v7631
        %v7637 = vmul.f32 1.0, %v7636
        %v7638 = vrcp.pop %v7412
        %v7639 = vmul.f32 %v7412, %v7638
        %v7640 = vsub.f32 1.0, %v7639
        %v7641 = vmul.f32 %v7638, %v7640
        %v7642 = vadd.f32 %v7638, %v7641
        %vm7643 = vweird.f32 %v7412
        %vm7644 = vweird.f32 %v7638
        %vm7645 = vmor %vm7643, %vm7644
        %v7646 = vsel %vm7645, %v7638, %v7642
        %v7647 = vand.u32 2147483647, %v7412
        %vm7648 = vcmp.eq.f32.partialorder %v7647, 8.507059e+37
        %v7649 = vand.u32 %v7412, 2147483648
        %v7650 = vor.u32 1.1754944e-38, %v7649
        %v7651 = vsel %vm7648, %v7650, %v7646
        %v7652 = vmul.f32 1.0, %v7651
        %v7653 = vmul.f32 %v7317, %v7427
        %v7654 = vmul.f32 %v7318, %v7427
        %v7655 = vmul.f32 %v7319, %v7442
        %v7656 = vmul.f32 %v7320, %v7442
        %v7657 = vmul.f32 %v7321, %v7457
        %v7658 = vmul.f32 %v7322, %v7457
        %v7659 = vmul.f32 %v7323, %v7472
        %v7660 = vmul.f32 %v7324, %v7472
        %v7661 = vmul.f32 %v7325, %v7487
        %v7662 = vmul.f32 %v7326, %v7487
        %v7663 = vmul.f32 %v7327, %v7502
        %v7664 = vmul.f32 %v7328, %v7502
        %v7665 = vmul.f32 %v7329, %v7517
        %v7666 = vmul.f32 %v7330, %v7517
        %v7667 = vmul.f32 %v7331, %v7532
        %v7668 = vmul.f32 %v7332, %v7532
        %v7669 = vmul.f32 %v7333, %v7547
        %v7670 = vmul.f32 %v7334, %v7547
        %v7671 = vmul.f32 %v7335, %v7562
        %v7672 = vmul.f32 %v7336, %v7562
        %v7673 = vmul.f32 %v7337, %v7577
        %v7674 = vmul.f32 %v7338, %v7577
        %v7675 = vmul.f32 %v7339, %v7592
        %v7676 = vmul.f32 %v7340, %v7592
        %v7677 = vmul.f32 %v7341, %v7607
        %v7678 = vmul.f32 %v7342, %v7607
        %v7679 = vmul.f32 %v7343, %v7622
        %v7680 = vmul.f32 %v7344, %v7622
        %v7681 = vmul.f32 %v7345, %v7637
        %v7682 = vmul.f32 %v7346, %v7637
        %v7683 = vmul.f32 %v7347, %v7652
        %v7684 = vmul.f32 %v7348, %v7652
        %7685 = vst [vmem:[%s432] sm:$0xff] %v7653
        %7686 = vst [vmem:[%s432 + $0x8] sm:$0xff] %v7654
        %7687 = vst [vmem:[%s432 + $0x10] sm:$0xff] %v7655
        %7688 = vst [vmem:[%s432 + $0x18] sm:$0xff] %v7656
        %7689 = vst [vmem:[%s432 + $0x20] sm:$0xff] %v7657
        %7690 = vst [vmem:[%s432 + $0x28] sm:$0xff] %v7658
        %7691 = vst [vmem:[%s432 + $0x30] sm:$0xff] %v7659
        %7692 = vst [vmem:[%s432 + $0x38] sm:$0xff] %v7660
        %7693 = vst [vmem:[%s432 + $0x40] sm:$0xff] %v7661
        %7694 = vst [vmem:[%s432 + $0x48] sm:$0xff] %v7662
        %7695 = vst [vmem:[%s432 + $0x50] sm:$0xff] %v7663
        %7696 = vst [vmem:[%s432 + $0x58] sm:$0xff] %v7664
        %7697 = vst [vmem:[%s432 + $0x60] sm:$0xff] %v7665
        %7698 = vst [vmem:[%s432 + $0x68] sm:$0xff] %v7666
        %7699 = vst [vmem:[%s432 + $0x70] sm:$0xff] %v7667
        %7700 = vst [vmem:[%s432 + $0x78] sm:$0xff] %v7668
        %7701 = vst [vmem:[%s432 + $0x80] sm:$0xff] %v7669
        %7702 = vst [vmem:[%s432 + $0x88] sm:$0xff] %v7670
        %7703 = vst [vmem:[%s432 + $0x90] sm:$0xff] %v7671
        %7704 = vst [vmem:[%s432 + $0x98] sm:$0xff] %v7672
        %7705 = vst [vmem:[%s432 + $0xa0] sm:$0xff] %v7673
        %7706 = vst [vmem:[%s432 + $0xa8] sm:$0xff] %v7674
        %7707 = vst [vmem:[%s432 + $0xb0] sm:$0xff] %v7675
        %7708 = vst [vmem:[%s432 + $0xb8] sm:$0xff] %v7676
        %7709 = vst [vmem:[%s432 + $0xc0] sm:$0xff] %v7677
        %7710 = vst [vmem:[%s432 + $0xc8] sm:$0xff] %v7678
        %7711 = vst [vmem:[%s432 + $0xd0] sm:$0xff] %v7679
        %7712 = vst [vmem:[%s432 + $0xd8] sm:$0xff] %v7680
        %7713 = vst [vmem:[%s432 + $0xe0] sm:$0xff] %v7681
        %7714 = vst [vmem:[%s432 + $0xe8] sm:$0xff] %v7682
        %7715 = vst [vmem:[%s432 + $0xf0] sm:$0xff] %v7683
        %7716 = vst [vmem:[%s432 + $0xf8] sm:$0xff] %v7684
        %7717 = vmatpush.xpose.msra.mxu0 %v7683
        %7718 = vmatpush.xpose.msra.mxu0 %v7681
        %7719 = vmatpush.xpose.msra.mxu0 %v7679
        %7720 = vmatpush.xpose.msra.mxu0 %v7677
        %7721 = vmatpush.xpose.msra.mxu0 %v7675
        %7722 = vmatpush.xpose.msra.mxu0 %v7673
        %7723 = vmatpush.xpose.msra.mxu0 %v7671
        %7724 = vmatpush.xpose.msra.mxu0 %v7669
        %7725 = vmatpush.xpose.msra.mxu0 %v7667
        %7726 = vmatpush.xpose.msra.mxu0 %v7665
        %7727 = vmatpush.xpose.msra.mxu0 %v7663
        %7728 = vmatpush.xpose.msra.mxu0 %v7661
        %7729 = vmatpush.xpose.msra.mxu0 %v7659
        %7730 = vmatpush.xpose.msra.mxu0 %v7657
        %7731 = vmatpush.xpose.msra.mxu0 %v7655
        %7732 = vmatpush.xpose.msra.mxu0 %v7653
        %7733 = vmatmul.f32.gmra.mxu0 %v434
        %v7734 = vpop.f32.mrf.mxu0
        %v7735 = vadd.f32 0.0, %v7734
        %7736 = vmatmul.f32.gmra.mxu0 %v436
        %v7737 = vpop.f32.mrf.mxu0
        %v7738 = vadd.f32 0.0, %v7737
        %7739 = vdwg.mxu0
        %7740 = vmatpush.xpose.msra.mxu0 %v7684
        %7741 = vmatpush.xpose.msra.mxu0 %v7682
        %7742 = vmatpush.xpose.msra.mxu0 %v7680
        %7743 = vmatpush.xpose.msra.mxu0 %v7678
        %7744 = vmatpush.xpose.msra.mxu0 %v7676
        %7745 = vmatpush.xpose.msra.mxu0 %v7674
        %7746 = vmatpush.xpose.msra.mxu0 %v7672
        %7747 = vmatpush.xpose.msra.mxu0 %v7670
        %7748 = vmatpush.xpose.msra.mxu0 %v7668
        %7749 = vmatpush.xpose.msra.mxu0 %v7666
        %7750 = vmatpush.xpose.msra.mxu0 %v7664
        %7751 = vmatpush.xpose.msra.mxu0 %v7662
        %7752 = vmatpush.xpose.msra.mxu0 %v7660
        %7753 = vmatpush.xpose.msra.mxu0 %v7658
        %7754 = vmatpush.xpose.msra.mxu0 %v7656
        %7755 = vmatpush.xpose.msra.mxu0 %v7654
        %7756 = vmatmul.f32.gmra.mxu0 %v435
        %v7757 = vpop.f32.mrf.mxu0
        %v7758 = vadd.f32 %v7735, %v7757
        %7759 = vmatmul.f32.gmra.mxu0 %v437
        %v7760 = vpop.f32.mrf.mxu0
        %v7761 = vadd.f32 %v7738, %v7760
        %7762 = vdwg.mxu0
        %7763 = vst [vmem:[%s425] sm:$0xff] %v7758
        %7764 = vst [vmem:[%s425 + $0x8] sm:$0xff] %v7761
        %s7765 = sand.u32 %s216, 1
        %s7766 = scalar_lea.sflag [#allocation5], %s7765
        %s7767 = sand.u32 %s216, 1
        %s7768 = smul.addr %s7767, 16
        %s7769 = scalar_lea.vmem [#allocation11], %s7768
        %s7770 = sand.u32 %s244, 1
        %s7771 = scalar_lea.sflag [#allocation13], %s7770
        %s7772 = sand.u32 %s244, 1
        %s7773 = smul.addr %s7772, 256
        %s7774 = scalar_lea.vmem [#allocation12], %s7773
        // Predicated region
        $region65: #{_lambda_.1} parent=47 // pred_check
          %p7775 = pneg %p226
        $region66: #{_lambda_.1} parent=47 // pred_check_branch
          %7777 = sbr.rel (%p7775) target = $region68
        $region67: #{_lambda_.1} parent=47 // pred_region
          %7779 = vsyncadd %s7766, 0
          %s7780 = smul.addr %s39, 4
          %s7781 = sadd.s32 %s40, %s7780
          %s7782 = smul.addr %s7781, 8
          %s7783 = scalar_lea.hbm %s7, %s7782
          %s7784 = sshll.u32 %s7769, 4
          %s7785 = int_to_ptr.vmem [resolvable:$true] %s7784
          %s7786 = sshll.u32 %s7783, 4
          %s7787 = int_to_ptr.hbm [resolvable:$true] %s7786
          %7792 = dma.vmem_to_hbm [thread:$0]  %s7785, 256, %s7787, %s7766, 128, 256, 8
        $region68: #{_lambda_.1} parent=47 // pred_fallthru
          _
        // Predicated region
        $region69: #{_lambda_.1} parent=47 // pred_check
          %p7793 = pneg %p254
        $region70: #{_lambda_.1} parent=47 // pred_check_branch
          %7795 = sbr.rel (%p7793) target = $region72
        $region71: #{_lambda_.1} parent=47 // pred_region
          %s7796 = smul.u32 16, %s40
          %7798 = vsyncadd %s7771, 0
          %s7799 = smul.addr %s7796, 2
          %s7800 = smul.addr %s39, 64
          %s7801 = sadd.s32 %s7799, %s7800
          %s7802 = smul.addr %s7801, 8
          %s7803 = scalar_lea.hbm %s8, %s7802
          %s7804 = sshll.u32 %s7774, 4
          %s7805 = int_to_ptr.vmem [resolvable:$true] %s7804
          %s7806 = sshll.u32 %s7803, 4
          %s7807 = int_to_ptr.hbm [resolvable:$true] %s7806
          %7812 = dma.vmem_to_hbm [thread:$0]  %s7805, 4096, %s7807, %s7771, 256, 256, 16
        $region72: #{_lambda_.1} parent=47 // pred_fallthru
          _
      $region48: #{_lambda_.1} parent=5 // pred_fallthru
        _
      %p7813 = scmp.le.s32.totalorder 2, %s30
      // Predicated region
      $region73: #{_lambda_.1} parent=5 // pred_check
        %p7814 = pneg %p7813
      $region74: #{_lambda_.1} parent=5 // pred_check_branch
        %7816 = sbr.rel (%p7814) target = $region76
      $region75: #{_lambda_.1} parent=5 // pred_region
        %s7817 = ssub.s32 %s30, 2
        // Predicated region
        $region77: #{_lambda_.1} parent=75 // pred_check
          %p7818 = pneg %p232
        $region78: #{_lambda_.1} parent=75 // pred_check_branch
          %7820 = sbr.rel (%p7818) target = $region80
        $region79: #{_lambda_.1} parent=75 // pred_region
          %s7821 = sand.u32 %s217, 1
          %s7822 = scalar_lea.sflag [#allocation5], %s7821
          %s7823 = sand.u32 %s217, 1
          %s7824 = smul.addr %s7823, 16
          %s7825 = scalar_lea.vmem [#allocation11], %s7824
          %7827 = dma.done %s7822, 256
        $region80: #{_lambda_.1} parent=75 // pred_fallthru
          _
        // Predicated region
        $region81: #{_lambda_.1} parent=75 // pred_check
          %p7828 = pneg %p260
        $region82: #{_lambda_.1} parent=75 // pred_check_branch
          %7830 = sbr.rel (%p7828) target = $region84
        $region83: #{_lambda_.1} parent=75 // pred_region
          %s7831 = sand.u32 %s245, 1
          %s7832 = scalar_lea.sflag [#allocation13], %s7831
          %s7833 = sand.u32 %s245, 1
          %s7834 = smul.addr %s7833, 256
          %s7835 = scalar_lea.vmem [#allocation12], %s7834
          %7837 = dma.done %s7832, 4096
        $region84: #{_lambda_.1} parent=75 // pred_fallthru
          _
      $region76: #{_lambda_.1} parent=5 // pred_fallthru
        _
    $region6: #{_lambda_.1} parent=1 // loop_footer
      %s34 = sadd.s32 1, %s30
    $region7: #{_lambda_.1} parent=1 // loop_footer_branch
      %29 = sbr.rel target = $region3
    $region8: #{_lambda_.1} parent=1 // loop_exit
      _
    %7838 = vsyncpa [#allocation4], 1
    %s7839 = scalar_lea.sflag [#allocation4], 1
    %7840 = vsyncpa %s7839, 1
    %7841 = vsyncpa [#allocation7], 1
    %s7842 = scalar_lea.sflag [#allocation7], 1
    %7843 = vsyncpa %s7842, 1
    %7844 = vsyncpa [#allocation10], 1
    %7845 = vsyncpa [#allocation5], 1
    %s7846 = scalar_lea.sflag [#allocation5], 1
    %7847 = vsyncpa %s7846, 1
    %7848 = vsyncpa [#allocation13], 1
    %s7849 = scalar_lea.sflag [#allocation13], 1
    %7850 = vsyncpa %s7849, 1

</llo_original>
